<compile_context>
chip_gen: v6e
topology: v6e:2x2x1
jax: 0.10.0
libtpu: 0.0.40
codegen_flags: <defaults>
</compile_context>

<pallas_src>
import functools

import jax
import jax.numpy as jnp
from jax.experimental import pallas as pl
from jax.experimental.pallas import tpu as pltpu


# ----------------------------- Pallas kernel -------------------------------
def vae_kernel(
    x_ref, eps_ref,
    w1_ref, b1_ref, w2_ref, b2_ref,
    w3_ref, b3_ref,                      # fused + lane-padded [fc31 | fc32] head
    w4_ref, b4_ref, w5_ref, b5_ref, w6_ref, b6_ref,
    recon_ref, mulv_ref,
):
    z_dim = eps_ref.shape[-1]

    # ---- encoder (bf16 operands on the MXU, f32 accumulation) ----
    x = x_ref[...]                                            # already bf16
    h = jnp.dot(x, w1_ref[...], preferred_element_type=jnp.float32) + b1_ref[...]
    h = jnp.maximum(h, 0.0)                                   # relu(fc1)
    h = jnp.dot(h.astype(jnp.bfloat16), w2_ref[...],
                preferred_element_type=jnp.float32) + b2_ref[...]
    h = jnp.maximum(h, 0.0)                                   # relu(fc2)

    # fused mu / log_var head: one matmul, padded to 128 lanes
    mulv = jnp.dot(h.astype(jnp.bfloat16), w3_ref[...],
                   preferred_element_type=jnp.float32) + b3_ref[...]
    mu = mulv[:, :z_dim]
    log_var = mulv[:, z_dim:2 * z_dim]

    # ---- sampling (reparameterization trick, f32 elementwise / EUP exp) ----
    std = jnp.exp(0.5 * log_var)
    z = eps_ref[...] * std + mu

    # ---- decoder / generator ----
    g = jnp.dot(z.astype(jnp.bfloat16), w4_ref[...],
                preferred_element_type=jnp.float32) + b4_ref[...]
    g = jnp.maximum(g, 0.0)                                   # relu(fc4)
    g = jnp.dot(g.astype(jnp.bfloat16), w5_ref[...],
                preferred_element_type=jnp.float32) + b5_ref[...]
    g = jnp.maximum(g, 0.0)                                   # relu(fc5)
    logits = jnp.dot(g.astype(jnp.bfloat16), w6_ref[...],
                     preferred_element_type=jnp.float32) + b6_ref[...]
    recon = jax.nn.sigmoid(logits)                            # sigmoid(fc6)

    recon_ref[...] = recon.astype(recon_ref.dtype)            # bf16 writeback
    mulv_ref[...] = mulv.astype(mulv_ref.dtype)               # f32, lane-dense


# ------------------------------ wrapper -------------------------------------
@functools.partial(jax.jit, static_argnames=("x_dim", "tb"))
def vae_forward(x_img, eps, params, *, x_dim=784, tb=256):
    # x.view(-1, 784) -> bf16 (kernel matmuls are bf16 on the MXU anyway)
    x = x_img.reshape(-1, x_dim).astype(jnp.bfloat16)
    B = x.shape[0]
    z_dim = params["w31"].shape[1]
    h1 = params["w1"].shape[1]
    h2 = params["w2"].shape[1]

    # lane-dense pixel dim: 784 -> 896 (= 7*128)
    x_pad = pl.cdiv(x_dim, 128) * 128
    pad = x_pad - x_dim

    # lane-dense fused mu/logvar head: 2*z_dim (=64) -> 128
    head_pad = max(128, pl.cdiv(2 * z_dim, 128) * 128)

    # batch tile: clamp to (padded) batch so tiny batches are not blown up,
    # then pad batch to a multiple of the tile
    tb_eff = max(8, min(tb, pl.cdiv(B, 8) * 8))
    b_pad = pl.cdiv(B, tb_eff) * tb_eff
    x = jnp.pad(x, ((0, b_pad - B), (0, pad)))
    eps_p = jnp.pad(eps.astype(jnp.float32), ((0, b_pad - B), (0, 0)))

    # bf16 weights (halves resident-weight DMA); f32 biases; fused/padded head
    w1 = jnp.pad(params["w1"], ((0, pad), (0, 0))).astype(jnp.bfloat16)
    b1 = params["b1"]
    w2 = params["w2"].astype(jnp.bfloat16)
    b2 = params["b2"]
    w3 = jnp.pad(jnp.concatenate([params["w31"], params["w32"]], axis=1),
                 ((0, 0), (0, head_pad - 2 * z_dim))).astype(jnp.bfloat16)
    b3 = jnp.pad(jnp.concatenate([params["b31"], params["b32"]], axis=1),
                 ((0, 0), (0, head_pad - 2 * z_dim)))
    w4 = params["w4"].astype(jnp.bfloat16)
    b4 = params["b4"]
    w5 = params["w5"].astype(jnp.bfloat16)
    b5 = params["b5"]
    w6 = jnp.pad(params["w6"], ((0, 0), (0, pad))).astype(jnp.bfloat16)
    b6 = jnp.pad(params["b6"], ((0, 0), (0, pad)))

    weights = (w1, b1, w2, b2, w3, b3, w4, b4, w5, b5, w6, b6)

    # per-batch-tile specs (pipelined) + weight-resident specs (DMA'd once)
    tile_specs = [
        pl.BlockSpec((tb_eff, x_pad), lambda i: (i, 0)),      # x (bf16)
        pl.BlockSpec((tb_eff, z_dim), lambda i: (i, 0)),      # eps (f32)
    ]
    weight_specs = [pl.BlockSpec(w.shape, lambda i: (0, 0)) for w in weights]

    flops = 2 * b_pad * (x_pad * h1 + h1 * h2 + h2 * head_pad
                         + z_dim * h2 + h2 * h1 + h1 * x_pad)
    bytes_accessed = (
        2 * (x_pad * h1 + h1 * h2 + h2 * head_pad
             + z_dim * h2 + h2 * h1 + h1 * x_pad)             # bf16 weights
        + 4 * (h1 + h2 + head_pad + h2 + h1 + x_pad)          # f32 biases
        + 2 * b_pad * x_pad + 4 * b_pad * z_dim               # inputs (x bf16, eps f32)
        + 2 * b_pad * x_pad + 4 * b_pad * head_pad            # outputs (recon bf16, mulv f32)
    )

    # explicit scoped-VMEM limit only when we'd exceed the v5e 16 MiB default
    tile_bytes = 2 * tb_eff * (2 * x_pad + 4 * z_dim + 2 * x_pad + 4 * head_pad)
    weight_bytes = 2 * sum(int(w.size) * w.dtype.itemsize for w in weights)
    vmem_needed = tile_bytes + weight_bytes
    compiler_kwargs = dict(dimension_semantics=("parallel",))
    if vmem_needed > 16 * 1024 * 1024:
        compiler_kwargs["vmem_limit_bytes"] = min(
            int(vmem_needed * 1.5), 64 * 1024 * 1024)

    recon_p, mulv = pl.pallas_call(
        vae_kernel,
        grid=(b_pad // tb_eff,),
        in_specs=tile_specs + weight_specs,
        out_specs=(
            pl.BlockSpec((tb_eff, x_pad), lambda i: (i, 0)),
            pl.BlockSpec((tb_eff, head_pad), lambda i: (i, 0)),
        ),
        out_shape=(
            jax.ShapeDtypeStruct((b_pad, x_pad), jnp.bfloat16),
            jax.ShapeDtypeStruct((b_pad, head_pad), jnp.float32),
        ),
        compiler_params=pltpu.CompilerParams(**compiler_kwargs),
        cost_estimate=pl.CostEstimate(
            flops=flops,
            transcendentals=b_pad * (z_dim + x_pad),
            bytes_accessed=bytes_accessed,
        ),
    )(x, eps_p, *weights)

    # slice padding off; recon back to f32 (bf16 writeback is a numerics tradeoff)
    recon = recon_p[:B, :x_dim].astype(jnp.float32)
    mu = mulv[:B, :z_dim]
    log_var = mulv[:B, z_dim:2 * z_dim]
    return recon, mu, log_var


# --------------------------- pure-JAX reference ------------------------------
def vae_reference(x_img, eps, params, x_dim=784):
    x = x_img.reshape(-1, x_dim).astype(jnp.float32)
    h = jax.nn.relu(x @ params["w1"] + params["b1"])
    h = jax.nn.relu(h @ params["w2"] + params["b2"])
    mu = h @ params["w31"] + params["b31"]
    log_var = h @ params["w32"] + params["b32"]
    std = jnp.exp(0.5 * log_var)
    z = eps * std + mu
    g = jax.nn.relu(z @ params["w4"] + params["b4"])
    g = jax.nn.relu(g @ params["w5"] + params["b5"])
    recon = jax.nn.sigmoid(g @ params["w6"] + params["b6"])
    return recon, mu, log_var


# --------------------------- parameter init ----------------------------------
def init_linear(key, fan_in, fan_out):
    # PyTorch-like uniform(-1/sqrt(fan_in), 1/sqrt(fan_in))
    kw, kb = jax.random.split(key)
    bound = 1.0 / jnp.sqrt(float(fan_in))
    w = jax.random.uniform(kw, (fan_in, fan_out), jnp.float32, -bound, bound)
    b = jax.random.uniform(kb, (1, fan_out), jnp.float32, -bound, bound)
    return w, b


def init_vae_params(key, x_dim, h_dim1, h_dim2, z_dim):
    keys = jax.random.split(key, 7)
    p = {}
    p["w1"], p["b1"] = init_linear(keys[0], x_dim, h_dim1)     # fc1
    p["w2"], p["b2"] = init_linear(keys[1], h_dim1, h_dim2)    # fc2
    p["w31"], p["b31"] = init_linear(keys[2], h_dim2, z_dim)   # fc31 (mu)
    p["w32"], p["b32"] = init_linear(keys[3], h_dim2, z_dim)   # fc32 (log_var)
    p["w4"], p["b4"] = init_linear(keys[4], z_dim, h_dim2)     # fc4
    p["w5"], p["b5"] = init_linear(keys[5], h_dim2, h_dim1)    # fc5
    p["w6"], p["b6"] = init_linear(keys[6], h_dim1, x_dim)     # fc6
    return p


# ------------------------------- main ----------------------------------------
if __name__ == "__main__":
    x_dim, h_dim1, h_dim2, z_dim = 784, 128, 64, 32
    B = 512       # two grid steps at tb=256 (exercises batch pipeline / megacore)

    key = jax.random.PRNGKey(0)
    k_params, k_x, k_eps = jax.random.split(key, 3)

    params = init_vae_params(k_params, x_dim, h_dim1, h_dim2, z_dim)

    # MNIST-like input (N, C, H, W) = (B, 1, 28, 28); forward flattens to (B, 784)
    x_img = jax.random.uniform(k_x, (B, 1, 28, 28), jnp.float32)
    # eps ~ N(0, 1), generated outside the kernel for determinism
    eps = jax.random.normal(k_eps, (B, z_dim), jnp.float32)

    recon, mu, log_var = vae_forward(x_img, eps, params, x_dim=x_dim, tb=256)
    jax.block_until_ready((recon, mu, log_var))

    assert recon.shape == (B, x_dim)
    assert mu.shape == (B, z_dim)
    assert log_var.shape == (B, z_dim)
    assert bool(jnp.all(jnp.isfinite(recon)))
    assert bool(jnp.all((recon >= 0.0) & (recon <= 1.0)))

    # numerics vs. f32 reference (bf16 weight/activation casts -> loose tol)
    recon_r, mu_r, lv_r = vae_reference(x_img, eps, params, x_dim=x_dim)
    assert float(jnp.max(jnp.abs(recon - recon_r))) < 5e-2
    assert float(jnp.max(jnp.abs(mu - mu_r))) < 5e-2
    assert float(jnp.max(jnp.abs(log_var - lv_r))) < 5e-2

    print("KERNEL_OK")
</pallas_src>

<mosaic_0001>
module attributes {stable_mosaic.version = 11 : i64} {
  func.func @vae_kernel(%arg0: i32, %arg1: memref<256x896xbf16, #tpu.memory_space<vmem>>, %arg2: memref<256x32xf32, #tpu.memory_space<vmem>>, %arg3: memref<896x128xbf16, #tpu.memory_space<vmem>>, %arg4: memref<1x128xf32, #tpu.memory_space<vmem>>, %arg5: memref<128x64xbf16, #tpu.memory_space<vmem>>, %arg6: memref<1x64xf32, #tpu.memory_space<vmem>>, %arg7: memref<64x128xbf16, #tpu.memory_space<vmem>>, %arg8: memref<1x128xf32, #tpu.memory_space<vmem>>, %arg9: memref<32x64xbf16, #tpu.memory_space<vmem>>, %arg10: memref<1x64xf32, #tpu.memory_space<vmem>>, %arg11: memref<64x128xbf16, #tpu.memory_space<vmem>>, %arg12: memref<1x128xf32, #tpu.memory_space<vmem>>, %arg13: memref<128x896xbf16, #tpu.memory_space<vmem>>, %arg14: memref<1x896xf32, #tpu.memory_space<vmem>>, %arg15: memref<256x896xbf16, #tpu.memory_space<vmem>>, %arg16: memref<256x128xf32, #tpu.memory_space<vmem>>) attributes {dimension_semantics = [#tpu.dimension_semantics<parallel>], iteration_bounds = array<i64: 2>, scalar_prefetch = 0 : i64, scratch_operands = 0 : i64, tpu.core_type = #tpu.core_type<tc>, window_params = [{transform_indices = @transform_0, window_bounds = array<i64: 256, 896>}, {transform_indices = @transform_1, window_bounds = array<i64: 256, 32>}, {pipeline_mode = #tpu.pipeline_mode<synchronous>, transform_indices = @transform_2, window_bounds = array<i64: 896, 128>}, {pipeline_mode = #tpu.pipeline_mode<synchronous>, transform_indices = @transform_3, window_bounds = array<i64: 1, 128>}, {pipeline_mode = #tpu.pipeline_mode<synchronous>, transform_indices = @transform_4, window_bounds = array<i64: 128, 64>}, {pipeline_mode = #tpu.pipeline_mode<synchronous>, transform_indices = @transform_5, window_bounds = array<i64: 1, 64>}, {pipeline_mode = #tpu.pipeline_mode<synchronous>, transform_indices = @transform_6, window_bounds = array<i64: 64, 128>}, {pipeline_mode = #tpu.pipeline_mode<synchronous>, transform_indices = @transform_7, window_bounds = array<i64: 1, 128>}, {pipeline_mode = #tpu.pipeline_mode<synchronous>, transform_indices = @transform_8, window_bounds = array<i64: 32, 64>}, {pipeline_mode = #tpu.pipeline_mode<synchronous>, transform_indices = @transform_9, window_bounds = array<i64: 1, 64>}, {pipeline_mode = #tpu.pipeline_mode<synchronous>, transform_indices = @transform_10, window_bounds = array<i64: 64, 128>}, {pipeline_mode = #tpu.pipeline_mode<synchronous>, transform_indices = @transform_11, window_bounds = array<i64: 1, 128>}, {pipeline_mode = #tpu.pipeline_mode<synchronous>, transform_indices = @transform_12, window_bounds = array<i64: 128, 896>}, {pipeline_mode = #tpu.pipeline_mode<synchronous>, transform_indices = @transform_13, window_bounds = array<i64: 1, 896>}, {transform_indices = @transform_14, window_bounds = array<i64: 256, 896>}, {transform_indices = @transform_15, window_bounds = array<i64: 256, 128>}]} {
    %c0 = arith.constant 0 : index
    %c0_0 = arith.constant 0 : index
    %0 = vector.load %arg1[%c0, %c0_0] : memref<256x896xbf16, #tpu.memory_space<vmem>>, vector<256x896xbf16>
    %c0_1 = arith.constant 0 : index
    %c0_2 = arith.constant 0 : index
    %1 = vector.load %arg3[%c0_1, %c0_2] : memref<896x128xbf16, #tpu.memory_space<vmem>>, vector<896x128xbf16>
    %cst = arith.constant dense<0.000000e+00> : vector<256x128xf32>
    %2 = tpu.matmul %0, %1, %cst {dimension_numbers = #tpu.dot_dimension_numbers<[1], [0], [0], [1], [0, 0, 1, 1], [], []>} : vector<256x896xbf16>, vector<896x128xbf16>, vector<256x128xf32> -> vector<256x128xf32>
    %c0_3 = arith.constant 0 : index
    %c0_4 = arith.constant 0 : index
    %3 = vector.load %arg4[%c0_3, %c0_4] : memref<1x128xf32, #tpu.memory_space<vmem>>, vector<1x128xf32>
    %4 = vector.broadcast %3 : vector<1x128xf32> to vector<256x128xf32>
    %5 = arith.addf %2, %4 : vector<256x128xf32>
    %cst_5 = arith.constant 0.000000e+00 : f32
    %6 = vector.broadcast %cst_5 : f32 to vector<256x128xf32>
    %7 = arith.maximumf %5, %6 : vector<256x128xf32>
    %8 = arith.truncf %7 : vector<256x128xf32> to vector<256x128xbf16>
    %c0_6 = arith.constant 0 : index
    %c0_7 = arith.constant 0 : index
    %9 = vector.load %arg5[%c0_6, %c0_7] : memref<128x64xbf16, #tpu.memory_space<vmem>>, vector<128x64xbf16>
    %cst_8 = arith.constant dense<0.000000e+00> : vector<256x64xf32>
    %10 = tpu.matmul %8, %9, %cst_8 {dimension_numbers = #tpu.dot_dimension_numbers<[1], [0], [0], [1], [0, 0, 1, 1], [], []>} : vector<256x128xbf16>, vector<128x64xbf16>, vector<256x64xf32> -> vector<256x64xf32>
    %c0_9 = arith.constant 0 : index
    %c0_10 = arith.constant 0 : index
    %11 = vector.load %arg6[%c0_9, %c0_10] : memref<1x64xf32, #tpu.memory_space<vmem>>, vector<1x64xf32>
    %12 = vector.broadcast %11 : vector<1x64xf32> to vector<256x64xf32>
    %13 = arith.addf %10, %12 : vector<256x64xf32>
    %cst_11 = arith.constant 0.000000e+00 : f32
    %14 = vector.broadcast %cst_11 : f32 to vector<256x64xf32>
    %15 = arith.maximumf %13, %14 : vector<256x64xf32>
    %16 = arith.truncf %15 : vector<256x64xf32> to vector<256x64xbf16>
    %c0_12 = arith.constant 0 : index
    %c0_13 = arith.constant 0 : index
    %17 = vector.load %arg7[%c0_12, %c0_13] : memref<64x128xbf16, #tpu.memory_space<vmem>>, vector<64x128xbf16>
    %cst_14 = arith.constant dense<0.000000e+00> : vector<256x128xf32>
    %18 = tpu.matmul %16, %17, %cst_14 {dimension_numbers = #tpu.dot_dimension_numbers<[1], [0], [0], [1], [0, 0, 1, 1], [], []>} : vector<256x64xbf16>, vector<64x128xbf16>, vector<256x128xf32> -> vector<256x128xf32>
    %c0_15 = arith.constant 0 : index
    %c0_16 = arith.constant 0 : index
    %19 = vector.load %arg8[%c0_15, %c0_16] : memref<1x128xf32, #tpu.memory_space<vmem>>, vector<1x128xf32>
    %20 = vector.broadcast %19 : vector<1x128xf32> to vector<256x128xf32>
    %21 = arith.addf %18, %20 : vector<256x128xf32>
    %22 = vector.extract_strided_slice %21 {offsets = [0, 0], sizes = [256, 32], strides = [1, 1]} : vector<256x128xf32> to vector<256x32xf32>
    %23 = vector.extract_strided_slice %21 {offsets = [0, 32], sizes = [256, 32], strides = [1, 1]} : vector<256x128xf32> to vector<256x32xf32>
    %cst_17 = arith.constant 5.000000e-01 : f32
    %24 = vector.broadcast %cst_17 : f32 to vector<256x32xf32>
    %25 = arith.mulf %24, %23 : vector<256x32xf32>
    %26 = math.exp %25 : vector<256x32xf32>
    %c0_18 = arith.constant 0 : index
    %c0_19 = arith.constant 0 : index
    %27 = vector.load %arg2[%c0_18, %c0_19] : memref<256x32xf32, #tpu.memory_space<vmem>>, vector<256x32xf32>
    %28 = arith.mulf %27, %26 : vector<256x32xf32>
    %29 = arith.addf %28, %22 : vector<256x32xf32>
    %30 = arith.truncf %29 : vector<256x32xf32> to vector<256x32xbf16>
    %c0_20 = arith.constant 0 : index
    %c0_21 = arith.constant 0 : index
    %31 = vector.load %arg9[%c0_20, %c0_21] : memref<32x64xbf16, #tpu.memory_space<vmem>>, vector<32x64xbf16>
    %cst_22 = arith.constant dense<0.000000e+00> : vector<256x64xf32>
    %32 = tpu.matmul %30, %31, %cst_22 {dimension_numbers = #tpu.dot_dimension_numbers<[1], [0], [0], [1], [0, 0, 1, 1], [], []>} : vector<256x32xbf16>, vector<32x64xbf16>, vector<256x64xf32> -> vector<256x64xf32>
    %c0_23 = arith.constant 0 : index
    %c0_24 = arith.constant 0 : index
    %33 = vector.load %arg10[%c0_23, %c0_24] : memref<1x64xf32, #tpu.memory_space<vmem>>, vector<1x64xf32>
    %34 = vector.broadcast %33 : vector<1x64xf32> to vector<256x64xf32>
    %35 = arith.addf %32, %34 : vector<256x64xf32>
    %cst_25 = arith.constant 0.000000e+00 : f32
    %36 = vector.broadcast %cst_25 : f32 to vector<256x64xf32>
    %37 = arith.maximumf %35, %36 : vector<256x64xf32>
    %38 = arith.truncf %37 : vector<256x64xf32> to vector<256x64xbf16>
    %c0_26 = arith.constant 0 : index
    %c0_27 = arith.constant 0 : index
    %39 = vector.load %arg11[%c0_26, %c0_27] : memref<64x128xbf16, #tpu.memory_space<vmem>>, vector<64x128xbf16>
    %cst_28 = arith.constant dense<0.000000e+00> : vector<256x128xf32>
    %40 = tpu.matmul %38, %39, %cst_28 {dimension_numbers = #tpu.dot_dimension_numbers<[1], [0], [0], [1], [0, 0, 1, 1], [], []>} : vector<256x64xbf16>, vector<64x128xbf16>, vector<256x128xf32> -> vector<256x128xf32>
    %c0_29 = arith.constant 0 : index
    %c0_30 = arith.constant 0 : index
    %41 = vector.load %arg12[%c0_29, %c0_30] : memref<1x128xf32, #tpu.memory_space<vmem>>, vector<1x128xf32>
    %42 = vector.broadcast %41 : vector<1x128xf32> to vector<256x128xf32>
    %43 = arith.addf %40, %42 : vector<256x128xf32>
    %cst_31 = arith.constant 0.000000e+00 : f32
    %44 = vector.broadcast %cst_31 : f32 to vector<256x128xf32>
    %45 = arith.maximumf %43, %44 : vector<256x128xf32>
    %46 = arith.truncf %45 : vector<256x128xf32> to vector<256x128xbf16>
    %c0_32 = arith.constant 0 : index
    %c0_33 = arith.constant 0 : index
    %47 = vector.load %arg13[%c0_32, %c0_33] : memref<128x896xbf16, #tpu.memory_space<vmem>>, vector<128x896xbf16>
    %cst_34 = arith.constant dense<0.000000e+00> : vector<256x896xf32>
    %48 = tpu.matmul %46, %47, %cst_34 {dimension_numbers = #tpu.dot_dimension_numbers<[1], [0], [0], [1], [0, 0, 1, 1], [], []>} : vector<256x128xbf16>, vector<128x896xbf16>, vector<256x896xf32> -> vector<256x896xf32>
    %c0_35 = arith.constant 0 : index
    %c0_36 = arith.constant 0 : index
    %49 = vector.load %arg14[%c0_35, %c0_36] : memref<1x896xf32, #tpu.memory_space<vmem>>, vector<1x896xf32>
    %50 = vector.broadcast %49 : vector<1x896xf32> to vector<256x896xf32>
    %51 = arith.addf %48, %50 : vector<256x896xf32>
    %52 = arith.negf %51 : vector<256x896xf32>
    %53 = math.exp %52 : vector<256x896xf32>
    %cst_37 = arith.constant 1.000000e+00 : f32
    %54 = vector.broadcast %cst_37 : f32 to vector<256x896xf32>
    %55 = arith.addf %54, %53 : vector<256x896xf32>
    %56 = arith.divf %54, %55 : vector<256x896xf32>
    %57 = arith.truncf %56 : vector<256x896xf32> to vector<256x896xbf16>
    %c0_38 = arith.constant 0 : index
    %c0_39 = arith.constant 0 : index
    %58 = vector.load %arg15[%c0_38, %c0_39] : memref<256x896xbf16, #tpu.memory_space<vmem>>, vector<256x896xbf16>
    tpu.vector_store %arg15[%c0_38, %c0_39], %57 {strides = array<i32>} : memref<256x896xbf16, #tpu.memory_space<vmem>>, vector<256x896xbf16>,
    %c0_40 = arith.constant 0 : index
    %c0_41 = arith.constant 0 : index
    %59 = vector.load %arg16[%c0_40, %c0_41] : memref<256x128xf32, #tpu.memory_space<vmem>>, vector<256x128xf32>
    tpu.vector_store %arg16[%c0_40, %c0_41], %21 {strides = array<i32>} : memref<256x128xf32, #tpu.memory_space<vmem>>, vector<256x128xf32>,
    return
  }
  func.func @transform_0(%arg0: i32) -> (i32, i32) {
    %c0_i32 = arith.constant 0 : i32
    %c0_i32_0 = arith.constant 0 : i32
    return %arg0, %c0_i32 : i32, i32
  }
  func.func @transform_1(%arg0: i32) -> (i32, i32) {
    %c0_i32 = arith.constant 0 : i32
    %c0_i32_0 = arith.constant 0 : i32
    return %arg0, %c0_i32 : i32, i32
  }
  func.func @transform_2(%arg0: i32) -> (i32, i32) {
    %c0_i32 = arith.constant 0 : i32
    %c0_i32_0 = arith.constant 0 : i32
    %c0_i32_1 = arith.constant 0 : i32
    return %c0_i32, %c0_i32_0 : i32, i32
  }
  func.func @transform_3(%arg0: i32) -> (i32, i32) {
    %c0_i32 = arith.constant 0 : i32
    %c0_i32_0 = arith.constant 0 : i32
    %c0_i32_1 = arith.constant 0 : i32
    return %c0_i32, %c0_i32_0 : i32, i32
  }
  func.func @transform_4(%arg0: i32) -> (i32, i32) {
    %c0_i32 = arith.constant 0 : i32
    %c0_i32_0 = arith.constant 0 : i32
    %c0_i32_1 = arith.constant 0 : i32
    return %c0_i32, %c0_i32_0 : i32, i32
  }
  func.func @transform_5(%arg0: i32) -> (i32, i32) {
    %c0_i32 = arith.constant 0 : i32
    %c0_i32_0 = arith.constant 0 : i32
    %c0_i32_1 = arith.constant 0 : i32
    return %c0_i32, %c0_i32_0 : i32, i32
  }
  func.func @transform_6(%arg0: i32) -> (i32, i32) {
    %c0_i32 = arith.constant 0 : i32
    %c0_i32_0 = arith.constant 0 : i32
    %c0_i32_1 = arith.constant 0 : i32
    return %c0_i32, %c0_i32_0 : i32, i32
  }
  func.func @transform_7(%arg0: i32) -> (i32, i32) {
    %c0_i32 = arith.constant 0 : i32
    %c0_i32_0 = arith.constant 0 : i32
    %c0_i32_1 = arith.constant 0 : i32
    return %c0_i32, %c0_i32_0 : i32, i32
  }
  func.func @transform_8(%arg0: i32) -> (i32, i32) {
    %c0_i32 = arith.constant 0 : i32
    %c0_i32_0 = arith.constant 0 : i32
    %c0_i32_1 = arith.constant 0 : i32
    return %c0_i32, %c0_i32_0 : i32, i32
  }
  func.func @transform_9(%arg0: i32) -> (i32, i32) {
    %c0_i32 = arith.constant 0 : i32
    %c0_i32_0 = arith.constant 0 : i32
    %c0_i32_1 = arith.constant 0 : i32
    return %c0_i32, %c0_i32_0 : i32, i32
  }
  func.func @transform_10(%arg0: i32) -> (i32, i32) {
    %c0_i32 = arith.constant 0 : i32
    %c0_i32_0 = arith.constant 0 : i32
    %c0_i32_1 = arith.constant 0 : i32
    return %c0_i32, %c0_i32_0 : i32, i32
  }
  func.func @transform_11(%arg0: i32) -> (i32, i32) {
    %c0_i32 = arith.constant 0 : i32
    %c0_i32_0 = arith.constant 0 : i32
    %c0_i32_1 = arith.constant 0 : i32
    return %c0_i32, %c0_i32_0 : i32, i32
  }
  func.func @transform_12(%arg0: i32) -> (i32, i32) {
    %c0_i32 = arith.constant 0 : i32
    %c0_i32_0 = arith.constant 0 : i32
    %c0_i32_1 = arith.constant 0 : i32
    return %c0_i32, %c0_i32_0 : i32, i32
  }
  func.func @transform_13(%arg0: i32) -> (i32, i32) {
    %c0_i32 = arith.constant 0 : i32
    %c0_i32_0 = arith.constant 0 : i32
    %c0_i32_1 = arith.constant 0 : i32
    return %c0_i32, %c0_i32_0 : i32, i32
  }
  func.func @transform_14(%arg0: i32) -> (i32, i32) {
    %c0_i32 = arith.constant 0 : i32
    %c0_i32_0 = arith.constant 0 : i32
    return %arg0, %c0_i32 : i32, i32
  }
  func.func @transform_15(%arg0: i32) -> (i32, i32) {
    %c0_i32 = arith.constant 0 : i32
    %c0_i32_0 = arith.constant 0 : i32
    return %arg0, %c0_i32 : i32, i32
  }
}

</mosaic_0001>

<llo_original>
// kernel: vae_forward.1
$region0: #{vae_forward.1}
  #allocation0 [shape = 'u32[]', space=smem, size = 0x4, offset = 0x4, fixed_abs, tag = 'smem constant byte address 0x4 - core index']
  #allocation1 [shape = 'u32[144,128]{1,0:T(1,128)}', space=vmem, size = 0x12000, scoped, tag = 'internal scratch']
  %s0 = inlined_call_operand.vmem [shape: bf16[512,896], index: 0, kind: input, shape index: {}]
  %s1 = inlined_call_operand.vmem [shape: f32[512,32], index: 1, kind: input, shape index: {}]
  %s2 = inlined_call_operand.vmem [shape: bf16[896,128], index: 2, kind: input, shape index: {}]
  %s3 = inlined_call_operand.vmem [shape: f32[1,128], index: 3, kind: input, shape index: {}]
  %s4 = inlined_call_operand.vmem [shape: bf16[128,64], index: 4, kind: input, shape index: {}]
  %s5 = inlined_call_operand.vmem [shape: f32[1,64], index: 5, kind: input, shape index: {}]
  %s6 = inlined_call_operand.vmem [shape: bf16[64,128], index: 6, kind: input, shape index: {}]
  %s7 = inlined_call_operand.vmem [shape: f32[1,128], index: 7, kind: input, shape index: {}]
  %s8 = inlined_call_operand.vmem [shape: bf16[32,64], index: 8, kind: input, shape index: {}]
  %s9 = inlined_call_operand.vmem [shape: f32[1,64], index: 9, kind: input, shape index: {}]
  %s10 = inlined_call_operand.vmem [shape: bf16[64,128], index: 10, kind: input, shape index: {}]
  %s11 = inlined_call_operand.vmem [shape: f32[1,128], index: 11, kind: input, shape index: {}]
  %s12 = inlined_call_operand.vmem [shape: bf16[128,896], index: 12, kind: input, shape index: {}]
  %s13 = inlined_call_operand.vmem [shape: f32[1,896], index: 13, kind: input, shape index: {}]
  %s14 = inlined_call_operand.vmem [shape: bf16[512,896], index: 14, kind: output, shape index: {0}]
  %s15 = inlined_call_operand.vmem [shape: f32[512,128], index: 15, kind: output, shape index: {1}]
  %16 = xla_tuple %s14, %s15
  %s17 = sld [smem:[#allocation0]]
  $region97: #{vae_forward.1} parent=0
    _
  %s19 = ssub.s32 1, %s17
  %s20 = scalar_select 0, %s19, %s17
  loop: start=0, step=1, limit=4
  $region2: #{vae_forward.1} parent=0 // loop_pre_header
    _
  $region3: #{vae_forward.1} parent=0 // loop_header
    %s22 = sphi 0, %s26
    %p23 = scmp.ge.s32.totalorder %s22, 4
    %s32 = sphi 0, %s34
    %s35 = sphi 0, %s32
    %s36 = sphi 0, %s35
    %s52 = sphi 0, %s36
    %s58 = sphi 0, %s60
    %s61 = sphi 0, %s58
    %s62 = sphi 0, %s61
    %s78 = sphi 0, %s62
    %s82 = sphi 0, %s82
    %s84 = sphi 0, %s82
    %s85 = sphi 0, %s84
    %s99 = sphi 0, %s85
    %s103 = sphi 0, %s103
    %s105 = sphi 0, %s103
    %s106 = sphi 0, %s105
    %s120 = sphi 0, %s106
    %s124 = sphi 0, %s124
    %s126 = sphi 0, %s124
    %s127 = sphi 0, %s126
    %s141 = sphi 0, %s127
    %s145 = sphi 0, %s145
    %s147 = sphi 0, %s145
    %s148 = sphi 0, %s147
    %s162 = sphi 0, %s148
    %s166 = sphi 0, %s166
    %s168 = sphi 0, %s166
    %s169 = sphi 0, %s168
    %s183 = sphi 0, %s169
    %s187 = sphi 0, %s187
    %s189 = sphi 0, %s187
    %s190 = sphi 0, %s189
    %s204 = sphi 0, %s190
    %s208 = sphi 0, %s208
    %s210 = sphi 0, %s208
    %s211 = sphi 0, %s210
    %s225 = sphi 0, %s211
    %s229 = sphi 0, %s229
    %s231 = sphi 0, %s229
    %s232 = sphi 0, %s231
    %s246 = sphi 0, %s232
    %s250 = sphi 0, %s250
    %s252 = sphi 0, %s250
    %s253 = sphi 0, %s252
    %s267 = sphi 0, %s253
    %s271 = sphi 0, %s271
    %s273 = sphi 0, %s271
    %s274 = sphi 0, %s273
    %s288 = sphi 0, %s274
    %s292 = sphi 0, %s292
    %s294 = sphi 0, %s292
    %s295 = sphi 0, %s294
    %s309 = sphi 0, %s295
    %s313 = sphi 0, %s313
    %s315 = sphi 0, %s313
    %s316 = sphi 0, %s315
    %s330 = sphi 0, %s316
    %s336 = sphi 0, %s338
    %s339 = sphi 0, %s336
    %s340 = sphi 0, %s339
    %s356 = sphi 0, %s340
    %s362 = sphi 0, %s364
    %s365 = sphi 0, %s362
    %s366 = sphi 0, %s365
    %s382 = sphi 0, %s366
  $region4: #{vae_forward.1} parent=0 // loop_header_branch
    %25 = sbr.rel (%p23) target = $region8
  $region5: #{vae_forward.1} parent=0 // loop_body
    %s27 = ssub.s32 %s22, 1
    %s28 = ssub.s32 %s22, 2
    %s29 = sadd.s32 %s22, 1
    %s30 = ssub.s32 %s22, %s29
    %p31 = scmp.eq.s32.totalorder %s30, 0
    %s33 = sadd.s32 %s32, 1
    %s34 = scalar_select %p31, %s32, %s33
    %p37 = pneg %p31
    %p38 = scmp.eq.s32.totalorder %s22, 1
    %p39 = por %p37, %p38
    %p40 = scmp.ne.s32.totalorder %s32, %s35
    %p41 = scmp.eq.s32.totalorder %s22, 0
    %p42 = por %p40, %p41
    %p43 = scmp.ne.s32.totalorder %s32, %s35
    %p44 = scmp.eq.s32.totalorder %s27, 1
    %p45 = por %p43, %p44
    %p46 = scmp.ne.s32.totalorder %s35, %s36
    %p47 = scmp.eq.s32.totalorder %s27, 0
    %p48 = por %p46, %p47
    %p49 = scmp.ne.s32.totalorder %s35, %s36
    %p50 = scmp.eq.s32.totalorder %s28, 1
    %p51 = por %p49, %p50
    %p53 = scmp.ne.s32.totalorder %s36, %s52
    %p54 = scmp.eq.s32.totalorder %s28, 0
    %p55 = por %p53, %p54
    %s56 = ssub.s32 %s22, %s29
    %p57 = scmp.eq.s32.totalorder %s56, 0
    %s59 = sadd.s32 %s58, 1
    %s60 = scalar_select %p57, %s58, %s59
    %p63 = pneg %p57
    %p64 = scmp.eq.s32.totalorder %s22, 1
    %p65 = por %p63, %p64
    %p66 = scmp.ne.s32.totalorder %s58, %s61
    %p67 = scmp.eq.s32.totalorder %s22, 0
    %p68 = por %p66, %p67
    %p69 = scmp.ne.s32.totalorder %s58, %s61
    %p70 = scmp.eq.s32.totalorder %s27, 1
    %p71 = por %p69, %p70
    %p72 = scmp.ne.s32.totalorder %s61, %s62
    %p73 = scmp.eq.s32.totalorder %s27, 0
    %p74 = por %p72, %p73
    %p75 = scmp.ne.s32.totalorder %s61, %s62
    %p76 = scmp.eq.s32.totalorder %s28, 1
    %p77 = por %p75, %p76
    %p79 = scmp.ne.s32.totalorder %s62, %s78
    %p80 = scmp.eq.s32.totalorder %s28, 0
    %p81 = por %p79, %p80
    %s83 = sadd.s32 %s82, 1
    %p86 = scmp.eq.s32.totalorder %s22, 1
    %p87 = scmp.ne.s32.totalorder %s82, %s84
    %p88 = scmp.eq.s32.totalorder %s22, 0
    %p89 = por %p87, %p88
    %p90 = scmp.ne.s32.totalorder %s82, %s84
    %p91 = scmp.eq.s32.totalorder %s27, 1
    %p92 = por %p90, %p91
    %p93 = scmp.ne.s32.totalorder %s84, %s85
    %p94 = scmp.eq.s32.totalorder %s27, 0
    %p95 = por %p93, %p94
    %p96 = scmp.ne.s32.totalorder %s84, %s85
    %p97 = scmp.eq.s32.totalorder %s28, 1
    %p98 = por %p96, %p97
    %p100 = scmp.ne.s32.totalorder %s85, %s99
    %p101 = scmp.eq.s32.totalorder %s28, 0
    %p102 = por %p100, %p101
    %s104 = sadd.s32 %s103, 1
    %p107 = scmp.eq.s32.totalorder %s22, 1
    %p108 = scmp.ne.s32.totalorder %s103, %s105
    %p109 = scmp.eq.s32.totalorder %s22, 0
    %p110 = por %p108, %p109
    %p111 = scmp.ne.s32.totalorder %s103, %s105
    %p112 = scmp.eq.s32.totalorder %s27, 1
    %p113 = por %p111, %p112
    %p114 = scmp.ne.s32.totalorder %s105, %s106
    %p115 = scmp.eq.s32.totalorder %s27, 0
    %p116 = por %p114, %p115
    %p117 = scmp.ne.s32.totalorder %s105, %s106
    %p118 = scmp.eq.s32.totalorder %s28, 1
    %p119 = por %p117, %p118
    %p121 = scmp.ne.s32.totalorder %s106, %s120
    %p122 = scmp.eq.s32.totalorder %s28, 0
    %p123 = por %p121, %p122
    %s125 = sadd.s32 %s124, 1
    %p128 = scmp.eq.s32.totalorder %s22, 1
    %p129 = scmp.ne.s32.totalorder %s124, %s126
    %p130 = scmp.eq.s32.totalorder %s22, 0
    %p131 = por %p129, %p130
    %p132 = scmp.ne.s32.totalorder %s124, %s126
    %p133 = scmp.eq.s32.totalorder %s27, 1
    %p134 = por %p132, %p133
    %p135 = scmp.ne.s32.totalorder %s126, %s127
    %p136 = scmp.eq.s32.totalorder %s27, 0
    %p137 = por %p135, %p136
    %p138 = scmp.ne.s32.totalorder %s126, %s127
    %p139 = scmp.eq.s32.totalorder %s28, 1
    %p140 = por %p138, %p139
    %p142 = scmp.ne.s32.totalorder %s127, %s141
    %p143 = scmp.eq.s32.totalorder %s28, 0
    %p144 = por %p142, %p143
    %s146 = sadd.s32 %s145, 1
    %p149 = scmp.eq.s32.totalorder %s22, 1
    %p150 = scmp.ne.s32.totalorder %s145, %s147
    %p151 = scmp.eq.s32.totalorder %s22, 0
    %p152 = por %p150, %p151
    %p153 = scmp.ne.s32.totalorder %s145, %s147
    %p154 = scmp.eq.s32.totalorder %s27, 1
    %p155 = por %p153, %p154
    %p156 = scmp.ne.s32.totalorder %s147, %s148
    %p157 = scmp.eq.s32.totalorder %s27, 0
    %p158 = por %p156, %p157
    %p159 = scmp.ne.s32.totalorder %s147, %s148
    %p160 = scmp.eq.s32.totalorder %s28, 1
    %p161 = por %p159, %p160
    %p163 = scmp.ne.s32.totalorder %s148, %s162
    %p164 = scmp.eq.s32.totalorder %s28, 0
    %p165 = por %p163, %p164
    %s167 = sadd.s32 %s166, 1
    %p170 = scmp.eq.s32.totalorder %s22, 1
    %p171 = scmp.ne.s32.totalorder %s166, %s168
    %p172 = scmp.eq.s32.totalorder %s22, 0
    %p173 = por %p171, %p172
    %p174 = scmp.ne.s32.totalorder %s166, %s168
    %p175 = scmp.eq.s32.totalorder %s27, 1
    %p176 = por %p174, %p175
    %p177 = scmp.ne.s32.totalorder %s168, %s169
    %p178 = scmp.eq.s32.totalorder %s27, 0
    %p179 = por %p177, %p178
    %p180 = scmp.ne.s32.totalorder %s168, %s169
    %p181 = scmp.eq.s32.totalorder %s28, 1
    %p182 = por %p180, %p181
    %p184 = scmp.ne.s32.totalorder %s169, %s183
    %p185 = scmp.eq.s32.totalorder %s28, 0
    %p186 = por %p184, %p185
    %s188 = sadd.s32 %s187, 1
    %p191 = scmp.eq.s32.totalorder %s22, 1
    %p192 = scmp.ne.s32.totalorder %s187, %s189
    %p193 = scmp.eq.s32.totalorder %s22, 0
    %p194 = por %p192, %p193
    %p195 = scmp.ne.s32.totalorder %s187, %s189
    %p196 = scmp.eq.s32.totalorder %s27, 1
    %p197 = por %p195, %p196
    %p198 = scmp.ne.s32.totalorder %s189, %s190
    %p199 = scmp.eq.s32.totalorder %s27, 0
    %p200 = por %p198, %p199
    %p201 = scmp.ne.s32.totalorder %s189, %s190
    %p202 = scmp.eq.s32.totalorder %s28, 1
    %p203 = por %p201, %p202
    %p205 = scmp.ne.s32.totalorder %s190, %s204
    %p206 = scmp.eq.s32.totalorder %s28, 0
    %p207 = por %p205, %p206
    %s209 = sadd.s32 %s208, 1
    %p212 = scmp.eq.s32.totalorder %s22, 1
    %p213 = scmp.ne.s32.totalorder %s208, %s210
    %p214 = scmp.eq.s32.totalorder %s22, 0
    %p215 = por %p213, %p214
    %p216 = scmp.ne.s32.totalorder %s208, %s210
    %p217 = scmp.eq.s32.totalorder %s27, 1
    %p218 = por %p216, %p217
    %p219 = scmp.ne.s32.totalorder %s210, %s211
    %p220 = scmp.eq.s32.totalorder %s27, 0
    %p221 = por %p219, %p220
    %p222 = scmp.ne.s32.totalorder %s210, %s211
    %p223 = scmp.eq.s32.totalorder %s28, 1
    %p224 = por %p222, %p223
    %p226 = scmp.ne.s32.totalorder %s211, %s225
    %p227 = scmp.eq.s32.totalorder %s28, 0
    %p228 = por %p226, %p227
    %s230 = sadd.s32 %s229, 1
    %p233 = scmp.eq.s32.totalorder %s22, 1
    %p234 = scmp.ne.s32.totalorder %s229, %s231
    %p235 = scmp.eq.s32.totalorder %s22, 0
    %p236 = por %p234, %p235
    %p237 = scmp.ne.s32.totalorder %s229, %s231
    %p238 = scmp.eq.s32.totalorder %s27, 1
    %p239 = por %p237, %p238
    %p240 = scmp.ne.s32.totalorder %s231, %s232
    %p241 = scmp.eq.s32.totalorder %s27, 0
    %p242 = por %p240, %p241
    %p243 = scmp.ne.s32.totalorder %s231, %s232
    %p244 = scmp.eq.s32.totalorder %s28, 1
    %p245 = por %p243, %p244
    %p247 = scmp.ne.s32.totalorder %s232, %s246
    %p248 = scmp.eq.s32.totalorder %s28, 0
    %p249 = por %p247, %p248
    %s251 = sadd.s32 %s250, 1
    %p254 = scmp.eq.s32.totalorder %s22, 1
    %p255 = scmp.ne.s32.totalorder %s250, %s252
    %p256 = scmp.eq.s32.totalorder %s22, 0
    %p257 = por %p255, %p256
    %p258 = scmp.ne.s32.totalorder %s250, %s252
    %p259 = scmp.eq.s32.totalorder %s27, 1
    %p260 = por %p258, %p259
    %p261 = scmp.ne.s32.totalorder %s252, %s253
    %p262 = scmp.eq.s32.totalorder %s27, 0
    %p263 = por %p261, %p262
    %p264 = scmp.ne.s32.totalorder %s252, %s253
    %p265 = scmp.eq.s32.totalorder %s28, 1
    %p266 = por %p264, %p265
    %p268 = scmp.ne.s32.totalorder %s253, %s267
    %p269 = scmp.eq.s32.totalorder %s28, 0
    %p270 = por %p268, %p269
    %s272 = sadd.s32 %s271, 1
    %p275 = scmp.eq.s32.totalorder %s22, 1
    %p276 = scmp.ne.s32.totalorder %s271, %s273
    %p277 = scmp.eq.s32.totalorder %s22, 0
    %p278 = por %p276, %p277
    %p279 = scmp.ne.s32.totalorder %s271, %s273
    %p280 = scmp.eq.s32.totalorder %s27, 1
    %p281 = por %p279, %p280
    %p282 = scmp.ne.s32.totalorder %s273, %s274
    %p283 = scmp.eq.s32.totalorder %s27, 0
    %p284 = por %p282, %p283
    %p285 = scmp.ne.s32.totalorder %s273, %s274
    %p286 = scmp.eq.s32.totalorder %s28, 1
    %p287 = por %p285, %p286
    %p289 = scmp.ne.s32.totalorder %s274, %s288
    %p290 = scmp.eq.s32.totalorder %s28, 0
    %p291 = por %p289, %p290
    %s293 = sadd.s32 %s292, 1
    %p296 = scmp.eq.s32.totalorder %s22, 1
    %p297 = scmp.ne.s32.totalorder %s292, %s294
    %p298 = scmp.eq.s32.totalorder %s22, 0
    %p299 = por %p297, %p298
    %p300 = scmp.ne.s32.totalorder %s292, %s294
    %p301 = scmp.eq.s32.totalorder %s27, 1
    %p302 = por %p300, %p301
    %p303 = scmp.ne.s32.totalorder %s294, %s295
    %p304 = scmp.eq.s32.totalorder %s27, 0
    %p305 = por %p303, %p304
    %p306 = scmp.ne.s32.totalorder %s294, %s295
    %p307 = scmp.eq.s32.totalorder %s28, 1
    %p308 = por %p306, %p307
    %p310 = scmp.ne.s32.totalorder %s295, %s309
    %p311 = scmp.eq.s32.totalorder %s28, 0
    %p312 = por %p310, %p311
    %s314 = sadd.s32 %s313, 1
    %p317 = scmp.eq.s32.totalorder %s22, 1
    %p318 = scmp.ne.s32.totalorder %s313, %s315
    %p319 = scmp.eq.s32.totalorder %s22, 0
    %p320 = por %p318, %p319
    %p321 = scmp.ne.s32.totalorder %s313, %s315
    %p322 = scmp.eq.s32.totalorder %s27, 1
    %p323 = por %p321, %p322
    %p324 = scmp.ne.s32.totalorder %s315, %s316
    %p325 = scmp.eq.s32.totalorder %s27, 0
    %p326 = por %p324, %p325
    %p327 = scmp.ne.s32.totalorder %s315, %s316
    %p328 = scmp.eq.s32.totalorder %s28, 1
    %p329 = por %p327, %p328
    %p331 = scmp.ne.s32.totalorder %s316, %s330
    %p332 = scmp.eq.s32.totalorder %s28, 0
    %p333 = por %p331, %p332
    %s334 = ssub.s32 %s22, %s29
    %p335 = scmp.eq.s32.totalorder %s334, 0
    %s337 = sadd.s32 %s336, 1
    %s338 = scalar_select %p335, %s336, %s337
    %p341 = pneg %p335
    %p342 = scmp.eq.s32.totalorder %s22, 1
    %p343 = por %p341, %p342
    %p344 = scmp.ne.s32.totalorder %s336, %s339
    %p345 = scmp.eq.s32.totalorder %s22, 0
    %p346 = por %p344, %p345
    %p347 = scmp.ne.s32.totalorder %s336, %s339
    %p348 = scmp.eq.s32.totalorder %s27, 1
    %p349 = por %p347, %p348
    %p350 = scmp.ne.s32.totalorder %s339, %s340
    %p351 = scmp.eq.s32.totalorder %s27, 0
    %p352 = por %p350, %p351
    %p353 = scmp.ne.s32.totalorder %s339, %s340
    %p354 = scmp.eq.s32.totalorder %s28, 1
    %p355 = por %p353, %p354
    %p357 = scmp.ne.s32.totalorder %s340, %s356
    %p358 = scmp.eq.s32.totalorder %s28, 0
    %p359 = por %p357, %p358
    %s360 = ssub.s32 %s22, %s29
    %p361 = scmp.eq.s32.totalorder %s360, 0
    %s363 = sadd.s32 %s362, 1
    %s364 = scalar_select %p361, %s362, %s363
    %p367 = pneg %p361
    %p368 = scmp.eq.s32.totalorder %s22, 1
    %p369 = por %p367, %p368
    %p370 = scmp.ne.s32.totalorder %s362, %s365
    %p371 = scmp.eq.s32.totalorder %s22, 0
    %p372 = por %p370, %p371
    %p373 = scmp.ne.s32.totalorder %s362, %s365
    %p374 = scmp.eq.s32.totalorder %s27, 1
    %p375 = por %p373, %p374
    %p376 = scmp.ne.s32.totalorder %s365, %s366
    %p377 = scmp.eq.s32.totalorder %s27, 0
    %p378 = por %p376, %p377
    %p379 = scmp.ne.s32.totalorder %s365, %s366
    %p380 = scmp.eq.s32.totalorder %s28, 1
    %p381 = por %p379, %p380
    %p383 = scmp.ne.s32.totalorder %s366, %s382
    %p384 = scmp.eq.s32.totalorder %s28, 0
    %p385 = por %p383, %p384
    %p386 = scmp.le.s32.totalorder 1, %s22
    %p387 = scmp.lt.s32.totalorder %s22, 3
    %p388 = pnand %p386, %p387
    %p389 = pneg %p388
    // Predicated region
    $region9: #{vae_forward.1} parent=5 // pred_check
      _
    $region10: #{vae_forward.1} parent=5 // pred_check_branch
      %391 = sbr.rel (%p388) target = $region12
    $region11: #{vae_forward.1} parent=5 // pred_region
      %s392 = ssub.s32 %s22, 1
      // Predicated region
      $region13: #{vae_forward.1} parent=11 // pred_check
        %p393 = pneg %p95
      $region14: #{vae_forward.1} parent=11 // pred_check_branch
        %395 = sbr.rel (%p393) target = $region16
      $region15: #{vae_forward.1} parent=11 // pred_region
        _
      $region16: #{vae_forward.1} parent=11 // pred_fallthru
        _
      // Predicated region
      $region17: #{vae_forward.1} parent=11 // pred_check
        %p396 = pneg %p116
      $region18: #{vae_forward.1} parent=11 // pred_check_branch
        %398 = sbr.rel (%p396) target = $region20
      $region19: #{vae_forward.1} parent=11 // pred_region
        _
      $region20: #{vae_forward.1} parent=11 // pred_fallthru
        _
      // Predicated region
      $region21: #{vae_forward.1} parent=11 // pred_check
        %p399 = pneg %p137
      $region22: #{vae_forward.1} parent=11 // pred_check_branch
        %401 = sbr.rel (%p399) target = $region24
      $region23: #{vae_forward.1} parent=11 // pred_region
        _
      $region24: #{vae_forward.1} parent=11 // pred_fallthru
        _
      // Predicated region
      $region25: #{vae_forward.1} parent=11 // pred_check
        %p402 = pneg %p158
      $region26: #{vae_forward.1} parent=11 // pred_check_branch
        %404 = sbr.rel (%p402) target = $region28
      $region27: #{vae_forward.1} parent=11 // pred_region
        _
      $region28: #{vae_forward.1} parent=11 // pred_fallthru
        _
      // Predicated region
      $region29: #{vae_forward.1} parent=11 // pred_check
        %p405 = pneg %p179
      $region30: #{vae_forward.1} parent=11 // pred_check_branch
        %407 = sbr.rel (%p405) target = $region32
      $region31: #{vae_forward.1} parent=11 // pred_region
        _
      $region32: #{vae_forward.1} parent=11 // pred_fallthru
        _
      // Predicated region
      $region33: #{vae_forward.1} parent=11 // pred_check
        %p408 = pneg %p200
      $region34: #{vae_forward.1} parent=11 // pred_check_branch
        %410 = sbr.rel (%p408) target = $region36
      $region35: #{vae_forward.1} parent=11 // pred_region
        _
      $region36: #{vae_forward.1} parent=11 // pred_fallthru
        _
      // Predicated region
      $region37: #{vae_forward.1} parent=11 // pred_check
        %p411 = pneg %p221
      $region38: #{vae_forward.1} parent=11 // pred_check_branch
        %413 = sbr.rel (%p411) target = $region40
      $region39: #{vae_forward.1} parent=11 // pred_region
        _
      $region40: #{vae_forward.1} parent=11 // pred_fallthru
        _
      // Predicated region
      $region41: #{vae_forward.1} parent=11 // pred_check
        %p414 = pneg %p242
      $region42: #{vae_forward.1} parent=11 // pred_check_branch
        %416 = sbr.rel (%p414) target = $region44
      $region43: #{vae_forward.1} parent=11 // pred_region
        _
      $region44: #{vae_forward.1} parent=11 // pred_fallthru
        _
      // Predicated region
      $region45: #{vae_forward.1} parent=11 // pred_check
        %p417 = pneg %p263
      $region46: #{vae_forward.1} parent=11 // pred_check_branch
        %419 = sbr.rel (%p417) target = $region48
      $region47: #{vae_forward.1} parent=11 // pred_region
        _
      $region48: #{vae_forward.1} parent=11 // pred_fallthru
        _
      // Predicated region
      $region49: #{vae_forward.1} parent=11 // pred_check
        %p420 = pneg %p284
      $region50: #{vae_forward.1} parent=11 // pred_check_branch
        %422 = sbr.rel (%p420) target = $region52
      $region51: #{vae_forward.1} parent=11 // pred_region
        _
      $region52: #{vae_forward.1} parent=11 // pred_fallthru
        _
      // Predicated region
      $region53: #{vae_forward.1} parent=11 // pred_check
        %p423 = pneg %p305
      $region54: #{vae_forward.1} parent=11 // pred_check_branch
        %425 = sbr.rel (%p423) target = $region56
      $region55: #{vae_forward.1} parent=11 // pred_region
        _
      $region56: #{vae_forward.1} parent=11 // pred_fallthru
        _
      // Predicated region
      $region57: #{vae_forward.1} parent=11 // pred_check
        %p426 = pneg %p326
      $region58: #{vae_forward.1} parent=11 // pred_check_branch
        %428 = sbr.rel (%p426) target = $region60
      $region59: #{vae_forward.1} parent=11 // pred_region
        _
      $region60: #{vae_forward.1} parent=11 // pred_fallthru
        _
    $region12: #{vae_forward.1} parent=5 // pred_fallthru
      _
    %p429 = scmp.lt.s32.totalorder %s22, 2
    // Predicated region
    $region61: #{vae_forward.1} parent=5 // pred_check
      %p430 = pneg %p429
    $region62: #{vae_forward.1} parent=5 // pred_check_branch
      %432 = sbr.rel (%p430) target = $region64
    $region63: #{vae_forward.1} parent=5 // pred_region
      // Predicated region
      $region65: #{vae_forward.1} parent=63 // pred_check
        %p433 = pneg %p42
      $region66: #{vae_forward.1} parent=63 // pred_check_branch
        %435 = sbr.rel (%p433) target = $region68
      $region67: #{vae_forward.1} parent=63 // pred_region
        %s436 = smul.u32 32, %s22
        %p437 = scmp.lt.s32.totalorder %s436, 63
        %s438 = scalar_select %p437, %s436, 63
        %s439 = smul.addr %s438, 7
        %s440 = smul.addr %s439, 4
        %s441 = scalar_lea.vmem %s0, %s440
        %s442 = smul.u32 32, %s22
      $region68: #{vae_forward.1} parent=63 // pred_fallthru
        _
      // Predicated region
      $region69: #{vae_forward.1} parent=63 // pred_check
        %p443 = pneg %p68
      $region70: #{vae_forward.1} parent=63 // pred_check_branch
        %445 = sbr.rel (%p443) target = $region72
      $region71: #{vae_forward.1} parent=63 // pred_region
        %s446 = smul.u32 32, %s22
        %p447 = scmp.lt.s32.totalorder %s446, 63
        %s448 = scalar_select %p447, %s446, 63
        %s449 = smul.addr %s448, 8
        %s450 = scalar_lea.vmem %s1, %s449
        %s451 = smul.u32 32, %s22
      $region72: #{vae_forward.1} parent=63 // pred_fallthru
        _
    $region64: #{vae_forward.1} parent=5 // pred_fallthru
      _
    %p452 = scmp.le.s32.totalorder 1, %s22
    %p453 = scmp.lt.s32.totalorder %s22, 3
    %p454 = pnand %p452, %p453
    %p455 = pneg %p454
    // Predicated region
    $region73: #{vae_forward.1} parent=5 // pred_check
      _
    $region74: #{vae_forward.1} parent=5 // pred_check_branch
      %457 = sbr.rel (%p454) target = $region76
    $region75: #{vae_forward.1} parent=5 // pred_region
      %s458 = ssub.s32 %s22, 1
      %s459 = smul.u32 32, %s27
      %p460 = scmp.lt.s32.totalorder %s459, 63
      %s461 = scalar_select %p460, %s459, 63
      %s462 = smul.addr %s461, 7
      %s463 = smul.addr %s462, 4
      %s464 = scalar_lea.vmem %s0, %s463
      %p465 = pneg %p48
      %p466 = pneg %p45
      %s467 = smul.u32 32, %s27
      %p468 = scmp.lt.s32.totalorder %s467, 63
      %s469 = scalar_select %p468, %s467, 63
      %s470 = smul.addr %s469, 8
      %s471 = scalar_lea.vmem %s1, %s470
      %p472 = pneg %p74
      %p473 = pneg %p71
      %p474 = pneg %p95
      %p475 = pneg %p92
      %p476 = pneg %p116
      %p477 = pneg %p113
      %p478 = pneg %p137
      %p479 = pneg %p134
      %p480 = pneg %p158
      %p481 = pneg %p155
      %p482 = pneg %p179
      %p483 = pneg %p176
      %p484 = pneg %p200
      %p485 = pneg %p197
      %p486 = pneg %p221
      %p487 = pneg %p218
      %p488 = pneg %p242
      %p489 = pneg %p239
      %p490 = pneg %p263
      %p491 = pneg %p260
      %p492 = pneg %p284
      %p493 = pneg %p281
      %p494 = pneg %p305
      %p495 = pneg %p302
      %p496 = pneg %p326
      %p497 = pneg %p323
      %p498 = pneg %p352
      %p499 = pneg %p349
      %s500 = smul.u32 32, %s27
      %p501 = scmp.lt.s32.totalorder %s500, 63
      %s502 = scalar_select %p501, %s500, 63
      %s503 = smul.addr %s502, 7
      %s504 = smul.addr %s503, 4
      %s505 = scalar_lea.vmem %s14, %s504
      %p506 = pneg %p378
      %p507 = pneg %p375
      %s508 = smul.u32 32, %s27
      %p509 = scmp.lt.s32.totalorder %s508, 63
      %s510 = scalar_select %p509, %s508, 63
      %s511 = smul.addr %s510, 8
      %s512 = scalar_lea.vmem %s15, %s511
      %s513 = smul.u32 32, %s27
      %p514 = scmp.lt.s32.totalorder %s513, 63
      %s515 = scalar_select %p514, %s513, 63
      %s516 = smul.addr %s515, 7
      %s517 = smul.addr %s516, 4
      %s518 = scalar_lea.vmem %s0, %s517
      %s519 = smul.u32 32, %s27
      %s520 = smul.u32 32, %s27
      %p521 = scmp.lt.s32.totalorder %s520, 63
      %s522 = scalar_select %p521, %s520, 63
      %s523 = smul.addr %s522, 8
      %s524 = scalar_lea.vmem %s1, %s523
      %s525 = smul.u32 32, %s27
      %s526 = smul.u32 32, %s27
      %p527 = scmp.lt.s32.totalorder %s526, 63
      %s528 = scalar_select %p527, %s526, 63
      %s529 = smul.addr %s528, 7
      %s530 = smul.addr %s529, 4
      %s531 = scalar_lea.vmem %s14, %s530
      %s532 = smul.u32 32, %s27
      %s533 = smul.u32 32, %s27
      %p534 = scmp.lt.s32.totalorder %s533, 63
      %s535 = scalar_select %p534, %s533, 63
      %s536 = smul.addr %s535, 8
      %s537 = scalar_lea.vmem %s15, %s536
      %s538 = smul.u32 32, %s27
      %v540 = vld [vmem:[%s518] sm:$0xff]
      %v541 = vld [vmem:[%s518 + $0x8] sm:$0xff]
      %v542 = vld [vmem:[%s518 + $0x10] sm:$0xff]
      %v543 = vld [vmem:[%s518 + $0x18] sm:$0xf]
      %v544 = vld [vmem:[%s518 + $0x1c] sm:$0xff]
      %v545 = vld [vmem:[%s518 + $0x24] sm:$0xff]
      %v546 = vld [vmem:[%s518 + $0x2c] sm:$0xff]
      %v547 = vld [vmem:[%s518 + $0x34] sm:$0xf]
      %v548 = vld [vmem:[%s518 + $0x38] sm:$0xff]
      %v549 = vld [vmem:[%s518 + $0x40] sm:$0xff]
      %v550 = vld [vmem:[%s518 + $0x48] sm:$0xff]
      %v551 = vld [vmem:[%s518 + $0x50] sm:$0xf]
      %v552 = vld [vmem:[%s518 + $0x54] sm:$0xff]
      %v553 = vld [vmem:[%s518 + $0x5c] sm:$0xff]
      %v554 = vld [vmem:[%s518 + $0x64] sm:$0xff]
      %v555 = vld [vmem:[%s518 + $0x6c] sm:$0xf]
      %v556 = vld [vmem:[%s518 + $0x70] sm:$0xff]
      %v557 = vld [vmem:[%s518 + $0x78] sm:$0xff]
      %v558 = vld [vmem:[%s518 + $0x80] sm:$0xff]
      %v559 = vld [vmem:[%s518 + $0x88] sm:$0xf]
      %v560 = vld [vmem:[%s518 + $0x8c] sm:$0xff]
      %v561 = vld [vmem:[%s518 + $0x94] sm:$0xff]
      %v562 = vld [vmem:[%s518 + $0x9c] sm:$0xff]
      %v563 = vld [vmem:[%s518 + $0xa4] sm:$0xf]
      %v564 = vld [vmem:[%s518 + $0xa8] sm:$0xff]
      %v565 = vld [vmem:[%s518 + $0xb0] sm:$0xff]
      %v566 = vld [vmem:[%s518 + $0xb8] sm:$0xff]
      %v567 = vld [vmem:[%s518 + $0xc0] sm:$0xf]
      %v568 = vld [vmem:[%s518 + $0xc4] sm:$0xff]
      %v569 = vld [vmem:[%s518 + $0xcc] sm:$0xff]
      %v570 = vld [vmem:[%s518 + $0xd4] sm:$0xff]
      %v571 = vld [vmem:[%s518 + $0xdc] sm:$0xf]
      %v572 = vld [vmem:[%s518 + $0xe0] sm:$0xff]
      %v573 = vld [vmem:[%s518 + $0xe8] sm:$0xff]
      %v574 = vld [vmem:[%s518 + $0xf0] sm:$0xff]
      %v575 = vld [vmem:[%s518 + $0xf8] sm:$0xf]
      %v576 = vld [vmem:[%s518 + $0xfc] sm:$0xff]
      %v577 = vld [vmem:[%s518 + $0x104] sm:$0xff]
      %v578 = vld [vmem:[%s518 + $0x10c] sm:$0xff]
      %v579 = vld [vmem:[%s518 + $0x114] sm:$0xf]
      %v580 = vld [vmem:[%s518 + $0x118] sm:$0xff]
      %v581 = vld [vmem:[%s518 + $0x120] sm:$0xff]
      %v582 = vld [vmem:[%s518 + $0x128] sm:$0xff]
      %v583 = vld [vmem:[%s518 + $0x130] sm:$0xf]
      %v584 = vld [vmem:[%s518 + $0x134] sm:$0xff]
      %v585 = vld [vmem:[%s518 + $0x13c] sm:$0xff]
      %v586 = vld [vmem:[%s518 + $0x144] sm:$0xff]
      %v587 = vld [vmem:[%s518 + $0x14c] sm:$0xf]
      %v588 = vld [vmem:[%s518 + $0x150] sm:$0xff]
      %v589 = vld [vmem:[%s518 + $0x158] sm:$0xff]
      %v590 = vld [vmem:[%s518 + $0x160] sm:$0xff]
      %v591 = vld [vmem:[%s518 + $0x168] sm:$0xf]
      %v592 = vld [vmem:[%s518 + $0x16c] sm:$0xff]
      %v593 = vld [vmem:[%s518 + $0x174] sm:$0xff]
      %v594 = vld [vmem:[%s518 + $0x17c] sm:$0xff]
      %v595 = vld [vmem:[%s518 + $0x184] sm:$0xf]
      %v596 = vld [vmem:[%s518 + $0x188] sm:$0xff]
      %v597 = vld [vmem:[%s518 + $0x190] sm:$0xff]
      %v598 = vld [vmem:[%s518 + $0x198] sm:$0xff]
      %v599 = vld [vmem:[%s518 + $0x1a0] sm:$0xf]
      %v600 = vld [vmem:[%s518 + $0x1a4] sm:$0xff]
      %v601 = vld [vmem:[%s518 + $0x1ac] sm:$0xff]
      %v602 = vld [vmem:[%s518 + $0x1b4] sm:$0xff]
      %v603 = vld [vmem:[%s518 + $0x1bc] sm:$0xf]
      %v604 = vld [vmem:[%s518 + $0x1c0] sm:$0xff]
      %v605 = vld [vmem:[%s518 + $0x1c8] sm:$0xff]
      %v606 = vld [vmem:[%s518 + $0x1d0] sm:$0xff]
      %v607 = vld [vmem:[%s518 + $0x1d8] sm:$0xf]
      %v608 = vld [vmem:[%s518 + $0x1dc] sm:$0xff]
      %v609 = vld [vmem:[%s518 + $0x1e4] sm:$0xff]
      %v610 = vld [vmem:[%s518 + $0x1ec] sm:$0xff]
      %v611 = vld [vmem:[%s518 + $0x1f4] sm:$0xf]
      %v612 = vld [vmem:[%s518 + $0x1f8] sm:$0xff]
      %v613 = vld [vmem:[%s518 + $0x200] sm:$0xff]
      %v614 = vld [vmem:[%s518 + $0x208] sm:$0xff]
      %v615 = vld [vmem:[%s518 + $0x210] sm:$0xf]
      %v616 = vld [vmem:[%s518 + $0x214] sm:$0xff]
      %v617 = vld [vmem:[%s518 + $0x21c] sm:$0xff]
      %v618 = vld [vmem:[%s518 + $0x224] sm:$0xff]
      %v619 = vld [vmem:[%s518 + $0x22c] sm:$0xf]
      %v620 = vld [vmem:[%s518 + $0x230] sm:$0xff]
      %v621 = vld [vmem:[%s518 + $0x238] sm:$0xff]
      %v622 = vld [vmem:[%s518 + $0x240] sm:$0xff]
      %v623 = vld [vmem:[%s518 + $0x248] sm:$0xf]
      %v624 = vld [vmem:[%s518 + $0x24c] sm:$0xff]
      %v625 = vld [vmem:[%s518 + $0x254] sm:$0xff]
      %v626 = vld [vmem:[%s518 + $0x25c] sm:$0xff]
      %v627 = vld [vmem:[%s518 + $0x264] sm:$0xf]
      %v628 = vld [vmem:[%s518 + $0x268] sm:$0xff]
      %v629 = vld [vmem:[%s518 + $0x270] sm:$0xff]
      %v630 = vld [vmem:[%s518 + $0x278] sm:$0xff]
      %v631 = vld [vmem:[%s518 + $0x280] sm:$0xf]
      %v632 = vld [vmem:[%s518 + $0x284] sm:$0xff]
      %v633 = vld [vmem:[%s518 + $0x28c] sm:$0xff]
      %v634 = vld [vmem:[%s518 + $0x294] sm:$0xff]
      %v635 = vld [vmem:[%s518 + $0x29c] sm:$0xf]
      %v636 = vld [vmem:[%s518 + $0x2a0] sm:$0xff]
      %v637 = vld [vmem:[%s518 + $0x2a8] sm:$0xff]
      %v638 = vld [vmem:[%s518 + $0x2b0] sm:$0xff]
      %v639 = vld [vmem:[%s518 + $0x2b8] sm:$0xf]
      %v640 = vld [vmem:[%s518 + $0x2bc] sm:$0xff]
      %v641 = vld [vmem:[%s518 + $0x2c4] sm:$0xff]
      %v642 = vld [vmem:[%s518 + $0x2cc] sm:$0xff]
      %v643 = vld [vmem:[%s518 + $0x2d4] sm:$0xf]
      %v644 = vld [vmem:[%s518 + $0x2d8] sm:$0xff]
      %v645 = vld [vmem:[%s518 + $0x2e0] sm:$0xff]
      %v646 = vld [vmem:[%s518 + $0x2e8] sm:$0xff]
      %v647 = vld [vmem:[%s518 + $0x2f0] sm:$0xf]
      %v648 = vld [vmem:[%s518 + $0x2f4] sm:$0xff]
      %v649 = vld [vmem:[%s518 + $0x2fc] sm:$0xff]
      %v650 = vld [vmem:[%s518 + $0x304] sm:$0xff]
      %v651 = vld [vmem:[%s518 + $0x30c] sm:$0xf]
      %v652 = vld [vmem:[%s518 + $0x310] sm:$0xff]
      %v653 = vld [vmem:[%s518 + $0x318] sm:$0xff]
      %v654 = vld [vmem:[%s518 + $0x320] sm:$0xff]
      %v655 = vld [vmem:[%s518 + $0x328] sm:$0xf]
      %v656 = vld [vmem:[%s518 + $0x32c] sm:$0xff]
      %v657 = vld [vmem:[%s518 + $0x334] sm:$0xff]
      %v658 = vld [vmem:[%s518 + $0x33c] sm:$0xff]
      %v659 = vld [vmem:[%s518 + $0x344] sm:$0xf]
      %v660 = vld [vmem:[%s518 + $0x348] sm:$0xff]
      %v661 = vld [vmem:[%s518 + $0x350] sm:$0xff]
      %v662 = vld [vmem:[%s518 + $0x358] sm:$0xff]
      %v663 = vld [vmem:[%s518 + $0x360] sm:$0xf]
      %v664 = vld [vmem:[%s518 + $0x364] sm:$0xff]
      %v665 = vld [vmem:[%s518 + $0x36c] sm:$0xff]
      %v666 = vld [vmem:[%s518 + $0x374] sm:$0xff]
      %v667 = vld [vmem:[%s518 + $0x37c] sm:$0xf]
      %v668 = vld [vmem:[%s2] sm:$0xf]
      %v669 = vld [vmem:[%s2 + $0x4] sm:$0xf]
      %v670 = vld [vmem:[%s2 + $0x8] sm:$0xf]
      %v671 = vld [vmem:[%s2 + $0xc] sm:$0xf]
      %v672 = vld [vmem:[%s2 + $0x10] sm:$0xf]
      %v673 = vld [vmem:[%s2 + $0x14] sm:$0xf]
      %v674 = vld [vmem:[%s2 + $0x18] sm:$0xf]
      %v675 = vld [vmem:[%s2 + $0x1c] sm:$0xf]
      %v676 = vld [vmem:[%s2 + $0x20] sm:$0xf]
      %v677 = vld [vmem:[%s2 + $0x24] sm:$0xf]
      %v678 = vld [vmem:[%s2 + $0x28] sm:$0xf]
      %v679 = vld [vmem:[%s2 + $0x2c] sm:$0xf]
      %v680 = vld [vmem:[%s2 + $0x30] sm:$0xf]
      %v681 = vld [vmem:[%s2 + $0x34] sm:$0xf]
      %v682 = vld [vmem:[%s2 + $0x38] sm:$0xf]
      %v683 = vld [vmem:[%s2 + $0x3c] sm:$0xf]
      %v684 = vld [vmem:[%s2 + $0x40] sm:$0xf]
      %v685 = vld [vmem:[%s2 + $0x44] sm:$0xf]
      %v686 = vld [vmem:[%s2 + $0x48] sm:$0xf]
      %v687 = vld [vmem:[%s2 + $0x4c] sm:$0xf]
      %v688 = vld [vmem:[%s2 + $0x50] sm:$0xf]
      %v689 = vld [vmem:[%s2 + $0x54] sm:$0xf]
      %v690 = vld [vmem:[%s2 + $0x58] sm:$0xf]
      %v691 = vld [vmem:[%s2 + $0x5c] sm:$0xf]
      %v692 = vld [vmem:[%s2 + $0x60] sm:$0xf]
      %v693 = vld [vmem:[%s2 + $0x64] sm:$0xf]
      %v694 = vld [vmem:[%s2 + $0x68] sm:$0xf]
      %v695 = vld [vmem:[%s2 + $0x6c] sm:$0xf]
      %v696 = vld [vmem:[%s2 + $0x70] sm:$0xf]
      %v697 = vld [vmem:[%s2 + $0x74] sm:$0xf]
      %v698 = vld [vmem:[%s2 + $0x78] sm:$0xf]
      %v699 = vld [vmem:[%s2 + $0x7c] sm:$0xf]
      %v700 = vld [vmem:[%s2 + $0x80] sm:$0xf]
      %v701 = vld [vmem:[%s2 + $0x84] sm:$0xf]
      %v702 = vld [vmem:[%s2 + $0x88] sm:$0xf]
      %v703 = vld [vmem:[%s2 + $0x8c] sm:$0xf]
      %v704 = vld [vmem:[%s2 + $0x90] sm:$0xf]
      %v705 = vld [vmem:[%s2 + $0x94] sm:$0xf]
      %v706 = vld [vmem:[%s2 + $0x98] sm:$0xf]
      %v707 = vld [vmem:[%s2 + $0x9c] sm:$0xf]
      %v708 = vld [vmem:[%s2 + $0xa0] sm:$0xf]
      %v709 = vld [vmem:[%s2 + $0xa4] sm:$0xf]
      %v710 = vld [vmem:[%s2 + $0xa8] sm:$0xf]
      %v711 = vld [vmem:[%s2 + $0xac] sm:$0xf]
      %v712 = vld [vmem:[%s2 + $0xb0] sm:$0xf]
      %v713 = vld [vmem:[%s2 + $0xb4] sm:$0xf]
      %v714 = vld [vmem:[%s2 + $0xb8] sm:$0xf]
      %v715 = vld [vmem:[%s2 + $0xbc] sm:$0xf]
      %v716 = vld [vmem:[%s2 + $0xc0] sm:$0xf]
      %v717 = vld [vmem:[%s2 + $0xc4] sm:$0xf]
      %v718 = vld [vmem:[%s2 + $0xc8] sm:$0xf]
      %v719 = vld [vmem:[%s2 + $0xcc] sm:$0xf]
      %v720 = vld [vmem:[%s2 + $0xd0] sm:$0xf]
      %v721 = vld [vmem:[%s2 + $0xd4] sm:$0xf]
      %v722 = vld [vmem:[%s2 + $0xd8] sm:$0xf]
      %v723 = vld [vmem:[%s2 + $0xdc] sm:$0xf]
      %v724 = vld [vmem:[%s2 + $0xe0] sm:$0xf]
      %v725 = vld [vmem:[%s2 + $0xe4] sm:$0xf]
      %v726 = vld [vmem:[%s2 + $0xe8] sm:$0xf]
      %v727 = vld [vmem:[%s2 + $0xec] sm:$0xf]
      %v728 = vld [vmem:[%s2 + $0xf0] sm:$0xf]
      %v729 = vld [vmem:[%s2 + $0xf4] sm:$0xf]
      %v730 = vld [vmem:[%s2 + $0xf8] sm:$0xf]
      %v731 = vld [vmem:[%s2 + $0xfc] sm:$0xf]
      %v732 = vld [vmem:[%s2 + $0x100] sm:$0xf]
      %v733 = vld [vmem:[%s2 + $0x104] sm:$0xf]
      %v734 = vld [vmem:[%s2 + $0x108] sm:$0xf]
      %v735 = vld [vmem:[%s2 + $0x10c] sm:$0xf]
      %v736 = vld [vmem:[%s2 + $0x110] sm:$0xf]
      %v737 = vld [vmem:[%s2 + $0x114] sm:$0xf]
      %v738 = vld [vmem:[%s2 + $0x118] sm:$0xf]
      %v739 = vld [vmem:[%s2 + $0x11c] sm:$0xf]
      %v740 = vld [vmem:[%s2 + $0x120] sm:$0xf]
      %v741 = vld [vmem:[%s2 + $0x124] sm:$0xf]
      %v742 = vld [vmem:[%s2 + $0x128] sm:$0xf]
      %v743 = vld [vmem:[%s2 + $0x12c] sm:$0xf]
      %v744 = vld [vmem:[%s2 + $0x130] sm:$0xf]
      %v745 = vld [vmem:[%s2 + $0x134] sm:$0xf]
      %v746 = vld [vmem:[%s2 + $0x138] sm:$0xf]
      %v747 = vld [vmem:[%s2 + $0x13c] sm:$0xf]
      %v748 = vld [vmem:[%s2 + $0x140] sm:$0xf]
      %v749 = vld [vmem:[%s2 + $0x144] sm:$0xf]
      %v750 = vld [vmem:[%s2 + $0x148] sm:$0xf]
      %v751 = vld [vmem:[%s2 + $0x14c] sm:$0xf]
      %v752 = vld [vmem:[%s2 + $0x150] sm:$0xf]
      %v753 = vld [vmem:[%s2 + $0x154] sm:$0xf]
      %v754 = vld [vmem:[%s2 + $0x158] sm:$0xf]
      %v755 = vld [vmem:[%s2 + $0x15c] sm:$0xf]
      %v756 = vld [vmem:[%s2 + $0x160] sm:$0xf]
      %v757 = vld [vmem:[%s2 + $0x164] sm:$0xf]
      %v758 = vld [vmem:[%s2 + $0x168] sm:$0xf]
      %v759 = vld [vmem:[%s2 + $0x16c] sm:$0xf]
      %v760 = vld [vmem:[%s2 + $0x170] sm:$0xf]
      %v761 = vld [vmem:[%s2 + $0x174] sm:$0xf]
      %v762 = vld [vmem:[%s2 + $0x178] sm:$0xf]
      %v763 = vld [vmem:[%s2 + $0x17c] sm:$0xf]
      %v764 = vld [vmem:[%s2 + $0x180] sm:$0xf]
      %v765 = vld [vmem:[%s2 + $0x184] sm:$0xf]
      %v766 = vld [vmem:[%s2 + $0x188] sm:$0xf]
      %v767 = vld [vmem:[%s2 + $0x18c] sm:$0xf]
      %v768 = vld [vmem:[%s2 + $0x190] sm:$0xf]
      %v769 = vld [vmem:[%s2 + $0x194] sm:$0xf]
      %v770 = vld [vmem:[%s2 + $0x198] sm:$0xf]
      %v771 = vld [vmem:[%s2 + $0x19c] sm:$0xf]
      %v772 = vld [vmem:[%s2 + $0x1a0] sm:$0xf]
      %v773 = vld [vmem:[%s2 + $0x1a4] sm:$0xf]
      %v774 = vld [vmem:[%s2 + $0x1a8] sm:$0xf]
      %v775 = vld [vmem:[%s2 + $0x1ac] sm:$0xf]
      %v776 = vld [vmem:[%s2 + $0x1b0] sm:$0xf]
      %v777 = vld [vmem:[%s2 + $0x1b4] sm:$0xf]
      %v778 = vld [vmem:[%s2 + $0x1b8] sm:$0xf]
      %v779 = vld [vmem:[%s2 + $0x1bc] sm:$0xf]
      %v780 = vld [vmem:[%s3] sm:$0x1]
      %v782 = vlaneseq
      %v783 = vshrl.u32 %v782, 7
      %v784 = vsub.s32 0, %v783
      %v785 = vrot.slane %v780, %v784
      %v915 = vunpack.c.l.b16 %v540
      %v916 = vunpack.c.h.b16 %v540
      %v917 = vunpack.c.l.b16 %v541
      %v918 = vunpack.c.h.b16 %v541
      %v919 = vunpack.c.l.b16 %v542
      %v920 = vunpack.c.h.b16 %v542
      %v921 = vunpack.c.l.b16 %v543
      %v922 = vunpack.c.l.b16 %v544
      %v923 = vunpack.c.h.b16 %v544
      %v924 = vunpack.c.l.b16 %v545
      %v925 = vunpack.c.h.b16 %v545
      %v926 = vunpack.c.l.b16 %v546
      %v927 = vunpack.c.h.b16 %v546
      %v928 = vunpack.c.l.b16 %v547
      %v929 = vunpack.c.l.b16 %v548
      %v930 = vunpack.c.h.b16 %v548
      %v931 = vunpack.c.l.b16 %v549
      %v932 = vunpack.c.h.b16 %v549
      %v933 = vunpack.c.l.b16 %v550
      %v934 = vunpack.c.h.b16 %v550
      %v935 = vunpack.c.l.b16 %v551
      %v936 = vunpack.c.l.b16 %v552
      %v937 = vunpack.c.h.b16 %v552
      %v938 = vunpack.c.l.b16 %v553
      %v939 = vunpack.c.h.b16 %v553
      %v940 = vunpack.c.l.b16 %v554
      %v941 = vunpack.c.h.b16 %v554
      %v942 = vunpack.c.l.b16 %v555
      %v943 = vunpack.c.l.b16 %v556
      %v944 = vunpack.c.h.b16 %v556
      %v945 = vunpack.c.l.b16 %v557
      %v946 = vunpack.c.h.b16 %v557
      %v947 = vunpack.c.l.b16 %v558
      %v948 = vunpack.c.h.b16 %v558
      %v949 = vunpack.c.l.b16 %v559
      %v950 = vunpack.c.l.b16 %v560
      %v951 = vunpack.c.h.b16 %v560
      %v952 = vunpack.c.l.b16 %v561
      %v953 = vunpack.c.h.b16 %v561
      %v954 = vunpack.c.l.b16 %v562
      %v955 = vunpack.c.h.b16 %v562
      %v956 = vunpack.c.l.b16 %v563
      %v957 = vunpack.c.l.b16 %v564
      %v958 = vunpack.c.h.b16 %v564
      %v959 = vunpack.c.l.b16 %v565
      %v960 = vunpack.c.h.b16 %v565
      %v961 = vunpack.c.l.b16 %v566
      %v962 = vunpack.c.h.b16 %v566
      %v963 = vunpack.c.l.b16 %v567
      %v964 = vunpack.c.l.b16 %v568
      %v965 = vunpack.c.h.b16 %v568
      %v966 = vunpack.c.l.b16 %v569
      %v967 = vunpack.c.h.b16 %v569
      %v968 = vunpack.c.l.b16 %v570
      %v969 = vunpack.c.h.b16 %v570
      %v970 = vunpack.c.l.b16 %v571
      %v971 = vunpack.c.l.b16 %v572
      %v972 = vunpack.c.h.b16 %v572
      %v973 = vunpack.c.l.b16 %v573
      %v974 = vunpack.c.h.b16 %v573
      %v975 = vunpack.c.l.b16 %v574
      %v976 = vunpack.c.h.b16 %v574
      %v977 = vunpack.c.l.b16 %v575
      %v978 = vunpack.c.l.b16 %v576
      %v979 = vunpack.c.h.b16 %v576
      %v980 = vunpack.c.l.b16 %v577
      %v981 = vunpack.c.h.b16 %v577
      %v982 = vunpack.c.l.b16 %v578
      %v983 = vunpack.c.h.b16 %v578
      %v984 = vunpack.c.l.b16 %v579
      %v985 = vunpack.c.l.b16 %v580
      %v986 = vunpack.c.h.b16 %v580
      %v987 = vunpack.c.l.b16 %v581
      %v988 = vunpack.c.h.b16 %v581
      %v989 = vunpack.c.l.b16 %v582
      %v990 = vunpack.c.h.b16 %v582
      %v991 = vunpack.c.l.b16 %v583
      %v992 = vunpack.c.l.b16 %v584
      %v993 = vunpack.c.h.b16 %v584
      %v994 = vunpack.c.l.b16 %v585
      %v995 = vunpack.c.h.b16 %v585
      %v996 = vunpack.c.l.b16 %v586
      %v997 = vunpack.c.h.b16 %v586
      %v998 = vunpack.c.l.b16 %v587
      %v999 = vunpack.c.l.b16 %v588
      %v1000 = vunpack.c.h.b16 %v588
      %v1001 = vunpack.c.l.b16 %v589
      %v1002 = vunpack.c.h.b16 %v589
      %v1003 = vunpack.c.l.b16 %v590
      %v1004 = vunpack.c.h.b16 %v590
      %v1005 = vunpack.c.l.b16 %v591
      %v1006 = vunpack.c.l.b16 %v592
      %v1007 = vunpack.c.h.b16 %v592
      %v1008 = vunpack.c.l.b16 %v593
      %v1009 = vunpack.c.h.b16 %v593
      %v1010 = vunpack.c.l.b16 %v594
      %v1011 = vunpack.c.h.b16 %v594
      %v1012 = vunpack.c.l.b16 %v595
      %v1013 = vunpack.c.l.b16 %v596
      %v1014 = vunpack.c.h.b16 %v596
      %v1015 = vunpack.c.l.b16 %v597
      %v1016 = vunpack.c.h.b16 %v597
      %v1017 = vunpack.c.l.b16 %v598
      %v1018 = vunpack.c.h.b16 %v598
      %v1019 = vunpack.c.l.b16 %v599
      %v1020 = vunpack.c.l.b16 %v600
      %v1021 = vunpack.c.h.b16 %v600
      %v1022 = vunpack.c.l.b16 %v601
      %v1023 = vunpack.c.h.b16 %v601
      %v1024 = vunpack.c.l.b16 %v602
      %v1025 = vunpack.c.h.b16 %v602
      %v1026 = vunpack.c.l.b16 %v603
      %v1027 = vunpack.c.l.b16 %v604
      %v1028 = vunpack.c.h.b16 %v604
      %v1029 = vunpack.c.l.b16 %v605
      %v1030 = vunpack.c.h.b16 %v605
      %v1031 = vunpack.c.l.b16 %v606
      %v1032 = vunpack.c.h.b16 %v606
      %v1033 = vunpack.c.l.b16 %v607
      %v1034 = vunpack.c.l.b16 %v608
      %v1035 = vunpack.c.h.b16 %v608
      %v1036 = vunpack.c.l.b16 %v609
      %v1037 = vunpack.c.h.b16 %v609
      %v1038 = vunpack.c.l.b16 %v610
      %v1039 = vunpack.c.h.b16 %v610
      %v1040 = vunpack.c.l.b16 %v611
      %v1041 = vunpack.c.l.b16 %v612
      %v1042 = vunpack.c.h.b16 %v612
      %v1043 = vunpack.c.l.b16 %v613
      %v1044 = vunpack.c.h.b16 %v613
      %v1045 = vunpack.c.l.b16 %v614
      %v1046 = vunpack.c.h.b16 %v614
      %v1047 = vunpack.c.l.b16 %v615
      %v1048 = vunpack.c.l.b16 %v616
      %v1049 = vunpack.c.h.b16 %v616
      %v1050 = vunpack.c.l.b16 %v617
      %v1051 = vunpack.c.h.b16 %v617
      %v1052 = vunpack.c.l.b16 %v618
      %v1053 = vunpack.c.h.b16 %v618
      %v1054 = vunpack.c.l.b16 %v619
      %v1055 = vunpack.c.l.b16 %v620
      %v1056 = vunpack.c.h.b16 %v620
      %v1057 = vunpack.c.l.b16 %v621
      %v1058 = vunpack.c.h.b16 %v621
      %v1059 = vunpack.c.l.b16 %v622
      %v1060 = vunpack.c.h.b16 %v622
      %v1061 = vunpack.c.l.b16 %v623
      %v1062 = vunpack.c.l.b16 %v624
      %v1063 = vunpack.c.h.b16 %v624
      %v1064 = vunpack.c.l.b16 %v625
      %v1065 = vunpack.c.h.b16 %v625
      %v1066 = vunpack.c.l.b16 %v626
      %v1067 = vunpack.c.h.b16 %v626
      %v1068 = vunpack.c.l.b16 %v627
      %v1069 = vunpack.c.l.b16 %v628
      %v1070 = vunpack.c.h.b16 %v628
      %v1071 = vunpack.c.l.b16 %v629
      %v1072 = vunpack.c.h.b16 %v629
      %v1073 = vunpack.c.l.b16 %v630
      %v1074 = vunpack.c.h.b16 %v630
      %v1075 = vunpack.c.l.b16 %v631
      %v1076 = vunpack.c.l.b16 %v632
      %v1077 = vunpack.c.h.b16 %v632
      %v1078 = vunpack.c.l.b16 %v633
      %v1079 = vunpack.c.h.b16 %v633
      %v1080 = vunpack.c.l.b16 %v634
      %v1081 = vunpack.c.h.b16 %v634
      %v1082 = vunpack.c.l.b16 %v635
      %v1083 = vunpack.c.l.b16 %v636
      %v1084 = vunpack.c.h.b16 %v636
      %v1085 = vunpack.c.l.b16 %v637
      %v1086 = vunpack.c.h.b16 %v637
      %v1087 = vunpack.c.l.b16 %v638
      %v1088 = vunpack.c.h.b16 %v638
      %v1089 = vunpack.c.l.b16 %v639
      %v1090 = vunpack.c.l.b16 %v640
      %v1091 = vunpack.c.h.b16 %v640
      %v1092 = vunpack.c.l.b16 %v641
      %v1093 = vunpack.c.h.b16 %v641
      %v1094 = vunpack.c.l.b16 %v642
      %v1095 = vunpack.c.h.b16 %v642
      %v1096 = vunpack.c.l.b16 %v643
      %v1097 = vunpack.c.l.b16 %v644
      %v1098 = vunpack.c.h.b16 %v644
      %v1099 = vunpack.c.l.b16 %v645
      %v1100 = vunpack.c.h.b16 %v645
      %v1101 = vunpack.c.l.b16 %v646
      %v1102 = vunpack.c.h.b16 %v646
      %v1103 = vunpack.c.l.b16 %v647
      %v1104 = vunpack.c.l.b16 %v648
      %v1105 = vunpack.c.h.b16 %v648
      %v1106 = vunpack.c.l.b16 %v649
      %v1107 = vunpack.c.h.b16 %v649
      %v1108 = vunpack.c.l.b16 %v650
      %v1109 = vunpack.c.h.b16 %v650
      %v1110 = vunpack.c.l.b16 %v651
      %v1111 = vunpack.c.l.b16 %v652
      %v1112 = vunpack.c.h.b16 %v652
      %v1113 = vunpack.c.l.b16 %v653
      %v1114 = vunpack.c.h.b16 %v653
      %v1115 = vunpack.c.l.b16 %v654
      %v1116 = vunpack.c.h.b16 %v654
      %v1117 = vunpack.c.l.b16 %v655
      %v1118 = vunpack.c.l.b16 %v656
      %v1119 = vunpack.c.h.b16 %v656
      %v1120 = vunpack.c.l.b16 %v657
      %v1121 = vunpack.c.h.b16 %v657
      %v1122 = vunpack.c.l.b16 %v658
      %v1123 = vunpack.c.h.b16 %v658
      %v1124 = vunpack.c.l.b16 %v659
      %v1125 = vunpack.c.l.b16 %v660
      %v1126 = vunpack.c.h.b16 %v660
      %v1127 = vunpack.c.l.b16 %v661
      %v1128 = vunpack.c.h.b16 %v661
      %v1129 = vunpack.c.l.b16 %v662
      %v1130 = vunpack.c.h.b16 %v662
      %v1131 = vunpack.c.l.b16 %v663
      %v1132 = vunpack.c.l.b16 %v664
      %v1133 = vunpack.c.h.b16 %v664
      %v1134 = vunpack.c.l.b16 %v665
      %v1135 = vunpack.c.h.b16 %v665
      %v1136 = vunpack.c.l.b16 %v666
      %v1137 = vunpack.c.h.b16 %v666
      %v1138 = vunpack.c.l.b16 %v667
      %v1139 = vpack.c.b16 %v922, %v915
      %v1140 = vpack.c.b16 %v923, %v916
      %v1141 = vpack.c.b16 %v924, %v917
      %v1142 = vpack.c.b16 %v925, %v918
      %v1143 = vpack.c.b16 %v926, %v919
      %v1144 = vpack.c.b16 %v927, %v920
      %v1145 = vpack.c.b16 %v928, %v921
      %v1146 = vpack.c.b16 %v936, %v929
      %v1147 = vpack.c.b16 %v937, %v930
      %v1148 = vpack.c.b16 %v938, %v931
      %v1149 = vpack.c.b16 %v939, %v932
      %v1150 = vpack.c.b16 %v940, %v933
      %v1151 = vpack.c.b16 %v941, %v934
      %v1152 = vpack.c.b16 %v942, %v935
      %v1153 = vpack.c.b16 %v950, %v943
      %v1154 = vpack.c.b16 %v951, %v944
      %v1155 = vpack.c.b16 %v952, %v945
      %v1156 = vpack.c.b16 %v953, %v946
      %v1157 = vpack.c.b16 %v954, %v947
      %v1158 = vpack.c.b16 %v955, %v948
      %v1159 = vpack.c.b16 %v956, %v949
      %v1160 = vpack.c.b16 %v964, %v957
      %v1161 = vpack.c.b16 %v965, %v958
      %v1162 = vpack.c.b16 %v966, %v959
      %v1163 = vpack.c.b16 %v967, %v960
      %v1164 = vpack.c.b16 %v968, %v961
      %v1165 = vpack.c.b16 %v969, %v962
      %v1166 = vpack.c.b16 %v970, %v963
      %v1167 = vpack.c.b16 %v978, %v971
      %v1168 = vpack.c.b16 %v979, %v972
      %v1169 = vpack.c.b16 %v980, %v973
      %v1170 = vpack.c.b16 %v981, %v974
      %v1171 = vpack.c.b16 %v982, %v975
      %v1172 = vpack.c.b16 %v983, %v976
      %v1173 = vpack.c.b16 %v984, %v977
      %v1174 = vpack.c.b16 %v992, %v985
      %v1175 = vpack.c.b16 %v993, %v986
      %v1176 = vpack.c.b16 %v994, %v987
      %v1177 = vpack.c.b16 %v995, %v988
      %v1178 = vpack.c.b16 %v996, %v989
      %v1179 = vpack.c.b16 %v997, %v990
      %v1180 = vpack.c.b16 %v998, %v991
      %v1181 = vpack.c.b16 %v1006, %v999
      %v1182 = vpack.c.b16 %v1007, %v1000
      %v1183 = vpack.c.b16 %v1008, %v1001
      %v1184 = vpack.c.b16 %v1009, %v1002
      %v1185 = vpack.c.b16 %v1010, %v1003
      %v1186 = vpack.c.b16 %v1011, %v1004
      %v1187 = vpack.c.b16 %v1012, %v1005
      %v1188 = vpack.c.b16 %v1020, %v1013
      %v1189 = vpack.c.b16 %v1021, %v1014
      %v1190 = vpack.c.b16 %v1022, %v1015
      %v1191 = vpack.c.b16 %v1023, %v1016
      %v1192 = vpack.c.b16 %v1024, %v1017
      %v1193 = vpack.c.b16 %v1025, %v1018
      %v1194 = vpack.c.b16 %v1026, %v1019
      %v1195 = vpack.c.b16 %v1034, %v1027
      %v1196 = vpack.c.b16 %v1035, %v1028
      %v1197 = vpack.c.b16 %v1036, %v1029
      %v1198 = vpack.c.b16 %v1037, %v1030
      %v1199 = vpack.c.b16 %v1038, %v1031
      %v1200 = vpack.c.b16 %v1039, %v1032
      %v1201 = vpack.c.b16 %v1040, %v1033
      %v1202 = vpack.c.b16 %v1048, %v1041
      %v1203 = vpack.c.b16 %v1049, %v1042
      %v1204 = vpack.c.b16 %v1050, %v1043
      %v1205 = vpack.c.b16 %v1051, %v1044
      %v1206 = vpack.c.b16 %v1052, %v1045
      %v1207 = vpack.c.b16 %v1053, %v1046
      %v1208 = vpack.c.b16 %v1054, %v1047
      %v1209 = vpack.c.b16 %v1062, %v1055
      %v1210 = vpack.c.b16 %v1063, %v1056
      %v1211 = vpack.c.b16 %v1064, %v1057
      %v1212 = vpack.c.b16 %v1065, %v1058
      %v1213 = vpack.c.b16 %v1066, %v1059
      %v1214 = vpack.c.b16 %v1067, %v1060
      %v1215 = vpack.c.b16 %v1068, %v1061
      %v1216 = vpack.c.b16 %v1076, %v1069
      %v1217 = vpack.c.b16 %v1077, %v1070
      %v1218 = vpack.c.b16 %v1078, %v1071
      %v1219 = vpack.c.b16 %v1079, %v1072
      %v1220 = vpack.c.b16 %v1080, %v1073
      %v1221 = vpack.c.b16 %v1081, %v1074
      %v1222 = vpack.c.b16 %v1082, %v1075
      %v1223 = vpack.c.b16 %v1090, %v1083
      %v1224 = vpack.c.b16 %v1091, %v1084
      %v1225 = vpack.c.b16 %v1092, %v1085
      %v1226 = vpack.c.b16 %v1093, %v1086
      %v1227 = vpack.c.b16 %v1094, %v1087
      %v1228 = vpack.c.b16 %v1095, %v1088
      %v1229 = vpack.c.b16 %v1096, %v1089
      %v1230 = vpack.c.b16 %v1104, %v1097
      %v1231 = vpack.c.b16 %v1105, %v1098
      %v1232 = vpack.c.b16 %v1106, %v1099
      %v1233 = vpack.c.b16 %v1107, %v1100
      %v1234 = vpack.c.b16 %v1108, %v1101
      %v1235 = vpack.c.b16 %v1109, %v1102
      %v1236 = vpack.c.b16 %v1110, %v1103
      %v1237 = vpack.c.b16 %v1118, %v1111
      %v1238 = vpack.c.b16 %v1119, %v1112
      %v1239 = vpack.c.b16 %v1120, %v1113
      %v1240 = vpack.c.b16 %v1121, %v1114
      %v1241 = vpack.c.b16 %v1122, %v1115
      %v1242 = vpack.c.b16 %v1123, %v1116
      %v1243 = vpack.c.b16 %v1124, %v1117
      %v1244 = vpack.c.b16 %v1132, %v1125
      %v1245 = vpack.c.b16 %v1133, %v1126
      %v1246 = vpack.c.b16 %v1134, %v1127
      %v1247 = vpack.c.b16 %v1135, %v1128
      %v1248 = vpack.c.b16 %v1136, %v1129
      %v1249 = vpack.c.b16 %v1137, %v1130
      %v1250 = vpack.c.b16 %v1138, %v1131
      %v1475 = vunpack.c.l.b16 %v668
      %v1476 = vunpack.c.l.b16 %v669
      %v1477 = vunpack.c.l.b16 %v670
      %v1478 = vunpack.c.l.b16 %v671
      %v1479 = vunpack.c.l.b16 %v672
      %v1480 = vunpack.c.l.b16 %v673
      %v1481 = vunpack.c.l.b16 %v674
      %v1482 = vunpack.c.l.b16 %v675
      %v1483 = vunpack.c.l.b16 %v676
      %v1484 = vunpack.c.l.b16 %v677
      %v1485 = vunpack.c.l.b16 %v678
      %v1486 = vunpack.c.l.b16 %v679
      %v1487 = vunpack.c.l.b16 %v680
      %v1488 = vunpack.c.l.b16 %v681
      %v1489 = vunpack.c.l.b16 %v682
      %v1490 = vunpack.c.l.b16 %v683
      %v1491 = vunpack.c.l.b16 %v684
      %v1492 = vunpack.c.l.b16 %v685
      %v1493 = vunpack.c.l.b16 %v686
      %v1494 = vunpack.c.l.b16 %v687
      %v1495 = vunpack.c.l.b16 %v688
      %v1496 = vunpack.c.l.b16 %v689
      %v1497 = vunpack.c.l.b16 %v690
      %v1498 = vunpack.c.l.b16 %v691
      %v1499 = vunpack.c.l.b16 %v692
      %v1500 = vunpack.c.l.b16 %v693
      %v1501 = vunpack.c.l.b16 %v694
      %v1502 = vunpack.c.l.b16 %v695
      %v1503 = vunpack.c.l.b16 %v696
      %v1504 = vunpack.c.l.b16 %v697
      %v1505 = vunpack.c.l.b16 %v698
      %v1506 = vunpack.c.l.b16 %v699
      %v1507 = vunpack.c.l.b16 %v700
      %v1508 = vunpack.c.l.b16 %v701
      %v1509 = vunpack.c.l.b16 %v702
      %v1510 = vunpack.c.l.b16 %v703
      %v1511 = vunpack.c.l.b16 %v704
      %v1512 = vunpack.c.l.b16 %v705
      %v1513 = vunpack.c.l.b16 %v706
      %v1514 = vunpack.c.l.b16 %v707
      %v1515 = vunpack.c.l.b16 %v708
      %v1516 = vunpack.c.l.b16 %v709
      %v1517 = vunpack.c.l.b16 %v710
      %v1518 = vunpack.c.l.b16 %v711
      %v1519 = vunpack.c.l.b16 %v712
      %v1520 = vunpack.c.l.b16 %v713
      %v1521 = vunpack.c.l.b16 %v714
      %v1522 = vunpack.c.l.b16 %v715
      %v1523 = vunpack.c.l.b16 %v716
      %v1524 = vunpack.c.l.b16 %v717
      %v1525 = vunpack.c.l.b16 %v718
      %v1526 = vunpack.c.l.b16 %v719
      %v1527 = vunpack.c.l.b16 %v720
      %v1528 = vunpack.c.l.b16 %v721
      %v1529 = vunpack.c.l.b16 %v722
      %v1530 = vunpack.c.l.b16 %v723
      %v1531 = vunpack.c.l.b16 %v724
      %v1532 = vunpack.c.l.b16 %v725
      %v1533 = vunpack.c.l.b16 %v726
      %v1534 = vunpack.c.l.b16 %v727
      %v1535 = vunpack.c.l.b16 %v728
      %v1536 = vunpack.c.l.b16 %v729
      %v1537 = vunpack.c.l.b16 %v730
      %v1538 = vunpack.c.l.b16 %v731
      %v1539 = vunpack.c.l.b16 %v732
      %v1540 = vunpack.c.l.b16 %v733
      %v1541 = vunpack.c.l.b16 %v734
      %v1542 = vunpack.c.l.b16 %v735
      %v1543 = vunpack.c.l.b16 %v736
      %v1544 = vunpack.c.l.b16 %v737
      %v1545 = vunpack.c.l.b16 %v738
      %v1546 = vunpack.c.l.b16 %v739
      %v1547 = vunpack.c.l.b16 %v740
      %v1548 = vunpack.c.l.b16 %v741
      %v1549 = vunpack.c.l.b16 %v742
      %v1550 = vunpack.c.l.b16 %v743
      %v1551 = vunpack.c.l.b16 %v744
      %v1552 = vunpack.c.l.b16 %v745
      %v1553 = vunpack.c.l.b16 %v746
      %v1554 = vunpack.c.l.b16 %v747
      %v1555 = vunpack.c.l.b16 %v748
      %v1556 = vunpack.c.l.b16 %v749
      %v1557 = vunpack.c.l.b16 %v750
      %v1558 = vunpack.c.l.b16 %v751
      %v1559 = vunpack.c.l.b16 %v752
      %v1560 = vunpack.c.l.b16 %v753
      %v1561 = vunpack.c.l.b16 %v754
      %v1562 = vunpack.c.l.b16 %v755
      %v1563 = vunpack.c.l.b16 %v756
      %v1564 = vunpack.c.l.b16 %v757
      %v1565 = vunpack.c.l.b16 %v758
      %v1566 = vunpack.c.l.b16 %v759
      %v1567 = vunpack.c.l.b16 %v760
      %v1568 = vunpack.c.l.b16 %v761
      %v1569 = vunpack.c.l.b16 %v762
      %v1570 = vunpack.c.l.b16 %v763
      %v1571 = vunpack.c.l.b16 %v764
      %v1572 = vunpack.c.l.b16 %v765
      %v1573 = vunpack.c.l.b16 %v766
      %v1574 = vunpack.c.l.b16 %v767
      %v1575 = vunpack.c.l.b16 %v768
      %v1576 = vunpack.c.l.b16 %v769
      %v1577 = vunpack.c.l.b16 %v770
      %v1578 = vunpack.c.l.b16 %v771
      %v1579 = vunpack.c.l.b16 %v772
      %v1580 = vunpack.c.l.b16 %v773
      %v1581 = vunpack.c.l.b16 %v774
      %v1582 = vunpack.c.l.b16 %v775
      %v1583 = vunpack.c.l.b16 %v776
      %v1584 = vunpack.c.l.b16 %v777
      %v1585 = vunpack.c.l.b16 %v778
      %v1586 = vunpack.c.l.b16 %v779
      %v1587 = vpack.c.b16 %v1476, %v1475
      %v1588 = vpack.c.b16 %v1478, %v1477
      %v1589 = vpack.c.b16 %v1480, %v1479
      %v1590 = vpack.c.b16 %v1482, %v1481
      %v1591 = vpack.c.b16 %v1484, %v1483
      %v1592 = vpack.c.b16 %v1486, %v1485
      %v1593 = vpack.c.b16 %v1488, %v1487
      %v1594 = vpack.c.b16 %v1490, %v1489
      %v1595 = vpack.c.b16 %v1492, %v1491
      %v1596 = vpack.c.b16 %v1494, %v1493
      %v1597 = vpack.c.b16 %v1496, %v1495
      %v1598 = vpack.c.b16 %v1498, %v1497
      %v1599 = vpack.c.b16 %v1500, %v1499
      %v1600 = vpack.c.b16 %v1502, %v1501
      %v1601 = vpack.c.b16 %v1504, %v1503
      %v1602 = vpack.c.b16 %v1506, %v1505
      %v1603 = vpack.c.b16 %v1508, %v1507
      %v1604 = vpack.c.b16 %v1510, %v1509
      %v1605 = vpack.c.b16 %v1512, %v1511
      %v1606 = vpack.c.b16 %v1514, %v1513
      %v1607 = vpack.c.b16 %v1516, %v1515
      %v1608 = vpack.c.b16 %v1518, %v1517
      %v1609 = vpack.c.b16 %v1520, %v1519
      %v1610 = vpack.c.b16 %v1522, %v1521
      %v1611 = vpack.c.b16 %v1524, %v1523
      %v1612 = vpack.c.b16 %v1526, %v1525
      %v1613 = vpack.c.b16 %v1528, %v1527
      %v1614 = vpack.c.b16 %v1530, %v1529
      %v1615 = vpack.c.b16 %v1532, %v1531
      %v1616 = vpack.c.b16 %v1534, %v1533
      %v1617 = vpack.c.b16 %v1536, %v1535
      %v1618 = vpack.c.b16 %v1538, %v1537
      %v1619 = vpack.c.b16 %v1540, %v1539
      %v1620 = vpack.c.b16 %v1542, %v1541
      %v1621 = vpack.c.b16 %v1544, %v1543
      %v1622 = vpack.c.b16 %v1546, %v1545
      %v1623 = vpack.c.b16 %v1548, %v1547
      %v1624 = vpack.c.b16 %v1550, %v1549
      %v1625 = vpack.c.b16 %v1552, %v1551
      %v1626 = vpack.c.b16 %v1554, %v1553
      %v1627 = vpack.c.b16 %v1556, %v1555
      %v1628 = vpack.c.b16 %v1558, %v1557
      %v1629 = vpack.c.b16 %v1560, %v1559
      %v1630 = vpack.c.b16 %v1562, %v1561
      %v1631 = vpack.c.b16 %v1564, %v1563
      %v1632 = vpack.c.b16 %v1566, %v1565
      %v1633 = vpack.c.b16 %v1568, %v1567
      %v1634 = vpack.c.b16 %v1570, %v1569
      %v1635 = vpack.c.b16 %v1572, %v1571
      %v1636 = vpack.c.b16 %v1574, %v1573
      %v1637 = vpack.c.b16 %v1576, %v1575
      %v1638 = vpack.c.b16 %v1578, %v1577
      %v1639 = vpack.c.b16 %v1580, %v1579
      %v1640 = vpack.c.b16 %v1582, %v1581
      %v1641 = vpack.c.b16 %v1584, %v1583
      %v1642 = vpack.c.b16 %v1586, %v1585
      %1699 = vmatprep.subr.bf16.mxu0 0
      %1700 = vmatpush1.bf16.msra.mxu0 %v1594
      %1701 = vmatprep.subr.bf16.mxu0 0
      %1702 = vmatpush1.bf16.msra.mxu0 %v1593
      %1703 = vmatprep.subr.bf16.mxu0 0
      %1704 = vmatpush1.bf16.msra.mxu0 %v1592
      %1705 = vmatprep.subr.bf16.mxu0 0
      %1706 = vmatpush1.bf16.msra.mxu0 %v1591
      %1707 = vmatprep.subr.bf16.mxu0 0
      %1708 = vmatpush1.bf16.msra.mxu0 %v1590
      %1709 = vmatprep.subr.bf16.mxu0 0
      %1710 = vmatpush1.bf16.msra.mxu0 %v1589
      %1711 = vmatprep.subr.bf16.mxu0 0
      %1712 = vmatpush1.bf16.msra.mxu0 %v1588
      %1713 = vmatprep.subr.bf16.mxu0 0
      %1714 = vmatpush1.bf16.msra.mxu0 %v1587
      %1715 = vmatprep.subr.bf16.mxu0 0
      %1716 = vmatpush2.bf16.msra.mxu0 %v1602
      %1717 = vmatprep.subr.bf16.mxu0 0
      %1718 = vmatpush2.bf16.msra.mxu0 %v1601
      %1719 = vmatprep.subr.bf16.mxu0 0
      %1720 = vmatpush2.bf16.msra.mxu0 %v1600
      %1721 = vmatprep.subr.bf16.mxu0 0
      %1722 = vmatpush2.bf16.msra.mxu0 %v1599
      %1723 = vmatprep.subr.bf16.mxu0 0
      %1724 = vmatpush2.bf16.msra.mxu0 %v1598
      %1725 = vmatprep.subr.bf16.mxu0 0
      %1726 = vmatpush2.bf16.msra.mxu0 %v1597
      %1727 = vmatprep.subr.bf16.mxu0 0
      %1728 = vmatpush2.bf16.msra.mxu0 %v1596
      %1729 = vmatprep.subr.bf16.mxu0 0
      %1730 = vmatpush2.bf16.msra.mxu0 %v1595
      %1731 = vmatprep.mubr.bf16.mxu0 %v1140
      %1732 = vmatmul.mubr.bf16.gmra.mxu0 %v1139
      %v1733 = vpop.f32.mrf.mxu0
      %v1734 = vadd.f32 %v785, %v1733
      %v1735 = vpop.f32.mrf.mxu0
      %v1736 = vpop.f32.mrf.mxu0
      %v1737 = vadd.f32 %v785, %v1736
      %v1738 = vpop.f32.mrf.mxu0
      %1739 = vmatprep.mubr.bf16.mxu0 %v1147
      %1740 = vmatmul.mubr.bf16.gmra.mxu0 %v1146
      %v1741 = vpop.f32.mrf.mxu0
      %v1742 = vadd.f32 %v785, %v1741
      %v1743 = vpop.f32.mrf.mxu0
      %v1744 = vpop.f32.mrf.mxu0
      %v1745 = vadd.f32 %v785, %v1744
      %v1746 = vpop.f32.mrf.mxu0
      %1747 = vmatprep.mubr.bf16.mxu0 %v1154
      %1748 = vmatmul.mubr.bf16.gmra.mxu0 %v1153
      %v1749 = vpop.f32.mrf.mxu0
      %v1750 = vadd.f32 %v785, %v1749
      %v1751 = vpop.f32.mrf.mxu0
      %v1752 = vpop.f32.mrf.mxu0
      %v1753 = vadd.f32 %v785, %v1752
      %v1754 = vpop.f32.mrf.mxu0
      %1755 = vmatprep.mubr.bf16.mxu0 %v1161
      %1756 = vmatmul.mubr.bf16.gmra.mxu0 %v1160
      %v1757 = vpop.f32.mrf.mxu0
      %v1758 = vadd.f32 %v785, %v1757
      %v1759 = vpop.f32.mrf.mxu0
      %v1760 = vpop.f32.mrf.mxu0
      %v1761 = vadd.f32 %v785, %v1760
      %v1762 = vpop.f32.mrf.mxu0
      %1763 = vmatprep.mubr.bf16.mxu0 %v1168
      %1764 = vmatmul.mubr.bf16.gmra.mxu0 %v1167
      %v1765 = vpop.f32.mrf.mxu0
      %v1766 = vadd.f32 %v785, %v1765
      %v1767 = vpop.f32.mrf.mxu0
      %v1768 = vpop.f32.mrf.mxu0
      %v1769 = vadd.f32 %v785, %v1768
      %v1770 = vpop.f32.mrf.mxu0
      %1771 = vmatprep.mubr.bf16.mxu0 %v1175
      %1772 = vmatmul.mubr.bf16.gmra.mxu0 %v1174
      %v1773 = vpop.f32.mrf.mxu0
      %v1774 = vadd.f32 %v785, %v1773
      %v1775 = vpop.f32.mrf.mxu0
      %v1776 = vpop.f32.mrf.mxu0
      %v1777 = vadd.f32 %v785, %v1776
      %v1778 = vpop.f32.mrf.mxu0
      %1779 = vmatprep.mubr.bf16.mxu0 %v1182
      %1780 = vmatmul.mubr.bf16.gmra.mxu0 %v1181
      %v1781 = vpop.f32.mrf.mxu0
      %v1782 = vadd.f32 %v785, %v1781
      %v1783 = vpop.f32.mrf.mxu0
      %v1784 = vpop.f32.mrf.mxu0
      %v1785 = vadd.f32 %v785, %v1784
      %v1786 = vpop.f32.mrf.mxu0
      %1787 = vmatprep.mubr.bf16.mxu0 %v1189
      %1788 = vmatmul.mubr.bf16.gmra.mxu0 %v1188
      %v1789 = vpop.f32.mrf.mxu0
      %v1790 = vadd.f32 %v785, %v1789
      %v1791 = vpop.f32.mrf.mxu0
      %v1792 = vpop.f32.mrf.mxu0
      %v1793 = vadd.f32 %v785, %v1792
      %v1794 = vpop.f32.mrf.mxu0
      %1795 = vmatprep.mubr.bf16.mxu0 %v1196
      %1796 = vmatmul.mubr.bf16.gmra.mxu0 %v1195
      %v1797 = vpop.f32.mrf.mxu0
      %v1798 = vadd.f32 %v785, %v1797
      %v1799 = vpop.f32.mrf.mxu0
      %v1800 = vpop.f32.mrf.mxu0
      %v1801 = vadd.f32 %v785, %v1800
      %v1802 = vpop.f32.mrf.mxu0
      %1803 = vmatprep.mubr.bf16.mxu0 %v1203
      %1804 = vmatmul.mubr.bf16.gmra.mxu0 %v1202
      %v1805 = vpop.f32.mrf.mxu0
      %v1806 = vadd.f32 %v785, %v1805
      %v1807 = vpop.f32.mrf.mxu0
      %v1808 = vpop.f32.mrf.mxu0
      %v1809 = vadd.f32 %v785, %v1808
      %v1810 = vpop.f32.mrf.mxu0
      %1811 = vmatprep.mubr.bf16.mxu0 %v1210
      %1812 = vmatmul.mubr.bf16.gmra.mxu0 %v1209
      %v1813 = vpop.f32.mrf.mxu0
      %v1814 = vadd.f32 %v785, %v1813
      %v1815 = vpop.f32.mrf.mxu0
      %v1816 = vpop.f32.mrf.mxu0
      %v1817 = vadd.f32 %v785, %v1816
      %v1818 = vpop.f32.mrf.mxu0
      %1819 = vmatprep.mubr.bf16.mxu0 %v1217
      %1820 = vmatmul.mubr.bf16.gmra.mxu0 %v1216
      %v1821 = vpop.f32.mrf.mxu0
      %v1822 = vadd.f32 %v785, %v1821
      %v1823 = vpop.f32.mrf.mxu0
      %v1824 = vpop.f32.mrf.mxu0
      %v1825 = vadd.f32 %v785, %v1824
      %v1826 = vpop.f32.mrf.mxu0
      %1827 = vmatprep.mubr.bf16.mxu0 %v1224
      %1828 = vmatmul.mubr.bf16.gmra.mxu0 %v1223
      %v1829 = vpop.f32.mrf.mxu0
      %v1830 = vadd.f32 %v785, %v1829
      %v1831 = vpop.f32.mrf.mxu0
      %v1832 = vpop.f32.mrf.mxu0
      %v1833 = vadd.f32 %v785, %v1832
      %v1834 = vpop.f32.mrf.mxu0
      %1835 = vmatprep.mubr.bf16.mxu0 %v1231
      %1836 = vmatmul.mubr.bf16.gmra.mxu0 %v1230
      %v1837 = vpop.f32.mrf.mxu0
      %v1838 = vadd.f32 %v785, %v1837
      %v1839 = vpop.f32.mrf.mxu0
      %v1840 = vpop.f32.mrf.mxu0
      %v1841 = vadd.f32 %v785, %v1840
      %v1842 = vpop.f32.mrf.mxu0
      %1843 = vmatprep.mubr.bf16.mxu0 %v1238
      %1844 = vmatmul.mubr.bf16.gmra.mxu0 %v1237
      %v1845 = vpop.f32.mrf.mxu0
      %v1846 = vadd.f32 %v785, %v1845
      %v1847 = vpop.f32.mrf.mxu0
      %v1848 = vpop.f32.mrf.mxu0
      %v1849 = vadd.f32 %v785, %v1848
      %v1850 = vpop.f32.mrf.mxu0
      %1851 = vmatprep.mubr.bf16.mxu0 %v1245
      %1852 = vmatmul.mubr.bf16.gmra.mxu0 %v1244
      %v1853 = vpop.f32.mrf.mxu0
      %v1854 = vadd.f32 %v785, %v1853
      %v1855 = vpop.f32.mrf.mxu0
      %v1856 = vpop.f32.mrf.mxu0
      %v1857 = vadd.f32 %v785, %v1856
      %v1858 = vpop.f32.mrf.mxu0
      %1859 = vdwg.mxu0
      %1860 = vmatprep.subr.bf16.mxu0 0
      %1861 = vmatpush1.bf16.msra.mxu0 %v1610
      %1862 = vmatprep.subr.bf16.mxu0 0
      %1863 = vmatpush1.bf16.msra.mxu0 %v1609
      %1864 = vmatprep.subr.bf16.mxu0 0
      %1865 = vmatpush1.bf16.msra.mxu0 %v1608
      %1866 = vmatprep.subr.bf16.mxu0 0
      %1867 = vmatpush1.bf16.msra.mxu0 %v1607
      %1868 = vmatprep.subr.bf16.mxu0 0
      %1869 = vmatpush1.bf16.msra.mxu0 %v1606
      %1870 = vmatprep.subr.bf16.mxu0 0
      %1871 = vmatpush1.bf16.msra.mxu0 %v1605
      %1872 = vmatprep.subr.bf16.mxu0 0
      %1873 = vmatpush1.bf16.msra.mxu0 %v1604
      %1874 = vmatprep.subr.bf16.mxu0 0
      %1875 = vmatpush1.bf16.msra.mxu0 %v1603
      %1876 = vmatprep.subr.bf16.mxu0 0
      %1877 = vmatpush2.bf16.msra.mxu0 %v1618
      %1878 = vmatprep.subr.bf16.mxu0 0
      %1879 = vmatpush2.bf16.msra.mxu0 %v1617
      %1880 = vmatprep.subr.bf16.mxu0 0
      %1881 = vmatpush2.bf16.msra.mxu0 %v1616
      %1882 = vmatprep.subr.bf16.mxu0 0
      %1883 = vmatpush2.bf16.msra.mxu0 %v1615
      %1884 = vmatprep.subr.bf16.mxu0 0
      %1885 = vmatpush2.bf16.msra.mxu0 %v1614
      %1886 = vmatprep.subr.bf16.mxu0 0
      %1887 = vmatpush2.bf16.msra.mxu0 %v1613
      %1888 = vmatprep.subr.bf16.mxu0 0
      %1889 = vmatpush2.bf16.msra.mxu0 %v1612
      %1890 = vmatprep.subr.bf16.mxu0 0
      %1891 = vmatpush2.bf16.msra.mxu0 %v1611
      %1892 = vmatprep.mubr.bf16.mxu0 %v1142
      %1893 = vmatmul.mubr.bf16.gmra.mxu0 %v1141
      %v1894 = vpop.f32.mrf.mxu0
      %v1895 = vadd.f32 %v1734, %v1894
      %v1896 = vpop.f32.mrf.mxu0
      %v1897 = vpop.f32.mrf.mxu0
      %v1898 = vadd.f32 %v1737, %v1897
      %v1899 = vpop.f32.mrf.mxu0
      %1900 = vmatprep.mubr.bf16.mxu0 %v1149
      %1901 = vmatmul.mubr.bf16.gmra.mxu0 %v1148
      %v1902 = vpop.f32.mrf.mxu0
      %v1903 = vadd.f32 %v1742, %v1902
      %v1904 = vpop.f32.mrf.mxu0
      %v1905 = vpop.f32.mrf.mxu0
      %v1906 = vadd.f32 %v1745, %v1905
      %v1907 = vpop.f32.mrf.mxu0
      %1908 = vmatprep.mubr.bf16.mxu0 %v1156
      %1909 = vmatmul.mubr.bf16.gmra.mxu0 %v1155
      %v1910 = vpop.f32.mrf.mxu0
      %v1911 = vadd.f32 %v1750, %v1910
      %v1912 = vpop.f32.mrf.mxu0
      %v1913 = vpop.f32.mrf.mxu0
      %v1914 = vadd.f32 %v1753, %v1913
      %v1915 = vpop.f32.mrf.mxu0
      %1916 = vmatprep.mubr.bf16.mxu0 %v1163
      %1917 = vmatmul.mubr.bf16.gmra.mxu0 %v1162
      %v1918 = vpop.f32.mrf.mxu0
      %v1919 = vadd.f32 %v1758, %v1918
      %v1920 = vpop.f32.mrf.mxu0
      %v1921 = vpop.f32.mrf.mxu0
      %v1922 = vadd.f32 %v1761, %v1921
      %v1923 = vpop.f32.mrf.mxu0
      %1924 = vmatprep.mubr.bf16.mxu0 %v1170
      %1925 = vmatmul.mubr.bf16.gmra.mxu0 %v1169
      %v1926 = vpop.f32.mrf.mxu0
      %v1927 = vadd.f32 %v1766, %v1926
      %v1928 = vpop.f32.mrf.mxu0
      %v1929 = vpop.f32.mrf.mxu0
      %v1930 = vadd.f32 %v1769, %v1929
      %v1931 = vpop.f32.mrf.mxu0
      %1932 = vmatprep.mubr.bf16.mxu0 %v1177
      %1933 = vmatmul.mubr.bf16.gmra.mxu0 %v1176
      %v1934 = vpop.f32.mrf.mxu0
      %v1935 = vadd.f32 %v1774, %v1934
      %v1936 = vpop.f32.mrf.mxu0
      %v1937 = vpop.f32.mrf.mxu0
      %v1938 = vadd.f32 %v1777, %v1937
      %v1939 = vpop.f32.mrf.mxu0
      %1940 = vmatprep.mubr.bf16.mxu0 %v1184
      %1941 = vmatmul.mubr.bf16.gmra.mxu0 %v1183
      %v1942 = vpop.f32.mrf.mxu0
      %v1943 = vadd.f32 %v1782, %v1942
      %v1944 = vpop.f32.mrf.mxu0
      %v1945 = vpop.f32.mrf.mxu0
      %v1946 = vadd.f32 %v1785, %v1945
      %v1947 = vpop.f32.mrf.mxu0
      %1948 = vmatprep.mubr.bf16.mxu0 %v1191
      %1949 = vmatmul.mubr.bf16.gmra.mxu0 %v1190
      %v1950 = vpop.f32.mrf.mxu0
      %v1951 = vadd.f32 %v1790, %v1950
      %v1952 = vpop.f32.mrf.mxu0
      %v1953 = vpop.f32.mrf.mxu0
      %v1954 = vadd.f32 %v1793, %v1953
      %v1955 = vpop.f32.mrf.mxu0
      %1956 = vmatprep.mubr.bf16.mxu0 %v1198
      %1957 = vmatmul.mubr.bf16.gmra.mxu0 %v1197
      %v1958 = vpop.f32.mrf.mxu0
      %v1959 = vadd.f32 %v1798, %v1958
      %v1960 = vpop.f32.mrf.mxu0
      %v1961 = vpop.f32.mrf.mxu0
      %v1962 = vadd.f32 %v1801, %v1961
      %v1963 = vpop.f32.mrf.mxu0
      %1964 = vmatprep.mubr.bf16.mxu0 %v1205
      %1965 = vmatmul.mubr.bf16.gmra.mxu0 %v1204
      %v1966 = vpop.f32.mrf.mxu0
      %v1967 = vadd.f32 %v1806, %v1966
      %v1968 = vpop.f32.mrf.mxu0
      %v1969 = vpop.f32.mrf.mxu0
      %v1970 = vadd.f32 %v1809, %v1969
      %v1971 = vpop.f32.mrf.mxu0
      %1972 = vmatprep.mubr.bf16.mxu0 %v1212
      %1973 = vmatmul.mubr.bf16.gmra.mxu0 %v1211
      %v1974 = vpop.f32.mrf.mxu0
      %v1975 = vadd.f32 %v1814, %v1974
      %v1976 = vpop.f32.mrf.mxu0
      %v1977 = vpop.f32.mrf.mxu0
      %v1978 = vadd.f32 %v1817, %v1977
      %v1979 = vpop.f32.mrf.mxu0
      %1980 = vmatprep.mubr.bf16.mxu0 %v1219
      %1981 = vmatmul.mubr.bf16.gmra.mxu0 %v1218
      %v1982 = vpop.f32.mrf.mxu0
      %v1983 = vadd.f32 %v1822, %v1982
      %v1984 = vpop.f32.mrf.mxu0
      %v1985 = vpop.f32.mrf.mxu0
      %v1986 = vadd.f32 %v1825, %v1985
      %v1987 = vpop.f32.mrf.mxu0
      %1988 = vmatprep.mubr.bf16.mxu0 %v1226
      %1989 = vmatmul.mubr.bf16.gmra.mxu0 %v1225
      %v1990 = vpop.f32.mrf.mxu0
      %v1991 = vadd.f32 %v1830, %v1990
      %v1992 = vpop.f32.mrf.mxu0
      %v1993 = vpop.f32.mrf.mxu0
      %v1994 = vadd.f32 %v1833, %v1993
      %v1995 = vpop.f32.mrf.mxu0
      %1996 = vmatprep.mubr.bf16.mxu0 %v1233
      %1997 = vmatmul.mubr.bf16.gmra.mxu0 %v1232
      %v1998 = vpop.f32.mrf.mxu0
      %v1999 = vadd.f32 %v1838, %v1998
      %v2000 = vpop.f32.mrf.mxu0
      %v2001 = vpop.f32.mrf.mxu0
      %v2002 = vadd.f32 %v1841, %v2001
      %v2003 = vpop.f32.mrf.mxu0
      %2004 = vmatprep.mubr.bf16.mxu0 %v1240
      %2005 = vmatmul.mubr.bf16.gmra.mxu0 %v1239
      %v2006 = vpop.f32.mrf.mxu0
      %v2007 = vadd.f32 %v1846, %v2006
      %v2008 = vpop.f32.mrf.mxu0
      %v2009 = vpop.f32.mrf.mxu0
      %v2010 = vadd.f32 %v1849, %v2009
      %v2011 = vpop.f32.mrf.mxu0
      %2012 = vmatprep.mubr.bf16.mxu0 %v1247
      %2013 = vmatmul.mubr.bf16.gmra.mxu0 %v1246
      %v2014 = vpop.f32.mrf.mxu0
      %v2015 = vadd.f32 %v1854, %v2014
      %v2016 = vpop.f32.mrf.mxu0
      %v2017 = vpop.f32.mrf.mxu0
      %v2018 = vadd.f32 %v1857, %v2017
      %v2019 = vpop.f32.mrf.mxu0
      %2020 = vdwg.mxu0
      %2021 = vmatprep.subr.bf16.mxu0 0
      %2022 = vmatpush1.bf16.msra.mxu0 %v1626
      %2023 = vmatprep.subr.bf16.mxu0 0
      %2024 = vmatpush1.bf16.msra.mxu0 %v1625
      %2025 = vmatprep.subr.bf16.mxu0 0
      %2026 = vmatpush1.bf16.msra.mxu0 %v1624
      %2027 = vmatprep.subr.bf16.mxu0 0
      %2028 = vmatpush1.bf16.msra.mxu0 %v1623
      %2029 = vmatprep.subr.bf16.mxu0 0
      %2030 = vmatpush1.bf16.msra.mxu0 %v1622
      %2031 = vmatprep.subr.bf16.mxu0 0
      %2032 = vmatpush1.bf16.msra.mxu0 %v1621
      %2033 = vmatprep.subr.bf16.mxu0 0
      %2034 = vmatpush1.bf16.msra.mxu0 %v1620
      %2035 = vmatprep.subr.bf16.mxu0 0
      %2036 = vmatpush1.bf16.msra.mxu0 %v1619
      %2037 = vmatprep.subr.bf16.mxu0 0
      %2038 = vmatpush2.bf16.msra.mxu0 %v1634
      %2039 = vmatprep.subr.bf16.mxu0 0
      %2040 = vmatpush2.bf16.msra.mxu0 %v1633
      %2041 = vmatprep.subr.bf16.mxu0 0
      %2042 = vmatpush2.bf16.msra.mxu0 %v1632
      %2043 = vmatprep.subr.bf16.mxu0 0
      %2044 = vmatpush2.bf16.msra.mxu0 %v1631
      %2045 = vmatprep.subr.bf16.mxu0 0
      %2046 = vmatpush2.bf16.msra.mxu0 %v1630
      %2047 = vmatprep.subr.bf16.mxu0 0
      %2048 = vmatpush2.bf16.msra.mxu0 %v1629
      %2049 = vmatprep.subr.bf16.mxu0 0
      %2050 = vmatpush2.bf16.msra.mxu0 %v1628
      %2051 = vmatprep.subr.bf16.mxu0 0
      %2052 = vmatpush2.bf16.msra.mxu0 %v1627
      %2053 = vmatprep.mubr.bf16.mxu0 %v1144
      %2054 = vmatmul.mubr.bf16.gmra.mxu0 %v1143
      %v2055 = vpop.f32.mrf.mxu0
      %v2056 = vadd.f32 %v1895, %v2055
      %v2057 = vpop.f32.mrf.mxu0
      %v2058 = vpop.f32.mrf.mxu0
      %v2059 = vadd.f32 %v1898, %v2058
      %v2060 = vpop.f32.mrf.mxu0
      %2061 = vmatprep.mubr.bf16.mxu0 %v1151
      %2062 = vmatmul.mubr.bf16.gmra.mxu0 %v1150
      %v2063 = vpop.f32.mrf.mxu0
      %v2064 = vadd.f32 %v1903, %v2063
      %v2065 = vpop.f32.mrf.mxu0
      %v2066 = vpop.f32.mrf.mxu0
      %v2067 = vadd.f32 %v1906, %v2066
      %v2068 = vpop.f32.mrf.mxu0
      %2069 = vmatprep.mubr.bf16.mxu0 %v1158
      %2070 = vmatmul.mubr.bf16.gmra.mxu0 %v1157
      %v2071 = vpop.f32.mrf.mxu0
      %v2072 = vadd.f32 %v1911, %v2071
      %v2073 = vpop.f32.mrf.mxu0
      %v2074 = vpop.f32.mrf.mxu0
      %v2075 = vadd.f32 %v1914, %v2074
      %v2076 = vpop.f32.mrf.mxu0
      %2077 = vmatprep.mubr.bf16.mxu0 %v1165
      %2078 = vmatmul.mubr.bf16.gmra.mxu0 %v1164
      %v2079 = vpop.f32.mrf.mxu0
      %v2080 = vadd.f32 %v1919, %v2079
      %v2081 = vpop.f32.mrf.mxu0
      %v2082 = vpop.f32.mrf.mxu0
      %v2083 = vadd.f32 %v1922, %v2082
      %v2084 = vpop.f32.mrf.mxu0
      %2085 = vmatprep.mubr.bf16.mxu0 %v1172
      %2086 = vmatmul.mubr.bf16.gmra.mxu0 %v1171
      %v2087 = vpop.f32.mrf.mxu0
      %v2088 = vadd.f32 %v1927, %v2087
      %v2089 = vpop.f32.mrf.mxu0
      %v2090 = vpop.f32.mrf.mxu0
      %v2091 = vadd.f32 %v1930, %v2090
      %v2092 = vpop.f32.mrf.mxu0
      %2093 = vmatprep.mubr.bf16.mxu0 %v1179
      %2094 = vmatmul.mubr.bf16.gmra.mxu0 %v1178
      %v2095 = vpop.f32.mrf.mxu0
      %v2096 = vadd.f32 %v1935, %v2095
      %v2097 = vpop.f32.mrf.mxu0
      %v2098 = vpop.f32.mrf.mxu0
      %v2099 = vadd.f32 %v1938, %v2098
      %v2100 = vpop.f32.mrf.mxu0
      %2101 = vmatprep.mubr.bf16.mxu0 %v1186
      %2102 = vmatmul.mubr.bf16.gmra.mxu0 %v1185
      %v2103 = vpop.f32.mrf.mxu0
      %v2104 = vadd.f32 %v1943, %v2103
      %v2105 = vpop.f32.mrf.mxu0
      %v2106 = vpop.f32.mrf.mxu0
      %v2107 = vadd.f32 %v1946, %v2106
      %v2108 = vpop.f32.mrf.mxu0
      %2109 = vmatprep.mubr.bf16.mxu0 %v1193
      %2110 = vmatmul.mubr.bf16.gmra.mxu0 %v1192
      %v2111 = vpop.f32.mrf.mxu0
      %v2112 = vadd.f32 %v1951, %v2111
      %v2113 = vpop.f32.mrf.mxu0
      %v2114 = vpop.f32.mrf.mxu0
      %v2115 = vadd.f32 %v1954, %v2114
      %v2116 = vpop.f32.mrf.mxu0
      %2117 = vmatprep.mubr.bf16.mxu0 %v1200
      %2118 = vmatmul.mubr.bf16.gmra.mxu0 %v1199
      %v2119 = vpop.f32.mrf.mxu0
      %v2120 = vadd.f32 %v1959, %v2119
      %v2121 = vpop.f32.mrf.mxu0
      %v2122 = vpop.f32.mrf.mxu0
      %v2123 = vadd.f32 %v1962, %v2122
      %v2124 = vpop.f32.mrf.mxu0
      %2125 = vmatprep.mubr.bf16.mxu0 %v1207
      %2126 = vmatmul.mubr.bf16.gmra.mxu0 %v1206
      %v2127 = vpop.f32.mrf.mxu0
      %v2128 = vadd.f32 %v1967, %v2127
      %v2129 = vpop.f32.mrf.mxu0
      %v2130 = vpop.f32.mrf.mxu0
      %v2131 = vadd.f32 %v1970, %v2130
      %v2132 = vpop.f32.mrf.mxu0
      %2133 = vmatprep.mubr.bf16.mxu0 %v1214
      %2134 = vmatmul.mubr.bf16.gmra.mxu0 %v1213
      %v2135 = vpop.f32.mrf.mxu0
      %v2136 = vadd.f32 %v1975, %v2135
      %v2137 = vpop.f32.mrf.mxu0
      %v2138 = vpop.f32.mrf.mxu0
      %v2139 = vadd.f32 %v1978, %v2138
      %v2140 = vpop.f32.mrf.mxu0
      %2141 = vmatprep.mubr.bf16.mxu0 %v1221
      %2142 = vmatmul.mubr.bf16.gmra.mxu0 %v1220
      %v2143 = vpop.f32.mrf.mxu0
      %v2144 = vadd.f32 %v1983, %v2143
      %v2145 = vpop.f32.mrf.mxu0
      %v2146 = vpop.f32.mrf.mxu0
      %v2147 = vadd.f32 %v1986, %v2146
      %v2148 = vpop.f32.mrf.mxu0
      %2149 = vmatprep.mubr.bf16.mxu0 %v1228
      %2150 = vmatmul.mubr.bf16.gmra.mxu0 %v1227
      %v2151 = vpop.f32.mrf.mxu0
      %v2152 = vadd.f32 %v1991, %v2151
      %v2153 = vpop.f32.mrf.mxu0
      %v2154 = vpop.f32.mrf.mxu0
      %v2155 = vadd.f32 %v1994, %v2154
      %v2156 = vpop.f32.mrf.mxu0
      %2157 = vmatprep.mubr.bf16.mxu0 %v1235
      %2158 = vmatmul.mubr.bf16.gmra.mxu0 %v1234
      %v2159 = vpop.f32.mrf.mxu0
      %v2160 = vadd.f32 %v1999, %v2159
      %v2161 = vpop.f32.mrf.mxu0
      %v2162 = vpop.f32.mrf.mxu0
      %v2163 = vadd.f32 %v2002, %v2162
      %v2164 = vpop.f32.mrf.mxu0
      %2165 = vmatprep.mubr.bf16.mxu0 %v1242
      %2166 = vmatmul.mubr.bf16.gmra.mxu0 %v1241
      %v2167 = vpop.f32.mrf.mxu0
      %v2168 = vadd.f32 %v2007, %v2167
      %v2169 = vpop.f32.mrf.mxu0
      %v2170 = vpop.f32.mrf.mxu0
      %v2171 = vadd.f32 %v2010, %v2170
      %v2172 = vpop.f32.mrf.mxu0
      %2173 = vmatprep.mubr.bf16.mxu0 %v1249
      %2174 = vmatmul.mubr.bf16.gmra.mxu0 %v1248
      %v2175 = vpop.f32.mrf.mxu0
      %v2176 = vadd.f32 %v2015, %v2175
      %v2177 = vpop.f32.mrf.mxu0
      %v2178 = vpop.f32.mrf.mxu0
      %v2179 = vadd.f32 %v2018, %v2178
      %v2180 = vpop.f32.mrf.mxu0
      %2181 = vdwg.mxu0
      %2182 = vmatprep.subr.bf16.mxu0 0
      %2183 = vmatpush1.bf16.msra.mxu0 %v1642
      %2184 = vmatprep.subr.bf16.mxu0 0
      %2185 = vmatpush1.bf16.msra.mxu0 %v1641
      %2186 = vmatprep.subr.bf16.mxu0 0
      %2187 = vmatpush1.bf16.msra.mxu0 %v1640
      %2188 = vmatprep.subr.bf16.mxu0 0
      %2189 = vmatpush1.bf16.msra.mxu0 %v1639
      %2190 = vmatprep.subr.bf16.mxu0 0
      %2191 = vmatpush1.bf16.msra.mxu0 %v1638
      %2192 = vmatprep.subr.bf16.mxu0 0
      %2193 = vmatpush1.bf16.msra.mxu0 %v1637
      %2194 = vmatprep.subr.bf16.mxu0 0
      %2195 = vmatpush1.bf16.msra.mxu0 %v1636
      %2196 = vmatprep.subr.bf16.mxu0 0
      %2197 = vmatpush1.bf16.msra.mxu0 %v1635
      %2198 = vmatprep.subr.bf16.mxu0 0
      %2199 = vmatpush2.bf16.msra.mxu0 0
      %2200 = vmatprep.subr.bf16.mxu0 0
      %2201 = vmatpush2.bf16.msra.mxu0 0
      %2202 = vmatprep.subr.bf16.mxu0 0
      %2203 = vmatpush2.bf16.msra.mxu0 0
      %2204 = vmatprep.subr.bf16.mxu0 0
      %2205 = vmatpush2.bf16.msra.mxu0 0
      %2206 = vmatprep.subr.bf16.mxu0 0
      %2207 = vmatpush2.bf16.msra.mxu0 0
      %2208 = vmatprep.subr.bf16.mxu0 0
      %2209 = vmatpush2.bf16.msra.mxu0 0
      %2210 = vmatprep.subr.bf16.mxu0 0
      %2211 = vmatpush2.bf16.msra.mxu0 0
      %2212 = vmatprep.subr.bf16.mxu0 0
      %2213 = vmatpush2.bf16.msra.mxu0 0
      %2214 = vmatprep.mubr.bf16.mxu0 0
      %2215 = vmatmul.mubr.bf16.gmra.mxu0 %v1145
      %v2216 = vpop.f32.mrf.mxu0
      %v2217 = vadd.f32 %v2056, %v2216
      %v2218 = vpop.f32.mrf.mxu0
      %v2219 = vpop.f32.mrf.mxu0
      %v2220 = vadd.f32 %v2059, %v2219
      %v2221 = vpop.f32.mrf.mxu0
      %2222 = vmatprep.mubr.bf16.mxu0 0
      %2223 = vmatmul.mubr.bf16.gmra.mxu0 %v1152
      %v2224 = vpop.f32.mrf.mxu0
      %v2225 = vadd.f32 %v2064, %v2224
      %v2226 = vpop.f32.mrf.mxu0
      %v2227 = vpop.f32.mrf.mxu0
      %v2228 = vadd.f32 %v2067, %v2227
      %v2229 = vpop.f32.mrf.mxu0
      %2230 = vmatprep.mubr.bf16.mxu0 0
      %2231 = vmatmul.mubr.bf16.gmra.mxu0 %v1159
      %v2232 = vpop.f32.mrf.mxu0
      %v2233 = vadd.f32 %v2072, %v2232
      %v2234 = vpop.f32.mrf.mxu0
      %v2235 = vpop.f32.mrf.mxu0
      %v2236 = vadd.f32 %v2075, %v2235
      %v2237 = vpop.f32.mrf.mxu0
      %2238 = vmatprep.mubr.bf16.mxu0 0
      %2239 = vmatmul.mubr.bf16.gmra.mxu0 %v1166
      %v2240 = vpop.f32.mrf.mxu0
      %v2241 = vadd.f32 %v2080, %v2240
      %v2242 = vpop.f32.mrf.mxu0
      %v2243 = vpop.f32.mrf.mxu0
      %v2244 = vadd.f32 %v2083, %v2243
      %v2245 = vpop.f32.mrf.mxu0
      %2246 = vmatprep.mubr.bf16.mxu0 0
      %2247 = vmatmul.mubr.bf16.gmra.mxu0 %v1173
      %v2248 = vpop.f32.mrf.mxu0
      %v2249 = vadd.f32 %v2088, %v2248
      %v2250 = vpop.f32.mrf.mxu0
      %v2251 = vpop.f32.mrf.mxu0
      %v2252 = vadd.f32 %v2091, %v2251
      %v2253 = vpop.f32.mrf.mxu0
      %2254 = vmatprep.mubr.bf16.mxu0 0
      %2255 = vmatmul.mubr.bf16.gmra.mxu0 %v1180
      %v2256 = vpop.f32.mrf.mxu0
      %v2257 = vadd.f32 %v2096, %v2256
      %v2258 = vpop.f32.mrf.mxu0
      %v2259 = vpop.f32.mrf.mxu0
      %v2260 = vadd.f32 %v2099, %v2259
      %v2261 = vpop.f32.mrf.mxu0
      %2262 = vmatprep.mubr.bf16.mxu0 0
      %2263 = vmatmul.mubr.bf16.gmra.mxu0 %v1187
      %v2264 = vpop.f32.mrf.mxu0
      %v2265 = vadd.f32 %v2104, %v2264
      %v2266 = vpop.f32.mrf.mxu0
      %v2267 = vpop.f32.mrf.mxu0
      %v2268 = vadd.f32 %v2107, %v2267
      %v2269 = vpop.f32.mrf.mxu0
      %2270 = vmatprep.mubr.bf16.mxu0 0
      %2271 = vmatmul.mubr.bf16.gmra.mxu0 %v1194
      %v2272 = vpop.f32.mrf.mxu0
      %v2273 = vadd.f32 %v2112, %v2272
      %v2274 = vpop.f32.mrf.mxu0
      %v2275 = vpop.f32.mrf.mxu0
      %v2276 = vadd.f32 %v2115, %v2275
      %v2277 = vpop.f32.mrf.mxu0
      %2278 = vmatprep.mubr.bf16.mxu0 0
      %2279 = vmatmul.mubr.bf16.gmra.mxu0 %v1201
      %v2280 = vpop.f32.mrf.mxu0
      %v2281 = vadd.f32 %v2120, %v2280
      %v2282 = vpop.f32.mrf.mxu0
      %v2283 = vpop.f32.mrf.mxu0
      %v2284 = vadd.f32 %v2123, %v2283
      %v2285 = vpop.f32.mrf.mxu0
      %2286 = vmatprep.mubr.bf16.mxu0 0
      %2287 = vmatmul.mubr.bf16.gmra.mxu0 %v1208
      %v2288 = vpop.f32.mrf.mxu0
      %v2289 = vadd.f32 %v2128, %v2288
      %v2290 = vpop.f32.mrf.mxu0
      %v2291 = vpop.f32.mrf.mxu0
      %v2292 = vadd.f32 %v2131, %v2291
      %v2293 = vpop.f32.mrf.mxu0
      %2294 = vmatprep.mubr.bf16.mxu0 0
      %2295 = vmatmul.mubr.bf16.gmra.mxu0 %v1215
      %v2296 = vpop.f32.mrf.mxu0
      %v2297 = vadd.f32 %v2136, %v2296
      %v2298 = vpop.f32.mrf.mxu0
      %v2299 = vpop.f32.mrf.mxu0
      %v2300 = vadd.f32 %v2139, %v2299
      %v2301 = vpop.f32.mrf.mxu0
      %2302 = vmatprep.mubr.bf16.mxu0 0
      %2303 = vmatmul.mubr.bf16.gmra.mxu0 %v1222
      %v2304 = vpop.f32.mrf.mxu0
      %v2305 = vadd.f32 %v2144, %v2304
      %v2306 = vpop.f32.mrf.mxu0
      %v2307 = vpop.f32.mrf.mxu0
      %v2308 = vadd.f32 %v2147, %v2307
      %v2309 = vpop.f32.mrf.mxu0
      %2310 = vmatprep.mubr.bf16.mxu0 0
      %2311 = vmatmul.mubr.bf16.gmra.mxu0 %v1229
      %v2312 = vpop.f32.mrf.mxu0
      %v2313 = vadd.f32 %v2152, %v2312
      %v2314 = vpop.f32.mrf.mxu0
      %v2315 = vpop.f32.mrf.mxu0
      %v2316 = vadd.f32 %v2155, %v2315
      %v2317 = vpop.f32.mrf.mxu0
      %2318 = vmatprep.mubr.bf16.mxu0 0
      %2319 = vmatmul.mubr.bf16.gmra.mxu0 %v1236
      %v2320 = vpop.f32.mrf.mxu0
      %v2321 = vadd.f32 %v2160, %v2320
      %v2322 = vpop.f32.mrf.mxu0
      %v2323 = vpop.f32.mrf.mxu0
      %v2324 = vadd.f32 %v2163, %v2323
      %v2325 = vpop.f32.mrf.mxu0
      %2326 = vmatprep.mubr.bf16.mxu0 0
      %2327 = vmatmul.mubr.bf16.gmra.mxu0 %v1243
      %v2328 = vpop.f32.mrf.mxu0
      %v2329 = vadd.f32 %v2168, %v2328
      %v2330 = vpop.f32.mrf.mxu0
      %v2331 = vpop.f32.mrf.mxu0
      %v2332 = vadd.f32 %v2171, %v2331
      %v2333 = vpop.f32.mrf.mxu0
      %2334 = vmatprep.mubr.bf16.mxu0 0
      %2335 = vmatmul.mubr.bf16.gmra.mxu0 %v1250
      %v2336 = vpop.f32.mrf.mxu0
      %v2337 = vadd.f32 %v2176, %v2336
      %v2338 = vpop.f32.mrf.mxu0
      %v2339 = vpop.f32.mrf.mxu0
      %v2340 = vadd.f32 %v2179, %v2339
      %v2341 = vpop.f32.mrf.mxu0
      %2342 = vdwg.mxu0
      %v2343 = vmax.f32 %v2217, 0.0
      %v2344 = vmax.f32 %v2220, 0.0
      %v2345 = vmax.f32 %v2225, 0.0
      %v2346 = vmax.f32 %v2228, 0.0
      %v2347 = vmax.f32 %v2233, 0.0
      %v2348 = vmax.f32 %v2236, 0.0
      %v2349 = vmax.f32 %v2241, 0.0
      %v2350 = vmax.f32 %v2244, 0.0
      %v2351 = vmax.f32 %v2249, 0.0
      %v2352 = vmax.f32 %v2252, 0.0
      %v2353 = vmax.f32 %v2257, 0.0
      %v2354 = vmax.f32 %v2260, 0.0
      %v2355 = vmax.f32 %v2265, 0.0
      %v2356 = vmax.f32 %v2268, 0.0
      %v2357 = vmax.f32 %v2273, 0.0
      %v2358 = vmax.f32 %v2276, 0.0
      %v2359 = vmax.f32 %v2281, 0.0
      %v2360 = vmax.f32 %v2284, 0.0
      %v2361 = vmax.f32 %v2289, 0.0
      %v2362 = vmax.f32 %v2292, 0.0
      %v2363 = vmax.f32 %v2297, 0.0
      %v2364 = vmax.f32 %v2300, 0.0
      %v2365 = vmax.f32 %v2305, 0.0
      %v2366 = vmax.f32 %v2308, 0.0
      %v2367 = vmax.f32 %v2313, 0.0
      %v2368 = vmax.f32 %v2316, 0.0
      %v2369 = vmax.f32 %v2321, 0.0
      %v2370 = vmax.f32 %v2324, 0.0
      %v2371 = vmax.f32 %v2329, 0.0
      %v2372 = vmax.f32 %v2332, 0.0
      %v2373 = vmax.f32 %v2337, 0.0
      %v2374 = vmax.f32 %v2340, 0.0
      %v2375 = vpack.c.bf16 %v2344, %v2343
      %v2376 = vpack.c.bf16 %v2346, %v2345
      %v2377 = vpack.c.bf16 %v2348, %v2347
      %v2378 = vpack.c.bf16 %v2350, %v2349
      %v2379 = vpack.c.bf16 %v2352, %v2351
      %v2380 = vpack.c.bf16 %v2354, %v2353
      %v2381 = vpack.c.bf16 %v2356, %v2355
      %v2382 = vpack.c.bf16 %v2358, %v2357
      %v2383 = vpack.c.bf16 %v2360, %v2359
      %v2384 = vpack.c.bf16 %v2362, %v2361
      %v2385 = vpack.c.bf16 %v2364, %v2363
      %v2386 = vpack.c.bf16 %v2366, %v2365
      %v2387 = vpack.c.bf16 %v2368, %v2367
      %v2388 = vpack.c.bf16 %v2370, %v2369
      %v2389 = vpack.c.bf16 %v2372, %v2371
      %v2390 = vpack.c.bf16 %v2374, %v2373
      %v2391 = vld [vmem:[%s4] sm:$0xf]
      %v2392 = vld [vmem:[%s4 + $0x4] sm:$0xf]
      %v2393 = vld [vmem:[%s4 + $0x8] sm:$0xf]
      %v2394 = vld [vmem:[%s4 + $0xc] sm:$0xf]
      %v2395 = vld [vmem:[%s4 + $0x10] sm:$0xf]
      %v2396 = vld [vmem:[%s4 + $0x14] sm:$0xf]
      %v2397 = vld [vmem:[%s4 + $0x18] sm:$0xf]
      %v2398 = vld [vmem:[%s4 + $0x1c] sm:$0xf]
      %v2399 = vld [vmem:[%s4 + $0x20] sm:$0xf]
      %v2400 = vld [vmem:[%s4 + $0x24] sm:$0xf]
      %v2401 = vld [vmem:[%s4 + $0x28] sm:$0xf]
      %v2402 = vld [vmem:[%s4 + $0x2c] sm:$0xf]
      %v2403 = vld [vmem:[%s4 + $0x30] sm:$0xf]
      %v2404 = vld [vmem:[%s4 + $0x34] sm:$0xf]
      %v2405 = vld [vmem:[%s4 + $0x38] sm:$0xf]
      %v2406 = vld [vmem:[%s4 + $0x3c] sm:$0xf]
      %v2407 = vld [vmem:[%s5] sm:$0x1]
      %v2409 = vlaneseq
      %v2410 = vshrl.u32 %v2409, 7
      %v2411 = vsub.s32 0, %v2410
      %v2412 = vrot.slane %v2407, %v2411
      %v2430 = vunpack.c.l.b16 %v2391
      %v2431 = vunpack.c.l.b16 %v2392
      %v2432 = vunpack.c.l.b16 %v2393
      %v2433 = vunpack.c.l.b16 %v2394
      %v2434 = vunpack.c.l.b16 %v2395
      %v2435 = vunpack.c.l.b16 %v2396
      %v2436 = vunpack.c.l.b16 %v2397
      %v2437 = vunpack.c.l.b16 %v2398
      %v2438 = vunpack.c.l.b16 %v2399
      %v2439 = vunpack.c.l.b16 %v2400
      %v2440 = vunpack.c.l.b16 %v2401
      %v2441 = vunpack.c.l.b16 %v2402
      %v2442 = vunpack.c.l.b16 %v2403
      %v2443 = vunpack.c.l.b16 %v2404
      %v2444 = vunpack.c.l.b16 %v2405
      %v2445 = vunpack.c.l.b16 %v2406
      %v2446 = vpack.c.b16 %v2431, %v2430
      %v2447 = vpack.c.b16 %v2433, %v2432
      %v2448 = vpack.c.b16 %v2435, %v2434
      %v2449 = vpack.c.b16 %v2437, %v2436
      %v2450 = vpack.c.b16 %v2439, %v2438
      %v2451 = vpack.c.b16 %v2441, %v2440
      %v2452 = vpack.c.b16 %v2443, %v2442
      %v2453 = vpack.c.b16 %v2445, %v2444
      %2462 = vmatprep.subr.bf16.mxu0 0
      %2463 = vmatpush1.bf16.msra.mxu0 %v2453
      %2464 = vmatprep.subr.bf16.mxu0 0
      %2465 = vmatpush1.bf16.msra.mxu0 %v2452
      %2466 = vmatprep.subr.bf16.mxu0 0
      %2467 = vmatpush1.bf16.msra.mxu0 %v2451
      %2468 = vmatprep.subr.bf16.mxu0 0
      %2469 = vmatpush1.bf16.msra.mxu0 %v2450
      %2470 = vmatprep.subr.bf16.mxu0 0
      %2471 = vmatpush1.bf16.msra.mxu0 %v2449
      %2472 = vmatprep.subr.bf16.mxu0 0
      %2473 = vmatpush1.bf16.msra.mxu0 %v2448
      %2474 = vmatprep.subr.bf16.mxu0 0
      %2475 = vmatpush1.bf16.msra.mxu0 %v2447
      %2476 = vmatprep.subr.bf16.mxu0 0
      %2477 = vmatpush1.bf16.msra.mxu0 %v2446
      %2478 = vmatprep.subr.bf16.mxu0 0
      %2479 = vmatpush2.bf16.msra.mxu0 0
      %2480 = vmatprep.subr.bf16.mxu0 0
      %2481 = vmatpush2.bf16.msra.mxu0 0
      %2482 = vmatprep.subr.bf16.mxu0 0
      %2483 = vmatpush2.bf16.msra.mxu0 0
      %2484 = vmatprep.subr.bf16.mxu0 0
      %2485 = vmatpush2.bf16.msra.mxu0 0
      %2486 = vmatprep.subr.bf16.mxu0 0
      %2487 = vmatpush2.bf16.msra.mxu0 0
      %2488 = vmatprep.subr.bf16.mxu0 0
      %2489 = vmatpush2.bf16.msra.mxu0 0
      %2490 = vmatprep.subr.bf16.mxu0 0
      %2491 = vmatpush2.bf16.msra.mxu0 0
      %2492 = vmatprep.subr.bf16.mxu0 0
      %2493 = vmatpush2.bf16.msra.mxu0 0
      %2494 = vmatprep.mubr.bf16.mxu0 0
      %2495 = vmatmul.mubr.bf16.gmra.mxu0 %v2375
      %v2496 = vpop.f32.mrf.mxu0
      %v2497 = vadd.f32 %v2412, %v2496
      %v2498 = vpop.f32.mrf.mxu0
      %v2499 = vpop.f32.mrf.mxu0
      %v2500 = vadd.f32 %v2412, %v2499
      %v2501 = vpop.f32.mrf.mxu0
      %2502 = vmatprep.mubr.bf16.mxu0 0
      %2503 = vmatmul.mubr.bf16.gmra.mxu0 %v2376
      %v2504 = vpop.f32.mrf.mxu0
      %v2505 = vadd.f32 %v2412, %v2504
      %v2506 = vpop.f32.mrf.mxu0
      %v2507 = vpop.f32.mrf.mxu0
      %v2508 = vadd.f32 %v2412, %v2507
      %v2509 = vpop.f32.mrf.mxu0
      %2510 = vmatprep.mubr.bf16.mxu0 0
      %2511 = vmatmul.mubr.bf16.gmra.mxu0 %v2377
      %v2512 = vpop.f32.mrf.mxu0
      %v2513 = vadd.f32 %v2412, %v2512
      %v2514 = vpop.f32.mrf.mxu0
      %v2515 = vpop.f32.mrf.mxu0
      %v2516 = vadd.f32 %v2412, %v2515
      %v2517 = vpop.f32.mrf.mxu0
      %2518 = vmatprep.mubr.bf16.mxu0 0
      %2519 = vmatmul.mubr.bf16.gmra.mxu0 %v2378
      %v2520 = vpop.f32.mrf.mxu0
      %v2521 = vadd.f32 %v2412, %v2520
      %v2522 = vpop.f32.mrf.mxu0
      %v2523 = vpop.f32.mrf.mxu0
      %v2524 = vadd.f32 %v2412, %v2523
      %v2525 = vpop.f32.mrf.mxu0
      %2526 = vmatprep.mubr.bf16.mxu0 0
      %2527 = vmatmul.mubr.bf16.gmra.mxu0 %v2379
      %v2528 = vpop.f32.mrf.mxu0
      %v2529 = vadd.f32 %v2412, %v2528
      %v2530 = vpop.f32.mrf.mxu0
      %v2531 = vpop.f32.mrf.mxu0
      %v2532 = vadd.f32 %v2412, %v2531
      %v2533 = vpop.f32.mrf.mxu0
      %2534 = vmatprep.mubr.bf16.mxu0 0
      %2535 = vmatmul.mubr.bf16.gmra.mxu0 %v2380
      %v2536 = vpop.f32.mrf.mxu0
      %v2537 = vadd.f32 %v2412, %v2536
      %v2538 = vpop.f32.mrf.mxu0
      %v2539 = vpop.f32.mrf.mxu0
      %v2540 = vadd.f32 %v2412, %v2539
      %v2541 = vpop.f32.mrf.mxu0
      %2542 = vmatprep.mubr.bf16.mxu0 0
      %2543 = vmatmul.mubr.bf16.gmra.mxu0 %v2381
      %v2544 = vpop.f32.mrf.mxu0
      %v2545 = vadd.f32 %v2412, %v2544
      %v2546 = vpop.f32.mrf.mxu0
      %v2547 = vpop.f32.mrf.mxu0
      %v2548 = vadd.f32 %v2412, %v2547
      %v2549 = vpop.f32.mrf.mxu0
      %2550 = vmatprep.mubr.bf16.mxu0 0
      %2551 = vmatmul.mubr.bf16.gmra.mxu0 %v2382
      %v2552 = vpop.f32.mrf.mxu0
      %v2553 = vadd.f32 %v2412, %v2552
      %v2554 = vpop.f32.mrf.mxu0
      %v2555 = vpop.f32.mrf.mxu0
      %v2556 = vadd.f32 %v2412, %v2555
      %v2557 = vpop.f32.mrf.mxu0
      %2558 = vmatprep.mubr.bf16.mxu0 0
      %2559 = vmatmul.mubr.bf16.gmra.mxu0 %v2383
      %v2560 = vpop.f32.mrf.mxu0
      %v2561 = vadd.f32 %v2412, %v2560
      %v2562 = vpop.f32.mrf.mxu0
      %v2563 = vpop.f32.mrf.mxu0
      %v2564 = vadd.f32 %v2412, %v2563
      %v2565 = vpop.f32.mrf.mxu0
      %2566 = vmatprep.mubr.bf16.mxu0 0
      %2567 = vmatmul.mubr.bf16.gmra.mxu0 %v2384
      %v2568 = vpop.f32.mrf.mxu0
      %v2569 = vadd.f32 %v2412, %v2568
      %v2570 = vpop.f32.mrf.mxu0
      %v2571 = vpop.f32.mrf.mxu0
      %v2572 = vadd.f32 %v2412, %v2571
      %v2573 = vpop.f32.mrf.mxu0
      %2574 = vmatprep.mubr.bf16.mxu0 0
      %2575 = vmatmul.mubr.bf16.gmra.mxu0 %v2385
      %v2576 = vpop.f32.mrf.mxu0
      %v2577 = vadd.f32 %v2412, %v2576
      %v2578 = vpop.f32.mrf.mxu0
      %v2579 = vpop.f32.mrf.mxu0
      %v2580 = vadd.f32 %v2412, %v2579
      %v2581 = vpop.f32.mrf.mxu0
      %2582 = vmatprep.mubr.bf16.mxu0 0
      %2583 = vmatmul.mubr.bf16.gmra.mxu0 %v2386
      %v2584 = vpop.f32.mrf.mxu0
      %v2585 = vadd.f32 %v2412, %v2584
      %v2586 = vpop.f32.mrf.mxu0
      %v2587 = vpop.f32.mrf.mxu0
      %v2588 = vadd.f32 %v2412, %v2587
      %v2589 = vpop.f32.mrf.mxu0
      %2590 = vmatprep.mubr.bf16.mxu0 0
      %2591 = vmatmul.mubr.bf16.gmra.mxu0 %v2387
      %v2592 = vpop.f32.mrf.mxu0
      %v2593 = vadd.f32 %v2412, %v2592
      %v2594 = vpop.f32.mrf.mxu0
      %v2595 = vpop.f32.mrf.mxu0
      %v2596 = vadd.f32 %v2412, %v2595
      %v2597 = vpop.f32.mrf.mxu0
      %2598 = vmatprep.mubr.bf16.mxu0 0
      %2599 = vmatmul.mubr.bf16.gmra.mxu0 %v2388
      %v2600 = vpop.f32.mrf.mxu0
      %v2601 = vadd.f32 %v2412, %v2600
      %v2602 = vpop.f32.mrf.mxu0
      %v2603 = vpop.f32.mrf.mxu0
      %v2604 = vadd.f32 %v2412, %v2603
      %v2605 = vpop.f32.mrf.mxu0
      %2606 = vmatprep.mubr.bf16.mxu0 0
      %2607 = vmatmul.mubr.bf16.gmra.mxu0 %v2389
      %v2608 = vpop.f32.mrf.mxu0
      %v2609 = vadd.f32 %v2412, %v2608
      %v2610 = vpop.f32.mrf.mxu0
      %v2611 = vpop.f32.mrf.mxu0
      %v2612 = vadd.f32 %v2412, %v2611
      %v2613 = vpop.f32.mrf.mxu0
      %2614 = vmatprep.mubr.bf16.mxu0 0
      %2615 = vmatmul.mubr.bf16.gmra.mxu0 %v2390
      %v2616 = vpop.f32.mrf.mxu0
      %v2617 = vadd.f32 %v2412, %v2616
      %v2618 = vpop.f32.mrf.mxu0
      %v2619 = vpop.f32.mrf.mxu0
      %v2620 = vadd.f32 %v2412, %v2619
      %v2621 = vpop.f32.mrf.mxu0
      %2622 = vdwg.mxu0
      %v2623 = vmax.f32 %v2497, 0.0
      %v2624 = vmax.f32 %v2500, 0.0
      %v2625 = vmax.f32 %v2505, 0.0
      %v2626 = vmax.f32 %v2508, 0.0
      %v2627 = vmax.f32 %v2513, 0.0
      %v2628 = vmax.f32 %v2516, 0.0
      %v2629 = vmax.f32 %v2521, 0.0
      %v2630 = vmax.f32 %v2524, 0.0
      %v2631 = vmax.f32 %v2529, 0.0
      %v2632 = vmax.f32 %v2532, 0.0
      %v2633 = vmax.f32 %v2537, 0.0
      %v2634 = vmax.f32 %v2540, 0.0
      %v2635 = vmax.f32 %v2545, 0.0
      %v2636 = vmax.f32 %v2548, 0.0
      %v2637 = vmax.f32 %v2553, 0.0
      %v2638 = vmax.f32 %v2556, 0.0
      %v2639 = vmax.f32 %v2561, 0.0
      %v2640 = vmax.f32 %v2564, 0.0
      %v2641 = vmax.f32 %v2569, 0.0
      %v2642 = vmax.f32 %v2572, 0.0
      %v2643 = vmax.f32 %v2577, 0.0
      %v2644 = vmax.f32 %v2580, 0.0
      %v2645 = vmax.f32 %v2585, 0.0
      %v2646 = vmax.f32 %v2588, 0.0
      %v2647 = vmax.f32 %v2593, 0.0
      %v2648 = vmax.f32 %v2596, 0.0
      %v2649 = vmax.f32 %v2601, 0.0
      %v2650 = vmax.f32 %v2604, 0.0
      %v2651 = vmax.f32 %v2609, 0.0
      %v2652 = vmax.f32 %v2612, 0.0
      %v2653 = vmax.f32 %v2617, 0.0
      %v2654 = vmax.f32 %v2620, 0.0
      %v2655 = vpack.c.bf16 %v2624, %v2623
      %v2656 = vpack.c.bf16 %v2626, %v2625
      %v2657 = vpack.c.bf16 %v2628, %v2627
      %v2658 = vpack.c.bf16 %v2630, %v2629
      %v2659 = vpack.c.bf16 %v2632, %v2631
      %v2660 = vpack.c.bf16 %v2634, %v2633
      %v2661 = vpack.c.bf16 %v2636, %v2635
      %v2662 = vpack.c.bf16 %v2638, %v2637
      %v2663 = vpack.c.bf16 %v2640, %v2639
      %v2664 = vpack.c.bf16 %v2642, %v2641
      %v2665 = vpack.c.bf16 %v2644, %v2643
      %v2666 = vpack.c.bf16 %v2646, %v2645
      %v2667 = vpack.c.bf16 %v2648, %v2647
      %v2668 = vpack.c.bf16 %v2650, %v2649
      %v2669 = vpack.c.bf16 %v2652, %v2651
      %v2670 = vpack.c.bf16 %v2654, %v2653
      %v2671 = vld [vmem:[%s6] sm:$0xf]
      %v2672 = vld [vmem:[%s6 + $0x4] sm:$0xf]
      %v2673 = vld [vmem:[%s6 + $0x8] sm:$0xf]
      %v2674 = vld [vmem:[%s6 + $0xc] sm:$0xf]
      %v2675 = vld [vmem:[%s6 + $0x10] sm:$0xf]
      %v2676 = vld [vmem:[%s6 + $0x14] sm:$0xf]
      %v2677 = vld [vmem:[%s6 + $0x18] sm:$0xf]
      %v2678 = vld [vmem:[%s6 + $0x1c] sm:$0xf]
      %v2679 = vld [vmem:[%s7] sm:$0x1]
      %v2681 = vlaneseq
      %v2682 = vshrl.u32 %v2681, 7
      %v2683 = vsub.s32 0, %v2682
      %v2684 = vrot.slane %v2679, %v2683
      %v2694 = vunpack.c.l.b16 %v2671
      %v2695 = vunpack.c.l.b16 %v2672
      %v2696 = vunpack.c.l.b16 %v2673
      %v2697 = vunpack.c.l.b16 %v2674
      %v2698 = vunpack.c.l.b16 %v2675
      %v2699 = vunpack.c.l.b16 %v2676
      %v2700 = vunpack.c.l.b16 %v2677
      %v2701 = vunpack.c.l.b16 %v2678
      %v2702 = vpack.c.b16 %v2695, %v2694
      %v2703 = vpack.c.b16 %v2697, %v2696
      %v2704 = vpack.c.b16 %v2699, %v2698
      %v2705 = vpack.c.b16 %v2701, %v2700
      %vm2710 = vcmask 523264
      %v2712 = vsel %vm2710, %v2655, 0
      %v2715 = vsel %vm2710, %v2656, 0
      %v2718 = vsel %vm2710, %v2657, 0
      %v2721 = vsel %vm2710, %v2658, 0
      %v2724 = vsel %vm2710, %v2659, 0
      %v2727 = vsel %vm2710, %v2660, 0
      %v2730 = vsel %vm2710, %v2661, 0
      %v2733 = vsel %vm2710, %v2662, 0
      %v2736 = vsel %vm2710, %v2663, 0
      %v2739 = vsel %vm2710, %v2664, 0
      %v2742 = vsel %vm2710, %v2665, 0
      %v2745 = vsel %vm2710, %v2666, 0
      %v2748 = vsel %vm2710, %v2667, 0
      %v2751 = vsel %vm2710, %v2668, 0
      %v2754 = vsel %vm2710, %v2669, 0
      %v2757 = vsel %vm2710, %v2670, 0
      %2759 = vmatprep.subr.bf16.mxu0 0
      %2760 = vmatpush1.bf16.msra.mxu0 0
      %2761 = vmatprep.subr.bf16.mxu0 0
      %2762 = vmatpush1.bf16.msra.mxu0 0
      %2763 = vmatprep.subr.bf16.mxu0 0
      %2764 = vmatpush1.bf16.msra.mxu0 0
      %2765 = vmatprep.subr.bf16.mxu0 0
      %2766 = vmatpush1.bf16.msra.mxu0 0
      %2767 = vmatprep.subr.bf16.mxu0 0
      %2768 = vmatpush1.bf16.msra.mxu0 %v2705
      %2769 = vmatprep.subr.bf16.mxu0 0
      %2770 = vmatpush1.bf16.msra.mxu0 %v2704
      %2771 = vmatprep.subr.bf16.mxu0 0
      %2772 = vmatpush1.bf16.msra.mxu0 %v2703
      %2773 = vmatprep.subr.bf16.mxu0 0
      %2774 = vmatpush1.bf16.msra.mxu0 %v2702
      %2775 = vmatprep.subr.bf16.mxu0 0
      %2776 = vmatpush2.bf16.msra.mxu0 0
      %2777 = vmatprep.subr.bf16.mxu0 0
      %2778 = vmatpush2.bf16.msra.mxu0 0
      %2779 = vmatprep.subr.bf16.mxu0 0
      %2780 = vmatpush2.bf16.msra.mxu0 0
      %2781 = vmatprep.subr.bf16.mxu0 0
      %2782 = vmatpush2.bf16.msra.mxu0 0
      %2783 = vmatprep.subr.bf16.mxu0 0
      %2784 = vmatpush2.bf16.msra.mxu0 0
      %2785 = vmatprep.subr.bf16.mxu0 0
      %2786 = vmatpush2.bf16.msra.mxu0 0
      %2787 = vmatprep.subr.bf16.mxu0 0
      %2788 = vmatpush2.bf16.msra.mxu0 0
      %2789 = vmatprep.subr.bf16.mxu0 0
      %2790 = vmatpush2.bf16.msra.mxu0 0
      %2791 = vmatprep.mubr.bf16.mxu0 0
      %2792 = vmatmul.mubr.bf16.gmra.mxu0 %v2712
      %v2793 = vpop.f32.mrf.mxu0
      %v2794 = vadd.f32 %v2684, %v2793
      %v2795 = vpop.f32.mrf.mxu0
      %v2796 = vpop.f32.mrf.mxu0
      %v2797 = vadd.f32 %v2684, %v2796
      %v2798 = vpop.f32.mrf.mxu0
      %2799 = vmatprep.mubr.bf16.mxu0 0
      %2800 = vmatmul.mubr.bf16.gmra.mxu0 %v2715
      %v2801 = vpop.f32.mrf.mxu0
      %v2802 = vadd.f32 %v2684, %v2801
      %v2803 = vpop.f32.mrf.mxu0
      %v2804 = vpop.f32.mrf.mxu0
      %v2805 = vadd.f32 %v2684, %v2804
      %v2806 = vpop.f32.mrf.mxu0
      %2807 = vmatprep.mubr.bf16.mxu0 0
      %2808 = vmatmul.mubr.bf16.gmra.mxu0 %v2718
      %v2809 = vpop.f32.mrf.mxu0
      %v2810 = vadd.f32 %v2684, %v2809
      %v2811 = vpop.f32.mrf.mxu0
      %v2812 = vpop.f32.mrf.mxu0
      %v2813 = vadd.f32 %v2684, %v2812
      %v2814 = vpop.f32.mrf.mxu0
      %2815 = vmatprep.mubr.bf16.mxu0 0
      %2816 = vmatmul.mubr.bf16.gmra.mxu0 %v2721
      %v2817 = vpop.f32.mrf.mxu0
      %v2818 = vadd.f32 %v2684, %v2817
      %v2819 = vpop.f32.mrf.mxu0
      %v2820 = vpop.f32.mrf.mxu0
      %v2821 = vadd.f32 %v2684, %v2820
      %v2822 = vpop.f32.mrf.mxu0
      %2823 = vmatprep.mubr.bf16.mxu0 0
      %2824 = vmatmul.mubr.bf16.gmra.mxu0 %v2724
      %v2825 = vpop.f32.mrf.mxu0
      %v2826 = vadd.f32 %v2684, %v2825
      %v2827 = vpop.f32.mrf.mxu0
      %v2828 = vpop.f32.mrf.mxu0
      %v2829 = vadd.f32 %v2684, %v2828
      %v2830 = vpop.f32.mrf.mxu0
      %2831 = vmatprep.mubr.bf16.mxu0 0
      %2832 = vmatmul.mubr.bf16.gmra.mxu0 %v2727
      %v2833 = vpop.f32.mrf.mxu0
      %v2834 = vadd.f32 %v2684, %v2833
      %v2835 = vpop.f32.mrf.mxu0
      %v2836 = vpop.f32.mrf.mxu0
      %v2837 = vadd.f32 %v2684, %v2836
      %v2838 = vpop.f32.mrf.mxu0
      %2839 = vmatprep.mubr.bf16.mxu0 0
      %2840 = vmatmul.mubr.bf16.gmra.mxu0 %v2730
      %v2841 = vpop.f32.mrf.mxu0
      %v2842 = vadd.f32 %v2684, %v2841
      %v2843 = vpop.f32.mrf.mxu0
      %v2844 = vpop.f32.mrf.mxu0
      %v2845 = vadd.f32 %v2684, %v2844
      %v2846 = vpop.f32.mrf.mxu0
      %2847 = vmatprep.mubr.bf16.mxu0 0
      %2848 = vmatmul.mubr.bf16.gmra.mxu0 %v2733
      %v2849 = vpop.f32.mrf.mxu0
      %v2850 = vadd.f32 %v2684, %v2849
      %v2851 = vpop.f32.mrf.mxu0
      %v2852 = vpop.f32.mrf.mxu0
      %v2853 = vadd.f32 %v2684, %v2852
      %v2854 = vpop.f32.mrf.mxu0
      %2855 = vmatprep.mubr.bf16.mxu0 0
      %2856 = vmatmul.mubr.bf16.gmra.mxu0 %v2736
      %v2857 = vpop.f32.mrf.mxu0
      %v2858 = vadd.f32 %v2684, %v2857
      %v2859 = vpop.f32.mrf.mxu0
      %v2860 = vpop.f32.mrf.mxu0
      %v2861 = vadd.f32 %v2684, %v2860
      %v2862 = vpop.f32.mrf.mxu0
      %2863 = vmatprep.mubr.bf16.mxu0 0
      %2864 = vmatmul.mubr.bf16.gmra.mxu0 %v2739
      %v2865 = vpop.f32.mrf.mxu0
      %v2866 = vadd.f32 %v2684, %v2865
      %v2867 = vpop.f32.mrf.mxu0
      %v2868 = vpop.f32.mrf.mxu0
      %v2869 = vadd.f32 %v2684, %v2868
      %v2870 = vpop.f32.mrf.mxu0
      %2871 = vmatprep.mubr.bf16.mxu0 0
      %2872 = vmatmul.mubr.bf16.gmra.mxu0 %v2742
      %v2873 = vpop.f32.mrf.mxu0
      %v2874 = vadd.f32 %v2684, %v2873
      %v2875 = vpop.f32.mrf.mxu0
      %v2876 = vpop.f32.mrf.mxu0
      %v2877 = vadd.f32 %v2684, %v2876
      %v2878 = vpop.f32.mrf.mxu0
      %2879 = vmatprep.mubr.bf16.mxu0 0
      %2880 = vmatmul.mubr.bf16.gmra.mxu0 %v2745
      %v2881 = vpop.f32.mrf.mxu0
      %v2882 = vadd.f32 %v2684, %v2881
      %v2883 = vpop.f32.mrf.mxu0
      %v2884 = vpop.f32.mrf.mxu0
      %v2885 = vadd.f32 %v2684, %v2884
      %v2886 = vpop.f32.mrf.mxu0
      %2887 = vmatprep.mubr.bf16.mxu0 0
      %2888 = vmatmul.mubr.bf16.gmra.mxu0 %v2748
      %v2889 = vpop.f32.mrf.mxu0
      %v2890 = vadd.f32 %v2684, %v2889
      %v2891 = vpop.f32.mrf.mxu0
      %v2892 = vpop.f32.mrf.mxu0
      %v2893 = vadd.f32 %v2684, %v2892
      %v2894 = vpop.f32.mrf.mxu0
      %2895 = vmatprep.mubr.bf16.mxu0 0
      %2896 = vmatmul.mubr.bf16.gmra.mxu0 %v2751
      %v2897 = vpop.f32.mrf.mxu0
      %v2898 = vadd.f32 %v2684, %v2897
      %v2899 = vpop.f32.mrf.mxu0
      %v2900 = vpop.f32.mrf.mxu0
      %v2901 = vadd.f32 %v2684, %v2900
      %v2902 = vpop.f32.mrf.mxu0
      %2903 = vmatprep.mubr.bf16.mxu0 0
      %2904 = vmatmul.mubr.bf16.gmra.mxu0 %v2754
      %v2905 = vpop.f32.mrf.mxu0
      %v2906 = vadd.f32 %v2684, %v2905
      %v2907 = vpop.f32.mrf.mxu0
      %v2908 = vpop.f32.mrf.mxu0
      %v2909 = vadd.f32 %v2684, %v2908
      %v2910 = vpop.f32.mrf.mxu0
      %2911 = vmatprep.mubr.bf16.mxu0 0
      %2912 = vmatmul.mubr.bf16.gmra.mxu0 %v2757
      %v2913 = vpop.f32.mrf.mxu0
      %v2914 = vadd.f32 %v2684, %v2913
      %v2915 = vpop.f32.mrf.mxu0
      %v2916 = vpop.f32.mrf.mxu0
      %v2917 = vadd.f32 %v2684, %v2916
      %v2918 = vpop.f32.mrf.mxu0
      %2919 = vdwg.mxu0
      %v2920 = vmul.f32 %v2794, 0.5
      %v2921 = vmul.f32 %v2797, 0.5
      %v2922 = vmul.f32 %v2802, 0.5
      %v2923 = vmul.f32 %v2805, 0.5
      %v2924 = vmul.f32 %v2810, 0.5
      %v2925 = vmul.f32 %v2813, 0.5
      %v2926 = vmul.f32 %v2818, 0.5
      %v2927 = vmul.f32 %v2821, 0.5
      %v2928 = vmul.f32 %v2826, 0.5
      %v2929 = vmul.f32 %v2829, 0.5
      %v2930 = vmul.f32 %v2834, 0.5
      %v2931 = vmul.f32 %v2837, 0.5
      %v2932 = vmul.f32 %v2842, 0.5
      %v2933 = vmul.f32 %v2845, 0.5
      %v2934 = vmul.f32 %v2850, 0.5
      %v2935 = vmul.f32 %v2853, 0.5
      %v2936 = vmul.f32 %v2858, 0.5
      %v2937 = vmul.f32 %v2861, 0.5
      %v2938 = vmul.f32 %v2866, 0.5
      %v2939 = vmul.f32 %v2869, 0.5
      %v2940 = vmul.f32 %v2874, 0.5
      %v2941 = vmul.f32 %v2877, 0.5
      %v2942 = vmul.f32 %v2882, 0.5
      %v2943 = vmul.f32 %v2885, 0.5
      %v2944 = vmul.f32 %v2890, 0.5
      %v2945 = vmul.f32 %v2893, 0.5
      %v2946 = vmul.f32 %v2898, 0.5
      %v2947 = vmul.f32 %v2901, 0.5
      %v2948 = vmul.f32 %v2906, 0.5
      %v2949 = vmul.f32 %v2909, 0.5
      %v2950 = vmul.f32 %v2914, 0.5
      %v2951 = vmul.f32 %v2917, 0.5
      %v2952 = vmul.f32 %v2920, 1.442695
      %v2953 = vpow.pop %v2952
      %v2954 = vmul.f32 %v2921, 1.442695
      %v2955 = vpow.pop %v2954
      %v2956 = vmul.f32 %v2922, 1.442695
      %v2957 = vpow.pop %v2956
      %v2958 = vmul.f32 %v2923, 1.442695
      %v2959 = vpow.pop %v2958
      %v2960 = vmul.f32 %v2924, 1.442695
      %v2961 = vpow.pop %v2960
      %v2962 = vmul.f32 %v2925, 1.442695
      %v2963 = vpow.pop %v2962
      %v2964 = vmul.f32 %v2926, 1.442695
      %v2965 = vpow.pop %v2964
      %v2966 = vmul.f32 %v2927, 1.442695
      %v2967 = vpow.pop %v2966
      %v2968 = vmul.f32 %v2928, 1.442695
      %v2969 = vpow.pop %v2968
      %v2970 = vmul.f32 %v2929, 1.442695
      %v2971 = vpow.pop %v2970
      %v2972 = vmul.f32 %v2930, 1.442695
      %v2973 = vpow.pop %v2972
      %v2974 = vmul.f32 %v2931, 1.442695
      %v2975 = vpow.pop %v2974
      %v2976 = vmul.f32 %v2932, 1.442695
      %v2977 = vpow.pop %v2976
      %v2978 = vmul.f32 %v2933, 1.442695
      %v2979 = vpow.pop %v2978
      %v2980 = vmul.f32 %v2934, 1.442695
      %v2981 = vpow.pop %v2980
      %v2982 = vmul.f32 %v2935, 1.442695
      %v2983 = vpow.pop %v2982
      %v2984 = vmul.f32 %v2936, 1.442695
      %v2985 = vpow.pop %v2984
      %v2986 = vmul.f32 %v2937, 1.442695
      %v2987 = vpow.pop %v2986
      %v2988 = vmul.f32 %v2938, 1.442695
      %v2989 = vpow.pop %v2988
      %v2990 = vmul.f32 %v2939, 1.442695
      %v2991 = vpow.pop %v2990
      %v2992 = vmul.f32 %v2940, 1.442695
      %v2993 = vpow.pop %v2992
      %v2994 = vmul.f32 %v2941, 1.442695
      %v2995 = vpow.pop %v2994
      %v2996 = vmul.f32 %v2942, 1.442695
      %v2997 = vpow.pop %v2996
      %v2998 = vmul.f32 %v2943, 1.442695
      %v2999 = vpow.pop %v2998
      %v3000 = vmul.f32 %v2944, 1.442695
      %v3001 = vpow.pop %v3000
      %v3002 = vmul.f32 %v2945, 1.442695
      %v3003 = vpow.pop %v3002
      %v3004 = vmul.f32 %v2946, 1.442695
      %v3005 = vpow.pop %v3004
      %v3006 = vmul.f32 %v2947, 1.442695
      %v3007 = vpow.pop %v3006
      %v3008 = vmul.f32 %v2948, 1.442695
      %v3009 = vpow.pop %v3008
      %v3010 = vmul.f32 %v2949, 1.442695
      %v3011 = vpow.pop %v3010
      %v3012 = vmul.f32 %v2950, 1.442695
      %v3013 = vpow.pop %v3012
      %v3014 = vmul.f32 %v2951, 1.442695
      %v3015 = vpow.pop %v3014
      %v3016 = vld [vmem:[%s524] sm:$0xff]
      %v3017 = vld [vmem:[%s524 + $0x8] sm:$0xff]
      %v3018 = vld [vmem:[%s524 + $0x10] sm:$0xff]
      %v3019 = vld [vmem:[%s524 + $0x18] sm:$0xff]
      %v3020 = vld [vmem:[%s524 + $0x20] sm:$0xff]
      %v3021 = vld [vmem:[%s524 + $0x28] sm:$0xff]
      %v3022 = vld [vmem:[%s524 + $0x30] sm:$0xff]
      %v3023 = vld [vmem:[%s524 + $0x38] sm:$0xff]
      %v3024 = vld [vmem:[%s524 + $0x40] sm:$0xff]
      %v3025 = vld [vmem:[%s524 + $0x48] sm:$0xff]
      %v3026 = vld [vmem:[%s524 + $0x50] sm:$0xff]
      %v3027 = vld [vmem:[%s524 + $0x58] sm:$0xff]
      %v3028 = vld [vmem:[%s524 + $0x60] sm:$0xff]
      %v3029 = vld [vmem:[%s524 + $0x68] sm:$0xff]
      %v3030 = vld [vmem:[%s524 + $0x70] sm:$0xff]
      %v3031 = vld [vmem:[%s524 + $0x78] sm:$0xff]
      %v3032 = vld [vmem:[%s524 + $0x80] sm:$0xff]
      %v3033 = vld [vmem:[%s524 + $0x88] sm:$0xff]
      %v3034 = vld [vmem:[%s524 + $0x90] sm:$0xff]
      %v3035 = vld [vmem:[%s524 + $0x98] sm:$0xff]
      %v3036 = vld [vmem:[%s524 + $0xa0] sm:$0xff]
      %v3037 = vld [vmem:[%s524 + $0xa8] sm:$0xff]
      %v3038 = vld [vmem:[%s524 + $0xb0] sm:$0xff]
      %v3039 = vld [vmem:[%s524 + $0xb8] sm:$0xff]
      %v3040 = vld [vmem:[%s524 + $0xc0] sm:$0xff]
      %v3041 = vld [vmem:[%s524 + $0xc8] sm:$0xff]
      %v3042 = vld [vmem:[%s524 + $0xd0] sm:$0xff]
      %v3043 = vld [vmem:[%s524 + $0xd8] sm:$0xff]
      %v3044 = vld [vmem:[%s524 + $0xe0] sm:$0xff]
      %v3045 = vld [vmem:[%s524 + $0xe8] sm:$0xff]
      %v3046 = vld [vmem:[%s524 + $0xf0] sm:$0xff]
      %v3047 = vld [vmem:[%s524 + $0xf8] sm:$0xff]
      %3080 = vrot.lane.b32.xlu0 %v2953, 96
      %v3081 = vpop.permute.xlu0 %3080
      %3082 = vrot.lane.b32.xlu0 %v2955, 96
      %v3083 = vpop.permute.xlu0 %3082
      %3084 = vrot.lane.b32.xlu0 %v2957, 96
      %v3085 = vpop.permute.xlu0 %3084
      %3086 = vrot.lane.b32.xlu0 %v2959, 96
      %v3087 = vpop.permute.xlu0 %3086
      %3088 = vrot.lane.b32.xlu0 %v2961, 96
      %v3089 = vpop.permute.xlu0 %3088
      %3090 = vrot.lane.b32.xlu0 %v2963, 96
      %v3091 = vpop.permute.xlu0 %3090
      %3092 = vrot.lane.b32.xlu0 %v2965, 96
      %v3093 = vpop.permute.xlu0 %3092
      %3094 = vrot.lane.b32.xlu0 %v2967, 96
      %v3095 = vpop.permute.xlu0 %3094
      %3096 = vrot.lane.b32.xlu0 %v2969, 96
      %v3097 = vpop.permute.xlu0 %3096
      %3098 = vrot.lane.b32.xlu0 %v2971, 96
      %v3099 = vpop.permute.xlu0 %3098
      %3100 = vrot.lane.b32.xlu0 %v2973, 96
      %v3101 = vpop.permute.xlu0 %3100
      %3102 = vrot.lane.b32.xlu0 %v2975, 96
      %v3103 = vpop.permute.xlu0 %3102
      %3104 = vrot.lane.b32.xlu0 %v2977, 96
      %v3105 = vpop.permute.xlu0 %3104
      %3106 = vrot.lane.b32.xlu0 %v2979, 96
      %v3107 = vpop.permute.xlu0 %3106
      %3108 = vrot.lane.b32.xlu0 %v2981, 96
      %v3109 = vpop.permute.xlu0 %3108
      %3110 = vrot.lane.b32.xlu0 %v2983, 96
      %v3111 = vpop.permute.xlu0 %3110
      %3112 = vrot.lane.b32.xlu0 %v2985, 96
      %v3113 = vpop.permute.xlu0 %3112
      %3114 = vrot.lane.b32.xlu0 %v2987, 96
      %v3115 = vpop.permute.xlu0 %3114
      %3116 = vrot.lane.b32.xlu0 %v2989, 96
      %v3117 = vpop.permute.xlu0 %3116
      %3118 = vrot.lane.b32.xlu0 %v2991, 96
      %v3119 = vpop.permute.xlu0 %3118
      %3120 = vrot.lane.b32.xlu0 %v2993, 96
      %v3121 = vpop.permute.xlu0 %3120
      %3122 = vrot.lane.b32.xlu0 %v2995, 96
      %v3123 = vpop.permute.xlu0 %3122
      %3124 = vrot.lane.b32.xlu0 %v2997, 96
      %v3125 = vpop.permute.xlu0 %3124
      %3126 = vrot.lane.b32.xlu0 %v2999, 96
      %v3127 = vpop.permute.xlu0 %3126
      %3128 = vrot.lane.b32.xlu0 %v3001, 96
      %v3129 = vpop.permute.xlu0 %3128
      %3130 = vrot.lane.b32.xlu0 %v3003, 96
      %v3131 = vpop.permute.xlu0 %3130
      %3132 = vrot.lane.b32.xlu0 %v3005, 96
      %v3133 = vpop.permute.xlu0 %3132
      %3134 = vrot.lane.b32.xlu0 %v3007, 96
      %v3135 = vpop.permute.xlu0 %3134
      %3136 = vrot.lane.b32.xlu0 %v3009, 96
      %v3137 = vpop.permute.xlu0 %3136
      %3138 = vrot.lane.b32.xlu0 %v3011, 96
      %v3139 = vpop.permute.xlu0 %3138
      %3140 = vrot.lane.b32.xlu0 %v3013, 96
      %v3141 = vpop.permute.xlu0 %3140
      %3142 = vrot.lane.b32.xlu0 %v3015, 96
      %v3143 = vpop.permute.xlu0 %3142
      %v3176 = vmul.f32 %v3016, %v3081
      %v3177 = vmul.f32 %v3017, %v3083
      %v3178 = vmul.f32 %v3018, %v3085
      %v3179 = vmul.f32 %v3019, %v3087
      %v3180 = vmul.f32 %v3020, %v3089
      %v3181 = vmul.f32 %v3021, %v3091
      %v3182 = vmul.f32 %v3022, %v3093
      %v3183 = vmul.f32 %v3023, %v3095
      %v3184 = vmul.f32 %v3024, %v3097
      %v3185 = vmul.f32 %v3025, %v3099
      %v3186 = vmul.f32 %v3026, %v3101
      %v3187 = vmul.f32 %v3027, %v3103
      %v3188 = vmul.f32 %v3028, %v3105
      %v3189 = vmul.f32 %v3029, %v3107
      %v3190 = vmul.f32 %v3030, %v3109
      %v3191 = vmul.f32 %v3031, %v3111
      %v3192 = vmul.f32 %v3032, %v3113
      %v3193 = vmul.f32 %v3033, %v3115
      %v3194 = vmul.f32 %v3034, %v3117
      %v3195 = vmul.f32 %v3035, %v3119
      %v3196 = vmul.f32 %v3036, %v3121
      %v3197 = vmul.f32 %v3037, %v3123
      %v3198 = vmul.f32 %v3038, %v3125
      %v3199 = vmul.f32 %v3039, %v3127
      %v3200 = vmul.f32 %v3040, %v3129
      %v3201 = vmul.f32 %v3041, %v3131
      %v3202 = vmul.f32 %v3042, %v3133
      %v3203 = vmul.f32 %v3043, %v3135
      %v3204 = vmul.f32 %v3044, %v3137
      %v3205 = vmul.f32 %v3045, %v3139
      %v3206 = vmul.f32 %v3046, %v3141
      %v3207 = vmul.f32 %v3047, %v3143
      %v3208 = vadd.f32 %v3176, %v2794
      %v3209 = vadd.f32 %v3177, %v2797
      %v3210 = vadd.f32 %v3178, %v2802
      %v3211 = vadd.f32 %v3179, %v2805
      %v3212 = vadd.f32 %v3180, %v2810
      %v3213 = vadd.f32 %v3181, %v2813
      %v3214 = vadd.f32 %v3182, %v2818
      %v3215 = vadd.f32 %v3183, %v2821
      %v3216 = vadd.f32 %v3184, %v2826
      %v3217 = vadd.f32 %v3185, %v2829
      %v3218 = vadd.f32 %v3186, %v2834
      %v3219 = vadd.f32 %v3187, %v2837
      %v3220 = vadd.f32 %v3188, %v2842
      %v3221 = vadd.f32 %v3189, %v2845
      %v3222 = vadd.f32 %v3190, %v2850
      %v3223 = vadd.f32 %v3191, %v2853
      %v3224 = vadd.f32 %v3192, %v2858
      %v3225 = vadd.f32 %v3193, %v2861
      %v3226 = vadd.f32 %v3194, %v2866
      %v3227 = vadd.f32 %v3195, %v2869
      %v3228 = vadd.f32 %v3196, %v2874
      %v3229 = vadd.f32 %v3197, %v2877
      %v3230 = vadd.f32 %v3198, %v2882
      %v3231 = vadd.f32 %v3199, %v2885
      %v3232 = vadd.f32 %v3200, %v2890
      %v3233 = vadd.f32 %v3201, %v2893
      %v3234 = vadd.f32 %v3202, %v2898
      %v3235 = vadd.f32 %v3203, %v2901
      %v3236 = vadd.f32 %v3204, %v2906
      %v3237 = vadd.f32 %v3205, %v2909
      %v3238 = vadd.f32 %v3206, %v2914
      %v3239 = vadd.f32 %v3207, %v2917
      %v3240 = vpack.c.bf16 %v3209, %v3208
      %v3241 = vpack.c.bf16 %v3211, %v3210
      %v3242 = vpack.c.bf16 %v3213, %v3212
      %v3243 = vpack.c.bf16 %v3215, %v3214
      %v3244 = vpack.c.bf16 %v3217, %v3216
      %v3245 = vpack.c.bf16 %v3219, %v3218
      %v3246 = vpack.c.bf16 %v3221, %v3220
      %v3247 = vpack.c.bf16 %v3223, %v3222
      %v3248 = vpack.c.bf16 %v3225, %v3224
      %v3249 = vpack.c.bf16 %v3227, %v3226
      %v3250 = vpack.c.bf16 %v3229, %v3228
      %v3251 = vpack.c.bf16 %v3231, %v3230
      %v3252 = vpack.c.bf16 %v3233, %v3232
      %v3253 = vpack.c.bf16 %v3235, %v3234
      %v3254 = vpack.c.bf16 %v3237, %v3236
      %v3255 = vpack.c.bf16 %v3239, %v3238
      %v3256 = vld [vmem:[%s8] sm:$0xf]
      %v3257 = vld [vmem:[%s8 + $0x4] sm:$0xf]
      %v3258 = vld [vmem:[%s8 + $0x8] sm:$0xf]
      %v3259 = vld [vmem:[%s8 + $0xc] sm:$0xf]
      %v3260 = vld [vmem:[%s9] sm:$0x1]
      %v3262 = vlaneseq
      %v3263 = vshrl.u32 %v3262, 7
      %v3264 = vsub.s32 0, %v3263
      %v3265 = vrot.slane %v3260, %v3264
      %v3271 = vunpack.c.l.b16 %v3256
      %v3272 = vunpack.c.l.b16 %v3257
      %v3273 = vunpack.c.l.b16 %v3258
      %v3274 = vunpack.c.l.b16 %v3259
      %v3275 = vpack.c.b16 %v3272, %v3271
      %v3276 = vpack.c.b16 %v3274, %v3273
      %vm3279 = vcmask 261120
      %v3281 = vsel %vm3279, %v3240, 0
      %v3284 = vsel %vm3279, %v3241, 0
      %v3287 = vsel %vm3279, %v3242, 0
      %v3290 = vsel %vm3279, %v3243, 0
      %v3293 = vsel %vm3279, %v3244, 0
      %v3296 = vsel %vm3279, %v3245, 0
      %v3299 = vsel %vm3279, %v3246, 0
      %v3302 = vsel %vm3279, %v3247, 0
      %v3305 = vsel %vm3279, %v3248, 0
      %v3308 = vsel %vm3279, %v3249, 0
      %v3311 = vsel %vm3279, %v3250, 0
      %v3314 = vsel %vm3279, %v3251, 0
      %v3317 = vsel %vm3279, %v3252, 0
      %v3320 = vsel %vm3279, %v3253, 0
      %v3323 = vsel %vm3279, %v3254, 0
      %v3326 = vsel %vm3279, %v3255, 0
      %3328 = vmatprep.subr.bf16.mxu0 0
      %3329 = vmatpush1.bf16.msra.mxu0 0
      %3330 = vmatprep.subr.bf16.mxu0 0
      %3331 = vmatpush1.bf16.msra.mxu0 0
      %3332 = vmatprep.subr.bf16.mxu0 0
      %3333 = vmatpush1.bf16.msra.mxu0 0
      %3334 = vmatprep.subr.bf16.mxu0 0
      %3335 = vmatpush1.bf16.msra.mxu0 0
      %3336 = vmatprep.subr.bf16.mxu0 0
      %3337 = vmatpush1.bf16.msra.mxu0 0
      %3338 = vmatprep.subr.bf16.mxu0 0
      %3339 = vmatpush1.bf16.msra.mxu0 0
      %3340 = vmatprep.subr.bf16.mxu0 0
      %3341 = vmatpush1.bf16.msra.mxu0 %v3276
      %3342 = vmatprep.subr.bf16.mxu0 0
      %3343 = vmatpush1.bf16.msra.mxu0 %v3275
      %3344 = vmatprep.subr.bf16.mxu0 0
      %3345 = vmatpush2.bf16.msra.mxu0 0
      %3346 = vmatprep.subr.bf16.mxu0 0
      %3347 = vmatpush2.bf16.msra.mxu0 0
      %3348 = vmatprep.subr.bf16.mxu0 0
      %3349 = vmatpush2.bf16.msra.mxu0 0
      %3350 = vmatprep.subr.bf16.mxu0 0
      %3351 = vmatpush2.bf16.msra.mxu0 0
      %3352 = vmatprep.subr.bf16.mxu0 0
      %3353 = vmatpush2.bf16.msra.mxu0 0
      %3354 = vmatprep.subr.bf16.mxu0 0
      %3355 = vmatpush2.bf16.msra.mxu0 0
      %3356 = vmatprep.subr.bf16.mxu0 0
      %3357 = vmatpush2.bf16.msra.mxu0 0
      %3358 = vmatprep.subr.bf16.mxu0 0
      %3359 = vmatpush2.bf16.msra.mxu0 0
      %3360 = vmatprep.mubr.bf16.mxu0 0
      %3361 = vmatmul.mubr.bf16.gmra.mxu0 %v3281
      %v3362 = vpop.f32.mrf.mxu0
      %v3363 = vadd.f32 %v3265, %v3362
      %v3364 = vpop.f32.mrf.mxu0
      %v3365 = vpop.f32.mrf.mxu0
      %v3366 = vadd.f32 %v3265, %v3365
      %v3367 = vpop.f32.mrf.mxu0
      %3368 = vmatprep.mubr.bf16.mxu0 0
      %3369 = vmatmul.mubr.bf16.gmra.mxu0 %v3284
      %v3370 = vpop.f32.mrf.mxu0
      %v3371 = vadd.f32 %v3265, %v3370
      %v3372 = vpop.f32.mrf.mxu0
      %v3373 = vpop.f32.mrf.mxu0
      %v3374 = vadd.f32 %v3265, %v3373
      %v3375 = vpop.f32.mrf.mxu0
      %3376 = vmatprep.mubr.bf16.mxu0 0
      %3377 = vmatmul.mubr.bf16.gmra.mxu0 %v3287
      %v3378 = vpop.f32.mrf.mxu0
      %v3379 = vadd.f32 %v3265, %v3378
      %v3380 = vpop.f32.mrf.mxu0
      %v3381 = vpop.f32.mrf.mxu0
      %v3382 = vadd.f32 %v3265, %v3381
      %v3383 = vpop.f32.mrf.mxu0
      %3384 = vmatprep.mubr.bf16.mxu0 0
      %3385 = vmatmul.mubr.bf16.gmra.mxu0 %v3290
      %v3386 = vpop.f32.mrf.mxu0
      %v3387 = vadd.f32 %v3265, %v3386
      %v3388 = vpop.f32.mrf.mxu0
      %v3389 = vpop.f32.mrf.mxu0
      %v3390 = vadd.f32 %v3265, %v3389
      %v3391 = vpop.f32.mrf.mxu0
      %3392 = vmatprep.mubr.bf16.mxu0 0
      %3393 = vmatmul.mubr.bf16.gmra.mxu0 %v3293
      %v3394 = vpop.f32.mrf.mxu0
      %v3395 = vadd.f32 %v3265, %v3394
      %v3396 = vpop.f32.mrf.mxu0
      %v3397 = vpop.f32.mrf.mxu0
      %v3398 = vadd.f32 %v3265, %v3397
      %v3399 = vpop.f32.mrf.mxu0
      %3400 = vmatprep.mubr.bf16.mxu0 0
      %3401 = vmatmul.mubr.bf16.gmra.mxu0 %v3296
      %v3402 = vpop.f32.mrf.mxu0
      %v3403 = vadd.f32 %v3265, %v3402
      %v3404 = vpop.f32.mrf.mxu0
      %v3405 = vpop.f32.mrf.mxu0
      %v3406 = vadd.f32 %v3265, %v3405
      %v3407 = vpop.f32.mrf.mxu0
      %3408 = vmatprep.mubr.bf16.mxu0 0
      %3409 = vmatmul.mubr.bf16.gmra.mxu0 %v3299
      %v3410 = vpop.f32.mrf.mxu0
      %v3411 = vadd.f32 %v3265, %v3410
      %v3412 = vpop.f32.mrf.mxu0
      %v3413 = vpop.f32.mrf.mxu0
      %v3414 = vadd.f32 %v3265, %v3413
      %v3415 = vpop.f32.mrf.mxu0
      %3416 = vmatprep.mubr.bf16.mxu0 0
      %3417 = vmatmul.mubr.bf16.gmra.mxu0 %v3302
      %v3418 = vpop.f32.mrf.mxu0
      %v3419 = vadd.f32 %v3265, %v3418
      %v3420 = vpop.f32.mrf.mxu0
      %v3421 = vpop.f32.mrf.mxu0
      %v3422 = vadd.f32 %v3265, %v3421
      %v3423 = vpop.f32.mrf.mxu0
      %3424 = vmatprep.mubr.bf16.mxu0 0
      %3425 = vmatmul.mubr.bf16.gmra.mxu0 %v3305
      %v3426 = vpop.f32.mrf.mxu0
      %v3427 = vadd.f32 %v3265, %v3426
      %v3428 = vpop.f32.mrf.mxu0
      %v3429 = vpop.f32.mrf.mxu0
      %v3430 = vadd.f32 %v3265, %v3429
      %v3431 = vpop.f32.mrf.mxu0
      %3432 = vmatprep.mubr.bf16.mxu0 0
      %3433 = vmatmul.mubr.bf16.gmra.mxu0 %v3308
      %v3434 = vpop.f32.mrf.mxu0
      %v3435 = vadd.f32 %v3265, %v3434
      %v3436 = vpop.f32.mrf.mxu0
      %v3437 = vpop.f32.mrf.mxu0
      %v3438 = vadd.f32 %v3265, %v3437
      %v3439 = vpop.f32.mrf.mxu0
      %3440 = vmatprep.mubr.bf16.mxu0 0
      %3441 = vmatmul.mubr.bf16.gmra.mxu0 %v3311
      %v3442 = vpop.f32.mrf.mxu0
      %v3443 = vadd.f32 %v3265, %v3442
      %v3444 = vpop.f32.mrf.mxu0
      %v3445 = vpop.f32.mrf.mxu0
      %v3446 = vadd.f32 %v3265, %v3445
      %v3447 = vpop.f32.mrf.mxu0
      %3448 = vmatprep.mubr.bf16.mxu0 0
      %3449 = vmatmul.mubr.bf16.gmra.mxu0 %v3314
      %v3450 = vpop.f32.mrf.mxu0
      %v3451 = vadd.f32 %v3265, %v3450
      %v3452 = vpop.f32.mrf.mxu0
      %v3453 = vpop.f32.mrf.mxu0
      %v3454 = vadd.f32 %v3265, %v3453
      %v3455 = vpop.f32.mrf.mxu0
      %3456 = vmatprep.mubr.bf16.mxu0 0
      %3457 = vmatmul.mubr.bf16.gmra.mxu0 %v3317
      %v3458 = vpop.f32.mrf.mxu0
      %v3459 = vadd.f32 %v3265, %v3458
      %v3460 = vpop.f32.mrf.mxu0
      %v3461 = vpop.f32.mrf.mxu0
      %v3462 = vadd.f32 %v3265, %v3461
      %v3463 = vpop.f32.mrf.mxu0
      %3464 = vmatprep.mubr.bf16.mxu0 0
      %3465 = vmatmul.mubr.bf16.gmra.mxu0 %v3320
      %v3466 = vpop.f32.mrf.mxu0
      %v3467 = vadd.f32 %v3265, %v3466
      %v3468 = vpop.f32.mrf.mxu0
      %v3469 = vpop.f32.mrf.mxu0
      %v3470 = vadd.f32 %v3265, %v3469
      %v3471 = vpop.f32.mrf.mxu0
      %3472 = vmatprep.mubr.bf16.mxu0 0
      %3473 = vmatmul.mubr.bf16.gmra.mxu0 %v3323
      %v3474 = vpop.f32.mrf.mxu0
      %v3475 = vadd.f32 %v3265, %v3474
      %v3476 = vpop.f32.mrf.mxu0
      %v3477 = vpop.f32.mrf.mxu0
      %v3478 = vadd.f32 %v3265, %v3477
      %v3479 = vpop.f32.mrf.mxu0
      %3480 = vmatprep.mubr.bf16.mxu0 0
      %3481 = vmatmul.mubr.bf16.gmra.mxu0 %v3326
      %v3482 = vpop.f32.mrf.mxu0
      %v3483 = vadd.f32 %v3265, %v3482
      %v3484 = vpop.f32.mrf.mxu0
      %v3485 = vpop.f32.mrf.mxu0
      %v3486 = vadd.f32 %v3265, %v3485
      %v3487 = vpop.f32.mrf.mxu0
      %3488 = vdwg.mxu0
      %v3489 = vmax.f32 %v3363, 0.0
      %v3490 = vmax.f32 %v3366, 0.0
      %v3491 = vmax.f32 %v3371, 0.0
      %v3492 = vmax.f32 %v3374, 0.0
      %v3493 = vmax.f32 %v3379, 0.0
      %v3494 = vmax.f32 %v3382, 0.0
      %v3495 = vmax.f32 %v3387, 0.0
      %v3496 = vmax.f32 %v3390, 0.0
      %v3497 = vmax.f32 %v3395, 0.0
      %v3498 = vmax.f32 %v3398, 0.0
      %v3499 = vmax.f32 %v3403, 0.0
      %v3500 = vmax.f32 %v3406, 0.0
      %v3501 = vmax.f32 %v3411, 0.0
      %v3502 = vmax.f32 %v3414, 0.0
      %v3503 = vmax.f32 %v3419, 0.0
      %v3504 = vmax.f32 %v3422, 0.0
      %v3505 = vmax.f32 %v3427, 0.0
      %v3506 = vmax.f32 %v3430, 0.0
      %v3507 = vmax.f32 %v3435, 0.0
      %v3508 = vmax.f32 %v3438, 0.0
      %v3509 = vmax.f32 %v3443, 0.0
      %v3510 = vmax.f32 %v3446, 0.0
      %v3511 = vmax.f32 %v3451, 0.0
      %v3512 = vmax.f32 %v3454, 0.0
      %v3513 = vmax.f32 %v3459, 0.0
      %v3514 = vmax.f32 %v3462, 0.0
      %v3515 = vmax.f32 %v3467, 0.0
      %v3516 = vmax.f32 %v3470, 0.0
      %v3517 = vmax.f32 %v3475, 0.0
      %v3518 = vmax.f32 %v3478, 0.0
      %v3519 = vmax.f32 %v3483, 0.0
      %v3520 = vmax.f32 %v3486, 0.0
      %v3521 = vpack.c.bf16 %v3490, %v3489
      %v3522 = vpack.c.bf16 %v3492, %v3491
      %v3523 = vpack.c.bf16 %v3494, %v3493
      %v3524 = vpack.c.bf16 %v3496, %v3495
      %v3525 = vpack.c.bf16 %v3498, %v3497
      %v3526 = vpack.c.bf16 %v3500, %v3499
      %v3527 = vpack.c.bf16 %v3502, %v3501
      %v3528 = vpack.c.bf16 %v3504, %v3503
      %v3529 = vpack.c.bf16 %v3506, %v3505
      %v3530 = vpack.c.bf16 %v3508, %v3507
      %v3531 = vpack.c.bf16 %v3510, %v3509
      %v3532 = vpack.c.bf16 %v3512, %v3511
      %v3533 = vpack.c.bf16 %v3514, %v3513
      %v3534 = vpack.c.bf16 %v3516, %v3515
      %v3535 = vpack.c.bf16 %v3518, %v3517
      %v3536 = vpack.c.bf16 %v3520, %v3519
      %v3537 = vld [vmem:[%s10] sm:$0xf]
      %v3538 = vld [vmem:[%s10 + $0x4] sm:$0xf]
      %v3539 = vld [vmem:[%s10 + $0x8] sm:$0xf]
      %v3540 = vld [vmem:[%s10 + $0xc] sm:$0xf]
      %v3541 = vld [vmem:[%s10 + $0x10] sm:$0xf]
      %v3542 = vld [vmem:[%s10 + $0x14] sm:$0xf]
      %v3543 = vld [vmem:[%s10 + $0x18] sm:$0xf]
      %v3544 = vld [vmem:[%s10 + $0x1c] sm:$0xf]
      %v3545 = vld [vmem:[%s11] sm:$0x1]
      %v3547 = vlaneseq
      %v3548 = vshrl.u32 %v3547, 7
      %v3549 = vsub.s32 0, %v3548
      %v3550 = vrot.slane %v3545, %v3549
      %v3560 = vunpack.c.l.b16 %v3537
      %v3561 = vunpack.c.l.b16 %v3538
      %v3562 = vunpack.c.l.b16 %v3539
      %v3563 = vunpack.c.l.b16 %v3540
      %v3564 = vunpack.c.l.b16 %v3541
      %v3565 = vunpack.c.l.b16 %v3542
      %v3566 = vunpack.c.l.b16 %v3543
      %v3567 = vunpack.c.l.b16 %v3544
      %v3568 = vpack.c.b16 %v3561, %v3560
      %v3569 = vpack.c.b16 %v3563, %v3562
      %v3570 = vpack.c.b16 %v3565, %v3564
      %v3571 = vpack.c.b16 %v3567, %v3566
      %v3577 = vsel %vm2710, %v3521, 0
      %v3580 = vsel %vm2710, %v3522, 0
      %v3583 = vsel %vm2710, %v3523, 0
      %v3586 = vsel %vm2710, %v3524, 0
      %v3589 = vsel %vm2710, %v3525, 0
      %v3592 = vsel %vm2710, %v3526, 0
      %v3595 = vsel %vm2710, %v3527, 0
      %v3598 = vsel %vm2710, %v3528, 0
      %v3601 = vsel %vm2710, %v3529, 0
      %v3604 = vsel %vm2710, %v3530, 0
      %v3607 = vsel %vm2710, %v3531, 0
      %v3610 = vsel %vm2710, %v3532, 0
      %v3613 = vsel %vm2710, %v3533, 0
      %v3616 = vsel %vm2710, %v3534, 0
      %v3619 = vsel %vm2710, %v3535, 0
      %v3622 = vsel %vm2710, %v3536, 0
      %3624 = vmatprep.subr.bf16.mxu0 0
      %3625 = vmatpush1.bf16.msra.mxu0 0
      %3626 = vmatprep.subr.bf16.mxu0 0
      %3627 = vmatpush1.bf16.msra.mxu0 0
      %3628 = vmatprep.subr.bf16.mxu0 0
      %3629 = vmatpush1.bf16.msra.mxu0 0
      %3630 = vmatprep.subr.bf16.mxu0 0
      %3631 = vmatpush1.bf16.msra.mxu0 0
      %3632 = vmatprep.subr.bf16.mxu0 0
      %3633 = vmatpush1.bf16.msra.mxu0 %v3571
      %3634 = vmatprep.subr.bf16.mxu0 0
      %3635 = vmatpush1.bf16.msra.mxu0 %v3570
      %3636 = vmatprep.subr.bf16.mxu0 0
      %3637 = vmatpush1.bf16.msra.mxu0 %v3569
      %3638 = vmatprep.subr.bf16.mxu0 0
      %3639 = vmatpush1.bf16.msra.mxu0 %v3568
      %3640 = vmatprep.subr.bf16.mxu0 0
      %3641 = vmatpush2.bf16.msra.mxu0 0
      %3642 = vmatprep.subr.bf16.mxu0 0
      %3643 = vmatpush2.bf16.msra.mxu0 0
      %3644 = vmatprep.subr.bf16.mxu0 0
      %3645 = vmatpush2.bf16.msra.mxu0 0
      %3646 = vmatprep.subr.bf16.mxu0 0
      %3647 = vmatpush2.bf16.msra.mxu0 0
      %3648 = vmatprep.subr.bf16.mxu0 0
      %3649 = vmatpush2.bf16.msra.mxu0 0
      %3650 = vmatprep.subr.bf16.mxu0 0
      %3651 = vmatpush2.bf16.msra.mxu0 0
      %3652 = vmatprep.subr.bf16.mxu0 0
      %3653 = vmatpush2.bf16.msra.mxu0 0
      %3654 = vmatprep.subr.bf16.mxu0 0
      %3655 = vmatpush2.bf16.msra.mxu0 0
      %3656 = vmatprep.mubr.bf16.mxu0 0
      %3657 = vmatmul.mubr.bf16.gmra.mxu0 %v3577
      %v3658 = vpop.f32.mrf.mxu0
      %v3659 = vadd.f32 %v3550, %v3658
      %v3660 = vpop.f32.mrf.mxu0
      %v3661 = vpop.f32.mrf.mxu0
      %v3662 = vadd.f32 %v3550, %v3661
      %v3663 = vpop.f32.mrf.mxu0
      %3664 = vmatprep.mubr.bf16.mxu0 0
      %3665 = vmatmul.mubr.bf16.gmra.mxu0 %v3580
      %v3666 = vpop.f32.mrf.mxu0
      %v3667 = vadd.f32 %v3550, %v3666
      %v3668 = vpop.f32.mrf.mxu0
      %v3669 = vpop.f32.mrf.mxu0
      %v3670 = vadd.f32 %v3550, %v3669
      %v3671 = vpop.f32.mrf.mxu0
      %3672 = vmatprep.mubr.bf16.mxu0 0
      %3673 = vmatmul.mubr.bf16.gmra.mxu0 %v3583
      %v3674 = vpop.f32.mrf.mxu0
      %v3675 = vadd.f32 %v3550, %v3674
      %v3676 = vpop.f32.mrf.mxu0
      %v3677 = vpop.f32.mrf.mxu0
      %v3678 = vadd.f32 %v3550, %v3677
      %v3679 = vpop.f32.mrf.mxu0
      %3680 = vmatprep.mubr.bf16.mxu0 0
      %3681 = vmatmul.mubr.bf16.gmra.mxu0 %v3586
      %v3682 = vpop.f32.mrf.mxu0
      %v3683 = vadd.f32 %v3550, %v3682
      %v3684 = vpop.f32.mrf.mxu0
      %v3685 = vpop.f32.mrf.mxu0
      %v3686 = vadd.f32 %v3550, %v3685
      %v3687 = vpop.f32.mrf.mxu0
      %3688 = vmatprep.mubr.bf16.mxu0 0
      %3689 = vmatmul.mubr.bf16.gmra.mxu0 %v3589
      %v3690 = vpop.f32.mrf.mxu0
      %v3691 = vadd.f32 %v3550, %v3690
      %v3692 = vpop.f32.mrf.mxu0
      %v3693 = vpop.f32.mrf.mxu0
      %v3694 = vadd.f32 %v3550, %v3693
      %v3695 = vpop.f32.mrf.mxu0
      %3696 = vmatprep.mubr.bf16.mxu0 0
      %3697 = vmatmul.mubr.bf16.gmra.mxu0 %v3592
      %v3698 = vpop.f32.mrf.mxu0
      %v3699 = vadd.f32 %v3550, %v3698
      %v3700 = vpop.f32.mrf.mxu0
      %v3701 = vpop.f32.mrf.mxu0
      %v3702 = vadd.f32 %v3550, %v3701
      %v3703 = vpop.f32.mrf.mxu0
      %3704 = vmatprep.mubr.bf16.mxu0 0
      %3705 = vmatmul.mubr.bf16.gmra.mxu0 %v3595
      %v3706 = vpop.f32.mrf.mxu0
      %v3707 = vadd.f32 %v3550, %v3706
      %v3708 = vpop.f32.mrf.mxu0
      %v3709 = vpop.f32.mrf.mxu0
      %v3710 = vadd.f32 %v3550, %v3709
      %v3711 = vpop.f32.mrf.mxu0
      %3712 = vmatprep.mubr.bf16.mxu0 0
      %3713 = vmatmul.mubr.bf16.gmra.mxu0 %v3598
      %v3714 = vpop.f32.mrf.mxu0
      %v3715 = vadd.f32 %v3550, %v3714
      %v3716 = vpop.f32.mrf.mxu0
      %v3717 = vpop.f32.mrf.mxu0
      %v3718 = vadd.f32 %v3550, %v3717
      %v3719 = vpop.f32.mrf.mxu0
      %3720 = vmatprep.mubr.bf16.mxu0 0
      %3721 = vmatmul.mubr.bf16.gmra.mxu0 %v3601
      %v3722 = vpop.f32.mrf.mxu0
      %v3723 = vadd.f32 %v3550, %v3722
      %v3724 = vpop.f32.mrf.mxu0
      %v3725 = vpop.f32.mrf.mxu0
      %v3726 = vadd.f32 %v3550, %v3725
      %v3727 = vpop.f32.mrf.mxu0
      %3728 = vmatprep.mubr.bf16.mxu0 0
      %3729 = vmatmul.mubr.bf16.gmra.mxu0 %v3604
      %v3730 = vpop.f32.mrf.mxu0
      %v3731 = vadd.f32 %v3550, %v3730
      %v3732 = vpop.f32.mrf.mxu0
      %v3733 = vpop.f32.mrf.mxu0
      %v3734 = vadd.f32 %v3550, %v3733
      %v3735 = vpop.f32.mrf.mxu0
      %3736 = vmatprep.mubr.bf16.mxu0 0
      %3737 = vmatmul.mubr.bf16.gmra.mxu0 %v3607
      %v3738 = vpop.f32.mrf.mxu0
      %v3739 = vadd.f32 %v3550, %v3738
      %v3740 = vpop.f32.mrf.mxu0
      %v3741 = vpop.f32.mrf.mxu0
      %v3742 = vadd.f32 %v3550, %v3741
      %v3743 = vpop.f32.mrf.mxu0
      %3744 = vmatprep.mubr.bf16.mxu0 0
      %3745 = vmatmul.mubr.bf16.gmra.mxu0 %v3610
      %v3746 = vpop.f32.mrf.mxu0
      %v3747 = vadd.f32 %v3550, %v3746
      %v3748 = vpop.f32.mrf.mxu0
      %v3749 = vpop.f32.mrf.mxu0
      %v3750 = vadd.f32 %v3550, %v3749
      %v3751 = vpop.f32.mrf.mxu0
      %3752 = vmatprep.mubr.bf16.mxu0 0
      %3753 = vmatmul.mubr.bf16.gmra.mxu0 %v3613
      %v3754 = vpop.f32.mrf.mxu0
      %v3755 = vadd.f32 %v3550, %v3754
      %v3756 = vpop.f32.mrf.mxu0
      %v3757 = vpop.f32.mrf.mxu0
      %v3758 = vadd.f32 %v3550, %v3757
      %v3759 = vpop.f32.mrf.mxu0
      %3760 = vmatprep.mubr.bf16.mxu0 0
      %3761 = vmatmul.mubr.bf16.gmra.mxu0 %v3616
      %v3762 = vpop.f32.mrf.mxu0
      %v3763 = vadd.f32 %v3550, %v3762
      %v3764 = vpop.f32.mrf.mxu0
      %v3765 = vpop.f32.mrf.mxu0
      %v3766 = vadd.f32 %v3550, %v3765
      %v3767 = vpop.f32.mrf.mxu0
      %3768 = vmatprep.mubr.bf16.mxu0 0
      %3769 = vmatmul.mubr.bf16.gmra.mxu0 %v3619
      %v3770 = vpop.f32.mrf.mxu0
      %v3771 = vadd.f32 %v3550, %v3770
      %v3772 = vpop.f32.mrf.mxu0
      %v3773 = vpop.f32.mrf.mxu0
      %v3774 = vadd.f32 %v3550, %v3773
      %v3775 = vpop.f32.mrf.mxu0
      %3776 = vmatprep.mubr.bf16.mxu0 0
      %3777 = vmatmul.mubr.bf16.gmra.mxu0 %v3622
      %v3778 = vpop.f32.mrf.mxu0
      %v3779 = vadd.f32 %v3550, %v3778
      %v3780 = vpop.f32.mrf.mxu0
      %v3781 = vpop.f32.mrf.mxu0
      %v3782 = vadd.f32 %v3550, %v3781
      %v3783 = vpop.f32.mrf.mxu0
      %3784 = vdwg.mxu0
      %v3785 = vmax.f32 %v3659, 0.0
      %v3786 = vmax.f32 %v3662, 0.0
      %v3787 = vmax.f32 %v3667, 0.0
      %v3788 = vmax.f32 %v3670, 0.0
      %v3789 = vmax.f32 %v3675, 0.0
      %v3790 = vmax.f32 %v3678, 0.0
      %v3791 = vmax.f32 %v3683, 0.0
      %v3792 = vmax.f32 %v3686, 0.0
      %v3793 = vmax.f32 %v3691, 0.0
      %v3794 = vmax.f32 %v3694, 0.0
      %v3795 = vmax.f32 %v3699, 0.0
      %v3796 = vmax.f32 %v3702, 0.0
      %v3797 = vmax.f32 %v3707, 0.0
      %v3798 = vmax.f32 %v3710, 0.0
      %v3799 = vmax.f32 %v3715, 0.0
      %v3800 = vmax.f32 %v3718, 0.0
      %v3801 = vmax.f32 %v3723, 0.0
      %v3802 = vmax.f32 %v3726, 0.0
      %v3803 = vmax.f32 %v3731, 0.0
      %v3804 = vmax.f32 %v3734, 0.0
      %v3805 = vmax.f32 %v3739, 0.0
      %v3806 = vmax.f32 %v3742, 0.0
      %v3807 = vmax.f32 %v3747, 0.0
      %v3808 = vmax.f32 %v3750, 0.0
      %v3809 = vmax.f32 %v3755, 0.0
      %v3810 = vmax.f32 %v3758, 0.0
      %v3811 = vmax.f32 %v3763, 0.0
      %v3812 = vmax.f32 %v3766, 0.0
      %v3813 = vmax.f32 %v3771, 0.0
      %v3814 = vmax.f32 %v3774, 0.0
      %v3815 = vmax.f32 %v3779, 0.0
      %v3816 = vmax.f32 %v3782, 0.0
      %v3817 = vpack.c.bf16 %v3786, %v3785
      %v3818 = vpack.c.bf16 %v3788, %v3787
      %v3819 = vpack.c.bf16 %v3790, %v3789
      %v3820 = vpack.c.bf16 %v3792, %v3791
      %v3821 = vpack.c.bf16 %v3794, %v3793
      %v3822 = vpack.c.bf16 %v3796, %v3795
      %v3823 = vpack.c.bf16 %v3798, %v3797
      %v3824 = vpack.c.bf16 %v3800, %v3799
      %v3825 = vpack.c.bf16 %v3802, %v3801
      %v3826 = vpack.c.bf16 %v3804, %v3803
      %v3827 = vpack.c.bf16 %v3806, %v3805
      %v3828 = vpack.c.bf16 %v3808, %v3807
      %v3829 = vpack.c.bf16 %v3810, %v3809
      %v3830 = vpack.c.bf16 %v3812, %v3811
      %v3831 = vpack.c.bf16 %v3814, %v3813
      %v3832 = vpack.c.bf16 %v3816, %v3815
      %v3833 = vld [vmem:[%s12] sm:$0xff]
      %v3834 = vld [vmem:[%s12 + $0x8] sm:$0xff]
      %v3835 = vld [vmem:[%s12 + $0x10] sm:$0xff]
      %v3836 = vld [vmem:[%s12 + $0x18] sm:$0xf]
      %v3837 = vld [vmem:[%s12 + $0x1c] sm:$0xff]
      %v3838 = vld [vmem:[%s12 + $0x24] sm:$0xff]
      %v3839 = vld [vmem:[%s12 + $0x2c] sm:$0xff]
      %v3840 = vld [vmem:[%s12 + $0x34] sm:$0xf]
      %v3841 = vld [vmem:[%s12 + $0x38] sm:$0xff]
      %v3842 = vld [vmem:[%s12 + $0x40] sm:$0xff]
      %v3843 = vld [vmem:[%s12 + $0x48] sm:$0xff]
      %v3844 = vld [vmem:[%s12 + $0x50] sm:$0xf]
      %v3845 = vld [vmem:[%s12 + $0x54] sm:$0xff]
      %v3846 = vld [vmem:[%s12 + $0x5c] sm:$0xff]
      %v3847 = vld [vmem:[%s12 + $0x64] sm:$0xff]
      %v3848 = vld [vmem:[%s12 + $0x6c] sm:$0xf]
      %v3849 = vld [vmem:[%s12 + $0x70] sm:$0xff]
      %v3850 = vld [vmem:[%s12 + $0x78] sm:$0xff]
      %v3851 = vld [vmem:[%s12 + $0x80] sm:$0xff]
      %v3852 = vld [vmem:[%s12 + $0x88] sm:$0xf]
      %v3853 = vld [vmem:[%s12 + $0x8c] sm:$0xff]
      %v3854 = vld [vmem:[%s12 + $0x94] sm:$0xff]
      %v3855 = vld [vmem:[%s12 + $0x9c] sm:$0xff]
      %v3856 = vld [vmem:[%s12 + $0xa4] sm:$0xf]
      %v3857 = vld [vmem:[%s12 + $0xa8] sm:$0xff]
      %v3858 = vld [vmem:[%s12 + $0xb0] sm:$0xff]
      %v3859 = vld [vmem:[%s12 + $0xb8] sm:$0xff]
      %v3860 = vld [vmem:[%s12 + $0xc0] sm:$0xf]
      %v3861 = vld [vmem:[%s12 + $0xc4] sm:$0xff]
      %v3862 = vld [vmem:[%s12 + $0xcc] sm:$0xff]
      %v3863 = vld [vmem:[%s12 + $0xd4] sm:$0xff]
      %v3864 = vld [vmem:[%s12 + $0xdc] sm:$0xf]
      %v3865 = vld [vmem:[%s12 + $0xe0] sm:$0xff]
      %v3866 = vld [vmem:[%s12 + $0xe8] sm:$0xff]
      %v3867 = vld [vmem:[%s12 + $0xf0] sm:$0xff]
      %v3868 = vld [vmem:[%s12 + $0xf8] sm:$0xf]
      %v3869 = vld [vmem:[%s12 + $0xfc] sm:$0xff]
      %v3870 = vld [vmem:[%s12 + $0x104] sm:$0xff]
      %v3871 = vld [vmem:[%s12 + $0x10c] sm:$0xff]
      %v3872 = vld [vmem:[%s12 + $0x114] sm:$0xf]
      %v3873 = vld [vmem:[%s12 + $0x118] sm:$0xff]
      %v3874 = vld [vmem:[%s12 + $0x120] sm:$0xff]
      %v3875 = vld [vmem:[%s12 + $0x128] sm:$0xff]
      %v3876 = vld [vmem:[%s12 + $0x130] sm:$0xf]
      %v3877 = vld [vmem:[%s12 + $0x134] sm:$0xff]
      %v3878 = vld [vmem:[%s12 + $0x13c] sm:$0xff]
      %v3879 = vld [vmem:[%s12 + $0x144] sm:$0xff]
      %v3880 = vld [vmem:[%s12 + $0x14c] sm:$0xf]
      %v3881 = vld [vmem:[%s12 + $0x150] sm:$0xff]
      %v3882 = vld [vmem:[%s12 + $0x158] sm:$0xff]
      %v3883 = vld [vmem:[%s12 + $0x160] sm:$0xff]
      %v3884 = vld [vmem:[%s12 + $0x168] sm:$0xf]
      %v3885 = vld [vmem:[%s12 + $0x16c] sm:$0xff]
      %v3886 = vld [vmem:[%s12 + $0x174] sm:$0xff]
      %v3887 = vld [vmem:[%s12 + $0x17c] sm:$0xff]
      %v3888 = vld [vmem:[%s12 + $0x184] sm:$0xf]
      %v3889 = vld [vmem:[%s12 + $0x188] sm:$0xff]
      %v3890 = vld [vmem:[%s12 + $0x190] sm:$0xff]
      %v3891 = vld [vmem:[%s12 + $0x198] sm:$0xff]
      %v3892 = vld [vmem:[%s12 + $0x1a0] sm:$0xf]
      %v3893 = vld [vmem:[%s12 + $0x1a4] sm:$0xff]
      %v3894 = vld [vmem:[%s12 + $0x1ac] sm:$0xff]
      %v3895 = vld [vmem:[%s12 + $0x1b4] sm:$0xff]
      %v3896 = vld [vmem:[%s12 + $0x1bc] sm:$0xf]
      %v3897 = vld [vmem:[%s13] sm:$0xff]
      %v3899 = vlaneseq
      %v3900 = vshrl.u32 %v3899, 7
      %v3901 = vsub.s32 0, %v3900
      %v3902 = vrot.slane %v3897, %v3901
      %v3903 = vlaneseq
      %v3904 = vshrl.u32 %v3903, 7
      %v3905 = vsub.s32 1, %v3904
      %v3906 = vrot.slane %v3897, %v3905
      %v3907 = vlaneseq
      %v3908 = vshrl.u32 %v3907, 7
      %v3909 = vsub.s32 2, %v3908
      %v3910 = vrot.slane %v3897, %v3909
      %v3911 = vlaneseq
      %v3912 = vshrl.u32 %v3911, 7
      %v3913 = vsub.s32 3, %v3912
      %v3914 = vrot.slane %v3897, %v3913
      %v3915 = vlaneseq
      %v3916 = vshrl.u32 %v3915, 7
      %v3917 = vsub.s32 4, %v3916
      %v3918 = vrot.slane %v3897, %v3917
      %v3919 = vlaneseq
      %v3920 = vshrl.u32 %v3919, 7
      %v3921 = vsub.s32 5, %v3920
      %v3922 = vrot.slane %v3897, %v3921
      %v3923 = vlaneseq
      %v3924 = vshrl.u32 %v3923, 7
      %v3925 = vsub.s32 6, %v3924
      %v3926 = vrot.slane %v3897, %v3925
      %v3998 = vunpack.c.l.b16 %v3833
      %v3999 = vunpack.c.h.b16 %v3833
      %v4000 = vunpack.c.l.b16 %v3834
      %v4001 = vunpack.c.h.b16 %v3834
      %v4002 = vunpack.c.l.b16 %v3835
      %v4003 = vunpack.c.h.b16 %v3835
      %v4004 = vunpack.c.l.b16 %v3836
      %v4005 = vunpack.c.l.b16 %v3837
      %v4006 = vunpack.c.h.b16 %v3837
      %v4007 = vunpack.c.l.b16 %v3838
      %v4008 = vunpack.c.h.b16 %v3838
      %v4009 = vunpack.c.l.b16 %v3839
      %v4010 = vunpack.c.h.b16 %v3839
      %v4011 = vunpack.c.l.b16 %v3840
      %v4012 = vunpack.c.l.b16 %v3841
      %v4013 = vunpack.c.h.b16 %v3841
      %v4014 = vunpack.c.l.b16 %v3842
      %v4015 = vunpack.c.h.b16 %v3842
      %v4016 = vunpack.c.l.b16 %v3843
      %v4017 = vunpack.c.h.b16 %v3843
      %v4018 = vunpack.c.l.b16 %v3844
      %v4019 = vunpack.c.l.b16 %v3845
      %v4020 = vunpack.c.h.b16 %v3845
      %v4021 = vunpack.c.l.b16 %v3846
      %v4022 = vunpack.c.h.b16 %v3846
      %v4023 = vunpack.c.l.b16 %v3847
      %v4024 = vunpack.c.h.b16 %v3847
      %v4025 = vunpack.c.l.b16 %v3848
      %v4026 = vunpack.c.l.b16 %v3849
      %v4027 = vunpack.c.h.b16 %v3849
      %v4028 = vunpack.c.l.b16 %v3850
      %v4029 = vunpack.c.h.b16 %v3850
      %v4030 = vunpack.c.l.b16 %v3851
      %v4031 = vunpack.c.h.b16 %v3851
      %v4032 = vunpack.c.l.b16 %v3852
      %v4033 = vunpack.c.l.b16 %v3853
      %v4034 = vunpack.c.h.b16 %v3853
      %v4035 = vunpack.c.l.b16 %v3854
      %v4036 = vunpack.c.h.b16 %v3854
      %v4037 = vunpack.c.l.b16 %v3855
      %v4038 = vunpack.c.h.b16 %v3855
      %v4039 = vunpack.c.l.b16 %v3856
      %v4040 = vunpack.c.l.b16 %v3857
      %v4041 = vunpack.c.h.b16 %v3857
      %v4042 = vunpack.c.l.b16 %v3858
      %v4043 = vunpack.c.h.b16 %v3858
      %v4044 = vunpack.c.l.b16 %v3859
      %v4045 = vunpack.c.h.b16 %v3859
      %v4046 = vunpack.c.l.b16 %v3860
      %v4047 = vunpack.c.l.b16 %v3861
      %v4048 = vunpack.c.h.b16 %v3861
      %v4049 = vunpack.c.l.b16 %v3862
      %v4050 = vunpack.c.h.b16 %v3862
      %v4051 = vunpack.c.l.b16 %v3863
      %v4052 = vunpack.c.h.b16 %v3863
      %v4053 = vunpack.c.l.b16 %v3864
      %v4054 = vunpack.c.l.b16 %v3865
      %v4055 = vunpack.c.h.b16 %v3865
      %v4056 = vunpack.c.l.b16 %v3866
      %v4057 = vunpack.c.h.b16 %v3866
      %v4058 = vunpack.c.l.b16 %v3867
      %v4059 = vunpack.c.h.b16 %v3867
      %v4060 = vunpack.c.l.b16 %v3868
      %v4061 = vunpack.c.l.b16 %v3869
      %v4062 = vunpack.c.h.b16 %v3869
      %v4063 = vunpack.c.l.b16 %v3870
      %v4064 = vunpack.c.h.b16 %v3870
      %v4065 = vunpack.c.l.b16 %v3871
      %v4066 = vunpack.c.h.b16 %v3871
      %v4067 = vunpack.c.l.b16 %v3872
      %v4068 = vunpack.c.l.b16 %v3873
      %v4069 = vunpack.c.h.b16 %v3873
      %v4070 = vunpack.c.l.b16 %v3874
      %v4071 = vunpack.c.h.b16 %v3874
      %v4072 = vunpack.c.l.b16 %v3875
      %v4073 = vunpack.c.h.b16 %v3875
      %v4074 = vunpack.c.l.b16 %v3876
      %v4075 = vunpack.c.l.b16 %v3877
      %v4076 = vunpack.c.h.b16 %v3877
      %v4077 = vunpack.c.l.b16 %v3878
      %v4078 = vunpack.c.h.b16 %v3878
      %v4079 = vunpack.c.l.b16 %v3879
      %v4080 = vunpack.c.h.b16 %v3879
      %v4081 = vunpack.c.l.b16 %v3880
      %v4082 = vunpack.c.l.b16 %v3881
      %v4083 = vunpack.c.h.b16 %v3881
      %v4084 = vunpack.c.l.b16 %v3882
      %v4085 = vunpack.c.h.b16 %v3882
      %v4086 = vunpack.c.l.b16 %v3883
      %v4087 = vunpack.c.h.b16 %v3883
      %v4088 = vunpack.c.l.b16 %v3884
      %v4089 = vunpack.c.l.b16 %v3885
      %v4090 = vunpack.c.h.b16 %v3885
      %v4091 = vunpack.c.l.b16 %v3886
      %v4092 = vunpack.c.h.b16 %v3886
      %v4093 = vunpack.c.l.b16 %v3887
      %v4094 = vunpack.c.h.b16 %v3887
      %v4095 = vunpack.c.l.b16 %v3888
      %v4096 = vunpack.c.l.b16 %v3889
      %v4097 = vunpack.c.h.b16 %v3889
      %v4098 = vunpack.c.l.b16 %v3890
      %v4099 = vunpack.c.h.b16 %v3890
      %v4100 = vunpack.c.l.b16 %v3891
      %v4101 = vunpack.c.h.b16 %v3891
      %v4102 = vunpack.c.l.b16 %v3892
      %v4103 = vunpack.c.l.b16 %v3893
      %v4104 = vunpack.c.h.b16 %v3893
      %v4105 = vunpack.c.l.b16 %v3894
      %v4106 = vunpack.c.h.b16 %v3894
      %v4107 = vunpack.c.l.b16 %v3895
      %v4108 = vunpack.c.h.b16 %v3895
      %v4109 = vunpack.c.l.b16 %v3896
      %v4110 = vpack.c.b16 %v4005, %v3998
      %v4111 = vpack.c.b16 %v4006, %v3999
      %v4112 = vpack.c.b16 %v4007, %v4000
      %v4113 = vpack.c.b16 %v4008, %v4001
      %v4114 = vpack.c.b16 %v4009, %v4002
      %v4115 = vpack.c.b16 %v4010, %v4003
      %v4116 = vpack.c.b16 %v4011, %v4004
      %v4117 = vpack.c.b16 %v4019, %v4012
      %v4118 = vpack.c.b16 %v4020, %v4013
      %v4119 = vpack.c.b16 %v4021, %v4014
      %v4120 = vpack.c.b16 %v4022, %v4015
      %v4121 = vpack.c.b16 %v4023, %v4016
      %v4122 = vpack.c.b16 %v4024, %v4017
      %v4123 = vpack.c.b16 %v4025, %v4018
      %v4124 = vpack.c.b16 %v4033, %v4026
      %v4125 = vpack.c.b16 %v4034, %v4027
      %v4126 = vpack.c.b16 %v4035, %v4028
      %v4127 = vpack.c.b16 %v4036, %v4029
      %v4128 = vpack.c.b16 %v4037, %v4030
      %v4129 = vpack.c.b16 %v4038, %v4031
      %v4130 = vpack.c.b16 %v4039, %v4032
      %v4131 = vpack.c.b16 %v4047, %v4040
      %v4132 = vpack.c.b16 %v4048, %v4041
      %v4133 = vpack.c.b16 %v4049, %v4042
      %v4134 = vpack.c.b16 %v4050, %v4043
      %v4135 = vpack.c.b16 %v4051, %v4044
      %v4136 = vpack.c.b16 %v4052, %v4045
      %v4137 = vpack.c.b16 %v4053, %v4046
      %v4138 = vpack.c.b16 %v4061, %v4054
      %v4139 = vpack.c.b16 %v4062, %v4055
      %v4140 = vpack.c.b16 %v4063, %v4056
      %v4141 = vpack.c.b16 %v4064, %v4057
      %v4142 = vpack.c.b16 %v4065, %v4058
      %v4143 = vpack.c.b16 %v4066, %v4059
      %v4144 = vpack.c.b16 %v4067, %v4060
      %v4145 = vpack.c.b16 %v4075, %v4068
      %v4146 = vpack.c.b16 %v4076, %v4069
      %v4147 = vpack.c.b16 %v4077, %v4070
      %v4148 = vpack.c.b16 %v4078, %v4071
      %v4149 = vpack.c.b16 %v4079, %v4072
      %v4150 = vpack.c.b16 %v4080, %v4073
      %v4151 = vpack.c.b16 %v4081, %v4074
      %v4152 = vpack.c.b16 %v4089, %v4082
      %v4153 = vpack.c.b16 %v4090, %v4083
      %v4154 = vpack.c.b16 %v4091, %v4084
      %v4155 = vpack.c.b16 %v4092, %v4085
      %v4156 = vpack.c.b16 %v4093, %v4086
      %v4157 = vpack.c.b16 %v4094, %v4087
      %v4158 = vpack.c.b16 %v4095, %v4088
      %v4159 = vpack.c.b16 %v4103, %v4096
      %v4160 = vpack.c.b16 %v4104, %v4097
      %v4161 = vpack.c.b16 %v4105, %v4098
      %v4162 = vpack.c.b16 %v4106, %v4099
      %v4163 = vpack.c.b16 %v4107, %v4100
      %v4164 = vpack.c.b16 %v4108, %v4101
      %v4165 = vpack.c.b16 %v4109, %v4102
      %4222 = vmatprep.subr.bf16.mxu0 %v4160
      %4223 = vmatpush1.bf16.msra.mxu0 %v4159
      %4224 = vmatprep.subr.bf16.mxu0 %v4153
      %4225 = vmatpush1.bf16.msra.mxu0 %v4152
      %4226 = vmatprep.subr.bf16.mxu0 %v4146
      %4227 = vmatpush1.bf16.msra.mxu0 %v4145
      %4228 = vmatprep.subr.bf16.mxu0 %v4139
      %4229 = vmatpush1.bf16.msra.mxu0 %v4138
      %4230 = vmatprep.subr.bf16.mxu0 %v4132
      %4231 = vmatpush1.bf16.msra.mxu0 %v4131
      %4232 = vmatprep.subr.bf16.mxu0 %v4125
      %4233 = vmatpush1.bf16.msra.mxu0 %v4124
      %4234 = vmatprep.subr.bf16.mxu0 %v4118
      %4235 = vmatpush1.bf16.msra.mxu0 %v4117
      %4236 = vmatprep.subr.bf16.mxu0 %v4111
      %4237 = vmatpush1.bf16.msra.mxu0 %v4110
      %4238 = vmatprep.subr.bf16.mxu0 0
      %4239 = vmatpush2.bf16.msra.mxu0 0
      %4240 = vmatprep.subr.bf16.mxu0 0
      %4241 = vmatpush2.bf16.msra.mxu0 0
      %4242 = vmatprep.subr.bf16.mxu0 0
      %4243 = vmatpush2.bf16.msra.mxu0 0
      %4244 = vmatprep.subr.bf16.mxu0 0
      %4245 = vmatpush2.bf16.msra.mxu0 0
      %4246 = vmatprep.subr.bf16.mxu0 0
      %4247 = vmatpush2.bf16.msra.mxu0 0
      %4248 = vmatprep.subr.bf16.mxu0 0
      %4249 = vmatpush2.bf16.msra.mxu0 0
      %4250 = vmatprep.subr.bf16.mxu0 0
      %4251 = vmatpush2.bf16.msra.mxu0 0
      %4252 = vmatprep.subr.bf16.mxu0 0
      %4253 = vmatpush2.bf16.msra.mxu0 0
      %4254 = vmatprep.mubr.bf16.mxu0 0
      %4255 = vmatmul.mubr.bf16.gmra.mxu0 %v3817
      %v4256 = vpop.f32.mrf.mxu0
      %v4257 = vadd.f32 %v3902, %v4256
      %v4258 = vpop.f32.mrf.mxu0
      %v4259 = vadd.f32 %v3906, %v4258
      %v4260 = vpop.f32.mrf.mxu0
      %v4261 = vadd.f32 %v3902, %v4260
      %v4262 = vpop.f32.mrf.mxu0
      %v4263 = vadd.f32 %v3906, %v4262
      %4264 = vmatprep.mubr.bf16.mxu0 0
      %4265 = vmatmul.mubr.bf16.gmra.mxu0 %v3818
      %v4266 = vpop.f32.mrf.mxu0
      %v4267 = vadd.f32 %v3902, %v4266
      %v4268 = vpop.f32.mrf.mxu0
      %v4269 = vadd.f32 %v3906, %v4268
      %v4270 = vpop.f32.mrf.mxu0
      %v4271 = vadd.f32 %v3902, %v4270
      %v4272 = vpop.f32.mrf.mxu0
      %v4273 = vadd.f32 %v3906, %v4272
      %4274 = vmatprep.mubr.bf16.mxu0 0
      %4275 = vmatmul.mubr.bf16.gmra.mxu0 %v3819
      %v4276 = vpop.f32.mrf.mxu0
      %v4277 = vadd.f32 %v3902, %v4276
      %v4278 = vpop.f32.mrf.mxu0
      %v4279 = vadd.f32 %v3906, %v4278
      %v4280 = vpop.f32.mrf.mxu0
      %v4281 = vadd.f32 %v3902, %v4280
      %v4282 = vpop.f32.mrf.mxu0
      %v4283 = vadd.f32 %v3906, %v4282
      %4284 = vmatprep.mubr.bf16.mxu0 0
      %4285 = vmatmul.mubr.bf16.gmra.mxu0 %v3820
      %v4286 = vpop.f32.mrf.mxu0
      %v4287 = vadd.f32 %v3902, %v4286
      %v4288 = vpop.f32.mrf.mxu0
      %v4289 = vadd.f32 %v3906, %v4288
      %v4290 = vpop.f32.mrf.mxu0
      %v4291 = vadd.f32 %v3902, %v4290
      %v4292 = vpop.f32.mrf.mxu0
      %v4293 = vadd.f32 %v3906, %v4292
      %4294 = vmatprep.mubr.bf16.mxu0 0
      %4295 = vmatmul.mubr.bf16.gmra.mxu0 %v3821
      %v4296 = vpop.f32.mrf.mxu0
      %v4297 = vadd.f32 %v3902, %v4296
      %v4298 = vpop.f32.mrf.mxu0
      %v4299 = vadd.f32 %v3906, %v4298
      %v4300 = vpop.f32.mrf.mxu0
      %v4301 = vadd.f32 %v3902, %v4300
      %v4302 = vpop.f32.mrf.mxu0
      %v4303 = vadd.f32 %v3906, %v4302
      %4304 = vmatprep.mubr.bf16.mxu0 0
      %4305 = vmatmul.mubr.bf16.gmra.mxu0 %v3822
      %v4306 = vpop.f32.mrf.mxu0
      %v4307 = vadd.f32 %v3902, %v4306
      %v4308 = vpop.f32.mrf.mxu0
      %v4309 = vadd.f32 %v3906, %v4308
      %v4310 = vpop.f32.mrf.mxu0
      %v4311 = vadd.f32 %v3902, %v4310
      %v4312 = vpop.f32.mrf.mxu0
      %v4313 = vadd.f32 %v3906, %v4312
      %4314 = vmatprep.mubr.bf16.mxu0 0
      %4315 = vmatmul.mubr.bf16.gmra.mxu0 %v3823
      %v4316 = vpop.f32.mrf.mxu0
      %v4317 = vadd.f32 %v3902, %v4316
      %v4318 = vpop.f32.mrf.mxu0
      %v4319 = vadd.f32 %v3906, %v4318
      %v4320 = vpop.f32.mrf.mxu0
      %v4321 = vadd.f32 %v3902, %v4320
      %v4322 = vpop.f32.mrf.mxu0
      %v4323 = vadd.f32 %v3906, %v4322
      %4324 = vmatprep.mubr.bf16.mxu0 0
      %4325 = vmatmul.mubr.bf16.gmra.mxu0 %v3824
      %v4326 = vpop.f32.mrf.mxu0
      %v4327 = vadd.f32 %v3902, %v4326
      %v4328 = vpop.f32.mrf.mxu0
      %v4329 = vadd.f32 %v3906, %v4328
      %v4330 = vpop.f32.mrf.mxu0
      %v4331 = vadd.f32 %v3902, %v4330
      %v4332 = vpop.f32.mrf.mxu0
      %v4333 = vadd.f32 %v3906, %v4332
      %4334 = vmatprep.mubr.bf16.mxu0 0
      %4335 = vmatmul.mubr.bf16.gmra.mxu0 %v3825
      %v4336 = vpop.f32.mrf.mxu0
      %v4337 = vadd.f32 %v3902, %v4336
      %v4338 = vpop.f32.mrf.mxu0
      %v4339 = vadd.f32 %v3906, %v4338
      %v4340 = vpop.f32.mrf.mxu0
      %v4341 = vadd.f32 %v3902, %v4340
      %v4342 = vpop.f32.mrf.mxu0
      %v4343 = vadd.f32 %v3906, %v4342
      %4344 = vmatprep.mubr.bf16.mxu0 0
      %4345 = vmatmul.mubr.bf16.gmra.mxu0 %v3826
      %v4346 = vpop.f32.mrf.mxu0
      %v4347 = vadd.f32 %v3902, %v4346
      %v4348 = vpop.f32.mrf.mxu0
      %v4349 = vadd.f32 %v3906, %v4348
      %v4350 = vpop.f32.mrf.mxu0
      %v4351 = vadd.f32 %v3902, %v4350
      %v4352 = vpop.f32.mrf.mxu0
      %v4353 = vadd.f32 %v3906, %v4352
      %4354 = vmatprep.mubr.bf16.mxu0 0
      %4355 = vmatmul.mubr.bf16.gmra.mxu0 %v3827
      %v4356 = vpop.f32.mrf.mxu0
      %v4357 = vadd.f32 %v3902, %v4356
      %v4358 = vpop.f32.mrf.mxu0
      %v4359 = vadd.f32 %v3906, %v4358
      %v4360 = vpop.f32.mrf.mxu0
      %v4361 = vadd.f32 %v3902, %v4360
      %v4362 = vpop.f32.mrf.mxu0
      %v4363 = vadd.f32 %v3906, %v4362
      %4364 = vmatprep.mubr.bf16.mxu0 0
      %4365 = vmatmul.mubr.bf16.gmra.mxu0 %v3828
      %v4366 = vpop.f32.mrf.mxu0
      %v4367 = vadd.f32 %v3902, %v4366
      %v4368 = vpop.f32.mrf.mxu0
      %v4369 = vadd.f32 %v3906, %v4368
      %v4370 = vpop.f32.mrf.mxu0
      %v4371 = vadd.f32 %v3902, %v4370
      %v4372 = vpop.f32.mrf.mxu0
      %v4373 = vadd.f32 %v3906, %v4372
      %4374 = vmatprep.mubr.bf16.mxu0 0
      %4375 = vmatmul.mubr.bf16.gmra.mxu0 %v3829
      %v4376 = vpop.f32.mrf.mxu0
      %v4377 = vadd.f32 %v3902, %v4376
      %v4378 = vpop.f32.mrf.mxu0
      %v4379 = vadd.f32 %v3906, %v4378
      %v4380 = vpop.f32.mrf.mxu0
      %v4381 = vadd.f32 %v3902, %v4380
      %v4382 = vpop.f32.mrf.mxu0
      %v4383 = vadd.f32 %v3906, %v4382
      %4384 = vmatprep.mubr.bf16.mxu0 0
      %4385 = vmatmul.mubr.bf16.gmra.mxu0 %v3830
      %v4386 = vpop.f32.mrf.mxu0
      %v4387 = vadd.f32 %v3902, %v4386
      %v4388 = vpop.f32.mrf.mxu0
      %v4389 = vadd.f32 %v3906, %v4388
      %v4390 = vpop.f32.mrf.mxu0
      %v4391 = vadd.f32 %v3902, %v4390
      %v4392 = vpop.f32.mrf.mxu0
      %v4393 = vadd.f32 %v3906, %v4392
      %4394 = vmatprep.mubr.bf16.mxu0 0
      %4395 = vmatmul.mubr.bf16.gmra.mxu0 %v3831
      %v4396 = vpop.f32.mrf.mxu0
      %v4397 = vadd.f32 %v3902, %v4396
      %v4398 = vpop.f32.mrf.mxu0
      %v4399 = vadd.f32 %v3906, %v4398
      %v4400 = vpop.f32.mrf.mxu0
      %v4401 = vadd.f32 %v3902, %v4400
      %v4402 = vpop.f32.mrf.mxu0
      %v4403 = vadd.f32 %v3906, %v4402
      %4404 = vmatprep.mubr.bf16.mxu0 0
      %4405 = vmatmul.mubr.bf16.gmra.mxu0 %v3832
      %v4406 = vpop.f32.mrf.mxu0
      %v4407 = vadd.f32 %v3902, %v4406
      %v4408 = vpop.f32.mrf.mxu0
      %v4409 = vadd.f32 %v3906, %v4408
      %v4410 = vpop.f32.mrf.mxu0
      %v4411 = vadd.f32 %v3902, %v4410
      %v4412 = vpop.f32.mrf.mxu0
      %v4413 = vadd.f32 %v3906, %v4412
      %4414 = vdwg.mxu0
      %4415 = vmatprep.subr.bf16.mxu0 %v4162
      %4416 = vmatpush1.bf16.msra.mxu0 %v4161
      %4417 = vmatprep.subr.bf16.mxu0 %v4155
      %4418 = vmatpush1.bf16.msra.mxu0 %v4154
      %4419 = vmatprep.subr.bf16.mxu0 %v4148
      %4420 = vmatpush1.bf16.msra.mxu0 %v4147
      %4421 = vmatprep.subr.bf16.mxu0 %v4141
      %4422 = vmatpush1.bf16.msra.mxu0 %v4140
      %4423 = vmatprep.subr.bf16.mxu0 %v4134
      %4424 = vmatpush1.bf16.msra.mxu0 %v4133
      %4425 = vmatprep.subr.bf16.mxu0 %v4127
      %4426 = vmatpush1.bf16.msra.mxu0 %v4126
      %4427 = vmatprep.subr.bf16.mxu0 %v4120
      %4428 = vmatpush1.bf16.msra.mxu0 %v4119
      %4429 = vmatprep.subr.bf16.mxu0 %v4113
      %4430 = vmatpush1.bf16.msra.mxu0 %v4112
      %4431 = vmatprep.subr.bf16.mxu0 0
      %4432 = vmatpush2.bf16.msra.mxu0 0
      %4433 = vmatprep.subr.bf16.mxu0 0
      %4434 = vmatpush2.bf16.msra.mxu0 0
      %4435 = vmatprep.subr.bf16.mxu0 0
      %4436 = vmatpush2.bf16.msra.mxu0 0
      %4437 = vmatprep.subr.bf16.mxu0 0
      %4438 = vmatpush2.bf16.msra.mxu0 0
      %4439 = vmatprep.subr.bf16.mxu0 0
      %4440 = vmatpush2.bf16.msra.mxu0 0
      %4441 = vmatprep.subr.bf16.mxu0 0
      %4442 = vmatpush2.bf16.msra.mxu0 0
      %4443 = vmatprep.subr.bf16.mxu0 0
      %4444 = vmatpush2.bf16.msra.mxu0 0
      %4445 = vmatprep.subr.bf16.mxu0 0
      %4446 = vmatpush2.bf16.msra.mxu0 0
      %4447 = vmatprep.mubr.bf16.mxu0 0
      %4448 = vmatmul.mubr.bf16.gmra.mxu0 %v3817
      %v4449 = vpop.f32.mrf.mxu0
      %v4450 = vadd.f32 %v3910, %v4449
      %v4451 = vpop.f32.mrf.mxu0
      %v4452 = vadd.f32 %v3914, %v4451
      %v4453 = vpop.f32.mrf.mxu0
      %v4454 = vadd.f32 %v3910, %v4453
      %v4455 = vpop.f32.mrf.mxu0
      %v4456 = vadd.f32 %v3914, %v4455
      %4457 = vmatprep.mubr.bf16.mxu0 0
      %4458 = vmatmul.mubr.bf16.gmra.mxu0 %v3818
      %v4459 = vpop.f32.mrf.mxu0
      %v4460 = vadd.f32 %v3910, %v4459
      %v4461 = vpop.f32.mrf.mxu0
      %v4462 = vadd.f32 %v3914, %v4461
      %v4463 = vpop.f32.mrf.mxu0
      %v4464 = vadd.f32 %v3910, %v4463
      %v4465 = vpop.f32.mrf.mxu0
      %v4466 = vadd.f32 %v3914, %v4465
      %4467 = vmatprep.mubr.bf16.mxu0 0
      %4468 = vmatmul.mubr.bf16.gmra.mxu0 %v3819
      %v4469 = vpop.f32.mrf.mxu0
      %v4470 = vadd.f32 %v3910, %v4469
      %v4471 = vpop.f32.mrf.mxu0
      %v4472 = vadd.f32 %v3914, %v4471
      %v4473 = vpop.f32.mrf.mxu0
      %v4474 = vadd.f32 %v3910, %v4473
      %v4475 = vpop.f32.mrf.mxu0
      %v4476 = vadd.f32 %v3914, %v4475
      %4477 = vmatprep.mubr.bf16.mxu0 0
      %4478 = vmatmul.mubr.bf16.gmra.mxu0 %v3820
      %v4479 = vpop.f32.mrf.mxu0
      %v4480 = vadd.f32 %v3910, %v4479
      %v4481 = vpop.f32.mrf.mxu0
      %v4482 = vadd.f32 %v3914, %v4481
      %v4483 = vpop.f32.mrf.mxu0
      %v4484 = vadd.f32 %v3910, %v4483
      %v4485 = vpop.f32.mrf.mxu0
      %v4486 = vadd.f32 %v3914, %v4485
      %4487 = vmatprep.mubr.bf16.mxu0 0
      %4488 = vmatmul.mubr.bf16.gmra.mxu0 %v3821
      %v4489 = vpop.f32.mrf.mxu0
      %v4490 = vadd.f32 %v3910, %v4489
      %v4491 = vpop.f32.mrf.mxu0
      %v4492 = vadd.f32 %v3914, %v4491
      %v4493 = vpop.f32.mrf.mxu0
      %v4494 = vadd.f32 %v3910, %v4493
      %v4495 = vpop.f32.mrf.mxu0
      %v4496 = vadd.f32 %v3914, %v4495
      %4497 = vmatprep.mubr.bf16.mxu0 0
      %4498 = vmatmul.mubr.bf16.gmra.mxu0 %v3822
      %v4499 = vpop.f32.mrf.mxu0
      %v4500 = vadd.f32 %v3910, %v4499
      %v4501 = vpop.f32.mrf.mxu0
      %v4502 = vadd.f32 %v3914, %v4501
      %v4503 = vpop.f32.mrf.mxu0
      %v4504 = vadd.f32 %v3910, %v4503
      %v4505 = vpop.f32.mrf.mxu0
      %v4506 = vadd.f32 %v3914, %v4505
      %4507 = vmatprep.mubr.bf16.mxu0 0
      %4508 = vmatmul.mubr.bf16.gmra.mxu0 %v3823
      %v4509 = vpop.f32.mrf.mxu0
      %v4510 = vadd.f32 %v3910, %v4509
      %v4511 = vpop.f32.mrf.mxu0
      %v4512 = vadd.f32 %v3914, %v4511
      %v4513 = vpop.f32.mrf.mxu0
      %v4514 = vadd.f32 %v3910, %v4513
      %v4515 = vpop.f32.mrf.mxu0
      %v4516 = vadd.f32 %v3914, %v4515
      %4517 = vmatprep.mubr.bf16.mxu0 0
      %4518 = vmatmul.mubr.bf16.gmra.mxu0 %v3824
      %v4519 = vpop.f32.mrf.mxu0
      %v4520 = vadd.f32 %v3910, %v4519
      %v4521 = vpop.f32.mrf.mxu0
      %v4522 = vadd.f32 %v3914, %v4521
      %v4523 = vpop.f32.mrf.mxu0
      %v4524 = vadd.f32 %v3910, %v4523
      %v4525 = vpop.f32.mrf.mxu0
      %v4526 = vadd.f32 %v3914, %v4525
      %4527 = vmatprep.mubr.bf16.mxu0 0
      %4528 = vmatmul.mubr.bf16.gmra.mxu0 %v3825
      %v4529 = vpop.f32.mrf.mxu0
      %v4530 = vadd.f32 %v3910, %v4529
      %v4531 = vpop.f32.mrf.mxu0
      %v4532 = vadd.f32 %v3914, %v4531
      %v4533 = vpop.f32.mrf.mxu0
      %v4534 = vadd.f32 %v3910, %v4533
      %v4535 = vpop.f32.mrf.mxu0
      %v4536 = vadd.f32 %v3914, %v4535
      %4537 = vmatprep.mubr.bf16.mxu0 0
      %4538 = vmatmul.mubr.bf16.gmra.mxu0 %v3826
      %v4539 = vpop.f32.mrf.mxu0
      %v4540 = vadd.f32 %v3910, %v4539
      %v4541 = vpop.f32.mrf.mxu0
      %v4542 = vadd.f32 %v3914, %v4541
      %v4543 = vpop.f32.mrf.mxu0
      %v4544 = vadd.f32 %v3910, %v4543
      %v4545 = vpop.f32.mrf.mxu0
      %v4546 = vadd.f32 %v3914, %v4545
      %4547 = vmatprep.mubr.bf16.mxu0 0
      %4548 = vmatmul.mubr.bf16.gmra.mxu0 %v3827
      %v4549 = vpop.f32.mrf.mxu0
      %v4550 = vadd.f32 %v3910, %v4549
      %v4551 = vpop.f32.mrf.mxu0
      %v4552 = vadd.f32 %v3914, %v4551
      %v4553 = vpop.f32.mrf.mxu0
      %v4554 = vadd.f32 %v3910, %v4553
      %v4555 = vpop.f32.mrf.mxu0
      %v4556 = vadd.f32 %v3914, %v4555
      %4557 = vmatprep.mubr.bf16.mxu0 0
      %4558 = vmatmul.mubr.bf16.gmra.mxu0 %v3828
      %v4559 = vpop.f32.mrf.mxu0
      %v4560 = vadd.f32 %v3910, %v4559
      %v4561 = vpop.f32.mrf.mxu0
      %v4562 = vadd.f32 %v3914, %v4561
      %v4563 = vpop.f32.mrf.mxu0
      %v4564 = vadd.f32 %v3910, %v4563
      %v4565 = vpop.f32.mrf.mxu0
      %v4566 = vadd.f32 %v3914, %v4565
      %4567 = vmatprep.mubr.bf16.mxu0 0
      %4568 = vmatmul.mubr.bf16.gmra.mxu0 %v3829
      %v4569 = vpop.f32.mrf.mxu0
      %v4570 = vadd.f32 %v3910, %v4569
      %v4571 = vpop.f32.mrf.mxu0
      %v4572 = vadd.f32 %v3914, %v4571
      %v4573 = vpop.f32.mrf.mxu0
      %v4574 = vadd.f32 %v3910, %v4573
      %v4575 = vpop.f32.mrf.mxu0
      %v4576 = vadd.f32 %v3914, %v4575
      %4577 = vmatprep.mubr.bf16.mxu0 0
      %4578 = vmatmul.mubr.bf16.gmra.mxu0 %v3830
      %v4579 = vpop.f32.mrf.mxu0
      %v4580 = vadd.f32 %v3910, %v4579
      %v4581 = vpop.f32.mrf.mxu0
      %v4582 = vadd.f32 %v3914, %v4581
      %v4583 = vpop.f32.mrf.mxu0
      %v4584 = vadd.f32 %v3910, %v4583
      %v4585 = vpop.f32.mrf.mxu0
      %v4586 = vadd.f32 %v3914, %v4585
      %4587 = vmatprep.mubr.bf16.mxu0 0
      %4588 = vmatmul.mubr.bf16.gmra.mxu0 %v3831
      %v4589 = vpop.f32.mrf.mxu0
      %v4590 = vadd.f32 %v3910, %v4589
      %v4591 = vpop.f32.mrf.mxu0
      %v4592 = vadd.f32 %v3914, %v4591
      %v4593 = vpop.f32.mrf.mxu0
      %v4594 = vadd.f32 %v3910, %v4593
      %v4595 = vpop.f32.mrf.mxu0
      %v4596 = vadd.f32 %v3914, %v4595
      %4597 = vmatprep.mubr.bf16.mxu0 0
      %4598 = vmatmul.mubr.bf16.gmra.mxu0 %v3832
      %v4599 = vpop.f32.mrf.mxu0
      %v4600 = vadd.f32 %v3910, %v4599
      %v4601 = vpop.f32.mrf.mxu0
      %v4602 = vadd.f32 %v3914, %v4601
      %v4603 = vpop.f32.mrf.mxu0
      %v4604 = vadd.f32 %v3910, %v4603
      %v4605 = vpop.f32.mrf.mxu0
      %v4606 = vadd.f32 %v3914, %v4605
      %4607 = vdwg.mxu0
      %4608 = vmatprep.subr.bf16.mxu0 %v4164
      %4609 = vmatpush1.bf16.msra.mxu0 %v4163
      %4610 = vmatprep.subr.bf16.mxu0 %v4157
      %4611 = vmatpush1.bf16.msra.mxu0 %v4156
      %4612 = vmatprep.subr.bf16.mxu0 %v4150
      %4613 = vmatpush1.bf16.msra.mxu0 %v4149
      %4614 = vmatprep.subr.bf16.mxu0 %v4143
      %4615 = vmatpush1.bf16.msra.mxu0 %v4142
      %4616 = vmatprep.subr.bf16.mxu0 %v4136
      %4617 = vmatpush1.bf16.msra.mxu0 %v4135
      %4618 = vmatprep.subr.bf16.mxu0 %v4129
      %4619 = vmatpush1.bf16.msra.mxu0 %v4128
      %4620 = vmatprep.subr.bf16.mxu0 %v4122
      %4621 = vmatpush1.bf16.msra.mxu0 %v4121
      %4622 = vmatprep.subr.bf16.mxu0 %v4115
      %4623 = vmatpush1.bf16.msra.mxu0 %v4114
      %4624 = vmatprep.subr.bf16.mxu0 0
      %4625 = vmatpush2.bf16.msra.mxu0 0
      %4626 = vmatprep.subr.bf16.mxu0 0
      %4627 = vmatpush2.bf16.msra.mxu0 0
      %4628 = vmatprep.subr.bf16.mxu0 0
      %4629 = vmatpush2.bf16.msra.mxu0 0
      %4630 = vmatprep.subr.bf16.mxu0 0
      %4631 = vmatpush2.bf16.msra.mxu0 0
      %4632 = vmatprep.subr.bf16.mxu0 0
      %4633 = vmatpush2.bf16.msra.mxu0 0
      %4634 = vmatprep.subr.bf16.mxu0 0
      %4635 = vmatpush2.bf16.msra.mxu0 0
      %4636 = vmatprep.subr.bf16.mxu0 0
      %4637 = vmatpush2.bf16.msra.mxu0 0
      %4638 = vmatprep.subr.bf16.mxu0 0
      %4639 = vmatpush2.bf16.msra.mxu0 0
      %4640 = vmatprep.mubr.bf16.mxu0 0
      %4641 = vmatmul.mubr.bf16.gmra.mxu0 %v3817
      %v4642 = vpop.f32.mrf.mxu0
      %v4643 = vadd.f32 %v3918, %v4642
      %v4644 = vpop.f32.mrf.mxu0
      %v4645 = vadd.f32 %v3922, %v4644
      %v4646 = vpop.f32.mrf.mxu0
      %v4647 = vadd.f32 %v3918, %v4646
      %v4648 = vpop.f32.mrf.mxu0
      %v4649 = vadd.f32 %v3922, %v4648
      %4650 = vmatprep.mubr.bf16.mxu0 0
      %4651 = vmatmul.mubr.bf16.gmra.mxu0 %v3818
      %v4652 = vpop.f32.mrf.mxu0
      %v4653 = vadd.f32 %v3918, %v4652
      %v4654 = vpop.f32.mrf.mxu0
      %v4655 = vadd.f32 %v3922, %v4654
      %v4656 = vpop.f32.mrf.mxu0
      %v4657 = vadd.f32 %v3918, %v4656
      %v4658 = vpop.f32.mrf.mxu0
      %v4659 = vadd.f32 %v3922, %v4658
      %4660 = vmatprep.mubr.bf16.mxu0 0
      %4661 = vmatmul.mubr.bf16.gmra.mxu0 %v3819
      %v4662 = vpop.f32.mrf.mxu0
      %v4663 = vadd.f32 %v3918, %v4662
      %v4664 = vpop.f32.mrf.mxu0
      %v4665 = vadd.f32 %v3922, %v4664
      %v4666 = vpop.f32.mrf.mxu0
      %v4667 = vadd.f32 %v3918, %v4666
      %v4668 = vpop.f32.mrf.mxu0
      %v4669 = vadd.f32 %v3922, %v4668
      %4670 = vmatprep.mubr.bf16.mxu0 0
      %4671 = vmatmul.mubr.bf16.gmra.mxu0 %v3820
      %v4672 = vpop.f32.mrf.mxu0
      %v4673 = vadd.f32 %v3918, %v4672
      %v4674 = vpop.f32.mrf.mxu0
      %v4675 = vadd.f32 %v3922, %v4674
      %v4676 = vpop.f32.mrf.mxu0
      %v4677 = vadd.f32 %v3918, %v4676
      %v4678 = vpop.f32.mrf.mxu0
      %v4679 = vadd.f32 %v3922, %v4678
      %4680 = vmatprep.mubr.bf16.mxu0 0
      %4681 = vmatmul.mubr.bf16.gmra.mxu0 %v3821
      %v4682 = vpop.f32.mrf.mxu0
      %v4683 = vadd.f32 %v3918, %v4682
      %v4684 = vpop.f32.mrf.mxu0
      %v4685 = vadd.f32 %v3922, %v4684
      %v4686 = vpop.f32.mrf.mxu0
      %v4687 = vadd.f32 %v3918, %v4686
      %v4688 = vpop.f32.mrf.mxu0
      %v4689 = vadd.f32 %v3922, %v4688
      %4690 = vmatprep.mubr.bf16.mxu0 0
      %4691 = vmatmul.mubr.bf16.gmra.mxu0 %v3822
      %v4692 = vpop.f32.mrf.mxu0
      %v4693 = vadd.f32 %v3918, %v4692
      %v4694 = vpop.f32.mrf.mxu0
      %v4695 = vadd.f32 %v3922, %v4694
      %v4696 = vpop.f32.mrf.mxu0
      %v4697 = vadd.f32 %v3918, %v4696
      %v4698 = vpop.f32.mrf.mxu0
      %v4699 = vadd.f32 %v3922, %v4698
      %4700 = vmatprep.mubr.bf16.mxu0 0
      %4701 = vmatmul.mubr.bf16.gmra.mxu0 %v3823
      %v4702 = vpop.f32.mrf.mxu0
      %v4703 = vadd.f32 %v3918, %v4702
      %v4704 = vpop.f32.mrf.mxu0
      %v4705 = vadd.f32 %v3922, %v4704
      %v4706 = vpop.f32.mrf.mxu0
      %v4707 = vadd.f32 %v3918, %v4706
      %v4708 = vpop.f32.mrf.mxu0
      %v4709 = vadd.f32 %v3922, %v4708
      %4710 = vmatprep.mubr.bf16.mxu0 0
      %4711 = vmatmul.mubr.bf16.gmra.mxu0 %v3824
      %v4712 = vpop.f32.mrf.mxu0
      %v4713 = vadd.f32 %v3918, %v4712
      %v4714 = vpop.f32.mrf.mxu0
      %v4715 = vadd.f32 %v3922, %v4714
      %v4716 = vpop.f32.mrf.mxu0
      %v4717 = vadd.f32 %v3918, %v4716
      %v4718 = vpop.f32.mrf.mxu0
      %v4719 = vadd.f32 %v3922, %v4718
      %4720 = vmatprep.mubr.bf16.mxu0 0
      %4721 = vmatmul.mubr.bf16.gmra.mxu0 %v3825
      %v4722 = vpop.f32.mrf.mxu0
      %v4723 = vadd.f32 %v3918, %v4722
      %v4724 = vpop.f32.mrf.mxu0
      %v4725 = vadd.f32 %v3922, %v4724
      %v4726 = vpop.f32.mrf.mxu0
      %v4727 = vadd.f32 %v3918, %v4726
      %v4728 = vpop.f32.mrf.mxu0
      %v4729 = vadd.f32 %v3922, %v4728
      %4730 = vmatprep.mubr.bf16.mxu0 0
      %4731 = vmatmul.mubr.bf16.gmra.mxu0 %v3826
      %v4732 = vpop.f32.mrf.mxu0
      %v4733 = vadd.f32 %v3918, %v4732
      %v4734 = vpop.f32.mrf.mxu0
      %v4735 = vadd.f32 %v3922, %v4734
      %v4736 = vpop.f32.mrf.mxu0
      %v4737 = vadd.f32 %v3918, %v4736
      %v4738 = vpop.f32.mrf.mxu0
      %v4739 = vadd.f32 %v3922, %v4738
      %4740 = vmatprep.mubr.bf16.mxu0 0
      %4741 = vmatmul.mubr.bf16.gmra.mxu0 %v3827
      %v4742 = vpop.f32.mrf.mxu0
      %v4743 = vadd.f32 %v3918, %v4742
      %v4744 = vpop.f32.mrf.mxu0
      %v4745 = vadd.f32 %v3922, %v4744
      %v4746 = vpop.f32.mrf.mxu0
      %v4747 = vadd.f32 %v3918, %v4746
      %v4748 = vpop.f32.mrf.mxu0
      %v4749 = vadd.f32 %v3922, %v4748
      %4750 = vmatprep.mubr.bf16.mxu0 0
      %4751 = vmatmul.mubr.bf16.gmra.mxu0 %v3828
      %v4752 = vpop.f32.mrf.mxu0
      %v4753 = vadd.f32 %v3918, %v4752
      %v4754 = vpop.f32.mrf.mxu0
      %v4755 = vadd.f32 %v3922, %v4754
      %v4756 = vpop.f32.mrf.mxu0
      %v4757 = vadd.f32 %v3918, %v4756
      %v4758 = vpop.f32.mrf.mxu0
      %v4759 = vadd.f32 %v3922, %v4758
      %4760 = vmatprep.mubr.bf16.mxu0 0
      %4761 = vmatmul.mubr.bf16.gmra.mxu0 %v3829
      %v4762 = vpop.f32.mrf.mxu0
      %v4763 = vadd.f32 %v3918, %v4762
      %v4764 = vpop.f32.mrf.mxu0
      %v4765 = vadd.f32 %v3922, %v4764
      %v4766 = vpop.f32.mrf.mxu0
      %v4767 = vadd.f32 %v3918, %v4766
      %v4768 = vpop.f32.mrf.mxu0
      %v4769 = vadd.f32 %v3922, %v4768
      %4770 = vmatprep.mubr.bf16.mxu0 0
      %4771 = vmatmul.mubr.bf16.gmra.mxu0 %v3830
      %v4772 = vpop.f32.mrf.mxu0
      %v4773 = vadd.f32 %v3918, %v4772
      %v4774 = vpop.f32.mrf.mxu0
      %v4775 = vadd.f32 %v3922, %v4774
      %v4776 = vpop.f32.mrf.mxu0
      %v4777 = vadd.f32 %v3918, %v4776
      %v4778 = vpop.f32.mrf.mxu0
      %v4779 = vadd.f32 %v3922, %v4778
      %4780 = vmatprep.mubr.bf16.mxu0 0
      %4781 = vmatmul.mubr.bf16.gmra.mxu0 %v3831
      %v4782 = vpop.f32.mrf.mxu0
      %v4783 = vadd.f32 %v3918, %v4782
      %v4784 = vpop.f32.mrf.mxu0
      %v4785 = vadd.f32 %v3922, %v4784
      %v4786 = vpop.f32.mrf.mxu0
      %v4787 = vadd.f32 %v3918, %v4786
      %v4788 = vpop.f32.mrf.mxu0
      %v4789 = vadd.f32 %v3922, %v4788
      %4790 = vmatprep.mubr.bf16.mxu0 0
      %4791 = vmatmul.mubr.bf16.gmra.mxu0 %v3832
      %v4792 = vpop.f32.mrf.mxu0
      %v4793 = vadd.f32 %v3918, %v4792
      %v4794 = vpop.f32.mrf.mxu0
      %v4795 = vadd.f32 %v3922, %v4794
      %v4796 = vpop.f32.mrf.mxu0
      %v4797 = vadd.f32 %v3918, %v4796
      %v4798 = vpop.f32.mrf.mxu0
      %v4799 = vadd.f32 %v3922, %v4798
      %4800 = vdwg.mxu0
      %4801 = vmatprep.subr.bf16.mxu0 0
      %4802 = vmatpush1.bf16.msra.mxu0 %v4165
      %4803 = vmatprep.subr.bf16.mxu0 0
      %4804 = vmatpush1.bf16.msra.mxu0 %v4158
      %4805 = vmatprep.subr.bf16.mxu0 0
      %4806 = vmatpush1.bf16.msra.mxu0 %v4151
      %4807 = vmatprep.subr.bf16.mxu0 0
      %4808 = vmatpush1.bf16.msra.mxu0 %v4144
      %4809 = vmatprep.subr.bf16.mxu0 0
      %4810 = vmatpush1.bf16.msra.mxu0 %v4137
      %4811 = vmatprep.subr.bf16.mxu0 0
      %4812 = vmatpush1.bf16.msra.mxu0 %v4130
      %4813 = vmatprep.subr.bf16.mxu0 0
      %4814 = vmatpush1.bf16.msra.mxu0 %v4123
      %4815 = vmatprep.subr.bf16.mxu0 0
      %4816 = vmatpush1.bf16.msra.mxu0 %v4116
      %4817 = vmatprep.subr.bf16.mxu0 0
      %4818 = vmatpush2.bf16.msra.mxu0 0
      %4819 = vmatprep.subr.bf16.mxu0 0
      %4820 = vmatpush2.bf16.msra.mxu0 0
      %4821 = vmatprep.subr.bf16.mxu0 0
      %4822 = vmatpush2.bf16.msra.mxu0 0
      %4823 = vmatprep.subr.bf16.mxu0 0
      %4824 = vmatpush2.bf16.msra.mxu0 0
      %4825 = vmatprep.subr.bf16.mxu0 0
      %4826 = vmatpush2.bf16.msra.mxu0 0
      %4827 = vmatprep.subr.bf16.mxu0 0
      %4828 = vmatpush2.bf16.msra.mxu0 0
      %4829 = vmatprep.subr.bf16.mxu0 0
      %4830 = vmatpush2.bf16.msra.mxu0 0
      %4831 = vmatprep.subr.bf16.mxu0 0
      %4832 = vmatpush2.bf16.msra.mxu0 0
      %4833 = vmatprep.mubr.bf16.mxu0 0
      %4834 = vmatmul.mubr.bf16.gmra.mxu0 %v3817
      %v4835 = vpop.f32.mrf.mxu0
      %v4836 = vadd.f32 %v3926, %v4835
      %v4837 = vpop.f32.mrf.mxu0
      %v4838 = vpop.f32.mrf.mxu0
      %v4839 = vadd.f32 %v3926, %v4838
      %v4840 = vpop.f32.mrf.mxu0
      %4841 = vmatprep.mubr.bf16.mxu0 0
      %4842 = vmatmul.mubr.bf16.gmra.mxu0 %v3818
      %v4843 = vpop.f32.mrf.mxu0
      %v4844 = vadd.f32 %v3926, %v4843
      %v4845 = vpop.f32.mrf.mxu0
      %v4846 = vpop.f32.mrf.mxu0
      %v4847 = vadd.f32 %v3926, %v4846
      %v4848 = vpop.f32.mrf.mxu0
      %4849 = vmatprep.mubr.bf16.mxu0 0
      %4850 = vmatmul.mubr.bf16.gmra.mxu0 %v3819
      %v4851 = vpop.f32.mrf.mxu0
      %v4852 = vadd.f32 %v3926, %v4851
      %v4853 = vpop.f32.mrf.mxu0
      %v4854 = vpop.f32.mrf.mxu0
      %v4855 = vadd.f32 %v3926, %v4854
      %v4856 = vpop.f32.mrf.mxu0
      %4857 = vmatprep.mubr.bf16.mxu0 0
      %4858 = vmatmul.mubr.bf16.gmra.mxu0 %v3820
      %v4859 = vpop.f32.mrf.mxu0
      %v4860 = vadd.f32 %v3926, %v4859
      %v4861 = vpop.f32.mrf.mxu0
      %v4862 = vpop.f32.mrf.mxu0
      %v4863 = vadd.f32 %v3926, %v4862
      %v4864 = vpop.f32.mrf.mxu0
      %4865 = vmatprep.mubr.bf16.mxu0 0
      %4866 = vmatmul.mubr.bf16.gmra.mxu0 %v3821
      %v4867 = vpop.f32.mrf.mxu0
      %v4868 = vadd.f32 %v3926, %v4867
      %v4869 = vpop.f32.mrf.mxu0
      %v4870 = vpop.f32.mrf.mxu0
      %v4871 = vadd.f32 %v3926, %v4870
      %v4872 = vpop.f32.mrf.mxu0
      %4873 = vmatprep.mubr.bf16.mxu0 0
      %4874 = vmatmul.mubr.bf16.gmra.mxu0 %v3822
      %v4875 = vpop.f32.mrf.mxu0
      %v4876 = vadd.f32 %v3926, %v4875
      %v4877 = vpop.f32.mrf.mxu0
      %v4878 = vpop.f32.mrf.mxu0
      %v4879 = vadd.f32 %v3926, %v4878
      %v4880 = vpop.f32.mrf.mxu0
      %4881 = vmatprep.mubr.bf16.mxu0 0
      %4882 = vmatmul.mubr.bf16.gmra.mxu0 %v3823
      %v4883 = vpop.f32.mrf.mxu0
      %v4884 = vadd.f32 %v3926, %v4883
      %v4885 = vpop.f32.mrf.mxu0
      %v4886 = vpop.f32.mrf.mxu0
      %v4887 = vadd.f32 %v3926, %v4886
      %v4888 = vpop.f32.mrf.mxu0
      %4889 = vmatprep.mubr.bf16.mxu0 0
      %4890 = vmatmul.mubr.bf16.gmra.mxu0 %v3824
      %v4891 = vpop.f32.mrf.mxu0
      %v4892 = vadd.f32 %v3926, %v4891
      %v4893 = vpop.f32.mrf.mxu0
      %v4894 = vpop.f32.mrf.mxu0
      %v4895 = vadd.f32 %v3926, %v4894
      %v4896 = vpop.f32.mrf.mxu0
      %4897 = vmatprep.mubr.bf16.mxu0 0
      %4898 = vmatmul.mubr.bf16.gmra.mxu0 %v3825
      %v4899 = vpop.f32.mrf.mxu0
      %v4900 = vadd.f32 %v3926, %v4899
      %v4901 = vpop.f32.mrf.mxu0
      %v4902 = vpop.f32.mrf.mxu0
      %v4903 = vadd.f32 %v3926, %v4902
      %v4904 = vpop.f32.mrf.mxu0
      %4905 = vmatprep.mubr.bf16.mxu0 0
      %4906 = vmatmul.mubr.bf16.gmra.mxu0 %v3826
      %v4907 = vpop.f32.mrf.mxu0
      %v4908 = vadd.f32 %v3926, %v4907
      %v4909 = vpop.f32.mrf.mxu0
      %v4910 = vpop.f32.mrf.mxu0
      %v4911 = vadd.f32 %v3926, %v4910
      %v4912 = vpop.f32.mrf.mxu0
      %4913 = vmatprep.mubr.bf16.mxu0 0
      %4914 = vmatmul.mubr.bf16.gmra.mxu0 %v3827
      %v4915 = vpop.f32.mrf.mxu0
      %v4916 = vadd.f32 %v3926, %v4915
      %v4917 = vpop.f32.mrf.mxu0
      %v4918 = vpop.f32.mrf.mxu0
      %v4919 = vadd.f32 %v3926, %v4918
      %v4920 = vpop.f32.mrf.mxu0
      %4921 = vmatprep.mubr.bf16.mxu0 0
      %4922 = vmatmul.mubr.bf16.gmra.mxu0 %v3828
      %v4923 = vpop.f32.mrf.mxu0
      %v4924 = vadd.f32 %v3926, %v4923
      %v4925 = vpop.f32.mrf.mxu0
      %v4926 = vpop.f32.mrf.mxu0
      %v4927 = vadd.f32 %v3926, %v4926
      %v4928 = vpop.f32.mrf.mxu0
      %4929 = vmatprep.mubr.bf16.mxu0 0
      %4930 = vmatmul.mubr.bf16.gmra.mxu0 %v3829
      %v4931 = vpop.f32.mrf.mxu0
      %v4932 = vadd.f32 %v3926, %v4931
      %v4933 = vpop.f32.mrf.mxu0
      %v4934 = vpop.f32.mrf.mxu0
      %v4935 = vadd.f32 %v3926, %v4934
      %v4936 = vpop.f32.mrf.mxu0
      %4937 = vmatprep.mubr.bf16.mxu0 0
      %4938 = vmatmul.mubr.bf16.gmra.mxu0 %v3830
      %v4939 = vpop.f32.mrf.mxu0
      %v4940 = vadd.f32 %v3926, %v4939
      %v4941 = vpop.f32.mrf.mxu0
      %v4942 = vpop.f32.mrf.mxu0
      %v4943 = vadd.f32 %v3926, %v4942
      %v4944 = vpop.f32.mrf.mxu0
      %4945 = vmatprep.mubr.bf16.mxu0 0
      %4946 = vmatmul.mubr.bf16.gmra.mxu0 %v3831
      %v4947 = vpop.f32.mrf.mxu0
      %v4948 = vadd.f32 %v3926, %v4947
      %v4949 = vpop.f32.mrf.mxu0
      %v4950 = vpop.f32.mrf.mxu0
      %v4951 = vadd.f32 %v3926, %v4950
      %v4952 = vpop.f32.mrf.mxu0
      %4953 = vmatprep.mubr.bf16.mxu0 0
      %4954 = vmatmul.mubr.bf16.gmra.mxu0 %v3832
      %v4955 = vpop.f32.mrf.mxu0
      %v4956 = vadd.f32 %v3926, %v4955
      %v4957 = vpop.f32.mrf.mxu0
      %v4958 = vpop.f32.mrf.mxu0
      %v4959 = vadd.f32 %v3926, %v4958
      %v4960 = vpop.f32.mrf.mxu0
      %4961 = vdwg.mxu0
      %v4962 = vxor.u32 %v4257, 2147483648
      %v4963 = vxor.u32 %v4259, 2147483648
      %v4964 = vxor.u32 %v4450, 2147483648
      %v4965 = vxor.u32 %v4452, 2147483648
      %v4966 = vxor.u32 %v4643, 2147483648
      %v4967 = vxor.u32 %v4645, 2147483648
      %v4968 = vxor.u32 %v4836, 2147483648
      %v4969 = vxor.u32 %v4261, 2147483648
      %v4970 = vxor.u32 %v4263, 2147483648
      %v4971 = vxor.u32 %v4454, 2147483648
      %v4972 = vxor.u32 %v4456, 2147483648
      %v4973 = vxor.u32 %v4647, 2147483648
      %v4974 = vxor.u32 %v4649, 2147483648
      %v4975 = vxor.u32 %v4839, 2147483648
      %v4976 = vxor.u32 %v4267, 2147483648
      %v4977 = vxor.u32 %v4269, 2147483648
      %v4978 = vxor.u32 %v4460, 2147483648
      %v4979 = vxor.u32 %v4462, 2147483648
      %v4980 = vxor.u32 %v4653, 2147483648
      %v4981 = vxor.u32 %v4655, 2147483648
      %v4982 = vxor.u32 %v4844, 2147483648
      %v4983 = vxor.u32 %v4271, 2147483648
      %v4984 = vxor.u32 %v4273, 2147483648
      %v4985 = vxor.u32 %v4464, 2147483648
      %v4986 = vxor.u32 %v4466, 2147483648
      %v4987 = vxor.u32 %v4657, 2147483648
      %v4988 = vxor.u32 %v4659, 2147483648
      %v4989 = vxor.u32 %v4847, 2147483648
      %v4990 = vxor.u32 %v4277, 2147483648
      %v4991 = vxor.u32 %v4279, 2147483648
      %v4992 = vxor.u32 %v4470, 2147483648
      %v4993 = vxor.u32 %v4472, 2147483648
      %v4994 = vxor.u32 %v4663, 2147483648
      %v4995 = vxor.u32 %v4665, 2147483648
      %v4996 = vxor.u32 %v4852, 2147483648
      %v4997 = vxor.u32 %v4281, 2147483648
      %v4998 = vxor.u32 %v4283, 2147483648
      %v4999 = vxor.u32 %v4474, 2147483648
      %v5000 = vxor.u32 %v4476, 2147483648
      %v5001 = vxor.u32 %v4667, 2147483648
      %v5002 = vxor.u32 %v4669, 2147483648
      %v5003 = vxor.u32 %v4855, 2147483648
      %v5004 = vxor.u32 %v4287, 2147483648
      %v5005 = vxor.u32 %v4289, 2147483648
      %v5006 = vxor.u32 %v4480, 2147483648
      %v5007 = vxor.u32 %v4482, 2147483648
      %v5008 = vxor.u32 %v4673, 2147483648
      %v5009 = vxor.u32 %v4675, 2147483648
      %v5010 = vxor.u32 %v4860, 2147483648
      %v5011 = vxor.u32 %v4291, 2147483648
      %v5012 = vxor.u32 %v4293, 2147483648
      %v5013 = vxor.u32 %v4484, 2147483648
      %v5014 = vxor.u32 %v4486, 2147483648
      %v5015 = vxor.u32 %v4677, 2147483648
      %v5016 = vxor.u32 %v4679, 2147483648
      %v5017 = vxor.u32 %v4863, 2147483648
      %v5018 = vxor.u32 %v4297, 2147483648
      %v5019 = vxor.u32 %v4299, 2147483648
      %v5020 = vxor.u32 %v4490, 2147483648
      %v5021 = vxor.u32 %v4492, 2147483648
      %v5022 = vxor.u32 %v4683, 2147483648
      %v5023 = vxor.u32 %v4685, 2147483648
      %v5024 = vxor.u32 %v4868, 2147483648
      %v5025 = vxor.u32 %v4301, 2147483648
      %v5026 = vxor.u32 %v4303, 2147483648
      %v5027 = vxor.u32 %v4494, 2147483648
      %v5028 = vxor.u32 %v4496, 2147483648
      %v5029 = vxor.u32 %v4687, 2147483648
      %v5030 = vxor.u32 %v4689, 2147483648
      %v5031 = vxor.u32 %v4871, 2147483648
      %v5032 = vxor.u32 %v4307, 2147483648
      %v5033 = vxor.u32 %v4309, 2147483648
      %v5034 = vxor.u32 %v4500, 2147483648
      %v5035 = vxor.u32 %v4502, 2147483648
      %v5036 = vxor.u32 %v4693, 2147483648
      %v5037 = vxor.u32 %v4695, 2147483648
      %v5038 = vxor.u32 %v4876, 2147483648
      %v5039 = vxor.u32 %v4311, 2147483648
      %v5040 = vxor.u32 %v4313, 2147483648
      %v5041 = vxor.u32 %v4504, 2147483648
      %v5042 = vxor.u32 %v4506, 2147483648
      %v5043 = vxor.u32 %v4697, 2147483648
      %v5044 = vxor.u32 %v4699, 2147483648
      %v5045 = vxor.u32 %v4879, 2147483648
      %v5046 = vxor.u32 %v4317, 2147483648
      %v5047 = vxor.u32 %v4319, 2147483648
      %v5048 = vxor.u32 %v4510, 2147483648
      %v5049 = vxor.u32 %v4512, 2147483648
      %v5050 = vxor.u32 %v4703, 2147483648
      %v5051 = vxor.u32 %v4705, 2147483648
      %v5052 = vxor.u32 %v4884, 2147483648
      %v5053 = vxor.u32 %v4321, 2147483648
      %v5054 = vxor.u32 %v4323, 2147483648
      %v5055 = vxor.u32 %v4514, 2147483648
      %v5056 = vxor.u32 %v4516, 2147483648
      %v5057 = vxor.u32 %v4707, 2147483648
      %v5058 = vxor.u32 %v4709, 2147483648
      %v5059 = vxor.u32 %v4887, 2147483648
      %v5060 = vxor.u32 %v4327, 2147483648
      %v5061 = vxor.u32 %v4329, 2147483648
      %v5062 = vxor.u32 %v4520, 2147483648
      %v5063 = vxor.u32 %v4522, 2147483648
      %v5064 = vxor.u32 %v4713, 2147483648
      %v5065 = vxor.u32 %v4715, 2147483648
      %v5066 = vxor.u32 %v4892, 2147483648
      %v5067 = vxor.u32 %v4331, 2147483648
      %v5068 = vxor.u32 %v4333, 2147483648
      %v5069 = vxor.u32 %v4524, 2147483648
      %v5070 = vxor.u32 %v4526, 2147483648
      %v5071 = vxor.u32 %v4717, 2147483648
      %v5072 = vxor.u32 %v4719, 2147483648
      %v5073 = vxor.u32 %v4895, 2147483648
      %v5074 = vxor.u32 %v4337, 2147483648
      %v5075 = vxor.u32 %v4339, 2147483648
      %v5076 = vxor.u32 %v4530, 2147483648
      %v5077 = vxor.u32 %v4532, 2147483648
      %v5078 = vxor.u32 %v4723, 2147483648
      %v5079 = vxor.u32 %v4725, 2147483648
      %v5080 = vxor.u32 %v4900, 2147483648
      %v5081 = vxor.u32 %v4341, 2147483648
      %v5082 = vxor.u32 %v4343, 2147483648
      %v5083 = vxor.u32 %v4534, 2147483648
      %v5084 = vxor.u32 %v4536, 2147483648
      %v5085 = vxor.u32 %v4727, 2147483648
      %v5086 = vxor.u32 %v4729, 2147483648
      %v5087 = vxor.u32 %v4903, 2147483648
      %v5088 = vxor.u32 %v4347, 2147483648
      %v5089 = vxor.u32 %v4349, 2147483648
      %v5090 = vxor.u32 %v4540, 2147483648
      %v5091 = vxor.u32 %v4542, 2147483648
      %v5092 = vxor.u32 %v4733, 2147483648
      %v5093 = vxor.u32 %v4735, 2147483648
      %v5094 = vxor.u32 %v4908, 2147483648
      %v5095 = vxor.u32 %v4351, 2147483648
      %v5096 = vxor.u32 %v4353, 2147483648
      %v5097 = vxor.u32 %v4544, 2147483648
      %v5098 = vxor.u32 %v4546, 2147483648
      %v5099 = vxor.u32 %v4737, 2147483648
      %v5100 = vxor.u32 %v4739, 2147483648
      %v5101 = vxor.u32 %v4911, 2147483648
      %v5102 = vxor.u32 %v4357, 2147483648
      %v5103 = vxor.u32 %v4359, 2147483648
      %v5104 = vxor.u32 %v4550, 2147483648
      %v5105 = vxor.u32 %v4552, 2147483648
      %v5106 = vxor.u32 %v4743, 2147483648
      %v5107 = vxor.u32 %v4745, 2147483648
      %v5108 = vxor.u32 %v4916, 2147483648
      %v5109 = vxor.u32 %v4361, 2147483648
      %v5110 = vxor.u32 %v4363, 2147483648
      %v5111 = vxor.u32 %v4554, 2147483648
      %v5112 = vxor.u32 %v4556, 2147483648
      %v5113 = vxor.u32 %v4747, 2147483648
      %v5114 = vxor.u32 %v4749, 2147483648
      %v5115 = vxor.u32 %v4919, 2147483648
      %v5116 = vxor.u32 %v4367, 2147483648
      %v5117 = vxor.u32 %v4369, 2147483648
      %v5118 = vxor.u32 %v4560, 2147483648
      %v5119 = vxor.u32 %v4562, 2147483648
      %v5120 = vxor.u32 %v4753, 2147483648
      %v5121 = vxor.u32 %v4755, 2147483648
      %v5122 = vxor.u32 %v4924, 2147483648
      %v5123 = vxor.u32 %v4371, 2147483648
      %v5124 = vxor.u32 %v4373, 2147483648
      %v5125 = vxor.u32 %v4564, 2147483648
      %v5126 = vxor.u32 %v4566, 2147483648
      %v5127 = vxor.u32 %v4757, 2147483648
      %v5128 = vxor.u32 %v4759, 2147483648
      %v5129 = vxor.u32 %v4927, 2147483648
      %v5130 = vxor.u32 %v4377, 2147483648
      %v5131 = vxor.u32 %v4379, 2147483648
      %v5132 = vxor.u32 %v4570, 2147483648
      %v5133 = vxor.u32 %v4572, 2147483648
      %v5134 = vxor.u32 %v4763, 2147483648
      %v5135 = vxor.u32 %v4765, 2147483648
      %v5136 = vxor.u32 %v4932, 2147483648
      %v5137 = vxor.u32 %v4381, 2147483648
      %v5138 = vxor.u32 %v4383, 2147483648
      %v5139 = vxor.u32 %v4574, 2147483648
      %v5140 = vxor.u32 %v4576, 2147483648
      %v5141 = vxor.u32 %v4767, 2147483648
      %v5142 = vxor.u32 %v4769, 2147483648
      %v5143 = vxor.u32 %v4935, 2147483648
      %v5144 = vxor.u32 %v4387, 2147483648
      %v5145 = vxor.u32 %v4389, 2147483648
      %v5146 = vxor.u32 %v4580, 2147483648
      %v5147 = vxor.u32 %v4582, 2147483648
      %v5148 = vxor.u32 %v4773, 2147483648
      %v5149 = vxor.u32 %v4775, 2147483648
      %v5150 = vxor.u32 %v4940, 2147483648
      %v5151 = vxor.u32 %v4391, 2147483648
      %v5152 = vxor.u32 %v4393, 2147483648
      %v5153 = vxor.u32 %v4584, 2147483648
      %v5154 = vxor.u32 %v4586, 2147483648
      %v5155 = vxor.u32 %v4777, 2147483648
      %v5156 = vxor.u32 %v4779, 2147483648
      %v5157 = vxor.u32 %v4943, 2147483648
      %v5158 = vxor.u32 %v4397, 2147483648
      %v5159 = vxor.u32 %v4399, 2147483648
      %v5160 = vxor.u32 %v4590, 2147483648
      %v5161 = vxor.u32 %v4592, 2147483648
      %v5162 = vxor.u32 %v4783, 2147483648
      %v5163 = vxor.u32 %v4785, 2147483648
      %v5164 = vxor.u32 %v4948, 2147483648
      %v5165 = vxor.u32 %v4401, 2147483648
      %v5166 = vxor.u32 %v4403, 2147483648
      %v5167 = vxor.u32 %v4594, 2147483648
      %v5168 = vxor.u32 %v4596, 2147483648
      %v5169 = vxor.u32 %v4787, 2147483648
      %v5170 = vxor.u32 %v4789, 2147483648
      %v5171 = vxor.u32 %v4951, 2147483648
      %v5172 = vxor.u32 %v4407, 2147483648
      %v5173 = vxor.u32 %v4409, 2147483648
      %v5174 = vxor.u32 %v4600, 2147483648
      %v5175 = vxor.u32 %v4602, 2147483648
      %v5176 = vxor.u32 %v4793, 2147483648
      %v5177 = vxor.u32 %v4795, 2147483648
      %v5178 = vxor.u32 %v4956, 2147483648
      %v5179 = vxor.u32 %v4411, 2147483648
      %v5180 = vxor.u32 %v4413, 2147483648
      %v5181 = vxor.u32 %v4604, 2147483648
      %v5182 = vxor.u32 %v4606, 2147483648
      %v5183 = vxor.u32 %v4797, 2147483648
      %v5184 = vxor.u32 %v4799, 2147483648
      %v5185 = vxor.u32 %v4959, 2147483648
      %v5186 = vmul.f32 %v4962, 1.442695
      %v5187 = vpow.pop %v5186
      %v5188 = vmul.f32 %v4963, 1.442695
      %v5189 = vpow.pop %v5188
      %v5190 = vmul.f32 %v4964, 1.442695
      %v5191 = vpow.pop %v5190
      %v5192 = vmul.f32 %v4965, 1.442695
      %v5193 = vpow.pop %v5192
      %v5194 = vmul.f32 %v4966, 1.442695
      %v5195 = vpow.pop %v5194
      %v5196 = vmul.f32 %v4967, 1.442695
      %v5197 = vpow.pop %v5196
      %v5198 = vmul.f32 %v4968, 1.442695
      %v5199 = vpow.pop %v5198
      %v5200 = vmul.f32 %v4969, 1.442695
      %v5201 = vpow.pop %v5200
      %v5202 = vmul.f32 %v4970, 1.442695
      %v5203 = vpow.pop %v5202
      %v5204 = vmul.f32 %v4971, 1.442695
      %v5205 = vpow.pop %v5204
      %v5206 = vmul.f32 %v4972, 1.442695
      %v5207 = vpow.pop %v5206
      %v5208 = vmul.f32 %v4973, 1.442695
      %v5209 = vpow.pop %v5208
      %v5210 = vmul.f32 %v4974, 1.442695
      %v5211 = vpow.pop %v5210
      %v5212 = vmul.f32 %v4975, 1.442695
      %v5213 = vpow.pop %v5212
      %v5214 = vmul.f32 %v4976, 1.442695
      %v5215 = vpow.pop %v5214
      %v5216 = vmul.f32 %v4977, 1.442695
      %v5217 = vpow.pop %v5216
      %v5218 = vmul.f32 %v4978, 1.442695
      %v5219 = vpow.pop %v5218
      %v5220 = vmul.f32 %v4979, 1.442695
      %v5221 = vpow.pop %v5220
      %v5222 = vmul.f32 %v4980, 1.442695
      %v5223 = vpow.pop %v5222
      %v5224 = vmul.f32 %v4981, 1.442695
      %v5225 = vpow.pop %v5224
      %v5226 = vmul.f32 %v4982, 1.442695
      %v5227 = vpow.pop %v5226
      %v5228 = vmul.f32 %v4983, 1.442695
      %v5229 = vpow.pop %v5228
      %v5230 = vmul.f32 %v4984, 1.442695
      %v5231 = vpow.pop %v5230
      %v5232 = vmul.f32 %v4985, 1.442695
      %v5233 = vpow.pop %v5232
      %v5234 = vmul.f32 %v4986, 1.442695
      %v5235 = vpow.pop %v5234
      %v5236 = vmul.f32 %v4987, 1.442695
      %v5237 = vpow.pop %v5236
      %v5238 = vmul.f32 %v4988, 1.442695
      %v5239 = vpow.pop %v5238
      %v5240 = vmul.f32 %v4989, 1.442695
      %v5241 = vpow.pop %v5240
      %v5242 = vmul.f32 %v4990, 1.442695
      %v5243 = vpow.pop %v5242
      %v5244 = vmul.f32 %v4991, 1.442695
      %v5245 = vpow.pop %v5244
      %v5246 = vmul.f32 %v4992, 1.442695
      %v5247 = vpow.pop %v5246
      %v5248 = vmul.f32 %v4993, 1.442695
      %v5249 = vpow.pop %v5248
      %v5250 = vmul.f32 %v4994, 1.442695
      %v5251 = vpow.pop %v5250
      %v5252 = vmul.f32 %v4995, 1.442695
      %v5253 = vpow.pop %v5252
      %v5254 = vmul.f32 %v4996, 1.442695
      %v5255 = vpow.pop %v5254
      %v5256 = vmul.f32 %v4997, 1.442695
      %v5257 = vpow.pop %v5256
      %v5258 = vmul.f32 %v4998, 1.442695
      %v5259 = vpow.pop %v5258
      %v5260 = vmul.f32 %v4999, 1.442695
      %v5261 = vpow.pop %v5260
      %v5262 = vmul.f32 %v5000, 1.442695
      %v5263 = vpow.pop %v5262
      %v5264 = vmul.f32 %v5001, 1.442695
      %v5265 = vpow.pop %v5264
      %v5266 = vmul.f32 %v5002, 1.442695
      %v5267 = vpow.pop %v5266
      %v5268 = vmul.f32 %v5003, 1.442695
      %v5269 = vpow.pop %v5268
      %v5270 = vmul.f32 %v5004, 1.442695
      %v5271 = vpow.pop %v5270
      %v5272 = vmul.f32 %v5005, 1.442695
      %v5273 = vpow.pop %v5272
      %v5274 = vmul.f32 %v5006, 1.442695
      %v5275 = vpow.pop %v5274
      %v5276 = vmul.f32 %v5007, 1.442695
      %v5277 = vpow.pop %v5276
      %v5278 = vmul.f32 %v5008, 1.442695
      %v5279 = vpow.pop %v5278
      %v5280 = vmul.f32 %v5009, 1.442695
      %v5281 = vpow.pop %v5280
      %v5282 = vmul.f32 %v5010, 1.442695
      %v5283 = vpow.pop %v5282
      %v5284 = vmul.f32 %v5011, 1.442695
      %v5285 = vpow.pop %v5284
      %v5286 = vmul.f32 %v5012, 1.442695
      %v5287 = vpow.pop %v5286
      %v5288 = vmul.f32 %v5013, 1.442695
      %v5289 = vpow.pop %v5288
      %v5290 = vmul.f32 %v5014, 1.442695
      %v5291 = vpow.pop %v5290
      %v5292 = vmul.f32 %v5015, 1.442695
      %v5293 = vpow.pop %v5292
      %v5294 = vmul.f32 %v5016, 1.442695
      %v5295 = vpow.pop %v5294
      %v5296 = vmul.f32 %v5017, 1.442695
      %v5297 = vpow.pop %v5296
      %v5298 = vmul.f32 %v5018, 1.442695
      %v5299 = vpow.pop %v5298
      %v5300 = vmul.f32 %v5019, 1.442695
      %v5301 = vpow.pop %v5300
      %v5302 = vmul.f32 %v5020, 1.442695
      %v5303 = vpow.pop %v5302
      %v5304 = vmul.f32 %v5021, 1.442695
      %v5305 = vpow.pop %v5304
      %v5306 = vmul.f32 %v5022, 1.442695
      %v5307 = vpow.pop %v5306
      %v5308 = vmul.f32 %v5023, 1.442695
      %v5309 = vpow.pop %v5308
      %v5310 = vmul.f32 %v5024, 1.442695
      %v5311 = vpow.pop %v5310
      %v5312 = vmul.f32 %v5025, 1.442695
      %v5313 = vpow.pop %v5312
      %v5314 = vmul.f32 %v5026, 1.442695
      %v5315 = vpow.pop %v5314
      %v5316 = vmul.f32 %v5027, 1.442695
      %v5317 = vpow.pop %v5316
      %v5318 = vmul.f32 %v5028, 1.442695
      %v5319 = vpow.pop %v5318
      %v5320 = vmul.f32 %v5029, 1.442695
      %v5321 = vpow.pop %v5320
      %v5322 = vmul.f32 %v5030, 1.442695
      %v5323 = vpow.pop %v5322
      %v5324 = vmul.f32 %v5031, 1.442695
      %v5325 = vpow.pop %v5324
      %v5326 = vmul.f32 %v5032, 1.442695
      %v5327 = vpow.pop %v5326
      %v5328 = vmul.f32 %v5033, 1.442695
      %v5329 = vpow.pop %v5328
      %v5330 = vmul.f32 %v5034, 1.442695
      %v5331 = vpow.pop %v5330
      %v5332 = vmul.f32 %v5035, 1.442695
      %v5333 = vpow.pop %v5332
      %v5334 = vmul.f32 %v5036, 1.442695
      %v5335 = vpow.pop %v5334
      %v5336 = vmul.f32 %v5037, 1.442695
      %v5337 = vpow.pop %v5336
      %v5338 = vmul.f32 %v5038, 1.442695
      %v5339 = vpow.pop %v5338
      %v5340 = vmul.f32 %v5039, 1.442695
      %v5341 = vpow.pop %v5340
      %v5342 = vmul.f32 %v5040, 1.442695
      %v5343 = vpow.pop %v5342
      %v5344 = vmul.f32 %v5041, 1.442695
      %v5345 = vpow.pop %v5344
      %v5346 = vmul.f32 %v5042, 1.442695
      %v5347 = vpow.pop %v5346
      %v5348 = vmul.f32 %v5043, 1.442695
      %v5349 = vpow.pop %v5348
      %v5350 = vmul.f32 %v5044, 1.442695
      %v5351 = vpow.pop %v5350
      %v5352 = vmul.f32 %v5045, 1.442695
      %v5353 = vpow.pop %v5352
      %v5354 = vmul.f32 %v5046, 1.442695
      %v5355 = vpow.pop %v5354
      %v5356 = vmul.f32 %v5047, 1.442695
      %v5357 = vpow.pop %v5356
      %v5358 = vmul.f32 %v5048, 1.442695
      %v5359 = vpow.pop %v5358
      %v5360 = vmul.f32 %v5049, 1.442695
      %v5361 = vpow.pop %v5360
      %v5362 = vmul.f32 %v5050, 1.442695
      %v5363 = vpow.pop %v5362
      %v5364 = vmul.f32 %v5051, 1.442695
      %v5365 = vpow.pop %v5364
      %v5366 = vmul.f32 %v5052, 1.442695
      %v5367 = vpow.pop %v5366
      %v5368 = vmul.f32 %v5053, 1.442695
      %v5369 = vpow.pop %v5368
      %v5370 = vmul.f32 %v5054, 1.442695
      %v5371 = vpow.pop %v5370
      %v5372 = vmul.f32 %v5055, 1.442695
      %v5373 = vpow.pop %v5372
      %v5374 = vmul.f32 %v5056, 1.442695
      %v5375 = vpow.pop %v5374
      %v5376 = vmul.f32 %v5057, 1.442695
      %v5377 = vpow.pop %v5376
      %v5378 = vmul.f32 %v5058, 1.442695
      %v5379 = vpow.pop %v5378
      %v5380 = vmul.f32 %v5059, 1.442695
      %v5381 = vpow.pop %v5380
      %v5382 = vmul.f32 %v5060, 1.442695
      %v5383 = vpow.pop %v5382
      %v5384 = vmul.f32 %v5061, 1.442695
      %v5385 = vpow.pop %v5384
      %v5386 = vmul.f32 %v5062, 1.442695
      %v5387 = vpow.pop %v5386
      %v5388 = vmul.f32 %v5063, 1.442695
      %v5389 = vpow.pop %v5388
      %v5390 = vmul.f32 %v5064, 1.442695
      %v5391 = vpow.pop %v5390
      %v5392 = vmul.f32 %v5065, 1.442695
      %v5393 = vpow.pop %v5392
      %v5394 = vmul.f32 %v5066, 1.442695
      %v5395 = vpow.pop %v5394
      %v5396 = vmul.f32 %v5067, 1.442695
      %v5397 = vpow.pop %v5396
      %v5398 = vmul.f32 %v5068, 1.442695
      %v5399 = vpow.pop %v5398
      %v5400 = vmul.f32 %v5069, 1.442695
      %v5401 = vpow.pop %v5400
      %v5402 = vmul.f32 %v5070, 1.442695
      %v5403 = vpow.pop %v5402
      %v5404 = vmul.f32 %v5071, 1.442695
      %v5405 = vpow.pop %v5404
      %v5406 = vmul.f32 %v5072, 1.442695
      %v5407 = vpow.pop %v5406
      %v5408 = vmul.f32 %v5073, 1.442695
      %v5409 = vpow.pop %v5408
      %v5410 = vmul.f32 %v5074, 1.442695
      %v5411 = vpow.pop %v5410
      %v5412 = vmul.f32 %v5075, 1.442695
      %v5413 = vpow.pop %v5412
      %v5414 = vmul.f32 %v5076, 1.442695
      %v5415 = vpow.pop %v5414
      %v5416 = vmul.f32 %v5077, 1.442695
      %v5417 = vpow.pop %v5416
      %v5418 = vmul.f32 %v5078, 1.442695
      %v5419 = vpow.pop %v5418
      %v5420 = vmul.f32 %v5079, 1.442695
      %v5421 = vpow.pop %v5420
      %v5422 = vmul.f32 %v5080, 1.442695
      %v5423 = vpow.pop %v5422
      %v5424 = vmul.f32 %v5081, 1.442695
      %v5425 = vpow.pop %v5424
      %v5426 = vmul.f32 %v5082, 1.442695
      %v5427 = vpow.pop %v5426
      %v5428 = vmul.f32 %v5083, 1.442695
      %v5429 = vpow.pop %v5428
      %v5430 = vmul.f32 %v5084, 1.442695
      %v5431 = vpow.pop %v5430
      %v5432 = vmul.f32 %v5085, 1.442695
      %v5433 = vpow.pop %v5432
      %v5434 = vmul.f32 %v5086, 1.442695
      %v5435 = vpow.pop %v5434
      %v5436 = vmul.f32 %v5087, 1.442695
      %v5437 = vpow.pop %v5436
      %v5438 = vmul.f32 %v5088, 1.442695
      %v5439 = vpow.pop %v5438
      %v5440 = vmul.f32 %v5089, 1.442695
      %v5441 = vpow.pop %v5440
      %v5442 = vmul.f32 %v5090, 1.442695
      %v5443 = vpow.pop %v5442
      %v5444 = vmul.f32 %v5091, 1.442695
      %v5445 = vpow.pop %v5444
      %v5446 = vmul.f32 %v5092, 1.442695
      %v5447 = vpow.pop %v5446
      %v5448 = vmul.f32 %v5093, 1.442695
      %v5449 = vpow.pop %v5448
      %v5450 = vmul.f32 %v5094, 1.442695
      %v5451 = vpow.pop %v5450
      %v5452 = vmul.f32 %v5095, 1.442695
      %v5453 = vpow.pop %v5452
      %v5454 = vmul.f32 %v5096, 1.442695
      %v5455 = vpow.pop %v5454
      %v5456 = vmul.f32 %v5097, 1.442695
      %v5457 = vpow.pop %v5456
      %v5458 = vmul.f32 %v5098, 1.442695
      %v5459 = vpow.pop %v5458
      %v5460 = vmul.f32 %v5099, 1.442695
      %v5461 = vpow.pop %v5460
      %v5462 = vmul.f32 %v5100, 1.442695
      %v5463 = vpow.pop %v5462
      %v5464 = vmul.f32 %v5101, 1.442695
      %v5465 = vpow.pop %v5464
      %v5466 = vmul.f32 %v5102, 1.442695
      %v5467 = vpow.pop %v5466
      %v5468 = vmul.f32 %v5103, 1.442695
      %v5469 = vpow.pop %v5468
      %v5470 = vmul.f32 %v5104, 1.442695
      %v5471 = vpow.pop %v5470
      %v5472 = vmul.f32 %v5105, 1.442695
      %v5473 = vpow.pop %v5472
      %v5474 = vmul.f32 %v5106, 1.442695
      %v5475 = vpow.pop %v5474
      %v5476 = vmul.f32 %v5107, 1.442695
      %v5477 = vpow.pop %v5476
      %v5478 = vmul.f32 %v5108, 1.442695
      %v5479 = vpow.pop %v5478
      %v5480 = vmul.f32 %v5109, 1.442695
      %v5481 = vpow.pop %v5480
      %v5482 = vmul.f32 %v5110, 1.442695
      %v5483 = vpow.pop %v5482
      %v5484 = vmul.f32 %v5111, 1.442695
      %v5485 = vpow.pop %v5484
      %v5486 = vmul.f32 %v5112, 1.442695
      %v5487 = vpow.pop %v5486
      %v5488 = vmul.f32 %v5113, 1.442695
      %v5489 = vpow.pop %v5488
      %v5490 = vmul.f32 %v5114, 1.442695
      %v5491 = vpow.pop %v5490
      %v5492 = vmul.f32 %v5115, 1.442695
      %v5493 = vpow.pop %v5492
      %v5494 = vmul.f32 %v5116, 1.442695
      %v5495 = vpow.pop %v5494
      %v5496 = vmul.f32 %v5117, 1.442695
      %v5497 = vpow.pop %v5496
      %v5498 = vmul.f32 %v5118, 1.442695
      %v5499 = vpow.pop %v5498
      %v5500 = vmul.f32 %v5119, 1.442695
      %v5501 = vpow.pop %v5500
      %v5502 = vmul.f32 %v5120, 1.442695
      %v5503 = vpow.pop %v5502
      %v5504 = vmul.f32 %v5121, 1.442695
      %v5505 = vpow.pop %v5504
      %v5506 = vmul.f32 %v5122, 1.442695
      %v5507 = vpow.pop %v5506
      %v5508 = vmul.f32 %v5123, 1.442695
      %v5509 = vpow.pop %v5508
      %v5510 = vmul.f32 %v5124, 1.442695
      %v5511 = vpow.pop %v5510
      %v5512 = vmul.f32 %v5125, 1.442695
      %v5513 = vpow.pop %v5512
      %v5514 = vmul.f32 %v5126, 1.442695
      %v5515 = vpow.pop %v5514
      %v5516 = vmul.f32 %v5127, 1.442695
      %v5517 = vpow.pop %v5516
      %v5518 = vmul.f32 %v5128, 1.442695
      %v5519 = vpow.pop %v5518
      %v5520 = vmul.f32 %v5129, 1.442695
      %v5521 = vpow.pop %v5520
      %v5522 = vmul.f32 %v5130, 1.442695
      %v5523 = vpow.pop %v5522
      %v5524 = vmul.f32 %v5131, 1.442695
      %v5525 = vpow.pop %v5524
      %v5526 = vmul.f32 %v5132, 1.442695
      %v5527 = vpow.pop %v5526
      %v5528 = vmul.f32 %v5133, 1.442695
      %v5529 = vpow.pop %v5528
      %v5530 = vmul.f32 %v5134, 1.442695
      %v5531 = vpow.pop %v5530
      %v5532 = vmul.f32 %v5135, 1.442695
      %v5533 = vpow.pop %v5532
      %v5534 = vmul.f32 %v5136, 1.442695
      %v5535 = vpow.pop %v5534
      %v5536 = vmul.f32 %v5137, 1.442695
      %v5537 = vpow.pop %v5536
      %v5538 = vmul.f32 %v5138, 1.442695
      %v5539 = vpow.pop %v5538
      %v5540 = vmul.f32 %v5139, 1.442695
      %v5541 = vpow.pop %v5540
      %v5542 = vmul.f32 %v5140, 1.442695
      %v5543 = vpow.pop %v5542
      %v5544 = vmul.f32 %v5141, 1.442695
      %v5545 = vpow.pop %v5544
      %v5546 = vmul.f32 %v5142, 1.442695
      %v5547 = vpow.pop %v5546
      %v5548 = vmul.f32 %v5143, 1.442695
      %v5549 = vpow.pop %v5548
      %v5550 = vmul.f32 %v5144, 1.442695
      %v5551 = vpow.pop %v5550
      %v5552 = vmul.f32 %v5145, 1.442695
      %v5553 = vpow.pop %v5552
      %v5554 = vmul.f32 %v5146, 1.442695
      %v5555 = vpow.pop %v5554
      %v5556 = vmul.f32 %v5147, 1.442695
      %v5557 = vpow.pop %v5556
      %v5558 = vmul.f32 %v5148, 1.442695
      %v5559 = vpow.pop %v5558
      %v5560 = vmul.f32 %v5149, 1.442695
      %v5561 = vpow.pop %v5560
      %v5562 = vmul.f32 %v5150, 1.442695
      %v5563 = vpow.pop %v5562
      %v5564 = vmul.f32 %v5151, 1.442695
      %v5565 = vpow.pop %v5564
      %v5566 = vmul.f32 %v5152, 1.442695
      %v5567 = vpow.pop %v5566
      %v5568 = vmul.f32 %v5153, 1.442695
      %v5569 = vpow.pop %v5568
      %v5570 = vmul.f32 %v5154, 1.442695
      %v5571 = vpow.pop %v5570
      %v5572 = vmul.f32 %v5155, 1.442695
      %v5573 = vpow.pop %v5572
      %v5574 = vmul.f32 %v5156, 1.442695
      %v5575 = vpow.pop %v5574
      %v5576 = vmul.f32 %v5157, 1.442695
      %v5577 = vpow.pop %v5576
      %v5578 = vmul.f32 %v5158, 1.442695
      %v5579 = vpow.pop %v5578
      %v5580 = vmul.f32 %v5159, 1.442695
      %v5581 = vpow.pop %v5580
      %v5582 = vmul.f32 %v5160, 1.442695
      %v5583 = vpow.pop %v5582
      %v5584 = vmul.f32 %v5161, 1.442695
      %v5585 = vpow.pop %v5584
      %v5586 = vmul.f32 %v5162, 1.442695
      %v5587 = vpow.pop %v5586
      %v5588 = vmul.f32 %v5163, 1.442695
      %v5589 = vpow.pop %v5588
      %v5590 = vmul.f32 %v5164, 1.442695
      %v5591 = vpow.pop %v5590
      %v5592 = vmul.f32 %v5165, 1.442695
      %v5593 = vpow.pop %v5592
      %v5594 = vmul.f32 %v5166, 1.442695
      %v5595 = vpow.pop %v5594
      %v5596 = vmul.f32 %v5167, 1.442695
      %v5597 = vpow.pop %v5596
      %v5598 = vmul.f32 %v5168, 1.442695
      %v5599 = vpow.pop %v5598
      %v5600 = vmul.f32 %v5169, 1.442695
      %v5601 = vpow.pop %v5600
      %v5602 = vmul.f32 %v5170, 1.442695
      %v5603 = vpow.pop %v5602
      %v5604 = vmul.f32 %v5171, 1.442695
      %v5605 = vpow.pop %v5604
      %v5606 = vmul.f32 %v5172, 1.442695
      %v5607 = vpow.pop %v5606
      %v5608 = vmul.f32 %v5173, 1.442695
      %v5609 = vpow.pop %v5608
      %v5610 = vmul.f32 %v5174, 1.442695
      %v5611 = vpow.pop %v5610
      %v5612 = vmul.f32 %v5175, 1.442695
      %v5613 = vpow.pop %v5612
      %v5614 = vmul.f32 %v5176, 1.442695
      %v5615 = vpow.pop %v5614
      %v5616 = vmul.f32 %v5177, 1.442695
      %v5617 = vpow.pop %v5616
      %v5618 = vmul.f32 %v5178, 1.442695
      %v5619 = vpow.pop %v5618
      %v5620 = vmul.f32 %v5179, 1.442695
      %v5621 = vpow.pop %v5620
      %v5622 = vmul.f32 %v5180, 1.442695
      %v5623 = vpow.pop %v5622
      %v5624 = vmul.f32 %v5181, 1.442695
      %v5625 = vpow.pop %v5624
      %v5626 = vmul.f32 %v5182, 1.442695
      %v5627 = vpow.pop %v5626
      %v5628 = vmul.f32 %v5183, 1.442695
      %v5629 = vpow.pop %v5628
      %v5630 = vmul.f32 %v5184, 1.442695
      %v5631 = vpow.pop %v5630
      %v5632 = vmul.f32 %v5185, 1.442695
      %v5633 = vpow.pop %v5632
      %v5634 = vadd.f32 %v5187, 1.0
      %v5635 = vadd.f32 %v5189, 1.0
      %v5636 = vadd.f32 %v5191, 1.0
      %v5637 = vadd.f32 %v5193, 1.0
      %v5638 = vadd.f32 %v5195, 1.0
      %v5639 = vadd.f32 %v5197, 1.0
      %v5640 = vadd.f32 %v5199, 1.0
      %v5641 = vadd.f32 %v5201, 1.0
      %v5642 = vadd.f32 %v5203, 1.0
      %v5643 = vadd.f32 %v5205, 1.0
      %v5644 = vadd.f32 %v5207, 1.0
      %v5645 = vadd.f32 %v5209, 1.0
      %v5646 = vadd.f32 %v5211, 1.0
      %v5647 = vadd.f32 %v5213, 1.0
      %v5648 = vadd.f32 %v5215, 1.0
      %v5649 = vadd.f32 %v5217, 1.0
      %v5650 = vadd.f32 %v5219, 1.0
      %v5651 = vadd.f32 %v5221, 1.0
      %v5652 = vadd.f32 %v5223, 1.0
      %v5653 = vadd.f32 %v5225, 1.0
      %v5654 = vadd.f32 %v5227, 1.0
      %v5655 = vadd.f32 %v5229, 1.0
      %v5656 = vadd.f32 %v5231, 1.0
      %v5657 = vadd.f32 %v5233, 1.0
      %v5658 = vadd.f32 %v5235, 1.0
      %v5659 = vadd.f32 %v5237, 1.0
      %v5660 = vadd.f32 %v5239, 1.0
      %v5661 = vadd.f32 %v5241, 1.0
      %v5662 = vadd.f32 %v5243, 1.0
      %v5663 = vadd.f32 %v5245, 1.0
      %v5664 = vadd.f32 %v5247, 1.0
      %v5665 = vadd.f32 %v5249, 1.0
      %v5666 = vadd.f32 %v5251, 1.0
      %v5667 = vadd.f32 %v5253, 1.0
      %v5668 = vadd.f32 %v5255, 1.0
      %v5669 = vadd.f32 %v5257, 1.0
      %v5670 = vadd.f32 %v5259, 1.0
      %v5671 = vadd.f32 %v5261, 1.0
      %v5672 = vadd.f32 %v5263, 1.0
      %v5673 = vadd.f32 %v5265, 1.0
      %v5674 = vadd.f32 %v5267, 1.0
      %v5675 = vadd.f32 %v5269, 1.0
      %v5676 = vadd.f32 %v5271, 1.0
      %v5677 = vadd.f32 %v5273, 1.0
      %v5678 = vadd.f32 %v5275, 1.0
      %v5679 = vadd.f32 %v5277, 1.0
      %v5680 = vadd.f32 %v5279, 1.0
      %v5681 = vadd.f32 %v5281, 1.0
      %v5682 = vadd.f32 %v5283, 1.0
      %v5683 = vadd.f32 %v5285, 1.0
      %v5684 = vadd.f32 %v5287, 1.0
      %v5685 = vadd.f32 %v5289, 1.0
      %v5686 = vadd.f32 %v5291, 1.0
      %v5687 = vadd.f32 %v5293, 1.0
      %v5688 = vadd.f32 %v5295, 1.0
      %v5689 = vadd.f32 %v5297, 1.0
      %v5690 = vadd.f32 %v5299, 1.0
      %v5691 = vadd.f32 %v5301, 1.0
      %v5692 = vadd.f32 %v5303, 1.0
      %v5693 = vadd.f32 %v5305, 1.0
      %v5694 = vadd.f32 %v5307, 1.0
      %v5695 = vadd.f32 %v5309, 1.0
      %v5696 = vadd.f32 %v5311, 1.0
      %v5697 = vadd.f32 %v5313, 1.0
      %v5698 = vadd.f32 %v5315, 1.0
      %v5699 = vadd.f32 %v5317, 1.0
      %v5700 = vadd.f32 %v5319, 1.0
      %v5701 = vadd.f32 %v5321, 1.0
      %v5702 = vadd.f32 %v5323, 1.0
      %v5703 = vadd.f32 %v5325, 1.0
      %v5704 = vadd.f32 %v5327, 1.0
      %v5705 = vadd.f32 %v5329, 1.0
      %v5706 = vadd.f32 %v5331, 1.0
      %v5707 = vadd.f32 %v5333, 1.0
      %v5708 = vadd.f32 %v5335, 1.0
      %v5709 = vadd.f32 %v5337, 1.0
      %v5710 = vadd.f32 %v5339, 1.0
      %v5711 = vadd.f32 %v5341, 1.0
      %v5712 = vadd.f32 %v5343, 1.0
      %v5713 = vadd.f32 %v5345, 1.0
      %v5714 = vadd.f32 %v5347, 1.0
      %v5715 = vadd.f32 %v5349, 1.0
      %v5716 = vadd.f32 %v5351, 1.0
      %v5717 = vadd.f32 %v5353, 1.0
      %v5718 = vadd.f32 %v5355, 1.0
      %v5719 = vadd.f32 %v5357, 1.0
      %v5720 = vadd.f32 %v5359, 1.0
      %v5721 = vadd.f32 %v5361, 1.0
      %v5722 = vadd.f32 %v5363, 1.0
      %v5723 = vadd.f32 %v5365, 1.0
      %v5724 = vadd.f32 %v5367, 1.0
      %v5725 = vadd.f32 %v5369, 1.0
      %v5726 = vadd.f32 %v5371, 1.0
      %v5727 = vadd.f32 %v5373, 1.0
      %v5728 = vadd.f32 %v5375, 1.0
      %v5729 = vadd.f32 %v5377, 1.0
      %v5730 = vadd.f32 %v5379, 1.0
      %v5731 = vadd.f32 %v5381, 1.0
      %v5732 = vadd.f32 %v5383, 1.0
      %v5733 = vadd.f32 %v5385, 1.0
      %v5734 = vadd.f32 %v5387, 1.0
      %v5735 = vadd.f32 %v5389, 1.0
      %v5736 = vadd.f32 %v5391, 1.0
      %v5737 = vadd.f32 %v5393, 1.0
      %v5738 = vadd.f32 %v5395, 1.0
      %v5739 = vadd.f32 %v5397, 1.0
      %v5740 = vadd.f32 %v5399, 1.0
      %v5741 = vadd.f32 %v5401, 1.0
      %v5742 = vadd.f32 %v5403, 1.0
      %v5743 = vadd.f32 %v5405, 1.0
      %v5744 = vadd.f32 %v5407, 1.0
      %v5745 = vadd.f32 %v5409, 1.0
      %v5746 = vadd.f32 %v5411, 1.0
      %v5747 = vadd.f32 %v5413, 1.0
      %v5748 = vadd.f32 %v5415, 1.0
      %v5749 = vadd.f32 %v5417, 1.0
      %v5750 = vadd.f32 %v5419, 1.0
      %v5751 = vadd.f32 %v5421, 1.0
      %v5752 = vadd.f32 %v5423, 1.0
      %v5753 = vadd.f32 %v5425, 1.0
      %v5754 = vadd.f32 %v5427, 1.0
      %v5755 = vadd.f32 %v5429, 1.0
      %v5756 = vadd.f32 %v5431, 1.0
      %v5757 = vadd.f32 %v5433, 1.0
      %v5758 = vadd.f32 %v5435, 1.0
      %v5759 = vadd.f32 %v5437, 1.0
      %v5760 = vadd.f32 %v5439, 1.0
      %v5761 = vadd.f32 %v5441, 1.0
      %v5762 = vadd.f32 %v5443, 1.0
      %v5763 = vadd.f32 %v5445, 1.0
      %v5764 = vadd.f32 %v5447, 1.0
      %v5765 = vadd.f32 %v5449, 1.0
      %v5766 = vadd.f32 %v5451, 1.0
      %v5767 = vadd.f32 %v5453, 1.0
      %v5768 = vadd.f32 %v5455, 1.0
      %v5769 = vadd.f32 %v5457, 1.0
      %v5770 = vadd.f32 %v5459, 1.0
      %v5771 = vadd.f32 %v5461, 1.0
      %v5772 = vadd.f32 %v5463, 1.0
      %v5773 = vadd.f32 %v5465, 1.0
      %v5774 = vadd.f32 %v5467, 1.0
      %v5775 = vadd.f32 %v5469, 1.0
      %v5776 = vadd.f32 %v5471, 1.0
      %v5777 = vadd.f32 %v5473, 1.0
      %v5778 = vadd.f32 %v5475, 1.0
      %v5779 = vadd.f32 %v5477, 1.0
      %v5780 = vadd.f32 %v5479, 1.0
      %v5781 = vadd.f32 %v5481, 1.0
      %v5782 = vadd.f32 %v5483, 1.0
      %v5783 = vadd.f32 %v5485, 1.0
      %v5784 = vadd.f32 %v5487, 1.0
      %v5785 = vadd.f32 %v5489, 1.0
      %v5786 = vadd.f32 %v5491, 1.0
      %v5787 = vadd.f32 %v5493, 1.0
      %v5788 = vadd.f32 %v5495, 1.0
      %v5789 = vadd.f32 %v5497, 1.0
      %v5790 = vadd.f32 %v5499, 1.0
      %v5791 = vadd.f32 %v5501, 1.0
      %v5792 = vadd.f32 %v5503, 1.0
      %v5793 = vadd.f32 %v5505, 1.0
      %v5794 = vadd.f32 %v5507, 1.0
      %v5795 = vadd.f32 %v5509, 1.0
      %v5796 = vadd.f32 %v5511, 1.0
      %v5797 = vadd.f32 %v5513, 1.0
      %v5798 = vadd.f32 %v5515, 1.0
      %v5799 = vadd.f32 %v5517, 1.0
      %v5800 = vadd.f32 %v5519, 1.0
      %v5801 = vadd.f32 %v5521, 1.0
      %v5802 = vadd.f32 %v5523, 1.0
      %v5803 = vadd.f32 %v5525, 1.0
      %v5804 = vadd.f32 %v5527, 1.0
      %v5805 = vadd.f32 %v5529, 1.0
      %v5806 = vadd.f32 %v5531, 1.0
      %v5807 = vadd.f32 %v5533, 1.0
      %v5808 = vadd.f32 %v5535, 1.0
      %v5809 = vadd.f32 %v5537, 1.0
      %v5810 = vadd.f32 %v5539, 1.0
      %v5811 = vadd.f32 %v5541, 1.0
      %v5812 = vadd.f32 %v5543, 1.0
      %v5813 = vadd.f32 %v5545, 1.0
      %v5814 = vadd.f32 %v5547, 1.0
      %v5815 = vadd.f32 %v5549, 1.0
      %v5816 = vadd.f32 %v5551, 1.0
      %v5817 = vadd.f32 %v5553, 1.0
      %v5818 = vadd.f32 %v5555, 1.0
      %v5819 = vadd.f32 %v5557, 1.0
      %v5820 = vadd.f32 %v5559, 1.0
      %v5821 = vadd.f32 %v5561, 1.0
      %v5822 = vadd.f32 %v5563, 1.0
      %v5823 = vadd.f32 %v5565, 1.0
      %v5824 = vadd.f32 %v5567, 1.0
      %v5825 = vadd.f32 %v5569, 1.0
      %v5826 = vadd.f32 %v5571, 1.0
      %v5827 = vadd.f32 %v5573, 1.0
      %v5828 = vadd.f32 %v5575, 1.0
      %v5829 = vadd.f32 %v5577, 1.0
      %v5830 = vadd.f32 %v5579, 1.0
      %v5831 = vadd.f32 %v5581, 1.0
      %v5832 = vadd.f32 %v5583, 1.0
      %v5833 = vadd.f32 %v5585, 1.0
      %v5834 = vadd.f32 %v5587, 1.0
      %v5835 = vadd.f32 %v5589, 1.0
      %v5836 = vadd.f32 %v5591, 1.0
      %v5837 = vadd.f32 %v5593, 1.0
      %v5838 = vadd.f32 %v5595, 1.0
      %v5839 = vadd.f32 %v5597, 1.0
      %v5840 = vadd.f32 %v5599, 1.0
      %v5841 = vadd.f32 %v5601, 1.0
      %v5842 = vadd.f32 %v5603, 1.0
      %v5843 = vadd.f32 %v5605, 1.0
      %v5844 = vadd.f32 %v5607, 1.0
      %v5845 = vadd.f32 %v5609, 1.0
      %v5846 = vadd.f32 %v5611, 1.0
      %v5847 = vadd.f32 %v5613, 1.0
      %v5848 = vadd.f32 %v5615, 1.0
      %v5849 = vadd.f32 %v5617, 1.0
      %v5850 = vadd.f32 %v5619, 1.0
      %v5851 = vadd.f32 %v5621, 1.0
      %v5852 = vadd.f32 %v5623, 1.0
      %v5853 = vadd.f32 %v5625, 1.0
      %v5854 = vadd.f32 %v5627, 1.0
      %v5855 = vadd.f32 %v5629, 1.0
      %v5856 = vadd.f32 %v5631, 1.0
      %v5857 = vadd.f32 %v5633, 1.0
      %v5858 = vrcp.pop %v5634
      %v5859 = vmul.f32 1.0, %v5858
      %v5860 = vrcp.pop %v5635
      %v5861 = vmul.f32 1.0, %v5860
      %v5862 = vrcp.pop %v5636
      %v5863 = vmul.f32 1.0, %v5862
      %v5864 = vrcp.pop %v5637
      %v5865 = vmul.f32 1.0, %v5864
      %v5866 = vrcp.pop %v5638
      %v5867 = vmul.f32 1.0, %v5866
      %v5868 = vrcp.pop %v5639
      %v5869 = vmul.f32 1.0, %v5868
      %v5870 = vrcp.pop %v5640
      %v5871 = vmul.f32 1.0, %v5870
      %v5872 = vrcp.pop %v5641
      %v5873 = vmul.f32 1.0, %v5872
      %v5874 = vrcp.pop %v5642
      %v5875 = vmul.f32 1.0, %v5874
      %v5876 = vrcp.pop %v5643
      %v5877 = vmul.f32 1.0, %v5876
      %v5878 = vrcp.pop %v5644
      %v5879 = vmul.f32 1.0, %v5878
      %v5880 = vrcp.pop %v5645
      %v5881 = vmul.f32 1.0, %v5880
      %v5882 = vrcp.pop %v5646
      %v5883 = vmul.f32 1.0, %v5882
      %v5884 = vrcp.pop %v5647
      %v5885 = vmul.f32 1.0, %v5884
      %v5886 = vrcp.pop %v5648
      %v5887 = vmul.f32 1.0, %v5886
      %v5888 = vrcp.pop %v5649
      %v5889 = vmul.f32 1.0, %v5888
      %v5890 = vrcp.pop %v5650
      %v5891 = vmul.f32 1.0, %v5890
      %v5892 = vrcp.pop %v5651
      %v5893 = vmul.f32 1.0, %v5892
      %v5894 = vrcp.pop %v5652
      %v5895 = vmul.f32 1.0, %v5894
      %v5896 = vrcp.pop %v5653
      %v5897 = vmul.f32 1.0, %v5896
      %v5898 = vrcp.pop %v5654
      %v5899 = vmul.f32 1.0, %v5898
      %v5900 = vrcp.pop %v5655
      %v5901 = vmul.f32 1.0, %v5900
      %v5902 = vrcp.pop %v5656
      %v5903 = vmul.f32 1.0, %v5902
      %v5904 = vrcp.pop %v5657
      %v5905 = vmul.f32 1.0, %v5904
      %v5906 = vrcp.pop %v5658
      %v5907 = vmul.f32 1.0, %v5906
      %v5908 = vrcp.pop %v5659
      %v5909 = vmul.f32 1.0, %v5908
      %v5910 = vrcp.pop %v5660
      %v5911 = vmul.f32 1.0, %v5910
      %v5912 = vrcp.pop %v5661
      %v5913 = vmul.f32 1.0, %v5912
      %v5914 = vrcp.pop %v5662
      %v5915 = vmul.f32 1.0, %v5914
      %v5916 = vrcp.pop %v5663
      %v5917 = vmul.f32 1.0, %v5916
      %v5918 = vrcp.pop %v5664
      %v5919 = vmul.f32 1.0, %v5918
      %v5920 = vrcp.pop %v5665
      %v5921 = vmul.f32 1.0, %v5920
      %v5922 = vrcp.pop %v5666
      %v5923 = vmul.f32 1.0, %v5922
      %v5924 = vrcp.pop %v5667
      %v5925 = vmul.f32 1.0, %v5924
      %v5926 = vrcp.pop %v5668
      %v5927 = vmul.f32 1.0, %v5926
      %v5928 = vrcp.pop %v5669
      %v5929 = vmul.f32 1.0, %v5928
      %v5930 = vrcp.pop %v5670
      %v5931 = vmul.f32 1.0, %v5930
      %v5932 = vrcp.pop %v5671
      %v5933 = vmul.f32 1.0, %v5932
      %v5934 = vrcp.pop %v5672
      %v5935 = vmul.f32 1.0, %v5934
      %v5936 = vrcp.pop %v5673
      %v5937 = vmul.f32 1.0, %v5936
      %v5938 = vrcp.pop %v5674
      %v5939 = vmul.f32 1.0, %v5938
      %v5940 = vrcp.pop %v5675
      %v5941 = vmul.f32 1.0, %v5940
      %v5942 = vrcp.pop %v5676
      %v5943 = vmul.f32 1.0, %v5942
      %v5944 = vrcp.pop %v5677
      %v5945 = vmul.f32 1.0, %v5944
      %v5946 = vrcp.pop %v5678
      %v5947 = vmul.f32 1.0, %v5946
      %v5948 = vrcp.pop %v5679
      %v5949 = vmul.f32 1.0, %v5948
      %v5950 = vrcp.pop %v5680
      %v5951 = vmul.f32 1.0, %v5950
      %v5952 = vrcp.pop %v5681
      %v5953 = vmul.f32 1.0, %v5952
      %v5954 = vrcp.pop %v5682
      %v5955 = vmul.f32 1.0, %v5954
      %v5956 = vrcp.pop %v5683
      %v5957 = vmul.f32 1.0, %v5956
      %v5958 = vrcp.pop %v5684
      %v5959 = vmul.f32 1.0, %v5958
      %v5960 = vrcp.pop %v5685
      %v5961 = vmul.f32 1.0, %v5960
      %v5962 = vrcp.pop %v5686
      %v5963 = vmul.f32 1.0, %v5962
      %v5964 = vrcp.pop %v5687
      %v5965 = vmul.f32 1.0, %v5964
      %v5966 = vrcp.pop %v5688
      %v5967 = vmul.f32 1.0, %v5966
      %v5968 = vrcp.pop %v5689
      %v5969 = vmul.f32 1.0, %v5968
      %v5970 = vrcp.pop %v5690
      %v5971 = vmul.f32 1.0, %v5970
      %v5972 = vrcp.pop %v5691
      %v5973 = vmul.f32 1.0, %v5972
      %v5974 = vrcp.pop %v5692
      %v5975 = vmul.f32 1.0, %v5974
      %v5976 = vrcp.pop %v5693
      %v5977 = vmul.f32 1.0, %v5976
      %v5978 = vrcp.pop %v5694
      %v5979 = vmul.f32 1.0, %v5978
      %v5980 = vrcp.pop %v5695
      %v5981 = vmul.f32 1.0, %v5980
      %v5982 = vrcp.pop %v5696
      %v5983 = vmul.f32 1.0, %v5982
      %v5984 = vrcp.pop %v5697
      %v5985 = vmul.f32 1.0, %v5984
      %v5986 = vrcp.pop %v5698
      %v5987 = vmul.f32 1.0, %v5986
      %v5988 = vrcp.pop %v5699
      %v5989 = vmul.f32 1.0, %v5988
      %v5990 = vrcp.pop %v5700
      %v5991 = vmul.f32 1.0, %v5990
      %v5992 = vrcp.pop %v5701
      %v5993 = vmul.f32 1.0, %v5992
      %v5994 = vrcp.pop %v5702
      %v5995 = vmul.f32 1.0, %v5994
      %v5996 = vrcp.pop %v5703
      %v5997 = vmul.f32 1.0, %v5996
      %v5998 = vrcp.pop %v5704
      %v5999 = vmul.f32 1.0, %v5998
      %v6000 = vrcp.pop %v5705
      %v6001 = vmul.f32 1.0, %v6000
      %v6002 = vrcp.pop %v5706
      %v6003 = vmul.f32 1.0, %v6002
      %v6004 = vrcp.pop %v5707
      %v6005 = vmul.f32 1.0, %v6004
      %v6006 = vrcp.pop %v5708
      %v6007 = vmul.f32 1.0, %v6006
      %v6008 = vrcp.pop %v5709
      %v6009 = vmul.f32 1.0, %v6008
      %v6010 = vrcp.pop %v5710
      %v6011 = vmul.f32 1.0, %v6010
      %v6012 = vrcp.pop %v5711
      %v6013 = vmul.f32 1.0, %v6012
      %v6014 = vrcp.pop %v5712
      %v6015 = vmul.f32 1.0, %v6014
      %v6016 = vrcp.pop %v5713
      %v6017 = vmul.f32 1.0, %v6016
      %v6018 = vrcp.pop %v5714
      %v6019 = vmul.f32 1.0, %v6018
      %v6020 = vrcp.pop %v5715
      %v6021 = vmul.f32 1.0, %v6020
      %v6022 = vrcp.pop %v5716
      %v6023 = vmul.f32 1.0, %v6022
      %v6024 = vrcp.pop %v5717
      %v6025 = vmul.f32 1.0, %v6024
      %v6026 = vrcp.pop %v5718
      %v6027 = vmul.f32 1.0, %v6026
      %v6028 = vrcp.pop %v5719
      %v6029 = vmul.f32 1.0, %v6028
      %v6030 = vrcp.pop %v5720
      %v6031 = vmul.f32 1.0, %v6030
      %v6032 = vrcp.pop %v5721
      %v6033 = vmul.f32 1.0, %v6032
      %v6034 = vrcp.pop %v5722
      %v6035 = vmul.f32 1.0, %v6034
      %v6036 = vrcp.pop %v5723
      %v6037 = vmul.f32 1.0, %v6036
      %v6038 = vrcp.pop %v5724
      %v6039 = vmul.f32 1.0, %v6038
      %v6040 = vrcp.pop %v5725
      %v6041 = vmul.f32 1.0, %v6040
      %v6042 = vrcp.pop %v5726
      %v6043 = vmul.f32 1.0, %v6042
      %v6044 = vrcp.pop %v5727
      %v6045 = vmul.f32 1.0, %v6044
      %v6046 = vrcp.pop %v5728
      %v6047 = vmul.f32 1.0, %v6046
      %v6048 = vrcp.pop %v5729
      %v6049 = vmul.f32 1.0, %v6048
      %v6050 = vrcp.pop %v5730
      %v6051 = vmul.f32 1.0, %v6050
      %v6052 = vrcp.pop %v5731
      %v6053 = vmul.f32 1.0, %v6052
      %v6054 = vrcp.pop %v5732
      %v6055 = vmul.f32 1.0, %v6054
      %v6056 = vrcp.pop %v5733
      %v6057 = vmul.f32 1.0, %v6056
      %v6058 = vrcp.pop %v5734
      %v6059 = vmul.f32 1.0, %v6058
      %v6060 = vrcp.pop %v5735
      %v6061 = vmul.f32 1.0, %v6060
      %v6062 = vrcp.pop %v5736
      %v6063 = vmul.f32 1.0, %v6062
      %v6064 = vrcp.pop %v5737
      %v6065 = vmul.f32 1.0, %v6064
      %v6066 = vrcp.pop %v5738
      %v6067 = vmul.f32 1.0, %v6066
      %v6068 = vrcp.pop %v5739
      %v6069 = vmul.f32 1.0, %v6068
      %v6070 = vrcp.pop %v5740
      %v6071 = vmul.f32 1.0, %v6070
      %v6072 = vrcp.pop %v5741
      %v6073 = vmul.f32 1.0, %v6072
      %v6074 = vrcp.pop %v5742
      %v6075 = vmul.f32 1.0, %v6074
      %v6076 = vrcp.pop %v5743
      %v6077 = vmul.f32 1.0, %v6076
      %v6078 = vrcp.pop %v5744
      %v6079 = vmul.f32 1.0, %v6078
      %v6080 = vrcp.pop %v5745
      %v6081 = vmul.f32 1.0, %v6080
      %v6082 = vrcp.pop %v5746
      %v6083 = vmul.f32 1.0, %v6082
      %v6084 = vrcp.pop %v5747
      %v6085 = vmul.f32 1.0, %v6084
      %v6086 = vrcp.pop %v5748
      %v6087 = vmul.f32 1.0, %v6086
      %v6088 = vrcp.pop %v5749
      %v6089 = vmul.f32 1.0, %v6088
      %v6090 = vrcp.pop %v5750
      %v6091 = vmul.f32 1.0, %v6090
      %v6092 = vrcp.pop %v5751
      %v6093 = vmul.f32 1.0, %v6092
      %v6094 = vrcp.pop %v5752
      %v6095 = vmul.f32 1.0, %v6094
      %v6096 = vrcp.pop %v5753
      %v6097 = vmul.f32 1.0, %v6096
      %v6098 = vrcp.pop %v5754
      %v6099 = vmul.f32 1.0, %v6098
      %v6100 = vrcp.pop %v5755
      %v6101 = vmul.f32 1.0, %v6100
      %v6102 = vrcp.pop %v5756
      %v6103 = vmul.f32 1.0, %v6102
      %v6104 = vrcp.pop %v5757
      %v6105 = vmul.f32 1.0, %v6104
      %v6106 = vrcp.pop %v5758
      %v6107 = vmul.f32 1.0, %v6106
      %v6108 = vrcp.pop %v5759
      %v6109 = vmul.f32 1.0, %v6108
      %v6110 = vrcp.pop %v5760
      %v6111 = vmul.f32 1.0, %v6110
      %v6112 = vrcp.pop %v5761
      %v6113 = vmul.f32 1.0, %v6112
      %v6114 = vrcp.pop %v5762
      %v6115 = vmul.f32 1.0, %v6114
      %v6116 = vrcp.pop %v5763
      %v6117 = vmul.f32 1.0, %v6116
      %v6118 = vrcp.pop %v5764
      %v6119 = vmul.f32 1.0, %v6118
      %v6120 = vrcp.pop %v5765
      %v6121 = vmul.f32 1.0, %v6120
      %v6122 = vrcp.pop %v5766
      %v6123 = vmul.f32 1.0, %v6122
      %v6124 = vrcp.pop %v5767
      %v6125 = vmul.f32 1.0, %v6124
      %v6126 = vrcp.pop %v5768
      %v6127 = vmul.f32 1.0, %v6126
      %v6128 = vrcp.pop %v5769
      %v6129 = vmul.f32 1.0, %v6128
      %v6130 = vrcp.pop %v5770
      %v6131 = vmul.f32 1.0, %v6130
      %v6132 = vrcp.pop %v5771
      %v6133 = vmul.f32 1.0, %v6132
      %v6134 = vrcp.pop %v5772
      %v6135 = vmul.f32 1.0, %v6134
      %v6136 = vrcp.pop %v5773
      %v6137 = vmul.f32 1.0, %v6136
      %v6138 = vrcp.pop %v5774
      %v6139 = vmul.f32 1.0, %v6138
      %v6140 = vrcp.pop %v5775
      %v6141 = vmul.f32 1.0, %v6140
      %v6142 = vrcp.pop %v5776
      %v6143 = vmul.f32 1.0, %v6142
      %v6144 = vrcp.pop %v5777
      %v6145 = vmul.f32 1.0, %v6144
      %v6146 = vrcp.pop %v5778
      %v6147 = vmul.f32 1.0, %v6146
      %v6148 = vrcp.pop %v5779
      %v6149 = vmul.f32 1.0, %v6148
      %v6150 = vrcp.pop %v5780
      %v6151 = vmul.f32 1.0, %v6150
      %v6152 = vrcp.pop %v5781
      %v6153 = vmul.f32 1.0, %v6152
      %v6154 = vrcp.pop %v5782
      %v6155 = vmul.f32 1.0, %v6154
      %v6156 = vrcp.pop %v5783
      %v6157 = vmul.f32 1.0, %v6156
      %v6158 = vrcp.pop %v5784
      %v6159 = vmul.f32 1.0, %v6158
      %v6160 = vrcp.pop %v5785
      %v6161 = vmul.f32 1.0, %v6160
      %v6162 = vrcp.pop %v5786
      %v6163 = vmul.f32 1.0, %v6162
      %v6164 = vrcp.pop %v5787
      %v6165 = vmul.f32 1.0, %v6164
      %v6166 = vrcp.pop %v5788
      %v6167 = vmul.f32 1.0, %v6166
      %v6168 = vrcp.pop %v5789
      %v6169 = vmul.f32 1.0, %v6168
      %v6170 = vrcp.pop %v5790
      %v6171 = vmul.f32 1.0, %v6170
      %v6172 = vrcp.pop %v5791
      %v6173 = vmul.f32 1.0, %v6172
      %v6174 = vrcp.pop %v5792
      %v6175 = vmul.f32 1.0, %v6174
      %v6176 = vrcp.pop %v5793
      %v6177 = vmul.f32 1.0, %v6176
      %v6178 = vrcp.pop %v5794
      %v6179 = vmul.f32 1.0, %v6178
      %v6180 = vrcp.pop %v5795
      %v6181 = vmul.f32 1.0, %v6180
      %v6182 = vrcp.pop %v5796
      %v6183 = vmul.f32 1.0, %v6182
      %v6184 = vrcp.pop %v5797
      %v6185 = vmul.f32 1.0, %v6184
      %v6186 = vrcp.pop %v5798
      %v6187 = vmul.f32 1.0, %v6186
      %v6188 = vrcp.pop %v5799
      %v6189 = vmul.f32 1.0, %v6188
      %v6190 = vrcp.pop %v5800
      %v6191 = vmul.f32 1.0, %v6190
      %v6192 = vrcp.pop %v5801
      %v6193 = vmul.f32 1.0, %v6192
      %v6194 = vrcp.pop %v5802
      %v6195 = vmul.f32 1.0, %v6194
      %v6196 = vrcp.pop %v5803
      %v6197 = vmul.f32 1.0, %v6196
      %v6198 = vrcp.pop %v5804
      %v6199 = vmul.f32 1.0, %v6198
      %v6200 = vrcp.pop %v5805
      %v6201 = vmul.f32 1.0, %v6200
      %v6202 = vrcp.pop %v5806
      %v6203 = vmul.f32 1.0, %v6202
      %v6204 = vrcp.pop %v5807
      %v6205 = vmul.f32 1.0, %v6204
      %v6206 = vrcp.pop %v5808
      %v6207 = vmul.f32 1.0, %v6206
      %v6208 = vrcp.pop %v5809
      %v6209 = vmul.f32 1.0, %v6208
      %v6210 = vrcp.pop %v5810
      %v6211 = vmul.f32 1.0, %v6210
      %v6212 = vrcp.pop %v5811
      %v6213 = vmul.f32 1.0, %v6212
      %v6214 = vrcp.pop %v5812
      %v6215 = vmul.f32 1.0, %v6214
      %v6216 = vrcp.pop %v5813
      %v6217 = vmul.f32 1.0, %v6216
      %v6218 = vrcp.pop %v5814
      %v6219 = vmul.f32 1.0, %v6218
      %v6220 = vrcp.pop %v5815
      %v6221 = vmul.f32 1.0, %v6220
      %v6222 = vrcp.pop %v5816
      %v6223 = vmul.f32 1.0, %v6222
      %v6224 = vrcp.pop %v5817
      %v6225 = vmul.f32 1.0, %v6224
      %v6226 = vrcp.pop %v5818
      %v6227 = vmul.f32 1.0, %v6226
      %v6228 = vrcp.pop %v5819
      %v6229 = vmul.f32 1.0, %v6228
      %v6230 = vrcp.pop %v5820
      %v6231 = vmul.f32 1.0, %v6230
      %v6232 = vrcp.pop %v5821
      %v6233 = vmul.f32 1.0, %v6232
      %v6234 = vrcp.pop %v5822
      %v6235 = vmul.f32 1.0, %v6234
      %v6236 = vrcp.pop %v5823
      %v6237 = vmul.f32 1.0, %v6236
      %v6238 = vrcp.pop %v5824
      %v6239 = vmul.f32 1.0, %v6238
      %v6240 = vrcp.pop %v5825
      %v6241 = vmul.f32 1.0, %v6240
      %v6242 = vrcp.pop %v5826
      %v6243 = vmul.f32 1.0, %v6242
      %v6244 = vrcp.pop %v5827
      %v6245 = vmul.f32 1.0, %v6244
      %v6246 = vrcp.pop %v5828
      %v6247 = vmul.f32 1.0, %v6246
      %v6248 = vrcp.pop %v5829
      %v6249 = vmul.f32 1.0, %v6248
      %v6250 = vrcp.pop %v5830
      %v6251 = vmul.f32 1.0, %v6250
      %v6252 = vrcp.pop %v5831
      %v6253 = vmul.f32 1.0, %v6252
      %v6254 = vrcp.pop %v5832
      %v6255 = vmul.f32 1.0, %v6254
      %v6256 = vrcp.pop %v5833
      %v6257 = vmul.f32 1.0, %v6256
      %v6258 = vrcp.pop %v5834
      %v6259 = vmul.f32 1.0, %v6258
      %v6260 = vrcp.pop %v5835
      %v6261 = vmul.f32 1.0, %v6260
      %v6262 = vrcp.pop %v5836
      %v6263 = vmul.f32 1.0, %v6262
      %v6264 = vrcp.pop %v5837
      %v6265 = vmul.f32 1.0, %v6264
      %v6266 = vrcp.pop %v5838
      %v6267 = vmul.f32 1.0, %v6266
      %v6268 = vrcp.pop %v5839
      %v6269 = vmul.f32 1.0, %v6268
      %v6270 = vrcp.pop %v5840
      %v6271 = vmul.f32 1.0, %v6270
      %v6272 = vrcp.pop %v5841
      %v6273 = vmul.f32 1.0, %v6272
      %v6274 = vrcp.pop %v5842
      %v6275 = vmul.f32 1.0, %v6274
      %v6276 = vrcp.pop %v5843
      %v6277 = vmul.f32 1.0, %v6276
      %v6278 = vrcp.pop %v5844
      %v6279 = vmul.f32 1.0, %v6278
      %v6280 = vrcp.pop %v5845
      %v6281 = vmul.f32 1.0, %v6280
      %v6282 = vrcp.pop %v5846
      %v6283 = vmul.f32 1.0, %v6282
      %v6284 = vrcp.pop %v5847
      %v6285 = vmul.f32 1.0, %v6284
      %v6286 = vrcp.pop %v5848
      %v6287 = vmul.f32 1.0, %v6286
      %v6288 = vrcp.pop %v5849
      %v6289 = vmul.f32 1.0, %v6288
      %v6290 = vrcp.pop %v5850
      %v6291 = vmul.f32 1.0, %v6290
      %v6292 = vrcp.pop %v5851
      %v6293 = vmul.f32 1.0, %v6292
      %v6294 = vrcp.pop %v5852
      %v6295 = vmul.f32 1.0, %v6294
      %v6296 = vrcp.pop %v5853
      %v6297 = vmul.f32 1.0, %v6296
      %v6298 = vrcp.pop %v5854
      %v6299 = vmul.f32 1.0, %v6298
      %v6300 = vrcp.pop %v5855
      %v6301 = vmul.f32 1.0, %v6300
      %v6302 = vrcp.pop %v5856
      %v6303 = vmul.f32 1.0, %v6302
      %v6304 = vrcp.pop %v5857
      %v6305 = vmul.f32 1.0, %v6304
      %v6306 = vpack.c.bf16 %v5873, %v5859
      %v6307 = vpack.c.bf16 %v5875, %v5861
      %v6308 = vpack.c.bf16 %v5877, %v5863
      %v6309 = vpack.c.bf16 %v5879, %v5865
      %v6310 = vpack.c.bf16 %v5881, %v5867
      %v6311 = vpack.c.bf16 %v5883, %v5869
      %v6312 = vpack.c.bf16 %v5885, %v5871
      %v6313 = vpack.c.bf16 %v5901, %v5887
      %v6314 = vpack.c.bf16 %v5903, %v5889
      %v6315 = vpack.c.bf16 %v5905, %v5891
      %v6316 = vpack.c.bf16 %v5907, %v5893
      %v6317 = vpack.c.bf16 %v5909, %v5895
      %v6318 = vpack.c.bf16 %v5911, %v5897
      %v6319 = vpack.c.bf16 %v5913, %v5899
      %v6320 = vpack.c.bf16 %v5929, %v5915
      %v6321 = vpack.c.bf16 %v5931, %v5917
      %v6322 = vpack.c.bf16 %v5933, %v5919
      %v6323 = vpack.c.bf16 %v5935, %v5921
      %v6324 = vpack.c.bf16 %v5937, %v5923
      %v6325 = vpack.c.bf16 %v5939, %v5925
      %v6326 = vpack.c.bf16 %v5941, %v5927
      %v6327 = vpack.c.bf16 %v5957, %v5943
      %v6328 = vpack.c.bf16 %v5959, %v5945
      %v6329 = vpack.c.bf16 %v5961, %v5947
      %v6330 = vpack.c.bf16 %v5963, %v5949
      %v6331 = vpack.c.bf16 %v5965, %v5951
      %v6332 = vpack.c.bf16 %v5967, %v5953
      %v6333 = vpack.c.bf16 %v5969, %v5955
      %v6334 = vpack.c.bf16 %v5985, %v5971
      %v6335 = vpack.c.bf16 %v5987, %v5973
      %v6336 = vpack.c.bf16 %v5989, %v5975
      %v6337 = vpack.c.bf16 %v5991, %v5977
      %v6338 = vpack.c.bf16 %v5993, %v5979
      %v6339 = vpack.c.bf16 %v5995, %v5981
      %v6340 = vpack.c.bf16 %v5997, %v5983
      %v6341 = vpack.c.bf16 %v6013, %v5999
      %v6342 = vpack.c.bf16 %v6015, %v6001
      %v6343 = vpack.c.bf16 %v6017, %v6003
      %v6344 = vpack.c.bf16 %v6019, %v6005
      %v6345 = vpack.c.bf16 %v6021, %v6007
      %v6346 = vpack.c.bf16 %v6023, %v6009
      %v6347 = vpack.c.bf16 %v6025, %v6011
      %v6348 = vpack.c.bf16 %v6041, %v6027
      %v6349 = vpack.c.bf16 %v6043, %v6029
      %v6350 = vpack.c.bf16 %v6045, %v6031
      %v6351 = vpack.c.bf16 %v6047, %v6033
      %v6352 = vpack.c.bf16 %v6049, %v6035
      %v6353 = vpack.c.bf16 %v6051, %v6037
      %v6354 = vpack.c.bf16 %v6053, %v6039
      %v6355 = vpack.c.bf16 %v6069, %v6055
      %v6356 = vpack.c.bf16 %v6071, %v6057
      %v6357 = vpack.c.bf16 %v6073, %v6059
      %v6358 = vpack.c.bf16 %v6075, %v6061
      %v6359 = vpack.c.bf16 %v6077, %v6063
      %v6360 = vpack.c.bf16 %v6079, %v6065
      %v6361 = vpack.c.bf16 %v6081, %v6067
      %v6362 = vpack.c.bf16 %v6097, %v6083
      %v6363 = vpack.c.bf16 %v6099, %v6085
      %v6364 = vpack.c.bf16 %v6101, %v6087
      %v6365 = vpack.c.bf16 %v6103, %v6089
      %v6366 = vpack.c.bf16 %v6105, %v6091
      %v6367 = vpack.c.bf16 %v6107, %v6093
      %v6368 = vpack.c.bf16 %v6109, %v6095
      %v6369 = vpack.c.bf16 %v6125, %v6111
      %v6370 = vpack.c.bf16 %v6127, %v6113
      %v6371 = vpack.c.bf16 %v6129, %v6115
      %v6372 = vpack.c.bf16 %v6131, %v6117
      %v6373 = vpack.c.bf16 %v6133, %v6119
      %v6374 = vpack.c.bf16 %v6135, %v6121
      %v6375 = vpack.c.bf16 %v6137, %v6123
      %v6376 = vpack.c.bf16 %v6153, %v6139
      %v6377 = vpack.c.bf16 %v6155, %v6141
      %v6378 = vpack.c.bf16 %v6157, %v6143
      %v6379 = vpack.c.bf16 %v6159, %v6145
      %v6380 = vpack.c.bf16 %v6161, %v6147
      %v6381 = vpack.c.bf16 %v6163, %v6149
      %v6382 = vpack.c.bf16 %v6165, %v6151
      %v6383 = vpack.c.bf16 %v6181, %v6167
      %v6384 = vpack.c.bf16 %v6183, %v6169
      %v6385 = vpack.c.bf16 %v6185, %v6171
      %v6386 = vpack.c.bf16 %v6187, %v6173
      %v6387 = vpack.c.bf16 %v6189, %v6175
      %v6388 = vpack.c.bf16 %v6191, %v6177
      %v6389 = vpack.c.bf16 %v6193, %v6179
      %v6390 = vpack.c.bf16 %v6209, %v6195
      %v6391 = vpack.c.bf16 %v6211, %v6197
      %v6392 = vpack.c.bf16 %v6213, %v6199
      %v6393 = vpack.c.bf16 %v6215, %v6201
      %v6394 = vpack.c.bf16 %v6217, %v6203
      %v6395 = vpack.c.bf16 %v6219, %v6205
      %v6396 = vpack.c.bf16 %v6221, %v6207
      %v6397 = vpack.c.bf16 %v6237, %v6223
      %v6398 = vpack.c.bf16 %v6239, %v6225
      %v6399 = vpack.c.bf16 %v6241, %v6227
      %v6400 = vpack.c.bf16 %v6243, %v6229
      %v6401 = vpack.c.bf16 %v6245, %v6231
      %v6402 = vpack.c.bf16 %v6247, %v6233
      %v6403 = vpack.c.bf16 %v6249, %v6235
      %v6404 = vpack.c.bf16 %v6265, %v6251
      %v6405 = vpack.c.bf16 %v6267, %v6253
      %v6406 = vpack.c.bf16 %v6269, %v6255
      %v6407 = vpack.c.bf16 %v6271, %v6257
      %v6408 = vpack.c.bf16 %v6273, %v6259
      %v6409 = vpack.c.bf16 %v6275, %v6261
      %v6410 = vpack.c.bf16 %v6277, %v6263
      %v6411 = vpack.c.bf16 %v6293, %v6279
      %v6412 = vpack.c.bf16 %v6295, %v6281
      %v6413 = vpack.c.bf16 %v6297, %v6283
      %v6414 = vpack.c.bf16 %v6299, %v6285
      %v6415 = vpack.c.bf16 %v6301, %v6287
      %v6416 = vpack.c.bf16 %v6303, %v6289
      %v6417 = vpack.c.bf16 %v6305, %v6291
      %v6530 = vunpack.c.l.b16 %v6306
      %v6531 = vunpack.c.l.b16 %v6307
      %v6532 = vunpack.c.l.b16 %v6308
      %v6533 = vunpack.c.l.b16 %v6309
      %v6534 = vunpack.c.l.b16 %v6310
      %v6535 = vunpack.c.l.b16 %v6311
      %v6536 = vunpack.c.l.b16 %v6312
      %v6537 = vunpack.c.h.b16 %v6306
      %v6538 = vunpack.c.h.b16 %v6307
      %v6539 = vunpack.c.h.b16 %v6308
      %v6540 = vunpack.c.h.b16 %v6309
      %v6541 = vunpack.c.h.b16 %v6310
      %v6542 = vunpack.c.h.b16 %v6311
      %v6543 = vunpack.c.h.b16 %v6312
      %v6544 = vunpack.c.l.b16 %v6313
      %v6545 = vunpack.c.l.b16 %v6314
      %v6546 = vunpack.c.l.b16 %v6315
      %v6547 = vunpack.c.l.b16 %v6316
      %v6548 = vunpack.c.l.b16 %v6317
      %v6549 = vunpack.c.l.b16 %v6318
      %v6550 = vunpack.c.l.b16 %v6319
      %v6551 = vunpack.c.h.b16 %v6313
      %v6552 = vunpack.c.h.b16 %v6314
      %v6553 = vunpack.c.h.b16 %v6315
      %v6554 = vunpack.c.h.b16 %v6316
      %v6555 = vunpack.c.h.b16 %v6317
      %v6556 = vunpack.c.h.b16 %v6318
      %v6557 = vunpack.c.h.b16 %v6319
      %v6558 = vunpack.c.l.b16 %v6320
      %v6559 = vunpack.c.l.b16 %v6321
      %v6560 = vunpack.c.l.b16 %v6322
      %v6561 = vunpack.c.l.b16 %v6323
      %v6562 = vunpack.c.l.b16 %v6324
      %v6563 = vunpack.c.l.b16 %v6325
      %v6564 = vunpack.c.l.b16 %v6326
      %v6565 = vunpack.c.h.b16 %v6320
      %v6566 = vunpack.c.h.b16 %v6321
      %v6567 = vunpack.c.h.b16 %v6322
      %v6568 = vunpack.c.h.b16 %v6323
      %v6569 = vunpack.c.h.b16 %v6324
      %v6570 = vunpack.c.h.b16 %v6325
      %v6571 = vunpack.c.h.b16 %v6326
      %v6572 = vunpack.c.l.b16 %v6327
      %v6573 = vunpack.c.l.b16 %v6328
      %v6574 = vunpack.c.l.b16 %v6329
      %v6575 = vunpack.c.l.b16 %v6330
      %v6576 = vunpack.c.l.b16 %v6331
      %v6577 = vunpack.c.l.b16 %v6332
      %v6578 = vunpack.c.l.b16 %v6333
      %v6579 = vunpack.c.h.b16 %v6327
      %v6580 = vunpack.c.h.b16 %v6328
      %v6581 = vunpack.c.h.b16 %v6329
      %v6582 = vunpack.c.h.b16 %v6330
      %v6583 = vunpack.c.h.b16 %v6331
      %v6584 = vunpack.c.h.b16 %v6332
      %v6585 = vunpack.c.h.b16 %v6333
      %v6586 = vunpack.c.l.b16 %v6334
      %v6587 = vunpack.c.l.b16 %v6335
      %v6588 = vunpack.c.l.b16 %v6336
      %v6589 = vunpack.c.l.b16 %v6337
      %v6590 = vunpack.c.l.b16 %v6338
      %v6591 = vunpack.c.l.b16 %v6339
      %v6592 = vunpack.c.l.b16 %v6340
      %v6593 = vunpack.c.h.b16 %v6334
      %v6594 = vunpack.c.h.b16 %v6335
      %v6595 = vunpack.c.h.b16 %v6336
      %v6596 = vunpack.c.h.b16 %v6337
      %v6597 = vunpack.c.h.b16 %v6338
      %v6598 = vunpack.c.h.b16 %v6339
      %v6599 = vunpack.c.h.b16 %v6340
      %v6600 = vunpack.c.l.b16 %v6341
      %v6601 = vunpack.c.l.b16 %v6342
      %v6602 = vunpack.c.l.b16 %v6343
      %v6603 = vunpack.c.l.b16 %v6344
      %v6604 = vunpack.c.l.b16 %v6345
      %v6605 = vunpack.c.l.b16 %v6346
      %v6606 = vunpack.c.l.b16 %v6347
      %v6607 = vunpack.c.h.b16 %v6341
      %v6608 = vunpack.c.h.b16 %v6342
      %v6609 = vunpack.c.h.b16 %v6343
      %v6610 = vunpack.c.h.b16 %v6344
      %v6611 = vunpack.c.h.b16 %v6345
      %v6612 = vunpack.c.h.b16 %v6346
      %v6613 = vunpack.c.h.b16 %v6347
      %v6614 = vunpack.c.l.b16 %v6348
      %v6615 = vunpack.c.l.b16 %v6349
      %v6616 = vunpack.c.l.b16 %v6350
      %v6617 = vunpack.c.l.b16 %v6351
      %v6618 = vunpack.c.l.b16 %v6352
      %v6619 = vunpack.c.l.b16 %v6353
      %v6620 = vunpack.c.l.b16 %v6354
      %v6621 = vunpack.c.h.b16 %v6348
      %v6622 = vunpack.c.h.b16 %v6349
      %v6623 = vunpack.c.h.b16 %v6350
      %v6624 = vunpack.c.h.b16 %v6351
      %v6625 = vunpack.c.h.b16 %v6352
      %v6626 = vunpack.c.h.b16 %v6353
      %v6627 = vunpack.c.h.b16 %v6354
      %v6628 = vunpack.c.l.b16 %v6355
      %v6629 = vunpack.c.l.b16 %v6356
      %v6630 = vunpack.c.l.b16 %v6357
      %v6631 = vunpack.c.l.b16 %v6358
      %v6632 = vunpack.c.l.b16 %v6359
      %v6633 = vunpack.c.l.b16 %v6360
      %v6634 = vunpack.c.l.b16 %v6361
      %v6635 = vunpack.c.h.b16 %v6355
      %v6636 = vunpack.c.h.b16 %v6356
      %v6637 = vunpack.c.h.b16 %v6357
      %v6638 = vunpack.c.h.b16 %v6358
      %v6639 = vunpack.c.h.b16 %v6359
      %v6640 = vunpack.c.h.b16 %v6360
      %v6641 = vunpack.c.h.b16 %v6361
      %v6642 = vunpack.c.l.b16 %v6362
      %v6643 = vunpack.c.l.b16 %v6363
      %v6644 = vunpack.c.l.b16 %v6364
      %v6645 = vunpack.c.l.b16 %v6365
      %v6646 = vunpack.c.l.b16 %v6366
      %v6647 = vunpack.c.l.b16 %v6367
      %v6648 = vunpack.c.l.b16 %v6368
      %v6649 = vunpack.c.h.b16 %v6362
      %v6650 = vunpack.c.h.b16 %v6363
      %v6651 = vunpack.c.h.b16 %v6364
      %v6652 = vunpack.c.h.b16 %v6365
      %v6653 = vunpack.c.h.b16 %v6366
      %v6654 = vunpack.c.h.b16 %v6367
      %v6655 = vunpack.c.h.b16 %v6368
      %v6656 = vunpack.c.l.b16 %v6369
      %v6657 = vunpack.c.l.b16 %v6370
      %v6658 = vunpack.c.l.b16 %v6371
      %v6659 = vunpack.c.l.b16 %v6372
      %v6660 = vunpack.c.l.b16 %v6373
      %v6661 = vunpack.c.l.b16 %v6374
      %v6662 = vunpack.c.l.b16 %v6375
      %v6663 = vunpack.c.h.b16 %v6369
      %v6664 = vunpack.c.h.b16 %v6370
      %v6665 = vunpack.c.h.b16 %v6371
      %v6666 = vunpack.c.h.b16 %v6372
      %v6667 = vunpack.c.h.b16 %v6373
      %v6668 = vunpack.c.h.b16 %v6374
      %v6669 = vunpack.c.h.b16 %v6375
      %v6670 = vunpack.c.l.b16 %v6376
      %v6671 = vunpack.c.l.b16 %v6377
      %v6672 = vunpack.c.l.b16 %v6378
      %v6673 = vunpack.c.l.b16 %v6379
      %v6674 = vunpack.c.l.b16 %v6380
      %v6675 = vunpack.c.l.b16 %v6381
      %v6676 = vunpack.c.l.b16 %v6382
      %v6677 = vunpack.c.h.b16 %v6376
      %v6678 = vunpack.c.h.b16 %v6377
      %v6679 = vunpack.c.h.b16 %v6378
      %v6680 = vunpack.c.h.b16 %v6379
      %v6681 = vunpack.c.h.b16 %v6380
      %v6682 = vunpack.c.h.b16 %v6381
      %v6683 = vunpack.c.h.b16 %v6382
      %v6684 = vunpack.c.l.b16 %v6383
      %v6685 = vunpack.c.l.b16 %v6384
      %v6686 = vunpack.c.l.b16 %v6385
      %v6687 = vunpack.c.l.b16 %v6386
      %v6688 = vunpack.c.l.b16 %v6387
      %v6689 = vunpack.c.l.b16 %v6388
      %v6690 = vunpack.c.l.b16 %v6389
      %v6691 = vunpack.c.h.b16 %v6383
      %v6692 = vunpack.c.h.b16 %v6384
      %v6693 = vunpack.c.h.b16 %v6385
      %v6694 = vunpack.c.h.b16 %v6386
      %v6695 = vunpack.c.h.b16 %v6387
      %v6696 = vunpack.c.h.b16 %v6388
      %v6697 = vunpack.c.h.b16 %v6389
      %v6698 = vunpack.c.l.b16 %v6390
      %v6699 = vunpack.c.l.b16 %v6391
      %v6700 = vunpack.c.l.b16 %v6392
      %v6701 = vunpack.c.l.b16 %v6393
      %v6702 = vunpack.c.l.b16 %v6394
      %v6703 = vunpack.c.l.b16 %v6395
      %v6704 = vunpack.c.l.b16 %v6396
      %v6705 = vunpack.c.h.b16 %v6390
      %v6706 = vunpack.c.h.b16 %v6391
      %v6707 = vunpack.c.h.b16 %v6392
      %v6708 = vunpack.c.h.b16 %v6393
      %v6709 = vunpack.c.h.b16 %v6394
      %v6710 = vunpack.c.h.b16 %v6395
      %v6711 = vunpack.c.h.b16 %v6396
      %v6712 = vunpack.c.l.b16 %v6397
      %v6713 = vunpack.c.l.b16 %v6398
      %v6714 = vunpack.c.l.b16 %v6399
      %v6715 = vunpack.c.l.b16 %v6400
      %v6716 = vunpack.c.l.b16 %v6401
      %v6717 = vunpack.c.l.b16 %v6402
      %v6718 = vunpack.c.l.b16 %v6403
      %v6719 = vunpack.c.h.b16 %v6397
      %v6720 = vunpack.c.h.b16 %v6398
      %v6721 = vunpack.c.h.b16 %v6399
      %v6722 = vunpack.c.h.b16 %v6400
      %v6723 = vunpack.c.h.b16 %v6401
      %v6724 = vunpack.c.h.b16 %v6402
      %v6725 = vunpack.c.h.b16 %v6403
      %v6726 = vunpack.c.l.b16 %v6404
      %v6727 = vunpack.c.l.b16 %v6405
      %v6728 = vunpack.c.l.b16 %v6406
      %v6729 = vunpack.c.l.b16 %v6407
      %v6730 = vunpack.c.l.b16 %v6408
      %v6731 = vunpack.c.l.b16 %v6409
      %v6732 = vunpack.c.l.b16 %v6410
      %v6733 = vunpack.c.h.b16 %v6404
      %v6734 = vunpack.c.h.b16 %v6405
      %v6735 = vunpack.c.h.b16 %v6406
      %v6736 = vunpack.c.h.b16 %v6407
      %v6737 = vunpack.c.h.b16 %v6408
      %v6738 = vunpack.c.h.b16 %v6409
      %v6739 = vunpack.c.h.b16 %v6410
      %v6740 = vunpack.c.l.b16 %v6411
      %v6741 = vunpack.c.l.b16 %v6412
      %v6742 = vunpack.c.l.b16 %v6413
      %v6743 = vunpack.c.l.b16 %v6414
      %v6744 = vunpack.c.l.b16 %v6415
      %v6745 = vunpack.c.l.b16 %v6416
      %v6746 = vunpack.c.l.b16 %v6417
      %v6747 = vunpack.c.h.b16 %v6411
      %v6748 = vunpack.c.h.b16 %v6412
      %v6749 = vunpack.c.h.b16 %v6413
      %v6750 = vunpack.c.h.b16 %v6414
      %v6751 = vunpack.c.h.b16 %v6415
      %v6752 = vunpack.c.h.b16 %v6416
      %v6753 = vunpack.c.h.b16 %v6417
      %v6754 = vpack.c.b16 %v6531, %v6530
      %v6755 = vpack.c.b16 %v6533, %v6532
      %v6756 = vpack.c.b16 %v6535, %v6534
      %v6757 = vpack.c.b16 %v6536, %v6536
      %v6758 = vpack.c.b16 %v6538, %v6537
      %v6759 = vpack.c.b16 %v6540, %v6539
      %v6760 = vpack.c.b16 %v6542, %v6541
      %v6761 = vpack.c.b16 %v6543, %v6543
      %v6762 = vpack.c.b16 %v6545, %v6544
      %v6763 = vpack.c.b16 %v6547, %v6546
      %v6764 = vpack.c.b16 %v6549, %v6548
      %v6765 = vpack.c.b16 %v6550, %v6550
      %v6766 = vpack.c.b16 %v6552, %v6551
      %v6767 = vpack.c.b16 %v6554, %v6553
      %v6768 = vpack.c.b16 %v6556, %v6555
      %v6769 = vpack.c.b16 %v6557, %v6557
      %v6770 = vpack.c.b16 %v6559, %v6558
      %v6771 = vpack.c.b16 %v6561, %v6560
      %v6772 = vpack.c.b16 %v6563, %v6562
      %v6773 = vpack.c.b16 %v6564, %v6564
      %v6774 = vpack.c.b16 %v6566, %v6565
      %v6775 = vpack.c.b16 %v6568, %v6567
      %v6776 = vpack.c.b16 %v6570, %v6569
      %v6777 = vpack.c.b16 %v6571, %v6571
      %v6778 = vpack.c.b16 %v6573, %v6572
      %v6779 = vpack.c.b16 %v6575, %v6574
      %v6780 = vpack.c.b16 %v6577, %v6576
      %v6781 = vpack.c.b16 %v6578, %v6578
      %v6782 = vpack.c.b16 %v6580, %v6579
      %v6783 = vpack.c.b16 %v6582, %v6581
      %v6784 = vpack.c.b16 %v6584, %v6583
      %v6785 = vpack.c.b16 %v6585, %v6585
      %v6786 = vpack.c.b16 %v6587, %v6586
      %v6787 = vpack.c.b16 %v6589, %v6588
      %v6788 = vpack.c.b16 %v6591, %v6590
      %v6789 = vpack.c.b16 %v6592, %v6592
      %v6790 = vpack.c.b16 %v6594, %v6593
      %v6791 = vpack.c.b16 %v6596, %v6595
      %v6792 = vpack.c.b16 %v6598, %v6597
      %v6793 = vpack.c.b16 %v6599, %v6599
      %v6794 = vpack.c.b16 %v6601, %v6600
      %v6795 = vpack.c.b16 %v6603, %v6602
      %v6796 = vpack.c.b16 %v6605, %v6604
      %v6797 = vpack.c.b16 %v6606, %v6606
      %v6798 = vpack.c.b16 %v6608, %v6607
      %v6799 = vpack.c.b16 %v6610, %v6609
      %v6800 = vpack.c.b16 %v6612, %v6611
      %v6801 = vpack.c.b16 %v6613, %v6613
      %v6802 = vpack.c.b16 %v6615, %v6614
      %v6803 = vpack.c.b16 %v6617, %v6616
      %v6804 = vpack.c.b16 %v6619, %v6618
      %v6805 = vpack.c.b16 %v6620, %v6620
      %v6806 = vpack.c.b16 %v6622, %v6621
      %v6807 = vpack.c.b16 %v6624, %v6623
      %v6808 = vpack.c.b16 %v6626, %v6625
      %v6809 = vpack.c.b16 %v6627, %v6627
      %v6810 = vpack.c.b16 %v6629, %v6628
      %v6811 = vpack.c.b16 %v6631, %v6630
      %v6812 = vpack.c.b16 %v6633, %v6632
      %v6813 = vpack.c.b16 %v6634, %v6634
      %v6814 = vpack.c.b16 %v6636, %v6635
      %v6815 = vpack.c.b16 %v6638, %v6637
      %v6816 = vpack.c.b16 %v6640, %v6639
      %v6817 = vpack.c.b16 %v6641, %v6641
      %v6818 = vpack.c.b16 %v6643, %v6642
      %v6819 = vpack.c.b16 %v6645, %v6644
      %v6820 = vpack.c.b16 %v6647, %v6646
      %v6821 = vpack.c.b16 %v6648, %v6648
      %v6822 = vpack.c.b16 %v6650, %v6649
      %v6823 = vpack.c.b16 %v6652, %v6651
      %v6824 = vpack.c.b16 %v6654, %v6653
      %v6825 = vpack.c.b16 %v6655, %v6655
      %v6826 = vpack.c.b16 %v6657, %v6656
      %v6827 = vpack.c.b16 %v6659, %v6658
      %v6828 = vpack.c.b16 %v6661, %v6660
      %v6829 = vpack.c.b16 %v6662, %v6662
      %v6830 = vpack.c.b16 %v6664, %v6663
      %v6831 = vpack.c.b16 %v6666, %v6665
      %v6832 = vpack.c.b16 %v6668, %v6667
      %v6833 = vpack.c.b16 %v6669, %v6669
      %v6834 = vpack.c.b16 %v6671, %v6670
      %v6835 = vpack.c.b16 %v6673, %v6672
      %v6836 = vpack.c.b16 %v6675, %v6674
      %v6837 = vpack.c.b16 %v6676, %v6676
      %v6838 = vpack.c.b16 %v6678, %v6677
      %v6839 = vpack.c.b16 %v6680, %v6679
      %v6840 = vpack.c.b16 %v6682, %v6681
      %v6841 = vpack.c.b16 %v6683, %v6683
      %v6842 = vpack.c.b16 %v6685, %v6684
      %v6843 = vpack.c.b16 %v6687, %v6686
      %v6844 = vpack.c.b16 %v6689, %v6688
      %v6845 = vpack.c.b16 %v6690, %v6690
      %v6846 = vpack.c.b16 %v6692, %v6691
      %v6847 = vpack.c.b16 %v6694, %v6693
      %v6848 = vpack.c.b16 %v6696, %v6695
      %v6849 = vpack.c.b16 %v6697, %v6697
      %v6850 = vpack.c.b16 %v6699, %v6698
      %v6851 = vpack.c.b16 %v6701, %v6700
      %v6852 = vpack.c.b16 %v6703, %v6702
      %v6853 = vpack.c.b16 %v6704, %v6704
      %v6854 = vpack.c.b16 %v6706, %v6705
      %v6855 = vpack.c.b16 %v6708, %v6707
      %v6856 = vpack.c.b16 %v6710, %v6709
      %v6857 = vpack.c.b16 %v6711, %v6711
      %v6858 = vpack.c.b16 %v6713, %v6712
      %v6859 = vpack.c.b16 %v6715, %v6714
      %v6860 = vpack.c.b16 %v6717, %v6716
      %v6861 = vpack.c.b16 %v6718, %v6718
      %v6862 = vpack.c.b16 %v6720, %v6719
      %v6863 = vpack.c.b16 %v6722, %v6721
      %v6864 = vpack.c.b16 %v6724, %v6723
      %v6865 = vpack.c.b16 %v6725, %v6725
      %v6866 = vpack.c.b16 %v6727, %v6726
      %v6867 = vpack.c.b16 %v6729, %v6728
      %v6868 = vpack.c.b16 %v6731, %v6730
      %v6869 = vpack.c.b16 %v6732, %v6732
      %v6870 = vpack.c.b16 %v6734, %v6733
      %v6871 = vpack.c.b16 %v6736, %v6735
      %v6872 = vpack.c.b16 %v6738, %v6737
      %v6873 = vpack.c.b16 %v6739, %v6739
      %v6874 = vpack.c.b16 %v6741, %v6740
      %v6875 = vpack.c.b16 %v6743, %v6742
      %v6876 = vpack.c.b16 %v6745, %v6744
      %v6877 = vpack.c.b16 %v6746, %v6746
      %v6878 = vpack.c.b16 %v6748, %v6747
      %v6879 = vpack.c.b16 %v6750, %v6749
      %v6880 = vpack.c.b16 %v6752, %v6751
      %v6881 = vpack.c.b16 %v6753, %v6753
      %7010 = vst [vmem:[%s531] sm:$0xff] %v6754
      %7011 = vst [vmem:[%s531 + $0x8] sm:$0xff] %v6755
      %7012 = vst [vmem:[%s531 + $0x10] sm:$0xff] %v6756
      %7013 = vst [vmem:[%s531 + $0x18] sm:$0xf] %v6757
      %7014 = vst [vmem:[%s531 + $0x1c] sm:$0xff] %v6758
      %7015 = vst [vmem:[%s531 + $0x24] sm:$0xff] %v6759
      %7016 = vst [vmem:[%s531 + $0x2c] sm:$0xff] %v6760
      %7017 = vst [vmem:[%s531 + $0x34] sm:$0xf] %v6761
      %7018 = vst [vmem:[%s531 + $0x38] sm:$0xff] %v6762
      %7019 = vst [vmem:[%s531 + $0x40] sm:$0xff] %v6763
      %7020 = vst [vmem:[%s531 + $0x48] sm:$0xff] %v6764
      %7021 = vst [vmem:[%s531 + $0x50] sm:$0xf] %v6765
      %7022 = vst [vmem:[%s531 + $0x54] sm:$0xff] %v6766
      %7023 = vst [vmem:[%s531 + $0x5c] sm:$0xff] %v6767
      %7024 = vst [vmem:[%s531 + $0x64] sm:$0xff] %v6768
      %7025 = vst [vmem:[%s531 + $0x6c] sm:$0xf] %v6769
      %7026 = vst [vmem:[%s531 + $0x70] sm:$0xff] %v6770
      %7027 = vst [vmem:[%s531 + $0x78] sm:$0xff] %v6771
      %7028 = vst [vmem:[%s531 + $0x80] sm:$0xff] %v6772
      %7029 = vst [vmem:[%s531 + $0x88] sm:$0xf] %v6773
      %7030 = vst [vmem:[%s531 + $0x8c] sm:$0xff] %v6774
      %7031 = vst [vmem:[%s531 + $0x94] sm:$0xff] %v6775
      %7032 = vst [vmem:[%s531 + $0x9c] sm:$0xff] %v6776
      %7033 = vst [vmem:[%s531 + $0xa4] sm:$0xf] %v6777
      %7034 = vst [vmem:[%s531 + $0xa8] sm:$0xff] %v6778
      %7035 = vst [vmem:[%s531 + $0xb0] sm:$0xff] %v6779
      %7036 = vst [vmem:[%s531 + $0xb8] sm:$0xff] %v6780
      %7037 = vst [vmem:[%s531 + $0xc0] sm:$0xf] %v6781
      %7038 = vst [vmem:[%s531 + $0xc4] sm:$0xff] %v6782
      %7039 = vst [vmem:[%s531 + $0xcc] sm:$0xff] %v6783
      %7040 = vst [vmem:[%s531 + $0xd4] sm:$0xff] %v6784
      %7041 = vst [vmem:[%s531 + $0xdc] sm:$0xf] %v6785
      %7042 = vst [vmem:[%s531 + $0xe0] sm:$0xff] %v6786
      %7043 = vst [vmem:[%s531 + $0xe8] sm:$0xff] %v6787
      %7044 = vst [vmem:[%s531 + $0xf0] sm:$0xff] %v6788
      %7045 = vst [vmem:[%s531 + $0xf8] sm:$0xf] %v6789
      %7046 = vst [vmem:[%s531 + $0xfc] sm:$0xff] %v6790
      %7047 = vst [vmem:[%s531 + $0x104] sm:$0xff] %v6791
      %7048 = vst [vmem:[%s531 + $0x10c] sm:$0xff] %v6792
      %7049 = vst [vmem:[%s531 + $0x114] sm:$0xf] %v6793
      %7050 = vst [vmem:[%s531 + $0x118] sm:$0xff] %v6794
      %7051 = vst [vmem:[%s531 + $0x120] sm:$0xff] %v6795
      %7052 = vst [vmem:[%s531 + $0x128] sm:$0xff] %v6796
      %7053 = vst [vmem:[%s531 + $0x130] sm:$0xf] %v6797
      %7054 = vst [vmem:[%s531 + $0x134] sm:$0xff] %v6798
      %7055 = vst [vmem:[%s531 + $0x13c] sm:$0xff] %v6799
      %7056 = vst [vmem:[%s531 + $0x144] sm:$0xff] %v6800
      %7057 = vst [vmem:[%s531 + $0x14c] sm:$0xf] %v6801
      %7058 = vst [vmem:[%s531 + $0x150] sm:$0xff] %v6802
      %7059 = vst [vmem:[%s531 + $0x158] sm:$0xff] %v6803
      %7060 = vst [vmem:[%s531 + $0x160] sm:$0xff] %v6804
      %7061 = vst [vmem:[%s531 + $0x168] sm:$0xf] %v6805
      %7062 = vst [vmem:[%s531 + $0x16c] sm:$0xff] %v6806
      %7063 = vst [vmem:[%s531 + $0x174] sm:$0xff] %v6807
      %7064 = vst [vmem:[%s531 + $0x17c] sm:$0xff] %v6808
      %7065 = vst [vmem:[%s531 + $0x184] sm:$0xf] %v6809
      %7066 = vst [vmem:[%s531 + $0x188] sm:$0xff] %v6810
      %7067 = vst [vmem:[%s531 + $0x190] sm:$0xff] %v6811
      %7068 = vst [vmem:[%s531 + $0x198] sm:$0xff] %v6812
      %7069 = vst [vmem:[%s531 + $0x1a0] sm:$0xf] %v6813
      %7070 = vst [vmem:[%s531 + $0x1a4] sm:$0xff] %v6814
      %7071 = vst [vmem:[%s531 + $0x1ac] sm:$0xff] %v6815
      %7072 = vst [vmem:[%s531 + $0x1b4] sm:$0xff] %v6816
      %7073 = vst [vmem:[%s531 + $0x1bc] sm:$0xf] %v6817
      %7074 = vst [vmem:[%s531 + $0x1c0] sm:$0xff] %v6818
      %7075 = vst [vmem:[%s531 + $0x1c8] sm:$0xff] %v6819
      %7076 = vst [vmem:[%s531 + $0x1d0] sm:$0xff] %v6820
      %7077 = vst [vmem:[%s531 + $0x1d8] sm:$0xf] %v6821
      %7078 = vst [vmem:[%s531 + $0x1dc] sm:$0xff] %v6822
      %7079 = vst [vmem:[%s531 + $0x1e4] sm:$0xff] %v6823
      %7080 = vst [vmem:[%s531 + $0x1ec] sm:$0xff] %v6824
      %7081 = vst [vmem:[%s531 + $0x1f4] sm:$0xf] %v6825
      %7082 = vst [vmem:[%s531 + $0x1f8] sm:$0xff] %v6826
      %7083 = vst [vmem:[%s531 + $0x200] sm:$0xff] %v6827
      %7084 = vst [vmem:[%s531 + $0x208] sm:$0xff] %v6828
      %7085 = vst [vmem:[%s531 + $0x210] sm:$0xf] %v6829
      %7086 = vst [vmem:[%s531 + $0x214] sm:$0xff] %v6830
      %7087 = vst [vmem:[%s531 + $0x21c] sm:$0xff] %v6831
      %7088 = vst [vmem:[%s531 + $0x224] sm:$0xff] %v6832
      %7089 = vst [vmem:[%s531 + $0x22c] sm:$0xf] %v6833
      %7090 = vst [vmem:[%s531 + $0x230] sm:$0xff] %v6834
      %7091 = vst [vmem:[%s531 + $0x238] sm:$0xff] %v6835
      %7092 = vst [vmem:[%s531 + $0x240] sm:$0xff] %v6836
      %7093 = vst [vmem:[%s531 + $0x248] sm:$0xf] %v6837
      %7094 = vst [vmem:[%s531 + $0x24c] sm:$0xff] %v6838
      %7095 = vst [vmem:[%s531 + $0x254] sm:$0xff] %v6839
      %7096 = vst [vmem:[%s531 + $0x25c] sm:$0xff] %v6840
      %7097 = vst [vmem:[%s531 + $0x264] sm:$0xf] %v6841
      %7098 = vst [vmem:[%s531 + $0x268] sm:$0xff] %v6842
      %7099 = vst [vmem:[%s531 + $0x270] sm:$0xff] %v6843
      %7100 = vst [vmem:[%s531 + $0x278] sm:$0xff] %v6844
      %7101 = vst [vmem:[%s531 + $0x280] sm:$0xf] %v6845
      %7102 = vst [vmem:[%s531 + $0x284] sm:$0xff] %v6846
      %7103 = vst [vmem:[%s531 + $0x28c] sm:$0xff] %v6847
      %7104 = vst [vmem:[%s531 + $0x294] sm:$0xff] %v6848
      %7105 = vst [vmem:[%s531 + $0x29c] sm:$0xf] %v6849
      %7106 = vst [vmem:[%s531 + $0x2a0] sm:$0xff] %v6850
      %7107 = vst [vmem:[%s531 + $0x2a8] sm:$0xff] %v6851
      %7108 = vst [vmem:[%s531 + $0x2b0] sm:$0xff] %v6852
      %7109 = vst [vmem:[%s531 + $0x2b8] sm:$0xf] %v6853
      %7110 = vst [vmem:[%s531 + $0x2bc] sm:$0xff] %v6854
      %7111 = vst [vmem:[%s531 + $0x2c4] sm:$0xff] %v6855
      %7112 = vst [vmem:[%s531 + $0x2cc] sm:$0xff] %v6856
      %7113 = vst [vmem:[%s531 + $0x2d4] sm:$0xf] %v6857
      %7114 = vst [vmem:[%s531 + $0x2d8] sm:$0xff] %v6858
      %7115 = vst [vmem:[%s531 + $0x2e0] sm:$0xff] %v6859
      %7116 = vst [vmem:[%s531 + $0x2e8] sm:$0xff] %v6860
      %7117 = vst [vmem:[%s531 + $0x2f0] sm:$0xf] %v6861
      %7118 = vst [vmem:[%s531 + $0x2f4] sm:$0xff] %v6862
      %7119 = vst [vmem:[%s531 + $0x2fc] sm:$0xff] %v6863
      %7120 = vst [vmem:[%s531 + $0x304] sm:$0xff] %v6864
      %7121 = vst [vmem:[%s531 + $0x30c] sm:$0xf] %v6865
      %7122 = vst [vmem:[%s531 + $0x310] sm:$0xff] %v6866
      %7123 = vst [vmem:[%s531 + $0x318] sm:$0xff] %v6867
      %7124 = vst [vmem:[%s531 + $0x320] sm:$0xff] %v6868
      %7125 = vst [vmem:[%s531 + $0x328] sm:$0xf] %v6869
      %7126 = vst [vmem:[%s531 + $0x32c] sm:$0xff] %v6870
      %7127 = vst [vmem:[%s531 + $0x334] sm:$0xff] %v6871
      %7128 = vst [vmem:[%s531 + $0x33c] sm:$0xff] %v6872
      %7129 = vst [vmem:[%s531 + $0x344] sm:$0xf] %v6873
      %7130 = vst [vmem:[%s531 + $0x348] sm:$0xff] %v6874
      %7131 = vst [vmem:[%s531 + $0x350] sm:$0xff] %v6875
      %7132 = vst [vmem:[%s531 + $0x358] sm:$0xff] %v6876
      %7133 = vst [vmem:[%s531 + $0x360] sm:$0xf] %v6877
      %7134 = vst [vmem:[%s531 + $0x364] sm:$0xff] %v6878
      %7135 = vst [vmem:[%s531 + $0x36c] sm:$0xff] %v6879
      %7136 = vst [vmem:[%s531 + $0x374] sm:$0xff] %v6880
      %7137 = vst [vmem:[%s531 + $0x37c] sm:$0xf] %v6881
      %7138 = vst [vmem:[%s537] sm:$0xff] %v2794
      %7139 = vst [vmem:[%s537 + $0x8] sm:$0xff] %v2797
      %7140 = vst [vmem:[%s537 + $0x10] sm:$0xff] %v2802
      %7141 = vst [vmem:[%s537 + $0x18] sm:$0xff] %v2805
      %7142 = vst [vmem:[%s537 + $0x20] sm:$0xff] %v2810
      %7143 = vst [vmem:[%s537 + $0x28] sm:$0xff] %v2813
      %7144 = vst [vmem:[%s537 + $0x30] sm:$0xff] %v2818
      %7145 = vst [vmem:[%s537 + $0x38] sm:$0xff] %v2821
      %7146 = vst [vmem:[%s537 + $0x40] sm:$0xff] %v2826
      %7147 = vst [vmem:[%s537 + $0x48] sm:$0xff] %v2829
      %7148 = vst [vmem:[%s537 + $0x50] sm:$0xff] %v2834
      %7149 = vst [vmem:[%s537 + $0x58] sm:$0xff] %v2837
      %7150 = vst [vmem:[%s537 + $0x60] sm:$0xff] %v2842
      %7151 = vst [vmem:[%s537 + $0x68] sm:$0xff] %v2845
      %7152 = vst [vmem:[%s537 + $0x70] sm:$0xff] %v2850
      %7153 = vst [vmem:[%s537 + $0x78] sm:$0xff] %v2853
      %7154 = vst [vmem:[%s537 + $0x80] sm:$0xff] %v2858
      %7155 = vst [vmem:[%s537 + $0x88] sm:$0xff] %v2861
      %7156 = vst [vmem:[%s537 + $0x90] sm:$0xff] %v2866
      %7157 = vst [vmem:[%s537 + $0x98] sm:$0xff] %v2869
      %7158 = vst [vmem:[%s537 + $0xa0] sm:$0xff] %v2874
      %7159 = vst [vmem:[%s537 + $0xa8] sm:$0xff] %v2877
      %7160 = vst [vmem:[%s537 + $0xb0] sm:$0xff] %v2882
      %7161 = vst [vmem:[%s537 + $0xb8] sm:$0xff] %v2885
      %7162 = vst [vmem:[%s537 + $0xc0] sm:$0xff] %v2890
      %7163 = vst [vmem:[%s537 + $0xc8] sm:$0xff] %v2893
      %7164 = vst [vmem:[%s537 + $0xd0] sm:$0xff] %v2898
      %7165 = vst [vmem:[%s537 + $0xd8] sm:$0xff] %v2901
      %7166 = vst [vmem:[%s537 + $0xe0] sm:$0xff] %v2906
      %7167 = vst [vmem:[%s537 + $0xe8] sm:$0xff] %v2909
      %7168 = vst [vmem:[%s537 + $0xf0] sm:$0xff] %v2914
      %7169 = vst [vmem:[%s537 + $0xf8] sm:$0xff] %v2917
      %s7170 = smul.u32 32, %s27
      %p7171 = scmp.lt.s32.totalorder %s7170, 63
      %s7172 = scalar_select %p7171, %s7170, 63
      %s7173 = smul.addr %s7172, 7
      %s7174 = smul.addr %s7173, 4
      %s7175 = scalar_lea.vmem %s14, %s7174
      %s7176 = smul.u32 32, %s27
      %p7177 = scmp.lt.s32.totalorder %s7176, 63
      %s7178 = scalar_select %p7177, %s7176, 63
      %s7179 = smul.addr %s7178, 8
      %s7180 = scalar_lea.vmem %s15, %s7179
      // Predicated region
      $region77: #{vae_forward.1} parent=75 // pred_check
        %p7181 = pneg %p349
      $region78: #{vae_forward.1} parent=75 // pred_check_branch
        %7183 = sbr.rel (%p7181) target = $region80
      $region79: #{vae_forward.1} parent=75 // pred_region
        %s7184 = smul.u32 32, %s27
      $region80: #{vae_forward.1} parent=75 // pred_fallthru
        _
      // Predicated region
      $region81: #{vae_forward.1} parent=75 // pred_check
        %p7185 = pneg %p375
      $region82: #{vae_forward.1} parent=75 // pred_check_branch
        %7187 = sbr.rel (%p7185) target = $region84
      $region83: #{vae_forward.1} parent=75 // pred_region
        %s7188 = smul.u32 32, %s27
      $region84: #{vae_forward.1} parent=75 // pred_fallthru
        _
    $region76: #{vae_forward.1} parent=5 // pred_fallthru
      _
    %p7189 = scmp.le.s32.totalorder 2, %s22
    // Predicated region
    $region85: #{vae_forward.1} parent=5 // pred_check
      %p7190 = pneg %p7189
    $region86: #{vae_forward.1} parent=5 // pred_check_branch
      %7192 = sbr.rel (%p7190) target = $region88
    $region87: #{vae_forward.1} parent=5 // pred_region
      %s7193 = ssub.s32 %s22, 2
      // Predicated region
      $region89: #{vae_forward.1} parent=87 // pred_check
        %p7194 = pneg %p355
      $region90: #{vae_forward.1} parent=87 // pred_check_branch
        %7196 = sbr.rel (%p7194) target = $region92
      $region91: #{vae_forward.1} parent=87 // pred_region
        %s7197 = smul.u32 32, %s28
        %p7198 = scmp.lt.s32.totalorder %s7197, 63
        %s7199 = scalar_select %p7198, %s7197, 63
        %s7200 = smul.addr %s7199, 7
        %s7201 = smul.addr %s7200, 4
        %s7202 = scalar_lea.vmem %s14, %s7201
      $region92: #{vae_forward.1} parent=87 // pred_fallthru
        _
      // Predicated region
      $region93: #{vae_forward.1} parent=87 // pred_check
        %p7203 = pneg %p381
      $region94: #{vae_forward.1} parent=87 // pred_check_branch
        %7205 = sbr.rel (%p7203) target = $region96
      $region95: #{vae_forward.1} parent=87 // pred_region
        %s7206 = smul.u32 32, %s28
        %p7207 = scmp.lt.s32.totalorder %s7206, 63
        %s7208 = scalar_select %p7207, %s7206, 63
        %s7209 = smul.addr %s7208, 8
        %s7210 = scalar_lea.vmem %s15, %s7209
      $region96: #{vae_forward.1} parent=87 // pred_fallthru
        _
    $region88: #{vae_forward.1} parent=5 // pred_fallthru
      _
  $region6: #{vae_forward.1} parent=0 // loop_footer
    %s26 = sadd.s32 1, %s22
  $region7: #{vae_forward.1} parent=0 // loop_footer_branch
    %21 = sbr.rel target = $region3
  $region8: #{vae_forward.1} parent=0 // loop_exit
    _

</llo_original>
